<compile_context>
chip_gen: v5e
topology: v5e:2x2
jax: 0.10.0
libtpu: 0.0.40
codegen_flags: <defaults>
</compile_context>

<pallas_src>
import functools
import math

import jax
import jax.numpy as jnp
from jax.experimental import pallas as pl
from jax.experimental.pallas import tpu as pltpu


# ----------------------------------------------------------------------------
# Fused Pallas kernel
# ----------------------------------------------------------------------------
def _layer_norm(v, g, b, eps=1e-5):
    """LayerNorm over the last axis (PyTorch semantics, biased variance), f32."""
    mu = jnp.mean(v, axis=-1, keepdims=True)
    d = v - mu
    var = jnp.mean(d * d, axis=-1, keepdims=True)
    return d * jax.lax.rsqrt(var + eps) * g + b


def fused_transformer_kernel(
        x_ref, w_in_ref, pe_ref,
        head_mask_ref, attn_mask_ref, block_ones_ref,
        wqkv_ref, bqkv_ref, wo_ref, bo_ref,
        ln1g_ref, ln1b_ref, ln2g_ref, ln2b_ref,
        w1_ref, b1_ref, w2_ref, b2_ref,
        fc1w_ref, fc1b_ref, fc2w_ref, fc2b_ref,
        out_ref, *, batch, tokens):
    # Shapes (test config, R = batch*tokens = 32, D = 128, H = 8):
    #   x_ref        (R, S)          f32   token-major rows (row = token*B+batch)
    #   w_in_ref     (S, D)          bf16
    #   pe_ref       (R, D)          f32   (input bias + positional encoding)
    #   head_mask_ref  (H*R, D)      bf16  0/1: lane-block head selector
    #   attn_mask_ref  (R, H*R)      f32   0 / -1e9: block-diag batch mask
    #   block_ones_ref (H*R, H*R)    bf16  block-diagonal ones (denominator sum)
    #   wqkv_ref     (L, D, 3D) bf16, bqkv_ref (L, 1, 3D) f32 (scale folded in Q)
    #   wo_ref       (L, D, D)  bf16, bo_ref   (L, 1, D)  f32
    #   ln*_ref      (L, 1, D)  f32
    #   w1_ref (L, D, F) bf16, b1_ref (L, 1, F) f32; w2_ref (L, F, D), b2 (L,1,D)
    #   fc1w_ref     (N*D, D)   bf16, fc1b_ref (1, D)   f32
    #   fc2w_ref     (D, OUT)   bf16, fc2b_ref (1, OUT) f32
    #   out_ref      (B, OUT)   f32
    D = w_in_ref.shape[1]
    num_layers = wqkv_ref.shape[0]
    bf16 = jnp.bfloat16
    B, N = batch, tokens

    # ---- input projection + (bias + positional encoding) --------------------
    h = jnp.dot(x_ref[...].astype(bf16), w_in_ref[...],
                preferred_element_type=jnp.float32) + pe_ref[...]      # (R, D)

    head_mask = head_mask_ref[...]                                      # bf16
    attn_mask = attn_mask_ref[...]                                      # f32
    block_ones = block_ones_ref[...]                                    # bf16
    num_heads = head_mask.shape[0] // h.shape[0]

    # ---- encoder layers (statically unrolled, weights resident in VMEM) -----
    for l in range(num_layers):
        hb = h.astype(bf16)
        # fused QKV projection: one (R, D) @ (D, 3D) matmul
        qkv = jnp.dot(hb, wqkv_ref[l],
                      preferred_element_type=jnp.float32) + bqkv_ref[l]
        q = qkv[:, :D].astype(bf16)                                     # (R, D)
        k = qkv[:, D:2 * D].astype(bf16)
        v = qkv[:, 2 * D:].astype(bf16)

        # packed multi-head attention: sublane-tile K/V H times, lane-mask per
        # head -- every matmul and every softmax op is lane-dense.
        kbig = jnp.concatenate([k] * num_heads, axis=0) * head_mask     # (H*R, D)
        vbig = jnp.concatenate([v] * num_heads, axis=0) * head_mask     # (H*R, D)

        s = jax.lax.dot_general(q, kbig, (((1,), (1,)), ((), ())),
                                preferred_element_type=jnp.float32)     # (R, H*R)
        s = s + attn_mask                       # block-diagonal batch mask
        s = s - jnp.max(s, axis=-1, keepdims=True)   # row constant: still exact
        e = jnp.exp(s)
        denom = jnp.dot(e.astype(bf16), block_ones,
                        preferred_element_type=jnp.float32)   # per-head sums
        p = e * pl.reciprocal(denom, approx=True)
        ctx = jnp.dot(p.astype(bf16), vbig,
                      preferred_element_type=jnp.float32)               # (R, D)

        attn = jnp.dot(ctx.astype(bf16), wo_ref[l],
                       preferred_element_type=jnp.float32) + bo_ref[l]
        y = _layer_norm(h + attn, ln1g_ref[l], ln1b_ref[l])

        # feed-forward (ReLU), bf16 matmuls, f32 accumulation
        f = jnp.dot(y.astype(bf16), w1_ref[l],
                    preferred_element_type=jnp.float32) + b1_ref[l]
        f = jnp.maximum(f, 0.0)
        f = jnp.dot(f.astype(bf16), w2_ref[l],
                    preferred_element_type=jnp.float32) + b2_ref[l]
        h = _layer_norm(y + f, ln2g_ref[l], ln2b_ref[l])

    # ---- head: flatten(start_dim=1) -> fc1 -> fc2 ----------------------------
    # Token-major rows make each batch's token-n slab a contiguous (B, D) slice;
    # a lane concat of the N slabs is exactly PyTorch's flatten, then fc1 is a
    # single K = N*D matmul (no serial per-token accumulation chain).
    flat = jnp.concatenate([h[n * B:(n + 1) * B, :] for n in range(N)],
                           axis=-1).astype(bf16)                        # (B, N*D)
    acc = jnp.dot(flat, fc1w_ref[...],
                  preferred_element_type=jnp.float32) + fc1b_ref[...]   # (B, D)
    out = jnp.dot(acc.astype(bf16), fc2w_ref[...],
                  preferred_element_type=jnp.float32) + fc2b_ref[...]   # (B, OUT)
    out_ref[...] = out


# ----------------------------------------------------------------------------
# pallas_call wrapper
# ----------------------------------------------------------------------------
def transformer96_pallas(x, kp, *, output_size, seq_len):
    B, N, S = x.shape
    OUT = kp["fc2_w"].shape[1]

    # token-major rows: row index = token*B + batch
    x_tm = jnp.transpose(x, (1, 0, 2)).reshape(N * B, S)

    def rep(arr):  # full-array block, constant index map
        nd = arr.ndim
        return pl.BlockSpec(arr.shape, lambda i, _n=nd: (0,) * _n)

    args = [x_tm, kp["w_in"], kp["pe_bias"],
            kp["head_mask"], kp["attn_mask"], kp["block_ones"],
            kp["wqkv"], kp["bqkv"], kp["wo"], kp["bo"],
            kp["ln1g"], kp["ln1b"], kp["ln2g"], kp["ln2b"],
            kp["w1"], kp["b1"], kp["w2"], kp["b2"],
            kp["fc1_w"], kp["fc1_b"], kp["fc2_w"], kp["fc2_b"]]

    out = pl.pallas_call(
        functools.partial(fused_transformer_kernel, batch=B, tokens=N),
        out_shape=jax.ShapeDtypeStruct((B, OUT), jnp.float32),
        grid=(1,),
        in_specs=[rep(a) for a in args],
        out_specs=pl.BlockSpec((B, OUT), lambda i: (0, 0)),
        compiler_params=pltpu.CompilerParams(
            dimension_semantics=("arbitrary",)),
    )(*args)
    return out.reshape(B, output_size, seq_len)


# ----------------------------------------------------------------------------
# Parameter construction (deterministic synthetic init) + kernel-layout prep
# ----------------------------------------------------------------------------
def make_pe(n, d):
    position = jnp.arange(n, dtype=jnp.float32)[:, None]
    div_term = jnp.exp(jnp.arange(0, d, 2, dtype=jnp.float32)
                       * (-(math.log(10000.0) / d)))
    ang = position * div_term
    pe = jnp.zeros((n, d), jnp.float32)
    pe = pe.at[:, 0::2].set(jnp.sin(ang))
    pe = pe.at[:, 1::2].set(jnp.cos(ang))
    return pe


def init_linear(key, in_dim, out_dim, scale=0.05):
    k1, k2 = jax.random.split(key)
    w = jax.random.normal(k1, (in_dim, out_dim), jnp.float32) * scale  # (in, out)
    b = jax.random.normal(k2, (out_dim,), jnp.float32) * scale
    return w, b


def init_layer(key, d_model, dim_ff):
    ks = jax.random.split(key, 6)
    wqT, bq = init_linear(ks[0], d_model, d_model)
    wkT, bk = init_linear(ks[1], d_model, d_model)
    wvT, bv = init_linear(ks[2], d_model, d_model)
    woT, bo = init_linear(ks[3], d_model, d_model)
    w1T, b1 = init_linear(ks[4], d_model, dim_ff)
    w2T, b2 = init_linear(ks[5], dim_ff, d_model)
    return dict(
        wqT=wqT, bq=bq, wkT=wkT, bk=bk, wvT=wvT, bv=bv, woT=woT, bo=bo,
        w1T=w1T, b1=b1, w2T=w2T, b2=b2,
        ln1g=jnp.ones((d_model,), jnp.float32), ln1b=jnp.zeros((d_model,), jnp.float32),
        ln2g=jnp.ones((d_model,), jnp.float32), ln2b=jnp.zeros((d_model,), jnp.float32),
    )


def init_params(key, input_size, output_size, seq_len, d_model, dim_ff, num_layers):
    keys = jax.random.split(key, num_layers + 3)
    params = {}
    params["w_inT"], params["b_in"] = init_linear(keys[0], seq_len, d_model)
    params["layers"] = [init_layer(keys[1 + i], d_model, dim_ff)
                        for i in range(num_layers)]
    params["fc1_wT"], params["fc1_b"] = init_linear(keys[-2], input_size * d_model, d_model)
    params["fc2_wT"], params["fc2_b"] = init_linear(keys[-1], d_model, output_size * seq_len)
    params["pe"] = make_pe(input_size, d_model)
    return params


def prepare_kernel_params(params, num_heads, batch):
    """Fuse / stack / cast parameters + build the packed-attention constants."""
    D = params["w_inT"].shape[1]
    N = params["pe"].shape[0]
    B = batch
    R = B * N                                # token-major rows
    hd = D // num_heads
    scale = 1.0 / math.sqrt(hd)              # 0.25 here -> exact power of two
    layers = params["layers"]
    bf16 = jnp.bfloat16

    def stack(fn):
        return jnp.stack([fn(lp) for lp in layers])

    # fused QKV with 1/sqrt(head_dim) folded into the Q weights/bias
    wqkv = stack(lambda lp: jnp.concatenate(
        [lp["wqT"] * scale, lp["wkT"], lp["wvT"]], axis=1)).astype(bf16)   # (L,D,3D)
    bqkv = stack(lambda lp: jnp.concatenate(
        [lp["bq"] * scale, lp["bk"], lp["bv"]]).reshape(1, 3 * D))          # (L,1,3D)

    # input bias + positional encoding, replicated token-major
    pe_bias = jnp.repeat(params["pe"] + params["b_in"][None, :], B, axis=0)  # (R,D)

    # packed-attention constants
    rows = jnp.arange(R)
    cols = jnp.arange(num_heads * R)
    lanes = jnp.arange(D)
    head_mask = ((cols[:, None] // R) == (lanes[None, :] // hd)).astype(bf16)    # (H*R, D)
    attn_mask = jnp.where((rows[:, None] % B) == ((cols[None, :] % R) % B),
                          0.0, -1e9).astype(jnp.float32)                          # (R, H*R)
    block_ones = ((cols[:, None] // R) == (cols[None, :] // R)).astype(bf16)      # (H*R, H*R)

    return dict(
        w_in=params["w_inT"].astype(bf16),
        pe_bias=pe_bias,
        head_mask=head_mask, attn_mask=attn_mask, block_ones=block_ones,
        wqkv=wqkv, bqkv=bqkv,
        wo=stack(lambda lp: lp["woT"]).astype(bf16),
        bo=stack(lambda lp: lp["bo"].reshape(1, D)),
        ln1g=stack(lambda lp: lp["ln1g"].reshape(1, D)),
        ln1b=stack(lambda lp: lp["ln1b"].reshape(1, D)),
        ln2g=stack(lambda lp: lp["ln2g"].reshape(1, D)),
        ln2b=stack(lambda lp: lp["ln2b"].reshape(1, D)),
        w1=stack(lambda lp: lp["w1T"]).astype(bf16),
        b1=stack(lambda lp: lp["b1"].reshape(1, -1)),
        w2=stack(lambda lp: lp["w2T"]).astype(bf16),
        b2=stack(lambda lp: lp["b2"].reshape(1, D)),
        fc1_w=params["fc1_wT"].astype(bf16),
        fc1_b=params["fc1_b"].reshape(1, -1),
        fc2_w=params["fc2_wT"].astype(bf16),
        fc2_b=params["fc2_b"].reshape(1, -1),
    )


# ----------------------------------------------------------------------------
# Pure-JAX reference (mirrors the kernel's bf16-operand / f32-accumulate policy)
# ----------------------------------------------------------------------------
def _bf16(a):
    return a.astype(jnp.bfloat16)


def _bdot(a, b):
    return jnp.dot(_bf16(a), _bf16(b), preferred_element_type=jnp.float32)


def _ref_layer(x, p, num_heads):
    B, L, D = x.shape
    hd = D // num_heads
    q = _bdot(x, p["wqT"]) + p["bq"]
    k = _bdot(x, p["wkT"]) + p["bk"]
    v = _bdot(x, p["wvT"]) + p["bv"]

    def split(t):
        return t.reshape(B, L, num_heads, hd).transpose(0, 2, 1, 3)

    qh, kh, vh = split(q), split(k), split(v)
    s = jnp.einsum("bhqd,bhkd->bhqk", _bf16(qh), _bf16(kh),
                   preferred_element_type=jnp.float32) / math.sqrt(hd)
    a = jax.nn.softmax(s, axis=-1)
    ctx = jnp.einsum("bhqk,bhkd->bhqd", _bf16(a), _bf16(vh),
                     preferred_element_type=jnp.float32)
    ctx = ctx.transpose(0, 2, 1, 3).reshape(B, L, D)
    attn = _bdot(ctx, p["woT"]) + p["bo"]

    def ln(t, g, b):
        mu = t.mean(-1, keepdims=True)
        var = ((t - mu) ** 2).mean(-1, keepdims=True)
        return (t - mu) / jnp.sqrt(var + 1e-5) * g + b

    y = ln(x + attn, p["ln1g"], p["ln1b"])
    f = _bdot(jnp.maximum(_bdot(y, p["w1T"]) + p["b1"], 0.0), p["w2T"]) + p["b2"]
    return ln(y + f, p["ln2g"], p["ln2b"])


def transformer96_ref(x, params, num_heads, output_size, seq_len):
    h = _bdot(x, params["w_inT"]) + params["b_in"] + params["pe"]
    for lp in params["layers"]:
        h = _ref_layer(h, lp, num_heads)
    hf = h.reshape(h.shape[0], -1)
    y = _bdot(hf, params["fc1_wT"]) + params["fc1_b"]
    y = _bdot(y, params["fc2_wT"]) + params["fc2_b"]
    return y.reshape(-1, output_size, seq_len)


# ----------------------------------------------------------------------------
if __name__ == "__main__":
    # Small but structurally faithful configuration of Transformer_96.
    B = 2
    INPUT_SIZE = 16      # number of tokens (module default 96)
    OUTPUT_SIZE = 16
    SEQ_LEN = 8          # per-token feature dim fed to input_fc (module default 7)
    D_MODEL = 128
    N_HEADS = 8
    DIM_FF = 4 * D_MODEL
    N_LAYERS = 5

    key = jax.random.PRNGKey(0)
    kx, kparam = jax.random.split(key)
    x = jax.random.normal(kx, (B, INPUT_SIZE, SEQ_LEN), jnp.float32)
    params = init_params(kparam, INPUT_SIZE, OUTPUT_SIZE, SEQ_LEN, D_MODEL,
                         DIM_FF, N_LAYERS)
    kparams = prepare_kernel_params(params, N_HEADS, B)

    out = transformer96_pallas(x, kparams, output_size=OUTPUT_SIZE,
                               seq_len=SEQ_LEN)
    out = jax.block_until_ready(out)
    assert out.shape == (B, OUTPUT_SIZE, SEQ_LEN), out.shape

    ref = jax.block_until_ready(
        transformer96_ref(x, params, N_HEADS, OUTPUT_SIZE, SEQ_LEN))
    max_err = float(jnp.max(jnp.abs(out - ref)))
    assert jnp.allclose(out, ref, atol=2e-2, rtol=2e-2), max_err

    print("KERNEL_OK")
</pallas_src>

<mosaic_0001>
module attributes {stable_mosaic.version = 11 : i64} {
  func.func @fused_transformer_kernel(%arg0: i32, %arg1: memref<32x8xf32, #tpu.memory_space<vmem>>, %arg2: memref<8x128xbf16, #tpu.memory_space<vmem>>, %arg3: memref<32x128xf32, #tpu.memory_space<vmem>>, %arg4: memref<256x128xbf16, #tpu.memory_space<vmem>>, %arg5: memref<32x256xf32, #tpu.memory_space<vmem>>, %arg6: memref<256x256xbf16, #tpu.memory_space<vmem>>, %arg7: memref<5x128x384xbf16, #tpu.memory_space<vmem>>, %arg8: memref<5x1x384xf32, #tpu.memory_space<vmem>>, %arg9: memref<5x128x128xbf16, #tpu.memory_space<vmem>>, %arg10: memref<5x1x128xf32, #tpu.memory_space<vmem>>, %arg11: memref<5x1x128xf32, #tpu.memory_space<vmem>>, %arg12: memref<5x1x128xf32, #tpu.memory_space<vmem>>, %arg13: memref<5x1x128xf32, #tpu.memory_space<vmem>>, %arg14: memref<5x1x128xf32, #tpu.memory_space<vmem>>, %arg15: memref<5x128x512xbf16, #tpu.memory_space<vmem>>, %arg16: memref<5x1x512xf32, #tpu.memory_space<vmem>>, %arg17: memref<5x512x128xbf16, #tpu.memory_space<vmem>>, %arg18: memref<5x1x128xf32, #tpu.memory_space<vmem>>, %arg19: memref<2048x128xbf16, #tpu.memory_space<vmem>>, %arg20: memref<1x128xf32, #tpu.memory_space<vmem>>, %arg21: memref<128x128xbf16, #tpu.memory_space<vmem>>, %arg22: memref<1x128xf32, #tpu.memory_space<vmem>>, %arg23: memref<2x128xf32, #tpu.memory_space<vmem>>) attributes {dimension_semantics = [#tpu.dimension_semantics<arbitrary>], iteration_bounds = array<i64: 1>, scalar_prefetch = 0 : i64, scratch_operands = 0 : i64, tpu.core_type = #tpu.core_type<tc>, window_params = [{pipeline_mode = #tpu.pipeline_mode<synchronous>, transform_indices = @transform_0, window_bounds = array<i64: 32, 8>}, {pipeline_mode = #tpu.pipeline_mode<synchronous>, transform_indices = @transform_1, window_bounds = array<i64: 8, 128>}, {pipeline_mode = #tpu.pipeline_mode<synchronous>, transform_indices = @transform_2, window_bounds = array<i64: 32, 128>}, {pipeline_mode = #tpu.pipeline_mode<synchronous>, transform_indices = @transform_3, window_bounds = array<i64: 256, 128>}, {pipeline_mode = #tpu.pipeline_mode<synchronous>, transform_indices = @transform_4, window_bounds = array<i64: 32, 256>}, {pipeline_mode = #tpu.pipeline_mode<synchronous>, transform_indices = @transform_5, window_bounds = array<i64: 256, 256>}, {pipeline_mode = #tpu.pipeline_mode<synchronous>, transform_indices = @transform_6, window_bounds = array<i64: 5, 128, 384>}, {pipeline_mode = #tpu.pipeline_mode<synchronous>, transform_indices = @transform_7, window_bounds = array<i64: 5, 1, 384>}, {pipeline_mode = #tpu.pipeline_mode<synchronous>, transform_indices = @transform_8, window_bounds = array<i64: 5, 128, 128>}, {pipeline_mode = #tpu.pipeline_mode<synchronous>, transform_indices = @transform_9, window_bounds = array<i64: 5, 1, 128>}, {pipeline_mode = #tpu.pipeline_mode<synchronous>, transform_indices = @transform_10, window_bounds = array<i64: 5, 1, 128>}, {pipeline_mode = #tpu.pipeline_mode<synchronous>, transform_indices = @transform_11, window_bounds = array<i64: 5, 1, 128>}, {pipeline_mode = #tpu.pipeline_mode<synchronous>, transform_indices = @transform_12, window_bounds = array<i64: 5, 1, 128>}, {pipeline_mode = #tpu.pipeline_mode<synchronous>, transform_indices = @transform_13, window_bounds = array<i64: 5, 1, 128>}, {pipeline_mode = #tpu.pipeline_mode<synchronous>, transform_indices = @transform_14, window_bounds = array<i64: 5, 128, 512>}, {pipeline_mode = #tpu.pipeline_mode<synchronous>, transform_indices = @transform_15, window_bounds = array<i64: 5, 1, 512>}, {pipeline_mode = #tpu.pipeline_mode<synchronous>, transform_indices = @transform_16, window_bounds = array<i64: 5, 512, 128>}, {pipeline_mode = #tpu.pipeline_mode<synchronous>, transform_indices = @transform_17, window_bounds = array<i64: 5, 1, 128>}, {pipeline_mode = #tpu.pipeline_mode<synchronous>, transform_indices = @transform_18, window_bounds = array<i64: 2048, 128>}, {pipeline_mode = #tpu.pipeline_mode<synchronous>, transform_indices = @transform_19, window_bounds = array<i64: 1, 128>}, {pipeline_mode = #tpu.pipeline_mode<synchronous>, transform_indices = @transform_20, window_bounds = array<i64: 128, 128>}, {pipeline_mode = #tpu.pipeline_mode<synchronous>, transform_indices = @transform_21, window_bounds = array<i64: 1, 128>}, {pipeline_mode = #tpu.pipeline_mode<synchronous>, transform_indices = @transform_22, window_bounds = array<i64: 2, 128>}]} {
    %c0 = arith.constant 0 : index
    %c0_0 = arith.constant 0 : index
    %0 = vector.load %arg1[%c0, %c0_0] : memref<32x8xf32, #tpu.memory_space<vmem>>, vector<32x8xf32>
    %1 = arith.truncf %0 : vector<32x8xf32> to vector<32x8xbf16>
    %c0_1 = arith.constant 0 : index
    %c0_2 = arith.constant 0 : index
    %2 = vector.load %arg2[%c0_1, %c0_2] : memref<8x128xbf16, #tpu.memory_space<vmem>>, vector<8x128xbf16>
    %cst = arith.constant dense<0.000000e+00> : vector<32x128xf32>
    %3 = tpu.matmul %1, %2, %cst {dimension_numbers = #tpu.dot_dimension_numbers<[1], [0], [0], [1], [0, 0, 1, 1], [], []>} : vector<32x8xbf16>, vector<8x128xbf16>, vector<32x128xf32> -> vector<32x128xf32>
    %c0_3 = arith.constant 0 : index
    %c0_4 = arith.constant 0 : index
    %4 = vector.load %arg3[%c0_3, %c0_4] : memref<32x128xf32, #tpu.memory_space<vmem>>, vector<32x128xf32>
    %5 = arith.addf %3, %4 : vector<32x128xf32>
    %c0_5 = arith.constant 0 : index
    %c0_6 = arith.constant 0 : index
    %6 = vector.load %arg4[%c0_5, %c0_6] : memref<256x128xbf16, #tpu.memory_space<vmem>>, vector<256x128xbf16>
    %c0_7 = arith.constant 0 : index
    %c0_8 = arith.constant 0 : index
    %7 = vector.load %arg5[%c0_7, %c0_8] : memref<32x256xf32, #tpu.memory_space<vmem>>, vector<32x256xf32>
    %c0_9 = arith.constant 0 : index
    %c0_10 = arith.constant 0 : index
    %8 = vector.load %arg6[%c0_9, %c0_10] : memref<256x256xbf16, #tpu.memory_space<vmem>>, vector<256x256xbf16>
    %9 = arith.truncf %5 : vector<32x128xf32> to vector<32x128xbf16>
    %c0_11 = arith.constant 0 : index
    %c0_12 = arith.constant 0 : index
    %c0_13 = arith.constant 0 : index
    %10 = vector.load %arg7[%c0_11, %c0_12, %c0_13] : memref<5x128x384xbf16, #tpu.memory_space<vmem>>, vector<1x128x384xbf16>
    %11 = vector.shape_cast %10 : vector<1x128x384xbf16> to vector<128x384xbf16>
    %cst_14 = arith.constant dense<0.000000e+00> : vector<32x384xf32>
    %12 = tpu.matmul %9, %11, %cst_14 {dimension_numbers = #tpu.dot_dimension_numbers<[1], [0], [0], [1], [0, 0, 1, 1], [], []>} : vector<32x128xbf16>, vector<128x384xbf16>, vector<32x384xf32> -> vector<32x384xf32>
    %c0_15 = arith.constant 0 : index
    %c0_16 = arith.constant 0 : index
    %c0_17 = arith.constant 0 : index
    %13 = vector.load %arg8[%c0_15, %c0_16, %c0_17] : memref<5x1x384xf32, #tpu.memory_space<vmem>>, vector<1x1x384xf32>
    %14 = vector.shape_cast %13 : vector<1x1x384xf32> to vector<1x384xf32>
    %15 = vector.broadcast %14 : vector<1x384xf32> to vector<32x384xf32>
    %16 = arith.addf %12, %15 : vector<32x384xf32>
    %17 = vector.extract_strided_slice %16 {offsets = [0, 0], sizes = [32, 128], strides = [1, 1]} : vector<32x384xf32> to vector<32x128xf32>
    %18 = arith.truncf %17 : vector<32x128xf32> to vector<32x128xbf16>
    %19 = vector.extract_strided_slice %16 {offsets = [0, 128], sizes = [32, 128], strides = [1, 1]} : vector<32x384xf32> to vector<32x128xf32>
    %20 = arith.truncf %19 : vector<32x128xf32> to vector<32x128xbf16>
    %21 = vector.extract_strided_slice %16 {offsets = [0, 256], sizes = [32, 128], strides = [1, 1]} : vector<32x384xf32> to vector<32x128xf32>
    %22 = arith.truncf %21 : vector<32x128xf32> to vector<32x128xbf16>
    %23 = tpu.concatenate %20, %20, %20, %20, %20, %20, %20, %20 in 0 : vector<32x128xbf16>, vector<32x128xbf16>, vector<32x128xbf16>, vector<32x128xbf16>, vector<32x128xbf16>, vector<32x128xbf16>, vector<32x128xbf16>, vector<32x128xbf16> -> vector<256x128xbf16>
    %24 = arith.mulf %23, %6 : vector<256x128xbf16>
    %25 = tpu.concatenate %22, %22, %22, %22, %22, %22, %22, %22 in 0 : vector<32x128xbf16>, vector<32x128xbf16>, vector<32x128xbf16>, vector<32x128xbf16>, vector<32x128xbf16>, vector<32x128xbf16>, vector<32x128xbf16>, vector<32x128xbf16> -> vector<256x128xbf16>
    %26 = arith.mulf %25, %6 : vector<256x128xbf16>
    %cst_18 = arith.constant dense<0.000000e+00> : vector<32x256xf32>
    %27 = tpu.matmul %18, %24, %cst_18 {dimension_numbers = #tpu.dot_dimension_numbers<[1], [1], [0], [0], [0, 0, 1, 0], [], []>} : vector<32x128xbf16>, vector<256x128xbf16>, vector<32x256xf32> -> vector<32x256xf32>
    %28 = arith.addf %27, %7 : vector<32x256xf32>
    %cst_19 = arith.constant dense<0xFF800000> : vector<32xf32>
    %29 = vector.multi_reduction <maximumf>, %28, %cst_19 [1] : vector<32x256xf32> to vector<32xf32>
    %30 = vector.shape_cast %29 : vector<32xf32> to vector<32x1xf32>
    %31 = vector.broadcast %30 : vector<32x1xf32> to vector<32x256xf32>
    %32 = arith.subf %28, %31 : vector<32x256xf32>
    %33 = math.exp %32 : vector<32x256xf32>
    %34 = arith.truncf %33 : vector<32x256xf32> to vector<32x256xbf16>
    %cst_20 = arith.constant dense<0.000000e+00> : vector<32x256xf32>
    %35 = tpu.matmul %34, %8, %cst_20 {dimension_numbers = #tpu.dot_dimension_numbers<[1], [0], [0], [1], [0, 0, 1, 1], [], []>} : vector<32x256xbf16>, vector<256x256xbf16>, vector<32x256xf32> -> vector<32x256xf32>
    %36 = tpu.reciprocal %35 {approx = true} : vector<32x256xf32> -> vector<32x256xf32>
    %37 = arith.mulf %33, %36 : vector<32x256xf32>
    %38 = arith.truncf %37 : vector<32x256xf32> to vector<32x256xbf16>
    %cst_21 = arith.constant dense<0.000000e+00> : vector<32x128xf32>
    %39 = tpu.matmul %38, %26, %cst_21 {dimension_numbers = #tpu.dot_dimension_numbers<[1], [0], [0], [1], [0, 0, 1, 1], [], []>} : vector<32x256xbf16>, vector<256x128xbf16>, vector<32x128xf32> -> vector<32x128xf32>
    %40 = arith.truncf %39 : vector<32x128xf32> to vector<32x128xbf16>
    %c0_22 = arith.constant 0 : index
    %c0_23 = arith.constant 0 : index
    %c0_24 = arith.constant 0 : index
    %41 = vector.load %arg9[%c0_22, %c0_23, %c0_24] : memref<5x128x128xbf16, #tpu.memory_space<vmem>>, vector<1x128x128xbf16>
    %42 = vector.shape_cast %41 : vector<1x128x128xbf16> to vector<128x128xbf16>
    %cst_25 = arith.constant dense<0.000000e+00> : vector<32x128xf32>
    %43 = tpu.matmul %40, %42, %cst_25 {dimension_numbers = #tpu.dot_dimension_numbers<[1], [0], [0], [1], [0, 0, 1, 1], [], []>} : vector<32x128xbf16>, vector<128x128xbf16>, vector<32x128xf32> -> vector<32x128xf32>
    %c0_26 = arith.constant 0 : index
    %c0_27 = arith.constant 0 : index
    %c0_28 = arith.constant 0 : index
    %44 = vector.load %arg10[%c0_26, %c0_27, %c0_28] : memref<5x1x128xf32, #tpu.memory_space<vmem>>, vector<1x1x128xf32>
    %45 = vector.shape_cast %44 : vector<1x1x128xf32> to vector<1x128xf32>
    %46 = vector.broadcast %45 : vector<1x128xf32> to vector<32x128xf32>
    %47 = arith.addf %43, %46 : vector<32x128xf32>
    %48 = arith.addf %5, %47 : vector<32x128xf32>
    %c0_29 = arith.constant 0 : index
    %c0_30 = arith.constant 0 : index
    %c0_31 = arith.constant 0 : index
    %49 = vector.load %arg11[%c0_29, %c0_30, %c0_31] : memref<5x1x128xf32, #tpu.memory_space<vmem>>, vector<1x1x128xf32>
    %50 = vector.shape_cast %49 : vector<1x1x128xf32> to vector<1x128xf32>
    %c0_32 = arith.constant 0 : index
    %c0_33 = arith.constant 0 : index
    %c0_34 = arith.constant 0 : index
    %51 = vector.load %arg12[%c0_32, %c0_33, %c0_34] : memref<5x1x128xf32, #tpu.memory_space<vmem>>, vector<1x1x128xf32>
    %52 = vector.shape_cast %51 : vector<1x1x128xf32> to vector<1x128xf32>
    %cst_35 = arith.constant dense<0.000000e+00> : vector<32xf32>
    %53 = vector.multi_reduction <add>, %48, %cst_35 [1] : vector<32x128xf32> to vector<32xf32>
    %54 = vector.shape_cast %53 : vector<32xf32> to vector<32x1xf32>
    %cst_36 = arith.constant 1.280000e+02 : f32
    %55 = vector.broadcast %cst_36 : f32 to vector<32x1xf32>
    %56 = arith.divf %54, %55 : vector<32x1xf32>
    %57 = vector.broadcast %56 : vector<32x1xf32> to vector<32x128xf32>
    %58 = arith.subf %48, %57 : vector<32x128xf32>
    %59 = arith.mulf %58, %58 : vector<32x128xf32>
    %cst_37 = arith.constant dense<0.000000e+00> : vector<32xf32>
    %60 = vector.multi_reduction <add>, %59, %cst_37 [1] : vector<32x128xf32> to vector<32xf32>
    %61 = vector.shape_cast %60 : vector<32xf32> to vector<32x1xf32>
    %cst_38 = arith.constant 1.280000e+02 : f32
    %62 = vector.broadcast %cst_38 : f32 to vector<32x1xf32>
    %63 = arith.divf %61, %62 : vector<32x1xf32>
    %cst_39 = arith.constant 9.99999974E-6 : f32
    %64 = vector.broadcast %cst_39 : f32 to vector<32x1xf32>
    %65 = arith.addf %63, %64 : vector<32x1xf32>
    %66 = math.rsqrt %65 : vector<32x1xf32>
    %67 = vector.broadcast %66 : vector<32x1xf32> to vector<32x128xf32>
    %68 = arith.mulf %58, %67 : vector<32x128xf32>
    %69 = vector.broadcast %50 : vector<1x128xf32> to vector<32x128xf32>
    %70 = arith.mulf %68, %69 : vector<32x128xf32>
    %71 = vector.broadcast %52 : vector<1x128xf32> to vector<32x128xf32>
    %72 = arith.addf %70, %71 : vector<32x128xf32>
    %73 = arith.truncf %72 : vector<32x128xf32> to vector<32x128xbf16>
    %c0_40 = arith.constant 0 : index
    %c0_41 = arith.constant 0 : index
    %c0_42 = arith.constant 0 : index
    %74 = vector.load %arg15[%c0_40, %c0_41, %c0_42] : memref<5x128x512xbf16, #tpu.memory_space<vmem>>, vector<1x128x512xbf16>
    %75 = vector.shape_cast %74 : vector<1x128x512xbf16> to vector<128x512xbf16>
    %cst_43 = arith.constant dense<0.000000e+00> : vector<32x512xf32>
    %76 = tpu.matmul %73, %75, %cst_43 {dimension_numbers = #tpu.dot_dimension_numbers<[1], [0], [0], [1], [0, 0, 1, 1], [], []>} : vector<32x128xbf16>, vector<128x512xbf16>, vector<32x512xf32> -> vector<32x512xf32>
    %c0_44 = arith.constant 0 : index
    %c0_45 = arith.constant 0 : index
    %c0_46 = arith.constant 0 : index
    %77 = vector.load %arg16[%c0_44, %c0_45, %c0_46] : memref<5x1x512xf32, #tpu.memory_space<vmem>>, vector<1x1x512xf32>
    %78 = vector.shape_cast %77 : vector<1x1x512xf32> to vector<1x512xf32>
    %79 = vector.broadcast %78 : vector<1x512xf32> to vector<32x512xf32>
    %80 = arith.addf %76, %79 : vector<32x512xf32>
    %cst_47 = arith.constant 0.000000e+00 : f32
    %81 = vector.broadcast %cst_47 : f32 to vector<32x512xf32>
    %82 = arith.maximumf %80, %81 : vector<32x512xf32>
    %83 = arith.truncf %82 : vector<32x512xf32> to vector<32x512xbf16>
    %c0_48 = arith.constant 0 : index
    %c0_49 = arith.constant 0 : index
    %c0_50 = arith.constant 0 : index
    %84 = vector.load %arg17[%c0_48, %c0_49, %c0_50] : memref<5x512x128xbf16, #tpu.memory_space<vmem>>, vector<1x512x128xbf16>
    %85 = vector.shape_cast %84 : vector<1x512x128xbf16> to vector<512x128xbf16>
    %cst_51 = arith.constant dense<0.000000e+00> : vector<32x128xf32>
    %86 = tpu.matmul %83, %85, %cst_51 {dimension_numbers = #tpu.dot_dimension_numbers<[1], [0], [0], [1], [0, 0, 1, 1], [], []>} : vector<32x512xbf16>, vector<512x128xbf16>, vector<32x128xf32> -> vector<32x128xf32>
    %c0_52 = arith.constant 0 : index
    %c0_53 = arith.constant 0 : index
    %c0_54 = arith.constant 0 : index
    %87 = vector.load %arg18[%c0_52, %c0_53, %c0_54] : memref<5x1x128xf32, #tpu.memory_space<vmem>>, vector<1x1x128xf32>
    %88 = vector.shape_cast %87 : vector<1x1x128xf32> to vector<1x128xf32>
    %89 = vector.broadcast %88 : vector<1x128xf32> to vector<32x128xf32>
    %90 = arith.addf %86, %89 : vector<32x128xf32>
    %91 = arith.addf %72, %90 : vector<32x128xf32>
    %c0_55 = arith.constant 0 : index
    %c0_56 = arith.constant 0 : index
    %c0_57 = arith.constant 0 : index
    %92 = vector.load %arg13[%c0_55, %c0_56, %c0_57] : memref<5x1x128xf32, #tpu.memory_space<vmem>>, vector<1x1x128xf32>
    %93 = vector.shape_cast %92 : vector<1x1x128xf32> to vector<1x128xf32>
    %c0_58 = arith.constant 0 : index
    %c0_59 = arith.constant 0 : index
    %c0_60 = arith.constant 0 : index
    %94 = vector.load %arg14[%c0_58, %c0_59, %c0_60] : memref<5x1x128xf32, #tpu.memory_space<vmem>>, vector<1x1x128xf32>
    %95 = vector.shape_cast %94 : vector<1x1x128xf32> to vector<1x128xf32>
    %cst_61 = arith.constant dense<0.000000e+00> : vector<32xf32>
    %96 = vector.multi_reduction <add>, %91, %cst_61 [1] : vector<32x128xf32> to vector<32xf32>
    %97 = vector.shape_cast %96 : vector<32xf32> to vector<32x1xf32>
    %cst_62 = arith.constant 1.280000e+02 : f32
    %98 = vector.broadcast %cst_62 : f32 to vector<32x1xf32>
    %99 = arith.divf %97, %98 : vector<32x1xf32>
    %100 = vector.broadcast %99 : vector<32x1xf32> to vector<32x128xf32>
    %101 = arith.subf %91, %100 : vector<32x128xf32>
    %102 = arith.mulf %101, %101 : vector<32x128xf32>
    %cst_63 = arith.constant dense<0.000000e+00> : vector<32xf32>
    %103 = vector.multi_reduction <add>, %102, %cst_63 [1] : vector<32x128xf32> to vector<32xf32>
    %104 = vector.shape_cast %103 : vector<32xf32> to vector<32x1xf32>
    %cst_64 = arith.constant 1.280000e+02 : f32
    %105 = vector.broadcast %cst_64 : f32 to vector<32x1xf32>
    %106 = arith.divf %104, %105 : vector<32x1xf32>
    %cst_65 = arith.constant 9.99999974E-6 : f32
    %107 = vector.broadcast %cst_65 : f32 to vector<32x1xf32>
    %108 = arith.addf %106, %107 : vector<32x1xf32>
    %109 = math.rsqrt %108 : vector<32x1xf32>
    %110 = vector.broadcast %109 : vector<32x1xf32> to vector<32x128xf32>
    %111 = arith.mulf %101, %110 : vector<32x128xf32>
    %112 = vector.broadcast %93 : vector<1x128xf32> to vector<32x128xf32>
    %113 = arith.mulf %111, %112 : vector<32x128xf32>
    %114 = vector.broadcast %95 : vector<1x128xf32> to vector<32x128xf32>
    %115 = arith.addf %113, %114 : vector<32x128xf32>
    %116 = arith.truncf %115 : vector<32x128xf32> to vector<32x128xbf16>
    %c1 = arith.constant 1 : index
    %c0_66 = arith.constant 0 : index
    %c0_67 = arith.constant 0 : index
    %117 = vector.load %arg7[%c1, %c0_66, %c0_67] : memref<5x128x384xbf16, #tpu.memory_space<vmem>>, vector<1x128x384xbf16>
    %118 = vector.shape_cast %117 : vector<1x128x384xbf16> to vector<128x384xbf16>
    %cst_68 = arith.constant dense<0.000000e+00> : vector<32x384xf32>
    %119 = tpu.matmul %116, %118, %cst_68 {dimension_numbers = #tpu.dot_dimension_numbers<[1], [0], [0], [1], [0, 0, 1, 1], [], []>} : vector<32x128xbf16>, vector<128x384xbf16>, vector<32x384xf32> -> vector<32x384xf32>
    %c1_69 = arith.constant 1 : index
    %c0_70 = arith.constant 0 : index
    %c0_71 = arith.constant 0 : index
    %120 = vector.load %arg8[%c1_69, %c0_70, %c0_71] : memref<5x1x384xf32, #tpu.memory_space<vmem>>, vector<1x1x384xf32>
    %121 = vector.shape_cast %120 : vector<1x1x384xf32> to vector<1x384xf32>
    %122 = vector.broadcast %121 : vector<1x384xf32> to vector<32x384xf32>
    %123 = arith.addf %119, %122 : vector<32x384xf32>
    %124 = vector.extract_strided_slice %123 {offsets = [0, 0], sizes = [32, 128], strides = [1, 1]} : vector<32x384xf32> to vector<32x128xf32>
    %125 = arith.truncf %124 : vector<32x128xf32> to vector<32x128xbf16>
    %126 = vector.extract_strided_slice %123 {offsets = [0, 128], sizes = [32, 128], strides = [1, 1]} : vector<32x384xf32> to vector<32x128xf32>
    %127 = arith.truncf %126 : vector<32x128xf32> to vector<32x128xbf16>
    %128 = vector.extract_strided_slice %123 {offsets = [0, 256], sizes = [32, 128], strides = [1, 1]} : vector<32x384xf32> to vector<32x128xf32>
    %129 = arith.truncf %128 : vector<32x128xf32> to vector<32x128xbf16>
    %130 = tpu.concatenate %127, %127, %127, %127, %127, %127, %127, %127 in 0 : vector<32x128xbf16>, vector<32x128xbf16>, vector<32x128xbf16>, vector<32x128xbf16>, vector<32x128xbf16>, vector<32x128xbf16>, vector<32x128xbf16>, vector<32x128xbf16> -> vector<256x128xbf16>
    %131 = arith.mulf %130, %6 : vector<256x128xbf16>
    %132 = tpu.concatenate %129, %129, %129, %129, %129, %129, %129, %129 in 0 : vector<32x128xbf16>, vector<32x128xbf16>, vector<32x128xbf16>, vector<32x128xbf16>, vector<32x128xbf16>, vector<32x128xbf16>, vector<32x128xbf16>, vector<32x128xbf16> -> vector<256x128xbf16>
    %133 = arith.mulf %132, %6 : vector<256x128xbf16>
    %cst_72 = arith.constant dense<0.000000e+00> : vector<32x256xf32>
    %134 = tpu.matmul %125, %131, %cst_72 {dimension_numbers = #tpu.dot_dimension_numbers<[1], [1], [0], [0], [0, 0, 1, 0], [], []>} : vector<32x128xbf16>, vector<256x128xbf16>, vector<32x256xf32> -> vector<32x256xf32>
    %135 = arith.addf %134, %7 : vector<32x256xf32>
    %cst_73 = arith.constant dense<0xFF800000> : vector<32xf32>
    %136 = vector.multi_reduction <maximumf>, %135, %cst_73 [1] : vector<32x256xf32> to vector<32xf32>
    %137 = vector.shape_cast %136 : vector<32xf32> to vector<32x1xf32>
    %138 = vector.broadcast %137 : vector<32x1xf32> to vector<32x256xf32>
    %139 = arith.subf %135, %138 : vector<32x256xf32>
    %140 = math.exp %139 : vector<32x256xf32>
    %141 = arith.truncf %140 : vector<32x256xf32> to vector<32x256xbf16>
    %cst_74 = arith.constant dense<0.000000e+00> : vector<32x256xf32>
    %142 = tpu.matmul %141, %8, %cst_74 {dimension_numbers = #tpu.dot_dimension_numbers<[1], [0], [0], [1], [0, 0, 1, 1], [], []>} : vector<32x256xbf16>, vector<256x256xbf16>, vector<32x256xf32> -> vector<32x256xf32>
    %143 = tpu.reciprocal %142 {approx = true} : vector<32x256xf32> -> vector<32x256xf32>
    %144 = arith.mulf %140, %143 : vector<32x256xf32>
    %145 = arith.truncf %144 : vector<32x256xf32> to vector<32x256xbf16>
    %cst_75 = arith.constant dense<0.000000e+00> : vector<32x128xf32>
    %146 = tpu.matmul %145, %133, %cst_75 {dimension_numbers = #tpu.dot_dimension_numbers<[1], [0], [0], [1], [0, 0, 1, 1], [], []>} : vector<32x256xbf16>, vector<256x128xbf16>, vector<32x128xf32> -> vector<32x128xf32>
    %147 = arith.truncf %146 : vector<32x128xf32> to vector<32x128xbf16>
    %c1_76 = arith.constant 1 : index
    %c0_77 = arith.constant 0 : index
    %c0_78 = arith.constant 0 : index
    %148 = vector.load %arg9[%c1_76, %c0_77, %c0_78] : memref<5x128x128xbf16, #tpu.memory_space<vmem>>, vector<1x128x128xbf16>
    %149 = vector.shape_cast %148 : vector<1x128x128xbf16> to vector<128x128xbf16>
    %cst_79 = arith.constant dense<0.000000e+00> : vector<32x128xf32>
    %150 = tpu.matmul %147, %149, %cst_79 {dimension_numbers = #tpu.dot_dimension_numbers<[1], [0], [0], [1], [0, 0, 1, 1], [], []>} : vector<32x128xbf16>, vector<128x128xbf16>, vector<32x128xf32> -> vector<32x128xf32>
    %c1_80 = arith.constant 1 : index
    %c0_81 = arith.constant 0 : index
    %c0_82 = arith.constant 0 : index
    %151 = vector.load %arg10[%c1_80, %c0_81, %c0_82] : memref<5x1x128xf32, #tpu.memory_space<vmem>>, vector<1x1x128xf32>
    %152 = vector.shape_cast %151 : vector<1x1x128xf32> to vector<1x128xf32>
    %153 = vector.broadcast %152 : vector<1x128xf32> to vector<32x128xf32>
    %154 = arith.addf %150, %153 : vector<32x128xf32>
    %155 = arith.addf %115, %154 : vector<32x128xf32>
    %c1_83 = arith.constant 1 : index
    %c0_84 = arith.constant 0 : index
    %c0_85 = arith.constant 0 : index
    %156 = vector.load %arg11[%c1_83, %c0_84, %c0_85] : memref<5x1x128xf32, #tpu.memory_space<vmem>>, vector<1x1x128xf32>
    %157 = vector.shape_cast %156 : vector<1x1x128xf32> to vector<1x128xf32>
    %c1_86 = arith.constant 1 : index
    %c0_87 = arith.constant 0 : index
    %c0_88 = arith.constant 0 : index
    %158 = vector.load %arg12[%c1_86, %c0_87, %c0_88] : memref<5x1x128xf32, #tpu.memory_space<vmem>>, vector<1x1x128xf32>
    %159 = vector.shape_cast %158 : vector<1x1x128xf32> to vector<1x128xf32>
    %cst_89 = arith.constant dense<0.000000e+00> : vector<32xf32>
    %160 = vector.multi_reduction <add>, %155, %cst_89 [1] : vector<32x128xf32> to vector<32xf32>
    %161 = vector.shape_cast %160 : vector<32xf32> to vector<32x1xf32>
    %cst_90 = arith.constant 1.280000e+02 : f32
    %162 = vector.broadcast %cst_90 : f32 to vector<32x1xf32>
    %163 = arith.divf %161, %162 : vector<32x1xf32>
    %164 = vector.broadcast %163 : vector<32x1xf32> to vector<32x128xf32>
    %165 = arith.subf %155, %164 : vector<32x128xf32>
    %166 = arith.mulf %165, %165 : vector<32x128xf32>
    %cst_91 = arith.constant dense<0.000000e+00> : vector<32xf32>
    %167 = vector.multi_reduction <add>, %166, %cst_91 [1] : vector<32x128xf32> to vector<32xf32>
    %168 = vector.shape_cast %167 : vector<32xf32> to vector<32x1xf32>
    %cst_92 = arith.constant 1.280000e+02 : f32
    %169 = vector.broadcast %cst_92 : f32 to vector<32x1xf32>
    %170 = arith.divf %168, %169 : vector<32x1xf32>
    %cst_93 = arith.constant 9.99999974E-6 : f32
    %171 = vector.broadcast %cst_93 : f32 to vector<32x1xf32>
    %172 = arith.addf %170, %171 : vector<32x1xf32>
    %173 = math.rsqrt %172 : vector<32x1xf32>
    %174 = vector.broadcast %173 : vector<32x1xf32> to vector<32x128xf32>
    %175 = arith.mulf %165, %174 : vector<32x128xf32>
    %176 = vector.broadcast %157 : vector<1x128xf32> to vector<32x128xf32>
    %177 = arith.mulf %175, %176 : vector<32x128xf32>
    %178 = vector.broadcast %159 : vector<1x128xf32> to vector<32x128xf32>
    %179 = arith.addf %177, %178 : vector<32x128xf32>
    %180 = arith.truncf %179 : vector<32x128xf32> to vector<32x128xbf16>
    %c1_94 = arith.constant 1 : index
    %c0_95 = arith.constant 0 : index
    %c0_96 = arith.constant 0 : index
    %181 = vector.load %arg15[%c1_94, %c0_95, %c0_96] : memref<5x128x512xbf16, #tpu.memory_space<vmem>>, vector<1x128x512xbf16>
    %182 = vector.shape_cast %181 : vector<1x128x512xbf16> to vector<128x512xbf16>
    %cst_97 = arith.constant dense<0.000000e+00> : vector<32x512xf32>
    %183 = tpu.matmul %180, %182, %cst_97 {dimension_numbers = #tpu.dot_dimension_numbers<[1], [0], [0], [1], [0, 0, 1, 1], [], []>} : vector<32x128xbf16>, vector<128x512xbf16>, vector<32x512xf32> -> vector<32x512xf32>
    %c1_98 = arith.constant 1 : index
    %c0_99 = arith.constant 0 : index
    %c0_100 = arith.constant 0 : index
    %184 = vector.load %arg16[%c1_98, %c0_99, %c0_100] : memref<5x1x512xf32, #tpu.memory_space<vmem>>, vector<1x1x512xf32>
    %185 = vector.shape_cast %184 : vector<1x1x512xf32> to vector<1x512xf32>
    %186 = vector.broadcast %185 : vector<1x512xf32> to vector<32x512xf32>
    %187 = arith.addf %183, %186 : vector<32x512xf32>
    %cst_101 = arith.constant 0.000000e+00 : f32
    %188 = vector.broadcast %cst_101 : f32 to vector<32x512xf32>
    %189 = arith.maximumf %187, %188 : vector<32x512xf32>
    %190 = arith.truncf %189 : vector<32x512xf32> to vector<32x512xbf16>
    %c1_102 = arith.constant 1 : index
    %c0_103 = arith.constant 0 : index
    %c0_104 = arith.constant 0 : index
    %191 = vector.load %arg17[%c1_102, %c0_103, %c0_104] : memref<5x512x128xbf16, #tpu.memory_space<vmem>>, vector<1x512x128xbf16>
    %192 = vector.shape_cast %191 : vector<1x512x128xbf16> to vector<512x128xbf16>
    %cst_105 = arith.constant dense<0.000000e+00> : vector<32x128xf32>
    %193 = tpu.matmul %190, %192, %cst_105 {dimension_numbers = #tpu.dot_dimension_numbers<[1], [0], [0], [1], [0, 0, 1, 1], [], []>} : vector<32x512xbf16>, vector<512x128xbf16>, vector<32x128xf32> -> vector<32x128xf32>
    %c1_106 = arith.constant 1 : index
    %c0_107 = arith.constant 0 : index
    %c0_108 = arith.constant 0 : index
    %194 = vector.load %arg18[%c1_106, %c0_107, %c0_108] : memref<5x1x128xf32, #tpu.memory_space<vmem>>, vector<1x1x128xf32>
    %195 = vector.shape_cast %194 : vector<1x1x128xf32> to vector<1x128xf32>
    %196 = vector.broadcast %195 : vector<1x128xf32> to vector<32x128xf32>
    %197 = arith.addf %193, %196 : vector<32x128xf32>
    %198 = arith.addf %179, %197 : vector<32x128xf32>
    %c1_109 = arith.constant 1 : index
    %c0_110 = arith.constant 0 : index
    %c0_111 = arith.constant 0 : index
    %199 = vector.load %arg13[%c1_109, %c0_110, %c0_111] : memref<5x1x128xf32, #tpu.memory_space<vmem>>, vector<1x1x128xf32>
    %200 = vector.shape_cast %199 : vector<1x1x128xf32> to vector<1x128xf32>
    %c1_112 = arith.constant 1 : index
    %c0_113 = arith.constant 0 : index
    %c0_114 = arith.constant 0 : index
    %201 = vector.load %arg14[%c1_112, %c0_113, %c0_114] : memref<5x1x128xf32, #tpu.memory_space<vmem>>, vector<1x1x128xf32>
    %202 = vector.shape_cast %201 : vector<1x1x128xf32> to vector<1x128xf32>
    %cst_115 = arith.constant dense<0.000000e+00> : vector<32xf32>
    %203 = vector.multi_reduction <add>, %198, %cst_115 [1] : vector<32x128xf32> to vector<32xf32>
    %204 = vector.shape_cast %203 : vector<32xf32> to vector<32x1xf32>
    %cst_116 = arith.constant 1.280000e+02 : f32
    %205 = vector.broadcast %cst_116 : f32 to vector<32x1xf32>
    %206 = arith.divf %204, %205 : vector<32x1xf32>
    %207 = vector.broadcast %206 : vector<32x1xf32> to vector<32x128xf32>
    %208 = arith.subf %198, %207 : vector<32x128xf32>
    %209 = arith.mulf %208, %208 : vector<32x128xf32>
    %cst_117 = arith.constant dense<0.000000e+00> : vector<32xf32>
    %210 = vector.multi_reduction <add>, %209, %cst_117 [1] : vector<32x128xf32> to vector<32xf32>
    %211 = vector.shape_cast %210 : vector<32xf32> to vector<32x1xf32>
    %cst_118 = arith.constant 1.280000e+02 : f32
    %212 = vector.broadcast %cst_118 : f32 to vector<32x1xf32>
    %213 = arith.divf %211, %212 : vector<32x1xf32>
    %cst_119 = arith.constant 9.99999974E-6 : f32
    %214 = vector.broadcast %cst_119 : f32 to vector<32x1xf32>
    %215 = arith.addf %213, %214 : vector<32x1xf32>
    %216 = math.rsqrt %215 : vector<32x1xf32>
    %217 = vector.broadcast %216 : vector<32x1xf32> to vector<32x128xf32>
    %218 = arith.mulf %208, %217 : vector<32x128xf32>
    %219 = vector.broadcast %200 : vector<1x128xf32> to vector<32x128xf32>
    %220 = arith.mulf %218, %219 : vector<32x128xf32>
    %221 = vector.broadcast %202 : vector<1x128xf32> to vector<32x128xf32>
    %222 = arith.addf %220, %221 : vector<32x128xf32>
    %223 = arith.truncf %222 : vector<32x128xf32> to vector<32x128xbf16>
    %c2 = arith.constant 2 : index
    %c0_120 = arith.constant 0 : index
    %c0_121 = arith.constant 0 : index
    %224 = vector.load %arg7[%c2, %c0_120, %c0_121] : memref<5x128x384xbf16, #tpu.memory_space<vmem>>, vector<1x128x384xbf16>
    %225 = vector.shape_cast %224 : vector<1x128x384xbf16> to vector<128x384xbf16>
    %cst_122 = arith.constant dense<0.000000e+00> : vector<32x384xf32>
    %226 = tpu.matmul %223, %225, %cst_122 {dimension_numbers = #tpu.dot_dimension_numbers<[1], [0], [0], [1], [0, 0, 1, 1], [], []>} : vector<32x128xbf16>, vector<128x384xbf16>, vector<32x384xf32> -> vector<32x384xf32>
    %c2_123 = arith.constant 2 : index
    %c0_124 = arith.constant 0 : index
    %c0_125 = arith.constant 0 : index
    %227 = vector.load %arg8[%c2_123, %c0_124, %c0_125] : memref<5x1x384xf32, #tpu.memory_space<vmem>>, vector<1x1x384xf32>
    %228 = vector.shape_cast %227 : vector<1x1x384xf32> to vector<1x384xf32>
    %229 = vector.broadcast %228 : vector<1x384xf32> to vector<32x384xf32>
    %230 = arith.addf %226, %229 : vector<32x384xf32>
    %231 = vector.extract_strided_slice %230 {offsets = [0, 0], sizes = [32, 128], strides = [1, 1]} : vector<32x384xf32> to vector<32x128xf32>
    %232 = arith.truncf %231 : vector<32x128xf32> to vector<32x128xbf16>
    %233 = vector.extract_strided_slice %230 {offsets = [0, 128], sizes = [32, 128], strides = [1, 1]} : vector<32x384xf32> to vector<32x128xf32>
    %234 = arith.truncf %233 : vector<32x128xf32> to vector<32x128xbf16>
    %235 = vector.extract_strided_slice %230 {offsets = [0, 256], sizes = [32, 128], strides = [1, 1]} : vector<32x384xf32> to vector<32x128xf32>
    %236 = arith.truncf %235 : vector<32x128xf32> to vector<32x128xbf16>
    %237 = tpu.concatenate %234, %234, %234, %234, %234, %234, %234, %234 in 0 : vector<32x128xbf16>, vector<32x128xbf16>, vector<32x128xbf16>, vector<32x128xbf16>, vector<32x128xbf16>, vector<32x128xbf16>, vector<32x128xbf16>, vector<32x128xbf16> -> vector<256x128xbf16>
    %238 = arith.mulf %237, %6 : vector<256x128xbf16>
    %239 = tpu.concatenate %236, %236, %236, %236, %236, %236, %236, %236 in 0 : vector<32x128xbf16>, vector<32x128xbf16>, vector<32x128xbf16>, vector<32x128xbf16>, vector<32x128xbf16>, vector<32x128xbf16>, vector<32x128xbf16>, vector<32x128xbf16> -> vector<256x128xbf16>
    %240 = arith.mulf %239, %6 : vector<256x128xbf16>
    %cst_126 = arith.constant dense<0.000000e+00> : vector<32x256xf32>
    %241 = tpu.matmul %232, %238, %cst_126 {dimension_numbers = #tpu.dot_dimension_numbers<[1], [1], [0], [0], [0, 0, 1, 0], [], []>} : vector<32x128xbf16>, vector<256x128xbf16>, vector<32x256xf32> -> vector<32x256xf32>
    %242 = arith.addf %241, %7 : vector<32x256xf32>
    %cst_127 = arith.constant dense<0xFF800000> : vector<32xf32>
    %243 = vector.multi_reduction <maximumf>, %242, %cst_127 [1] : vector<32x256xf32> to vector<32xf32>
    %244 = vector.shape_cast %243 : vector<32xf32> to vector<32x1xf32>
    %245 = vector.broadcast %244 : vector<32x1xf32> to vector<32x256xf32>
    %246 = arith.subf %242, %245 : vector<32x256xf32>
    %247 = math.exp %246 : vector<32x256xf32>
    %248 = arith.truncf %247 : vector<32x256xf32> to vector<32x256xbf16>
    %cst_128 = arith.constant dense<0.000000e+00> : vector<32x256xf32>
    %249 = tpu.matmul %248, %8, %cst_128 {dimension_numbers = #tpu.dot_dimension_numbers<[1], [0], [0], [1], [0, 0, 1, 1], [], []>} : vector<32x256xbf16>, vector<256x256xbf16>, vector<32x256xf32> -> vector<32x256xf32>
    %250 = tpu.reciprocal %249 {approx = true} : vector<32x256xf32> -> vector<32x256xf32>
    %251 = arith.mulf %247, %250 : vector<32x256xf32>
    %252 = arith.truncf %251 : vector<32x256xf32> to vector<32x256xbf16>
    %cst_129 = arith.constant dense<0.000000e+00> : vector<32x128xf32>
    %253 = tpu.matmul %252, %240, %cst_129 {dimension_numbers = #tpu.dot_dimension_numbers<[1], [0], [0], [1], [0, 0, 1, 1], [], []>} : vector<32x256xbf16>, vector<256x128xbf16>, vector<32x128xf32> -> vector<32x128xf32>
    %254 = arith.truncf %253 : vector<32x128xf32> to vector<32x128xbf16>
    %c2_130 = arith.constant 2 : index
    %c0_131 = arith.constant 0 : index
    %c0_132 = arith.constant 0 : index
    %255 = vector.load %arg9[%c2_130, %c0_131, %c0_132] : memref<5x128x128xbf16, #tpu.memory_space<vmem>>, vector<1x128x128xbf16>
    %256 = vector.shape_cast %255 : vector<1x128x128xbf16> to vector<128x128xbf16>
    %cst_133 = arith.constant dense<0.000000e+00> : vector<32x128xf32>
    %257 = tpu.matmul %254, %256, %cst_133 {dimension_numbers = #tpu.dot_dimension_numbers<[1], [0], [0], [1], [0, 0, 1, 1], [], []>} : vector<32x128xbf16>, vector<128x128xbf16>, vector<32x128xf32> -> vector<32x128xf32>
    %c2_134 = arith.constant 2 : index
    %c0_135 = arith.constant 0 : index
    %c0_136 = arith.constant 0 : index
    %258 = vector.load %arg10[%c2_134, %c0_135, %c0_136] : memref<5x1x128xf32, #tpu.memory_space<vmem>>, vector<1x1x128xf32>
    %259 = vector.shape_cast %258 : vector<1x1x128xf32> to vector<1x128xf32>
    %260 = vector.broadcast %259 : vector<1x128xf32> to vector<32x128xf32>
    %261 = arith.addf %257, %260 : vector<32x128xf32>
    %262 = arith.addf %222, %261 : vector<32x128xf32>
    %c2_137 = arith.constant 2 : index
    %c0_138 = arith.constant 0 : index
    %c0_139 = arith.constant 0 : index
    %263 = vector.load %arg11[%c2_137, %c0_138, %c0_139] : memref<5x1x128xf32, #tpu.memory_space<vmem>>, vector<1x1x128xf32>
    %264 = vector.shape_cast %263 : vector<1x1x128xf32> to vector<1x128xf32>
    %c2_140 = arith.constant 2 : index
    %c0_141 = arith.constant 0 : index
    %c0_142 = arith.constant 0 : index
    %265 = vector.load %arg12[%c2_140, %c0_141, %c0_142] : memref<5x1x128xf32, #tpu.memory_space<vmem>>, vector<1x1x128xf32>
    %266 = vector.shape_cast %265 : vector<1x1x128xf32> to vector<1x128xf32>
    %cst_143 = arith.constant dense<0.000000e+00> : vector<32xf32>
    %267 = vector.multi_reduction <add>, %262, %cst_143 [1] : vector<32x128xf32> to vector<32xf32>
    %268 = vector.shape_cast %267 : vector<32xf32> to vector<32x1xf32>
    %cst_144 = arith.constant 1.280000e+02 : f32
    %269 = vector.broadcast %cst_144 : f32 to vector<32x1xf32>
    %270 = arith.divf %268, %269 : vector<32x1xf32>
    %271 = vector.broadcast %270 : vector<32x1xf32> to vector<32x128xf32>
    %272 = arith.subf %262, %271 : vector<32x128xf32>
    %273 = arith.mulf %272, %272 : vector<32x128xf32>
    %cst_145 = arith.constant dense<0.000000e+00> : vector<32xf32>
    %274 = vector.multi_reduction <add>, %273, %cst_145 [1] : vector<32x128xf32> to vector<32xf32>
    %275 = vector.shape_cast %274 : vector<32xf32> to vector<32x1xf32>
    %cst_146 = arith.constant 1.280000e+02 : f32
    %276 = vector.broadcast %cst_146 : f32 to vector<32x1xf32>
    %277 = arith.divf %275, %276 : vector<32x1xf32>
    %cst_147 = arith.constant 9.99999974E-6 : f32
    %278 = vector.broadcast %cst_147 : f32 to vector<32x1xf32>
    %279 = arith.addf %277, %278 : vector<32x1xf32>
    %280 = math.rsqrt %279 : vector<32x1xf32>
    %281 = vector.broadcast %280 : vector<32x1xf32> to vector<32x128xf32>
    %282 = arith.mulf %272, %281 : vector<32x128xf32>
    %283 = vector.broadcast %264 : vector<1x128xf32> to vector<32x128xf32>
    %284 = arith.mulf %282, %283 : vector<32x128xf32>
    %285 = vector.broadcast %266 : vector<1x128xf32> to vector<32x128xf32>
    %286 = arith.addf %284, %285 : vector<32x128xf32>
    %287 = arith.truncf %286 : vector<32x128xf32> to vector<32x128xbf16>
    %c2_148 = arith.constant 2 : index
    %c0_149 = arith.constant 0 : index
    %c0_150 = arith.constant 0 : index
    %288 = vector.load %arg15[%c2_148, %c0_149, %c0_150] : memref<5x128x512xbf16, #tpu.memory_space<vmem>>, vector<1x128x512xbf16>
    %289 = vector.shape_cast %288 : vector<1x128x512xbf16> to vector<128x512xbf16>
    %cst_151 = arith.constant dense<0.000000e+00> : vector<32x512xf32>
    %290 = tpu.matmul %287, %289, %cst_151 {dimension_numbers = #tpu.dot_dimension_numbers<[1], [0], [0], [1], [0, 0, 1, 1], [], []>} : vector<32x128xbf16>, vector<128x512xbf16>, vector<32x512xf32> -> vector<32x512xf32>
    %c2_152 = arith.constant 2 : index
    %c0_153 = arith.constant 0 : index
    %c0_154 = arith.constant 0 : index
    %291 = vector.load %arg16[%c2_152, %c0_153, %c0_154] : memref<5x1x512xf32, #tpu.memory_space<vmem>>, vector<1x1x512xf32>
    %292 = vector.shape_cast %291 : vector<1x1x512xf32> to vector<1x512xf32>
    %293 = vector.broadcast %292 : vector<1x512xf32> to vector<32x512xf32>
    %294 = arith.addf %290, %293 : vector<32x512xf32>
    %cst_155 = arith.constant 0.000000e+00 : f32
    %295 = vector.broadcast %cst_155 : f32 to vector<32x512xf32>
    %296 = arith.maximumf %294, %295 : vector<32x512xf32>
    %297 = arith.truncf %296 : vector<32x512xf32> to vector<32x512xbf16>
    %c2_156 = arith.constant 2 : index
    %c0_157 = arith.constant 0 : index
    %c0_158 = arith.constant 0 : index
    %298 = vector.load %arg17[%c2_156, %c0_157, %c0_158] : memref<5x512x128xbf16, #tpu.memory_space<vmem>>, vector<1x512x128xbf16>
    %299 = vector.shape_cast %298 : vector<1x512x128xbf16> to vector<512x128xbf16>
    %cst_159 = arith.constant dense<0.000000e+00> : vector<32x128xf32>
    %300 = tpu.matmul %297, %299, %cst_159 {dimension_numbers = #tpu.dot_dimension_numbers<[1], [0], [0], [1], [0, 0, 1, 1], [], []>} : vector<32x512xbf16>, vector<512x128xbf16>, vector<32x128xf32> -> vector<32x128xf32>
    %c2_160 = arith.constant 2 : index
    %c0_161 = arith.constant 0 : index
    %c0_162 = arith.constant 0 : index
    %301 = vector.load %arg18[%c2_160, %c0_161, %c0_162] : memref<5x1x128xf32, #tpu.memory_space<vmem>>, vector<1x1x128xf32>
    %302 = vector.shape_cast %301 : vector<1x1x128xf32> to vector<1x128xf32>
    %303 = vector.broadcast %302 : vector<1x128xf32> to vector<32x128xf32>
    %304 = arith.addf %300, %303 : vector<32x128xf32>
    %305 = arith.addf %286, %304 : vector<32x128xf32>
    %c2_163 = arith.constant 2 : index
    %c0_164 = arith.constant 0 : index
    %c0_165 = arith.constant 0 : index
    %306 = vector.load %arg13[%c2_163, %c0_164, %c0_165] : memref<5x1x128xf32, #tpu.memory_space<vmem>>, vector<1x1x128xf32>
    %307 = vector.shape_cast %306 : vector<1x1x128xf32> to vector<1x128xf32>
    %c2_166 = arith.constant 2 : index
    %c0_167 = arith.constant 0 : index
    %c0_168 = arith.constant 0 : index
    %308 = vector.load %arg14[%c2_166, %c0_167, %c0_168] : memref<5x1x128xf32, #tpu.memory_space<vmem>>, vector<1x1x128xf32>
    %309 = vector.shape_cast %308 : vector<1x1x128xf32> to vector<1x128xf32>
    %cst_169 = arith.constant dense<0.000000e+00> : vector<32xf32>
    %310 = vector.multi_reduction <add>, %305, %cst_169 [1] : vector<32x128xf32> to vector<32xf32>
    %311 = vector.shape_cast %310 : vector<32xf32> to vector<32x1xf32>
    %cst_170 = arith.constant 1.280000e+02 : f32
    %312 = vector.broadcast %cst_170 : f32 to vector<32x1xf32>
    %313 = arith.divf %311, %312 : vector<32x1xf32>
    %314 = vector.broadcast %313 : vector<32x1xf32> to vector<32x128xf32>
    %315 = arith.subf %305, %314 : vector<32x128xf32>
    %316 = arith.mulf %315, %315 : vector<32x128xf32>
    %cst_171 = arith.constant dense<0.000000e+00> : vector<32xf32>
    %317 = vector.multi_reduction <add>, %316, %cst_171 [1] : vector<32x128xf32> to vector<32xf32>
    %318 = vector.shape_cast %317 : vector<32xf32> to vector<32x1xf32>
    %cst_172 = arith.constant 1.280000e+02 : f32
    %319 = vector.broadcast %cst_172 : f32 to vector<32x1xf32>
    %320 = arith.divf %318, %319 : vector<32x1xf32>
    %cst_173 = arith.constant 9.99999974E-6 : f32
    %321 = vector.broadcast %cst_173 : f32 to vector<32x1xf32>
    %322 = arith.addf %320, %321 : vector<32x1xf32>
    %323 = math.rsqrt %322 : vector<32x1xf32>
    %324 = vector.broadcast %323 : vector<32x1xf32> to vector<32x128xf32>
    %325 = arith.mulf %315, %324 : vector<32x128xf32>
    %326 = vector.broadcast %307 : vector<1x128xf32> to vector<32x128xf32>
    %327 = arith.mulf %325, %326 : vector<32x128xf32>
    %328 = vector.broadcast %309 : vector<1x128xf32> to vector<32x128xf32>
    %329 = arith.addf %327, %328 : vector<32x128xf32>
    %330 = arith.truncf %329 : vector<32x128xf32> to vector<32x128xbf16>
    %c3 = arith.constant 3 : index
    %c0_174 = arith.constant 0 : index
    %c0_175 = arith.constant 0 : index
    %331 = vector.load %arg7[%c3, %c0_174, %c0_175] : memref<5x128x384xbf16, #tpu.memory_space<vmem>>, vector<1x128x384xbf16>
    %332 = vector.shape_cast %331 : vector<1x128x384xbf16> to vector<128x384xbf16>
    %cst_176 = arith.constant dense<0.000000e+00> : vector<32x384xf32>
    %333 = tpu.matmul %330, %332, %cst_176 {dimension_numbers = #tpu.dot_dimension_numbers<[1], [0], [0], [1], [0, 0, 1, 1], [], []>} : vector<32x128xbf16>, vector<128x384xbf16>, vector<32x384xf32> -> vector<32x384xf32>
    %c3_177 = arith.constant 3 : index
    %c0_178 = arith.constant 0 : index
    %c0_179 = arith.constant 0 : index
    %334 = vector.load %arg8[%c3_177, %c0_178, %c0_179] : memref<5x1x384xf32, #tpu.memory_space<vmem>>, vector<1x1x384xf32>
    %335 = vector.shape_cast %334 : vector<1x1x384xf32> to vector<1x384xf32>
    %336 = vector.broadcast %335 : vector<1x384xf32> to vector<32x384xf32>
    %337 = arith.addf %333, %336 : vector<32x384xf32>
    %338 = vector.extract_strided_slice %337 {offsets = [0, 0], sizes = [32, 128], strides = [1, 1]} : vector<32x384xf32> to vector<32x128xf32>
    %339 = arith.truncf %338 : vector<32x128xf32> to vector<32x128xbf16>
    %340 = vector.extract_strided_slice %337 {offsets = [0, 128], sizes = [32, 128], strides = [1, 1]} : vector<32x384xf32> to vector<32x128xf32>
    %341 = arith.truncf %340 : vector<32x128xf32> to vector<32x128xbf16>
    %342 = vector.extract_strided_slice %337 {offsets = [0, 256], sizes = [32, 128], strides = [1, 1]} : vector<32x384xf32> to vector<32x128xf32>
    %343 = arith.truncf %342 : vector<32x128xf32> to vector<32x128xbf16>
    %344 = tpu.concatenate %341, %341, %341, %341, %341, %341, %341, %341 in 0 : vector<32x128xbf16>, vector<32x128xbf16>, vector<32x128xbf16>, vector<32x128xbf16>, vector<32x128xbf16>, vector<32x128xbf16>, vector<32x128xbf16>, vector<32x128xbf16> -> vector<256x128xbf16>
    %345 = arith.mulf %344, %6 : vector<256x128xbf16>
    %346 = tpu.concatenate %343, %343, %343, %343, %343, %343, %343, %343 in 0 : vector<32x128xbf16>, vector<32x128xbf16>, vector<32x128xbf16>, vector<32x128xbf16>, vector<32x128xbf16>, vector<32x128xbf16>, vector<32x128xbf16>, vector<32x128xbf16> -> vector<256x128xbf16>
    %347 = arith.mulf %346, %6 : vector<256x128xbf16>
    %cst_180 = arith.constant dense<0.000000e+00> : vector<32x256xf32>
    %348 = tpu.matmul %339, %345, %cst_180 {dimension_numbers = #tpu.dot_dimension_numbers<[1], [1], [0], [0], [0, 0, 1, 0], [], []>} : vector<32x128xbf16>, vector<256x128xbf16>, vector<32x256xf32> -> vector<32x256xf32>
    %349 = arith.addf %348, %7 : vector<32x256xf32>
    %cst_181 = arith.constant dense<0xFF800000> : vector<32xf32>
    %350 = vector.multi_reduction <maximumf>, %349, %cst_181 [1] : vector<32x256xf32> to vector<32xf32>
    %351 = vector.shape_cast %350 : vector<32xf32> to vector<32x1xf32>
    %352 = vector.broadcast %351 : vector<32x1xf32> to vector<32x256xf32>
    %353 = arith.subf %349, %352 : vector<32x256xf32>
    %354 = math.exp %353 : vector<32x256xf32>
    %355 = arith.truncf %354 : vector<32x256xf32> to vector<32x256xbf16>
    %cst_182 = arith.constant dense<0.000000e+00> : vector<32x256xf32>
    %356 = tpu.matmul %355, %8, %cst_182 {dimension_numbers = #tpu.dot_dimension_numbers<[1], [0], [0], [1], [0, 0, 1, 1], [], []>} : vector<32x256xbf16>, vector<256x256xbf16>, vector<32x256xf32> -> vector<32x256xf32>
    %357 = tpu.reciprocal %356 {approx = true} : vector<32x256xf32> -> vector<32x256xf32>
    %358 = arith.mulf %354, %357 : vector<32x256xf32>
    %359 = arith.truncf %358 : vector<32x256xf32> to vector<32x256xbf16>
    %cst_183 = arith.constant dense<0.000000e+00> : vector<32x128xf32>
    %360 = tpu.matmul %359, %347, %cst_183 {dimension_numbers = #tpu.dot_dimension_numbers<[1], [0], [0], [1], [0, 0, 1, 1], [], []>} : vector<32x256xbf16>, vector<256x128xbf16>, vector<32x128xf32> -> vector<32x128xf32>
    %361 = arith.truncf %360 : vector<32x128xf32> to vector<32x128xbf16>
    %c3_184 = arith.constant 3 : index
    %c0_185 = arith.constant 0 : index
    %c0_186 = arith.constant 0 : index
    %362 = vector.load %arg9[%c3_184, %c0_185, %c0_186] : memref<5x128x128xbf16, #tpu.memory_space<vmem>>, vector<1x128x128xbf16>
    %363 = vector.shape_cast %362 : vector<1x128x128xbf16> to vector<128x128xbf16>
    %cst_187 = arith.constant dense<0.000000e+00> : vector<32x128xf32>
    %364 = tpu.matmul %361, %363, %cst_187 {dimension_numbers = #tpu.dot_dimension_numbers<[1], [0], [0], [1], [0, 0, 1, 1], [], []>} : vector<32x128xbf16>, vector<128x128xbf16>, vector<32x128xf32> -> vector<32x128xf32>
    %c3_188 = arith.constant 3 : index
    %c0_189 = arith.constant 0 : index
    %c0_190 = arith.constant 0 : index
    %365 = vector.load %arg10[%c3_188, %c0_189, %c0_190] : memref<5x1x128xf32, #tpu.memory_space<vmem>>, vector<1x1x128xf32>
    %366 = vector.shape_cast %365 : vector<1x1x128xf32> to vector<1x128xf32>
    %367 = vector.broadcast %366 : vector<1x128xf32> to vector<32x128xf32>
    %368 = arith.addf %364, %367 : vector<32x128xf32>
    %369 = arith.addf %329, %368 : vector<32x128xf32>
    %c3_191 = arith.constant 3 : index
    %c0_192 = arith.constant 0 : index
    %c0_193 = arith.constant 0 : index
    %370 = vector.load %arg11[%c3_191, %c0_192, %c0_193] : memref<5x1x128xf32, #tpu.memory_space<vmem>>, vector<1x1x128xf32>
    %371 = vector.shape_cast %370 : vector<1x1x128xf32> to vector<1x128xf32>
    %c3_194 = arith.constant 3 : index
    %c0_195 = arith.constant 0 : index
    %c0_196 = arith.constant 0 : index
    %372 = vector.load %arg12[%c3_194, %c0_195, %c0_196] : memref<5x1x128xf32, #tpu.memory_space<vmem>>, vector<1x1x128xf32>
    %373 = vector.shape_cast %372 : vector<1x1x128xf32> to vector<1x128xf32>
    %cst_197 = arith.constant dense<0.000000e+00> : vector<32xf32>
    %374 = vector.multi_reduction <add>, %369, %cst_197 [1] : vector<32x128xf32> to vector<32xf32>
    %375 = vector.shape_cast %374 : vector<32xf32> to vector<32x1xf32>
    %cst_198 = arith.constant 1.280000e+02 : f32
    %376 = vector.broadcast %cst_198 : f32 to vector<32x1xf32>
    %377 = arith.divf %375, %376 : vector<32x1xf32>
    %378 = vector.broadcast %377 : vector<32x1xf32> to vector<32x128xf32>
    %379 = arith.subf %369, %378 : vector<32x128xf32>
    %380 = arith.mulf %379, %379 : vector<32x128xf32>
    %cst_199 = arith.constant dense<0.000000e+00> : vector<32xf32>
    %381 = vector.multi_reduction <add>, %380, %cst_199 [1] : vector<32x128xf32> to vector<32xf32>
    %382 = vector.shape_cast %381 : vector<32xf32> to vector<32x1xf32>
    %cst_200 = arith.constant 1.280000e+02 : f32
    %383 = vector.broadcast %cst_200 : f32 to vector<32x1xf32>
    %384 = arith.divf %382, %383 : vector<32x1xf32>
    %cst_201 = arith.constant 9.99999974E-6 : f32
    %385 = vector.broadcast %cst_201 : f32 to vector<32x1xf32>
    %386 = arith.addf %384, %385 : vector<32x1xf32>
    %387 = math.rsqrt %386 : vector<32x1xf32>
    %388 = vector.broadcast %387 : vector<32x1xf32> to vector<32x128xf32>
    %389 = arith.mulf %379, %388 : vector<32x128xf32>
    %390 = vector.broadcast %371 : vector<1x128xf32> to vector<32x128xf32>
    %391 = arith.mulf %389, %390 : vector<32x128xf32>
    %392 = vector.broadcast %373 : vector<1x128xf32> to vector<32x128xf32>
    %393 = arith.addf %391, %392 : vector<32x128xf32>
    %394 = arith.truncf %393 : vector<32x128xf32> to vector<32x128xbf16>
    %c3_202 = arith.constant 3 : index
    %c0_203 = arith.constant 0 : index
    %c0_204 = arith.constant 0 : index
    %395 = vector.load %arg15[%c3_202, %c0_203, %c0_204] : memref<5x128x512xbf16, #tpu.memory_space<vmem>>, vector<1x128x512xbf16>
    %396 = vector.shape_cast %395 : vector<1x128x512xbf16> to vector<128x512xbf16>
    %cst_205 = arith.constant dense<0.000000e+00> : vector<32x512xf32>
    %397 = tpu.matmul %394, %396, %cst_205 {dimension_numbers = #tpu.dot_dimension_numbers<[1], [0], [0], [1], [0, 0, 1, 1], [], []>} : vector<32x128xbf16>, vector<128x512xbf16>, vector<32x512xf32> -> vector<32x512xf32>
    %c3_206 = arith.constant 3 : index
    %c0_207 = arith.constant 0 : index
    %c0_208 = arith.constant 0 : index
    %398 = vector.load %arg16[%c3_206, %c0_207, %c0_208] : memref<5x1x512xf32, #tpu.memory_space<vmem>>, vector<1x1x512xf32>
    %399 = vector.shape_cast %398 : vector<1x1x512xf32> to vector<1x512xf32>
    %400 = vector.broadcast %399 : vector<1x512xf32> to vector<32x512xf32>
    %401 = arith.addf %397, %400 : vector<32x512xf32>
    %cst_209 = arith.constant 0.000000e+00 : f32
    %402 = vector.broadcast %cst_209 : f32 to vector<32x512xf32>
    %403 = arith.maximumf %401, %402 : vector<32x512xf32>
    %404 = arith.truncf %403 : vector<32x512xf32> to vector<32x512xbf16>
    %c3_210 = arith.constant 3 : index
    %c0_211 = arith.constant 0 : index
    %c0_212 = arith.constant 0 : index
    %405 = vector.load %arg17[%c3_210, %c0_211, %c0_212] : memref<5x512x128xbf16, #tpu.memory_space<vmem>>, vector<1x512x128xbf16>
    %406 = vector.shape_cast %405 : vector<1x512x128xbf16> to vector<512x128xbf16>
    %cst_213 = arith.constant dense<0.000000e+00> : vector<32x128xf32>
    %407 = tpu.matmul %404, %406, %cst_213 {dimension_numbers = #tpu.dot_dimension_numbers<[1], [0], [0], [1], [0, 0, 1, 1], [], []>} : vector<32x512xbf16>, vector<512x128xbf16>, vector<32x128xf32> -> vector<32x128xf32>
    %c3_214 = arith.constant 3 : index
    %c0_215 = arith.constant 0 : index
    %c0_216 = arith.constant 0 : index
    %408 = vector.load %arg18[%c3_214, %c0_215, %c0_216] : memref<5x1x128xf32, #tpu.memory_space<vmem>>, vector<1x1x128xf32>
    %409 = vector.shape_cast %408 : vector<1x1x128xf32> to vector<1x128xf32>
    %410 = vector.broadcast %409 : vector<1x128xf32> to vector<32x128xf32>
    %411 = arith.addf %407, %410 : vector<32x128xf32>
    %412 = arith.addf %393, %411 : vector<32x128xf32>
    %c3_217 = arith.constant 3 : index
    %c0_218 = arith.constant 0 : index
    %c0_219 = arith.constant 0 : index
    %413 = vector.load %arg13[%c3_217, %c0_218, %c0_219] : memref<5x1x128xf32, #tpu.memory_space<vmem>>, vector<1x1x128xf32>
    %414 = vector.shape_cast %413 : vector<1x1x128xf32> to vector<1x128xf32>
    %c3_220 = arith.constant 3 : index
    %c0_221 = arith.constant 0 : index
    %c0_222 = arith.constant 0 : index
    %415 = vector.load %arg14[%c3_220, %c0_221, %c0_222] : memref<5x1x128xf32, #tpu.memory_space<vmem>>, vector<1x1x128xf32>
    %416 = vector.shape_cast %415 : vector<1x1x128xf32> to vector<1x128xf32>
    %cst_223 = arith.constant dense<0.000000e+00> : vector<32xf32>
    %417 = vector.multi_reduction <add>, %412, %cst_223 [1] : vector<32x128xf32> to vector<32xf32>
    %418 = vector.shape_cast %417 : vector<32xf32> to vector<32x1xf32>
    %cst_224 = arith.constant 1.280000e+02 : f32
    %419 = vector.broadcast %cst_224 : f32 to vector<32x1xf32>
    %420 = arith.divf %418, %419 : vector<32x1xf32>
    %421 = vector.broadcast %420 : vector<32x1xf32> to vector<32x128xf32>
    %422 = arith.subf %412, %421 : vector<32x128xf32>
    %423 = arith.mulf %422, %422 : vector<32x128xf32>
    %cst_225 = arith.constant dense<0.000000e+00> : vector<32xf32>
    %424 = vector.multi_reduction <add>, %423, %cst_225 [1] : vector<32x128xf32> to vector<32xf32>
    %425 = vector.shape_cast %424 : vector<32xf32> to vector<32x1xf32>
    %cst_226 = arith.constant 1.280000e+02 : f32
    %426 = vector.broadcast %cst_226 : f32 to vector<32x1xf32>
    %427 = arith.divf %425, %426 : vector<32x1xf32>
    %cst_227 = arith.constant 9.99999974E-6 : f32
    %428 = vector.broadcast %cst_227 : f32 to vector<32x1xf32>
    %429 = arith.addf %427, %428 : vector<32x1xf32>
    %430 = math.rsqrt %429 : vector<32x1xf32>
    %431 = vector.broadcast %430 : vector<32x1xf32> to vector<32x128xf32>
    %432 = arith.mulf %422, %431 : vector<32x128xf32>
    %433 = vector.broadcast %414 : vector<1x128xf32> to vector<32x128xf32>
    %434 = arith.mulf %432, %433 : vector<32x128xf32>
    %435 = vector.broadcast %416 : vector<1x128xf32> to vector<32x128xf32>
    %436 = arith.addf %434, %435 : vector<32x128xf32>
    %437 = arith.truncf %436 : vector<32x128xf32> to vector<32x128xbf16>
    %c4 = arith.constant 4 : index
    %c0_228 = arith.constant 0 : index
    %c0_229 = arith.constant 0 : index
    %438 = vector.load %arg7[%c4, %c0_228, %c0_229] : memref<5x128x384xbf16, #tpu.memory_space<vmem>>, vector<1x128x384xbf16>
    %439 = vector.shape_cast %438 : vector<1x128x384xbf16> to vector<128x384xbf16>
    %cst_230 = arith.constant dense<0.000000e+00> : vector<32x384xf32>
    %440 = tpu.matmul %437, %439, %cst_230 {dimension_numbers = #tpu.dot_dimension_numbers<[1], [0], [0], [1], [0, 0, 1, 1], [], []>} : vector<32x128xbf16>, vector<128x384xbf16>, vector<32x384xf32> -> vector<32x384xf32>
    %c4_231 = arith.constant 4 : index
    %c0_232 = arith.constant 0 : index
    %c0_233 = arith.constant 0 : index
    %441 = vector.load %arg8[%c4_231, %c0_232, %c0_233] : memref<5x1x384xf32, #tpu.memory_space<vmem>>, vector<1x1x384xf32>
    %442 = vector.shape_cast %441 : vector<1x1x384xf32> to vector<1x384xf32>
    %443 = vector.broadcast %442 : vector<1x384xf32> to vector<32x384xf32>
    %444 = arith.addf %440, %443 : vector<32x384xf32>
    %445 = vector.extract_strided_slice %444 {offsets = [0, 0], sizes = [32, 128], strides = [1, 1]} : vector<32x384xf32> to vector<32x128xf32>
    %446 = arith.truncf %445 : vector<32x128xf32> to vector<32x128xbf16>
    %447 = vector.extract_strided_slice %444 {offsets = [0, 128], sizes = [32, 128], strides = [1, 1]} : vector<32x384xf32> to vector<32x128xf32>
    %448 = arith.truncf %447 : vector<32x128xf32> to vector<32x128xbf16>
    %449 = vector.extract_strided_slice %444 {offsets = [0, 256], sizes = [32, 128], strides = [1, 1]} : vector<32x384xf32> to vector<32x128xf32>
    %450 = arith.truncf %449 : vector<32x128xf32> to vector<32x128xbf16>
    %451 = tpu.concatenate %448, %448, %448, %448, %448, %448, %448, %448 in 0 : vector<32x128xbf16>, vector<32x128xbf16>, vector<32x128xbf16>, vector<32x128xbf16>, vector<32x128xbf16>, vector<32x128xbf16>, vector<32x128xbf16>, vector<32x128xbf16> -> vector<256x128xbf16>
    %452 = arith.mulf %451, %6 : vector<256x128xbf16>
    %453 = tpu.concatenate %450, %450, %450, %450, %450, %450, %450, %450 in 0 : vector<32x128xbf16>, vector<32x128xbf16>, vector<32x128xbf16>, vector<32x128xbf16>, vector<32x128xbf16>, vector<32x128xbf16>, vector<32x128xbf16>, vector<32x128xbf16> -> vector<256x128xbf16>
    %454 = arith.mulf %453, %6 : vector<256x128xbf16>
    %cst_234 = arith.constant dense<0.000000e+00> : vector<32x256xf32>
    %455 = tpu.matmul %446, %452, %cst_234 {dimension_numbers = #tpu.dot_dimension_numbers<[1], [1], [0], [0], [0, 0, 1, 0], [], []>} : vector<32x128xbf16>, vector<256x128xbf16>, vector<32x256xf32> -> vector<32x256xf32>
    %456 = arith.addf %455, %7 : vector<32x256xf32>
    %cst_235 = arith.constant dense<0xFF800000> : vector<32xf32>
    %457 = vector.multi_reduction <maximumf>, %456, %cst_235 [1] : vector<32x256xf32> to vector<32xf32>
    %458 = vector.shape_cast %457 : vector<32xf32> to vector<32x1xf32>
    %459 = vector.broadcast %458 : vector<32x1xf32> to vector<32x256xf32>
    %460 = arith.subf %456, %459 : vector<32x256xf32>
    %461 = math.exp %460 : vector<32x256xf32>
    %462 = arith.truncf %461 : vector<32x256xf32> to vector<32x256xbf16>
    %cst_236 = arith.constant dense<0.000000e+00> : vector<32x256xf32>
    %463 = tpu.matmul %462, %8, %cst_236 {dimension_numbers = #tpu.dot_dimension_numbers<[1], [0], [0], [1], [0, 0, 1, 1], [], []>} : vector<32x256xbf16>, vector<256x256xbf16>, vector<32x256xf32> -> vector<32x256xf32>
    %464 = tpu.reciprocal %463 {approx = true} : vector<32x256xf32> -> vector<32x256xf32>
    %465 = arith.mulf %461, %464 : vector<32x256xf32>
    %466 = arith.truncf %465 : vector<32x256xf32> to vector<32x256xbf16>
    %cst_237 = arith.constant dense<0.000000e+00> : vector<32x128xf32>
    %467 = tpu.matmul %466, %454, %cst_237 {dimension_numbers = #tpu.dot_dimension_numbers<[1], [0], [0], [1], [0, 0, 1, 1], [], []>} : vector<32x256xbf16>, vector<256x128xbf16>, vector<32x128xf32> -> vector<32x128xf32>
    %468 = arith.truncf %467 : vector<32x128xf32> to vector<32x128xbf16>
    %c4_238 = arith.constant 4 : index
    %c0_239 = arith.constant 0 : index
    %c0_240 = arith.constant 0 : index
    %469 = vector.load %arg9[%c4_238, %c0_239, %c0_240] : memref<5x128x128xbf16, #tpu.memory_space<vmem>>, vector<1x128x128xbf16>
    %470 = vector.shape_cast %469 : vector<1x128x128xbf16> to vector<128x128xbf16>
    %cst_241 = arith.constant dense<0.000000e+00> : vector<32x128xf32>
    %471 = tpu.matmul %468, %470, %cst_241 {dimension_numbers = #tpu.dot_dimension_numbers<[1], [0], [0], [1], [0, 0, 1, 1], [], []>} : vector<32x128xbf16>, vector<128x128xbf16>, vector<32x128xf32> -> vector<32x128xf32>
    %c4_242 = arith.constant 4 : index
    %c0_243 = arith.constant 0 : index
    %c0_244 = arith.constant 0 : index
    %472 = vector.load %arg10[%c4_242, %c0_243, %c0_244] : memref<5x1x128xf32, #tpu.memory_space<vmem>>, vector<1x1x128xf32>
    %473 = vector.shape_cast %472 : vector<1x1x128xf32> to vector<1x128xf32>
    %474 = vector.broadcast %473 : vector<1x128xf32> to vector<32x128xf32>
    %475 = arith.addf %471, %474 : vector<32x128xf32>
    %476 = arith.addf %436, %475 : vector<32x128xf32>
    %c4_245 = arith.constant 4 : index
    %c0_246 = arith.constant 0 : index
    %c0_247 = arith.constant 0 : index
    %477 = vector.load %arg11[%c4_245, %c0_246, %c0_247] : memref<5x1x128xf32, #tpu.memory_space<vmem>>, vector<1x1x128xf32>
    %478 = vector.shape_cast %477 : vector<1x1x128xf32> to vector<1x128xf32>
    %c4_248 = arith.constant 4 : index
    %c0_249 = arith.constant 0 : index
    %c0_250 = arith.constant 0 : index
    %479 = vector.load %arg12[%c4_248, %c0_249, %c0_250] : memref<5x1x128xf32, #tpu.memory_space<vmem>>, vector<1x1x128xf32>
    %480 = vector.shape_cast %479 : vector<1x1x128xf32> to vector<1x128xf32>
    %cst_251 = arith.constant dense<0.000000e+00> : vector<32xf32>
    %481 = vector.multi_reduction <add>, %476, %cst_251 [1] : vector<32x128xf32> to vector<32xf32>
    %482 = vector.shape_cast %481 : vector<32xf32> to vector<32x1xf32>
    %cst_252 = arith.constant 1.280000e+02 : f32
    %483 = vector.broadcast %cst_252 : f32 to vector<32x1xf32>
    %484 = arith.divf %482, %483 : vector<32x1xf32>
    %485 = vector.broadcast %484 : vector<32x1xf32> to vector<32x128xf32>
    %486 = arith.subf %476, %485 : vector<32x128xf32>
    %487 = arith.mulf %486, %486 : vector<32x128xf32>
    %cst_253 = arith.constant dense<0.000000e+00> : vector<32xf32>
    %488 = vector.multi_reduction <add>, %487, %cst_253 [1] : vector<32x128xf32> to vector<32xf32>
    %489 = vector.shape_cast %488 : vector<32xf32> to vector<32x1xf32>
    %cst_254 = arith.constant 1.280000e+02 : f32
    %490 = vector.broadcast %cst_254 : f32 to vector<32x1xf32>
    %491 = arith.divf %489, %490 : vector<32x1xf32>
    %cst_255 = arith.constant 9.99999974E-6 : f32
    %492 = vector.broadcast %cst_255 : f32 to vector<32x1xf32>
    %493 = arith.addf %491, %492 : vector<32x1xf32>
    %494 = math.rsqrt %493 : vector<32x1xf32>
    %495 = vector.broadcast %494 : vector<32x1xf32> to vector<32x128xf32>
    %496 = arith.mulf %486, %495 : vector<32x128xf32>
    %497 = vector.broadcast %478 : vector<1x128xf32> to vector<32x128xf32>
    %498 = arith.mulf %496, %497 : vector<32x128xf32>
    %499 = vector.broadcast %480 : vector<1x128xf32> to vector<32x128xf32>
    %500 = arith.addf %498, %499 : vector<32x128xf32>
    %501 = arith.truncf %500 : vector<32x128xf32> to vector<32x128xbf16>
    %c4_256 = arith.constant 4 : index
    %c0_257 = arith.constant 0 : index
    %c0_258 = arith.constant 0 : index
    %502 = vector.load %arg15[%c4_256, %c0_257, %c0_258] : memref<5x128x512xbf16, #tpu.memory_space<vmem>>, vector<1x128x512xbf16>
    %503 = vector.shape_cast %502 : vector<1x128x512xbf16> to vector<128x512xbf16>
    %cst_259 = arith.constant dense<0.000000e+00> : vector<32x512xf32>
    %504 = tpu.matmul %501, %503, %cst_259 {dimension_numbers = #tpu.dot_dimension_numbers<[1], [0], [0], [1], [0, 0, 1, 1], [], []>} : vector<32x128xbf16>, vector<128x512xbf16>, vector<32x512xf32> -> vector<32x512xf32>
    %c4_260 = arith.constant 4 : index
    %c0_261 = arith.constant 0 : index
    %c0_262 = arith.constant 0 : index
    %505 = vector.load %arg16[%c4_260, %c0_261, %c0_262] : memref<5x1x512xf32, #tpu.memory_space<vmem>>, vector<1x1x512xf32>
    %506 = vector.shape_cast %505 : vector<1x1x512xf32> to vector<1x512xf32>
    %507 = vector.broadcast %506 : vector<1x512xf32> to vector<32x512xf32>
    %508 = arith.addf %504, %507 : vector<32x512xf32>
    %cst_263 = arith.constant 0.000000e+00 : f32
    %509 = vector.broadcast %cst_263 : f32 to vector<32x512xf32>
    %510 = arith.maximumf %508, %509 : vector<32x512xf32>
    %511 = arith.truncf %510 : vector<32x512xf32> to vector<32x512xbf16>
    %c4_264 = arith.constant 4 : index
    %c0_265 = arith.constant 0 : index
    %c0_266 = arith.constant 0 : index
    %512 = vector.load %arg17[%c4_264, %c0_265, %c0_266] : memref<5x512x128xbf16, #tpu.memory_space<vmem>>, vector<1x512x128xbf16>
    %513 = vector.shape_cast %512 : vector<1x512x128xbf16> to vector<512x128xbf16>
    %cst_267 = arith.constant dense<0.000000e+00> : vector<32x128xf32>
    %514 = tpu.matmul %511, %513, %cst_267 {dimension_numbers = #tpu.dot_dimension_numbers<[1], [0], [0], [1], [0, 0, 1, 1], [], []>} : vector<32x512xbf16>, vector<512x128xbf16>, vector<32x128xf32> -> vector<32x128xf32>
    %c4_268 = arith.constant 4 : index
    %c0_269 = arith.constant 0 : index
    %c0_270 = arith.constant 0 : index
    %515 = vector.load %arg18[%c4_268, %c0_269, %c0_270] : memref<5x1x128xf32, #tpu.memory_space<vmem>>, vector<1x1x128xf32>
    %516 = vector.shape_cast %515 : vector<1x1x128xf32> to vector<1x128xf32>
    %517 = vector.broadcast %516 : vector<1x128xf32> to vector<32x128xf32>
    %518 = arith.addf %514, %517 : vector<32x128xf32>
    %519 = arith.addf %500, %518 : vector<32x128xf32>
    %c4_271 = arith.constant 4 : index
    %c0_272 = arith.constant 0 : index
    %c0_273 = arith.constant 0 : index
    %520 = vector.load %arg13[%c4_271, %c0_272, %c0_273] : memref<5x1x128xf32, #tpu.memory_space<vmem>>, vector<1x1x128xf32>
    %521 = vector.shape_cast %520 : vector<1x1x128xf32> to vector<1x128xf32>
    %c4_274 = arith.constant 4 : index
    %c0_275 = arith.constant 0 : index
    %c0_276 = arith.constant 0 : index
    %522 = vector.load %arg14[%c4_274, %c0_275, %c0_276] : memref<5x1x128xf32, #tpu.memory_space<vmem>>, vector<1x1x128xf32>
    %523 = vector.shape_cast %522 : vector<1x1x128xf32> to vector<1x128xf32>
    %cst_277 = arith.constant dense<0.000000e+00> : vector<32xf32>
    %524 = vector.multi_reduction <add>, %519, %cst_277 [1] : vector<32x128xf32> to vector<32xf32>
    %525 = vector.shape_cast %524 : vector<32xf32> to vector<32x1xf32>
    %cst_278 = arith.constant 1.280000e+02 : f32
    %526 = vector.broadcast %cst_278 : f32 to vector<32x1xf32>
    %527 = arith.divf %525, %526 : vector<32x1xf32>
    %528 = vector.broadcast %527 : vector<32x1xf32> to vector<32x128xf32>
    %529 = arith.subf %519, %528 : vector<32x128xf32>
    %530 = arith.mulf %529, %529 : vector<32x128xf32>
    %cst_279 = arith.constant dense<0.000000e+00> : vector<32xf32>
    %531 = vector.multi_reduction <add>, %530, %cst_279 [1] : vector<32x128xf32> to vector<32xf32>
    %532 = vector.shape_cast %531 : vector<32xf32> to vector<32x1xf32>
    %cst_280 = arith.constant 1.280000e+02 : f32
    %533 = vector.broadcast %cst_280 : f32 to vector<32x1xf32>
    %534 = arith.divf %532, %533 : vector<32x1xf32>
    %cst_281 = arith.constant 9.99999974E-6 : f32
    %535 = vector.broadcast %cst_281 : f32 to vector<32x1xf32>
    %536 = arith.addf %534, %535 : vector<32x1xf32>
    %537 = math.rsqrt %536 : vector<32x1xf32>
    %538 = vector.broadcast %537 : vector<32x1xf32> to vector<32x128xf32>
    %539 = arith.mulf %529, %538 : vector<32x128xf32>
    %540 = vector.broadcast %521 : vector<1x128xf32> to vector<32x128xf32>
    %541 = arith.mulf %539, %540 : vector<32x128xf32>
    %542 = vector.broadcast %523 : vector<1x128xf32> to vector<32x128xf32>
    %543 = arith.addf %541, %542 : vector<32x128xf32>
    %544 = vector.extract_strided_slice %543 {offsets = [0, 0], sizes = [2, 128], strides = [1, 1]} : vector<32x128xf32> to vector<2x128xf32>
    %545 = vector.extract_strided_slice %543 {offsets = [2, 0], sizes = [2, 128], strides = [1, 1]} : vector<32x128xf32> to vector<2x128xf32>
    %546 = vector.extract_strided_slice %543 {offsets = [4, 0], sizes = [2, 128], strides = [1, 1]} : vector<32x128xf32> to vector<2x128xf32>
    %547 = vector.extract_strided_slice %543 {offsets = [6, 0], sizes = [2, 128], strides = [1, 1]} : vector<32x128xf32> to vector<2x128xf32>
    %548 = vector.extract_strided_slice %543 {offsets = [8, 0], sizes = [2, 128], strides = [1, 1]} : vector<32x128xf32> to vector<2x128xf32>
    %549 = vector.extract_strided_slice %543 {offsets = [10, 0], sizes = [2, 128], strides = [1, 1]} : vector<32x128xf32> to vector<2x128xf32>
    %550 = vector.extract_strided_slice %543 {offsets = [12, 0], sizes = [2, 128], strides = [1, 1]} : vector<32x128xf32> to vector<2x128xf32>
    %551 = vector.extract_strided_slice %543 {offsets = [14, 0], sizes = [2, 128], strides = [1, 1]} : vector<32x128xf32> to vector<2x128xf32>
    %552 = vector.extract_strided_slice %543 {offsets = [16, 0], sizes = [2, 128], strides = [1, 1]} : vector<32x128xf32> to vector<2x128xf32>
    %553 = vector.extract_strided_slice %543 {offsets = [18, 0], sizes = [2, 128], strides = [1, 1]} : vector<32x128xf32> to vector<2x128xf32>
    %554 = vector.extract_strided_slice %543 {offsets = [20, 0], sizes = [2, 128], strides = [1, 1]} : vector<32x128xf32> to vector<2x128xf32>
    %555 = vector.extract_strided_slice %543 {offsets = [22, 0], sizes = [2, 128], strides = [1, 1]} : vector<32x128xf32> to vector<2x128xf32>
    %556 = vector.extract_strided_slice %543 {offsets = [24, 0], sizes = [2, 128], strides = [1, 1]} : vector<32x128xf32> to vector<2x128xf32>
    %557 = vector.extract_strided_slice %543 {offsets = [26, 0], sizes = [2, 128], strides = [1, 1]} : vector<32x128xf32> to vector<2x128xf32>
    %558 = vector.extract_strided_slice %543 {offsets = [28, 0], sizes = [2, 128], strides = [1, 1]} : vector<32x128xf32> to vector<2x128xf32>
    %559 = vector.extract_strided_slice %543 {offsets = [30, 0], sizes = [2, 128], strides = [1, 1]} : vector<32x128xf32> to vector<2x128xf32>
    %560 = tpu.concatenate %544, %545, %546, %547, %548, %549, %550, %551, %552, %553, %554, %555, %556, %557, %558, %559 in 1 : vector<2x128xf32>, vector<2x128xf32>, vector<2x128xf32>, vector<2x128xf32>, vector<2x128xf32>, vector<2x128xf32>, vector<2x128xf32>, vector<2x128xf32>, vector<2x128xf32>, vector<2x128xf32>, vector<2x128xf32>, vector<2x128xf32>, vector<2x128xf32>, vector<2x128xf32>, vector<2x128xf32>, vector<2x128xf32> -> vector<2x2048xf32>
    %561 = arith.truncf %560 : vector<2x2048xf32> to vector<2x2048xbf16>
    %c0_282 = arith.constant 0 : index
    %c0_283 = arith.constant 0 : index
    %562 = vector.load %arg19[%c0_282, %c0_283] : memref<2048x128xbf16, #tpu.memory_space<vmem>>, vector<2048x128xbf16>
    %cst_284 = arith.constant dense<0.000000e+00> : vector<2x128xf32>
    %563 = tpu.matmul %561, %562, %cst_284 {dimension_numbers = #tpu.dot_dimension_numbers<[1], [0], [0], [1], [0, 0, 1, 1], [], []>} : vector<2x2048xbf16>, vector<2048x128xbf16>, vector<2x128xf32> -> vector<2x128xf32>
    %c0_285 = arith.constant 0 : index
    %c0_286 = arith.constant 0 : index
    %564 = vector.load %arg20[%c0_285, %c0_286] : memref<1x128xf32, #tpu.memory_space<vmem>>, vector<1x128xf32>
    %565 = vector.broadcast %564 : vector<1x128xf32> to vector<2x128xf32>
    %566 = arith.addf %563, %565 : vector<2x128xf32>
    %567 = arith.truncf %566 : vector<2x128xf32> to vector<2x128xbf16>
    %c0_287 = arith.constant 0 : index
    %c0_288 = arith.constant 0 : index
    %568 = vector.load %arg21[%c0_287, %c0_288] : memref<128x128xbf16, #tpu.memory_space<vmem>>, vector<128x128xbf16>
    %cst_289 = arith.constant dense<0.000000e+00> : vector<2x128xf32>
    %569 = tpu.matmul %567, %568, %cst_289 {dimension_numbers = #tpu.dot_dimension_numbers<[1], [0], [0], [1], [0, 0, 1, 1], [], []>} : vector<2x128xbf16>, vector<128x128xbf16>, vector<2x128xf32> -> vector<2x128xf32>
    %c0_290 = arith.constant 0 : index
    %c0_291 = arith.constant 0 : index
    %570 = vector.load %arg22[%c0_290, %c0_291] : memref<1x128xf32, #tpu.memory_space<vmem>>, vector<1x128xf32>
    %571 = vector.broadcast %570 : vector<1x128xf32> to vector<2x128xf32>
    %572 = arith.addf %569, %571 : vector<2x128xf32>
    %c0_292 = arith.constant 0 : index
    %c0_293 = arith.constant 0 : index
    %573 = vector.load %arg23[%c0_292, %c0_293] : memref<2x128xf32, #tpu.memory_space<vmem>>, vector<2x128xf32>
    tpu.vector_store %arg23[%c0_292, %c0_293], %572 {strides = array<i32>} : memref<2x128xf32, #tpu.memory_space<vmem>>, vector<2x128xf32>,
    return
  }
  func.func @transform_0(%arg0: i32) -> (i32, i32) {
    %c0_i32 = arith.constant 0 : i32
    %c0_i32_0 = arith.constant 0 : i32
    %c0_i32_1 = arith.constant 0 : i32
    return %c0_i32, %c0_i32_0 : i32, i32
  }
  func.func @transform_1(%arg0: i32) -> (i32, i32) {
    %c0_i32 = arith.constant 0 : i32
    %c0_i32_0 = arith.constant 0 : i32
    %c0_i32_1 = arith.constant 0 : i32
    return %c0_i32, %c0_i32_0 : i32, i32
  }
  func.func @transform_2(%arg0: i32) -> (i32, i32) {
    %c0_i32 = arith.constant 0 : i32
    %c0_i32_0 = arith.constant 0 : i32
    %c0_i32_1 = arith.constant 0 : i32
    return %c0_i32, %c0_i32_0 : i32, i32
  }
  func.func @transform_3(%arg0: i32) -> (i32, i32) {
    %c0_i32 = arith.constant 0 : i32
    %c0_i32_0 = arith.constant 0 : i32
    %c0_i32_1 = arith.constant 0 : i32
    return %c0_i32, %c0_i32_0 : i32, i32
  }
  func.func @transform_4(%arg0: i32) -> (i32, i32) {
    %c0_i32 = arith.constant 0 : i32
    %c0_i32_0 = arith.constant 0 : i32
    %c0_i32_1 = arith.constant 0 : i32
    return %c0_i32, %c0_i32_0 : i32, i32
  }
  func.func @transform_5(%arg0: i32) -> (i32, i32) {
    %c0_i32 = arith.constant 0 : i32
    %c0_i32_0 = arith.constant 0 : i32
    %c0_i32_1 = arith.constant 0 : i32
    return %c0_i32, %c0_i32_0 : i32, i32
  }
  func.func @transform_6(%arg0: i32) -> (i32, i32, i32) {
    %c0_i32 = arith.constant 0 : i32
    %c0_i32_0 = arith.constant 0 : i32
    %c0_i32_1 = arith.constant 0 : i32
    %c0_i32_2 = arith.constant 0 : i32
    return %c0_i32, %c0_i32_0, %c0_i32_1 : i32, i32, i32
  }
  func.func @transform_7(%arg0: i32) -> (i32, i32, i32) {
    %c0_i32 = arith.constant 0 : i32
    %c0_i32_0 = arith.constant 0 : i32
    %c0_i32_1 = arith.constant 0 : i32
    %c0_i32_2 = arith.constant 0 : i32
    return %c0_i32, %c0_i32_0, %c0_i32_1 : i32, i32, i32
  }
  func.func @transform_8(%arg0: i32) -> (i32, i32, i32) {
    %c0_i32 = arith.constant 0 : i32
    %c0_i32_0 = arith.constant 0 : i32
    %c0_i32_1 = arith.constant 0 : i32
    %c0_i32_2 = arith.constant 0 : i32
    return %c0_i32, %c0_i32_0, %c0_i32_1 : i32, i32, i32
  }
  func.func @transform_9(%arg0: i32) -> (i32, i32, i32) {
    %c0_i32 = arith.constant 0 : i32
    %c0_i32_0 = arith.constant 0 : i32
    %c0_i32_1 = arith.constant 0 : i32
    %c0_i32_2 = arith.constant 0 : i32
    return %c0_i32, %c0_i32_0, %c0_i32_1 : i32, i32, i32
  }
  func.func @transform_10(%arg0: i32) -> (i32, i32, i32) {
    %c0_i32 = arith.constant 0 : i32
    %c0_i32_0 = arith.constant 0 : i32
    %c0_i32_1 = arith.constant 0 : i32
    %c0_i32_2 = arith.constant 0 : i32
    return %c0_i32, %c0_i32_0, %c0_i32_1 : i32, i32, i32
  }
  func.func @transform_11(%arg0: i32) -> (i32, i32, i32) {
    %c0_i32 = arith.constant 0 : i32
    %c0_i32_0 = arith.constant 0 : i32
    %c0_i32_1 = arith.constant 0 : i32
    %c0_i32_2 = arith.constant 0 : i32
    return %c0_i32, %c0_i32_0, %c0_i32_1 : i32, i32, i32
  }
  func.func @transform_12(%arg0: i32) -> (i32, i32, i32) {
    %c0_i32 = arith.constant 0 : i32
    %c0_i32_0 = arith.constant 0 : i32
    %c0_i32_1 = arith.constant 0 : i32
    %c0_i32_2 = arith.constant 0 : i32
    return %c0_i32, %c0_i32_0, %c0_i32_1 : i32, i32, i32
  }
  func.func @transform_13(%arg0: i32) -> (i32, i32, i32) {
    %c0_i32 = arith.constant 0 : i32
    %c0_i32_0 = arith.constant 0 : i32
    %c0_i32_1 = arith.constant 0 : i32
    %c0_i32_2 = arith.constant 0 : i32
    return %c0_i32, %c0_i32_0, %c0_i32_1 : i32, i32, i32
  }
  func.func @transform_14(%arg0: i32) -> (i32, i32, i32) {
    %c0_i32 = arith.constant 0 : i32
    %c0_i32_0 = arith.constant 0 : i32
    %c0_i32_1 = arith.constant 0 : i32
    %c0_i32_2 = arith.constant 0 : i32
    return %c0_i32, %c0_i32_0, %c0_i32_1 : i32, i32, i32
  }
  func.func @transform_15(%arg0: i32) -> (i32, i32, i32) {
    %c0_i32 = arith.constant 0 : i32
    %c0_i32_0 = arith.constant 0 : i32
    %c0_i32_1 = arith.constant 0 : i32
    %c0_i32_2 = arith.constant 0 : i32
    return %c0_i32, %c0_i32_0, %c0_i32_1 : i32, i32, i32
  }
  func.func @transform_16(%arg0: i32) -> (i32, i32, i32) {
    %c0_i32 = arith.constant 0 : i32
    %c0_i32_0 = arith.constant 0 : i32
    %c0_i32_1 = arith.constant 0 : i32
    %c0_i32_2 = arith.constant 0 : i32
    return %c0_i32, %c0_i32_0, %c0_i32_1 : i32, i32, i32
  }
  func.func @transform_17(%arg0: i32) -> (i32, i32, i32) {
    %c0_i32 = arith.constant 0 : i32
    %c0_i32_0 = arith.constant 0 : i32
    %c0_i32_1 = arith.constant 0 : i32
    %c0_i32_2 = arith.constant 0 : i32
    return %c0_i32, %c0_i32_0, %c0_i32_1 : i32, i32, i32
  }
  func.func @transform_18(%arg0: i32) -> (i32, i32) {
    %c0_i32 = arith.constant 0 : i32
    %c0_i32_0 = arith.constant 0 : i32
    %c0_i32_1 = arith.constant 0 : i32
    return %c0_i32, %c0_i32_0 : i32, i32
  }
  func.func @transform_19(%arg0: i32) -> (i32, i32) {
    %c0_i32 = arith.constant 0 : i32
    %c0_i32_0 = arith.constant 0 : i32
    %c0_i32_1 = arith.constant 0 : i32
    return %c0_i32, %c0_i32_0 : i32, i32
  }
  func.func @transform_20(%arg0: i32) -> (i32, i32) {
    %c0_i32 = arith.constant 0 : i32
    %c0_i32_0 = arith.constant 0 : i32
    %c0_i32_1 = arith.constant 0 : i32
    return %c0_i32, %c0_i32_0 : i32, i32
  }
  func.func @transform_21(%arg0: i32) -> (i32, i32) {
    %c0_i32 = arith.constant 0 : i32
    %c0_i32_0 = arith.constant 0 : i32
    %c0_i32_1 = arith.constant 0 : i32
    return %c0_i32, %c0_i32_0 : i32, i32
  }
  func.func @transform_22(%arg0: i32) -> (i32, i32) {
    %c0_i32 = arith.constant 0 : i32
    %c0_i32_0 = arith.constant 0 : i32
    %c0_i32_1 = arith.constant 0 : i32
    return %c0_i32, %c0_i32_0 : i32, i32
  }
}

</mosaic_0001>

<llo_original>
// kernel: tpu_custom_call.1
$region0: #{tpu_custom_call.1}
  #allocation0 [shape = 'u32[]', space=smem, size = 0x4, offset = 0x4, fixed_abs, tag = 'smem constant byte address 0x4 - core index']
  #allocation1 [shape = 'u32[72,128]{1,0:T(1,128)}', space=vmem, size = 0x9000, scoped, tag = 'internal scratch']
  %s0 = inlined_call_operand.vmem [shape: f32[32,8], index: 0, kind: input, shape index: {}]
  %s1 = inlined_call_operand.hbm [shape: bf16[8,128], index: 1, kind: input, shape index: {}]
  %s2 = inlined_call_operand.vmem [shape: f32[32,128], index: 2, kind: input, shape index: {}]
  %s3 = inlined_call_operand.hbm [shape: bf16[256,128], index: 3, kind: input, shape index: {}]
  %s4 = inlined_call_operand.hbm [shape: f32[32,256], index: 4, kind: input, shape index: {}]
  %s5 = inlined_call_operand.hbm [shape: bf16[256,256], index: 5, kind: input, shape index: {}]
  %s6 = inlined_call_operand.hbm [shape: bf16[5,128,384], index: 6, kind: input, shape index: {}]
  %s7 = inlined_call_operand.hbm [shape: f32[5,1,384], index: 7, kind: input, shape index: {}]
  %s8 = inlined_call_operand.hbm [shape: bf16[5,128,128], index: 8, kind: input, shape index: {}]
  %s9 = inlined_call_operand.hbm [shape: f32[5,1,128], index: 9, kind: input, shape index: {}]
  %s10 = inlined_call_operand.hbm [shape: f32[5,1,128], index: 10, kind: input, shape index: {}]
  %s11 = inlined_call_operand.hbm [shape: f32[5,1,128], index: 11, kind: input, shape index: {}]
  %s12 = inlined_call_operand.hbm [shape: f32[5,1,128], index: 12, kind: input, shape index: {}]
  %s13 = inlined_call_operand.hbm [shape: f32[5,1,128], index: 13, kind: input, shape index: {}]
  %s14 = inlined_call_operand.hbm [shape: bf16[5,128,512], index: 14, kind: input, shape index: {}]
  %s15 = inlined_call_operand.vmem [shape: f32[5,1,512], index: 15, kind: input, shape index: {}]
  %s16 = inlined_call_operand.hbm [shape: bf16[5,512,128], index: 16, kind: input, shape index: {}]
  %s17 = inlined_call_operand.hbm [shape: f32[5,1,128], index: 17, kind: input, shape index: {}]
  %s18 = inlined_call_operand.hbm [shape: bf16[2048,128], index: 18, kind: input, shape index: {}]
  %s19 = inlined_call_operand.vmem [shape: f32[1,128], index: 19, kind: input, shape index: {}]
  %s20 = inlined_call_operand.hbm [shape: bf16[128,128], index: 20, kind: input, shape index: {}]
  %s21 = inlined_call_operand.vmem [shape: f32[1,128], index: 21, kind: input, shape index: {}]
  %s22 = inlined_call_operand.hbm [shape: f32[2,128], index: 22, kind: output, shape index: {}]
  %s23 = sld [smem:[#allocation0]]
  $region166: #{tpu_custom_call.1} parent=0
    _
  %s25 = ssub.s32 1, %s23
  %s26 = scalar_select 0, %s25, %s23
  $region1: #{tpu_custom_call.1} parent=0
    #allocation2 [shape = 'u8[2048]{0}', space=vmem, size = 0x800, scoped, tag = 'input window, operand 1, single buffered']
    #allocation3 [shape = 's32[1]{0}', space=sflag, size = 0x4, scoped, tag = 'scoped memory for tpu_custom_call.1']
    #allocation4 [shape = 's32[1]{0}', space=sflag, size = 0x4, scoped, tag = 'scoped memory for tpu_custom_call.1']
    #allocation5 [shape = 'u8[65536]{0}', space=vmem, size = 0x10000, scoped, tag = 'input window, operand 3, single buffered']
    #allocation6 [shape = 's32[1]{0}', space=sflag, size = 0x4, scoped, tag = 'scoped memory for tpu_custom_call.1']
    #allocation7 [shape = 'u8[32768]{0}', space=vmem, size = 0x8000, scoped, tag = 'input window, operand 4, single buffered']
    #allocation8 [shape = 'u8[131072]{0}', space=vmem, size = 0x20000, scoped, tag = 'input window, operand 5, single buffered']
    #allocation9 [shape = 's32[1]{0}', space=sflag, size = 0x4, scoped, tag = 'scoped memory for tpu_custom_call.1']
    #allocation10 [shape = 'u8[491520]{0}', space=vmem, size = 0x78000, scoped, tag = 'input window, operand 6, single buffered']
    #allocation11 [shape = 'u8[7680]{0}', space=vmem, size = 0x2000, scoped, tag = 'input window, operand 7, single buffered']
    #allocation12 [shape = 's32[1]{0}', space=sflag, size = 0x4, scoped, tag = 'scoped memory for tpu_custom_call.1']
    #allocation13 [shape = 'u8[163840]{0}', space=vmem, size = 0x28000, scoped, tag = 'input window, operand 8, single buffered']
    #allocation14 [shape = 'u8[2560]{0}', space=vmem, size = 0xc00, scoped, tag = 'input window, operand 9, single buffered']
    #allocation15 [shape = 's32[1]{0}', space=sflag, size = 0x4, scoped, tag = 'scoped memory for tpu_custom_call.1']
    #allocation16 [shape = 'u8[2560]{0}', space=vmem, size = 0xc00, scoped, tag = 'input window, operand 10, single buffered']
    #allocation17 [shape = 'u8[2560]{0}', space=vmem, size = 0xc00, scoped, tag = 'input window, operand 11, single buffered']
    #allocation18 [shape = 's32[1]{0}', space=sflag, size = 0x4, scoped, tag = 'scoped memory for tpu_custom_call.1']
    #allocation19 [shape = 'u8[2560]{0}', space=vmem, size = 0xc00, scoped, tag = 'input window, operand 12, single buffered']
    #allocation20 [shape = 'u8[2560]{0}', space=vmem, size = 0xc00, scoped, tag = 'input window, operand 13, single buffered']
    #allocation21 [shape = 's32[1]{0}', space=sflag, size = 0x4, scoped, tag = 'scoped memory for tpu_custom_call.1']
    #allocation22 [shape = 'u8[655360]{0}', space=vmem, size = 0xa0000, scoped, tag = 'input window, operand 14, single buffered']
    #allocation23 [shape = 'u8[655360]{0}', space=vmem, size = 0xa0000, scoped, tag = 'input window, operand 16, single buffered']
    #allocation24 [shape = 's32[1]{0}', space=sflag, size = 0x4, scoped, tag = 'scoped memory for tpu_custom_call.1']
    #allocation25 [shape = 'u8[2560]{0}', space=vmem, size = 0xc00, scoped, tag = 'input window, operand 17, single buffered']
    #allocation26 [shape = 'u8[524288]{0}', space=vmem, size = 0x80000, scoped, tag = 'input window, operand 18, single buffered']
    #allocation27 [shape = 's32[1]{0}', space=sflag, size = 0x4, scoped, tag = 'scoped memory for tpu_custom_call.1']
    #allocation28 [shape = 'u8[32768]{0}', space=vmem, size = 0x8000, scoped, tag = 'input window, operand 20, single buffered']
    #allocation29 [shape = 'u8[1024]{0}', space=vmem, size = 0x400, scoped, tag = 'output window, operand 0, single buffered']
    %27 = vsyncpa [#allocation3], 0
    %28 = vsyncpa [#allocation6], 0
    %29 = vsyncpa [#allocation9], 0
    %30 = vsyncpa [#allocation12], 0
    %31 = vsyncpa [#allocation15], 0
    %32 = vsyncpa [#allocation18], 0
    %33 = vsyncpa [#allocation21], 0
    %34 = vsyncpa [#allocation24], 0
    %35 = vsyncpa [#allocation27], 0
    %36 = vsyncpa [#allocation4], 0
    // Predicated region
    $region2: #{tpu_custom_call.1} parent=1 // pred_check
      _
    $region3: #{tpu_custom_call.1} parent=1 // pred_check_branch
      %38 = sbr.rel (0) target = $region5
    $region4: #{tpu_custom_call.1} parent=1 // pred_region
      _
    $region5: #{tpu_custom_call.1} parent=1 // pred_fallthru
      _
    // Predicated region
    $region6: #{tpu_custom_call.1} parent=1 // pred_check
      _
    $region7: #{tpu_custom_call.1} parent=1 // pred_check_branch
      %40 = sbr.rel (0) target = $region9
    $region8: #{tpu_custom_call.1} parent=1 // pred_region
      %42 = vsyncadd [#allocation3], 0
      %s44 = sshll.u32 %s1, 4
      %s45 = int_to_ptr.hbm [resolvable:$true] %s44
      %s46 = sshll.u32 [#allocation2], 4
      %s47 = int_to_ptr.vmem [resolvable:$true] %s46
      %49 = dma.hbm_to_vmem [thread:$0]  %s45, 64, %s47, [#allocation3]
    $region9: #{tpu_custom_call.1} parent=1 // pred_fallthru
      _
    // Predicated region
    $region10: #{tpu_custom_call.1} parent=1 // pred_check
      _
    $region11: #{tpu_custom_call.1} parent=1 // pred_check_branch
      %51 = sbr.rel (0) target = $region13
    $region12: #{tpu_custom_call.1} parent=1 // pred_region
      _
    $region13: #{tpu_custom_call.1} parent=1 // pred_fallthru
      _
    // Predicated region
    $region14: #{tpu_custom_call.1} parent=1 // pred_check
      _
    $region15: #{tpu_custom_call.1} parent=1 // pred_check_branch
      %53 = sbr.rel (0) target = $region17
    $region16: #{tpu_custom_call.1} parent=1 // pred_region
      %55 = vsyncadd [#allocation6], 0
      %s56 = sshll.u32 %s3, 4
      %s57 = int_to_ptr.hbm [resolvable:$true] %s56
      %s58 = sshll.u32 [#allocation5], 4
      %s59 = int_to_ptr.vmem [resolvable:$true] %s58
      %64 = dma.hbm_to_vmem [thread:$0]  %s57, 2048, %s59, [#allocation6], 64, 64, 4
    $region17: #{tpu_custom_call.1} parent=1 // pred_fallthru
      _
    // Predicated region
    $region18: #{tpu_custom_call.1} parent=1 // pred_check
      _
    $region19: #{tpu_custom_call.1} parent=1 // pred_check_branch
      %66 = sbr.rel (0) target = $region21
    $region20: #{tpu_custom_call.1} parent=1 // pred_region
      %68 = vsyncadd [#allocation6], 0
      %s69 = sshll.u32 %s4, 4
      %s70 = int_to_ptr.hbm [resolvable:$true] %s69
      %s71 = sshll.u32 [#allocation7], 4
      %s72 = int_to_ptr.vmem [resolvable:$true] %s71
      %77 = dma.hbm_to_vmem [thread:$0]  %s70, 1024, %s72, [#allocation6], 256, 256, 16
    $region21: #{tpu_custom_call.1} parent=1 // pred_fallthru
      _
    // Predicated region
    $region22: #{tpu_custom_call.1} parent=1 // pred_check
      _
    $region23: #{tpu_custom_call.1} parent=1 // pred_check_branch
      %79 = sbr.rel (0) target = $region25
    $region24: #{tpu_custom_call.1} parent=1 // pred_region
      %81 = vsyncadd [#allocation9], 0
      %s82 = sshll.u32 %s5, 4
      %s83 = int_to_ptr.hbm [resolvable:$true] %s82
      %s84 = sshll.u32 [#allocation8], 4
      %s85 = int_to_ptr.vmem [resolvable:$true] %s84
      %90 = dma.hbm_to_vmem [thread:$0]  %s83, 4096, %s85, [#allocation9], 128, 128, 8
    $region25: #{tpu_custom_call.1} parent=1 // pred_fallthru
      _
    // Predicated region
    $region26: #{tpu_custom_call.1} parent=1 // pred_check
      _
    $region27: #{tpu_custom_call.1} parent=1 // pred_check_branch
      %92 = sbr.rel (0) target = $region29
    $region28: #{tpu_custom_call.1} parent=1 // pred_region
      %94 = vsyncadd [#allocation9], 0
      %s95 = sshll.u32 %s6, 4
      %s96 = int_to_ptr.hbm [resolvable:$true] %s95
      %s97 = sshll.u32 [#allocation10], 4
      %s98 = int_to_ptr.vmem [resolvable:$true] %s97
      %103 = dma.hbm_to_vmem [thread:$0]  %s96, 15360, %s98, [#allocation9], 192, 192, 12
    $region29: #{tpu_custom_call.1} parent=1 // pred_fallthru
      _
    // Predicated region
    $region30: #{tpu_custom_call.1} parent=1 // pred_check
      _
    $region31: #{tpu_custom_call.1} parent=1 // pred_check_branch
      %105 = sbr.rel (0) target = $region33
    $region32: #{tpu_custom_call.1} parent=1 // pred_region
      %107 = vsyncadd [#allocation12], 0
      %s108 = sshll.u32 %s7, 4
      %s109 = int_to_ptr.hbm [resolvable:$true] %s108
      %s110 = sshll.u32 [#allocation11], 4
      %s111 = int_to_ptr.vmem [resolvable:$true] %s110
      %116 = dma.hbm_to_vmem [thread:$0]  %s109, 240, %s111, [#allocation12], 48, 48, 3
    $region33: #{tpu_custom_call.1} parent=1 // pred_fallthru
      _
    // Predicated region
    $region34: #{tpu_custom_call.1} parent=1 // pred_check
      _
    $region35: #{tpu_custom_call.1} parent=1 // pred_check_branch
      %118 = sbr.rel (0) target = $region37
    $region36: #{tpu_custom_call.1} parent=1 // pred_region
      %120 = vsyncadd [#allocation12], 0
      %s121 = sshll.u32 %s8, 4
      %s122 = int_to_ptr.hbm [resolvable:$true] %s121
      %s123 = sshll.u32 [#allocation13], 4
      %s124 = int_to_ptr.vmem [resolvable:$true] %s123
      %129 = dma.hbm_to_vmem [thread:$0]  %s122, 5120, %s124, [#allocation12], 64, 64, 4
    $region37: #{tpu_custom_call.1} parent=1 // pred_fallthru
      _
    // Predicated region
    $region38: #{tpu_custom_call.1} parent=1 // pred_check
      _
    $region39: #{tpu_custom_call.1} parent=1 // pred_check_branch
      %131 = sbr.rel (0) target = $region41
    $region40: #{tpu_custom_call.1} parent=1 // pred_region
      %133 = vsyncadd [#allocation15], 0
      %s134 = sshll.u32 %s9, 4
      %s135 = int_to_ptr.hbm [resolvable:$true] %s134
      %s136 = sshll.u32 [#allocation14], 4
      %s137 = int_to_ptr.vmem [resolvable:$true] %s136
      %142 = dma.hbm_to_vmem [thread:$0]  %s135, 80, %s137, [#allocation15], 16, 16, 1
    $region41: #{tpu_custom_call.1} parent=1 // pred_fallthru
      _
    // Predicated region
    $region42: #{tpu_custom_call.1} parent=1 // pred_check
      _
    $region43: #{tpu_custom_call.1} parent=1 // pred_check_branch
      %144 = sbr.rel (0) target = $region45
    $region44: #{tpu_custom_call.1} parent=1 // pred_region
      %146 = vsyncadd [#allocation15], 0
      %s147 = sshll.u32 %s10, 4
      %s148 = int_to_ptr.hbm [resolvable:$true] %s147
      %s149 = sshll.u32 [#allocation16], 4
      %s150 = int_to_ptr.vmem [resolvable:$true] %s149
      %155 = dma.hbm_to_vmem [thread:$0]  %s148, 80, %s150, [#allocation15], 16, 16, 1
    $region45: #{tpu_custom_call.1} parent=1 // pred_fallthru
      _
    // Predicated region
    $region46: #{tpu_custom_call.1} parent=1 // pred_check
      _
    $region47: #{tpu_custom_call.1} parent=1 // pred_check_branch
      %157 = sbr.rel (0) target = $region49
    $region48: #{tpu_custom_call.1} parent=1 // pred_region
      %159 = vsyncadd [#allocation18], 0
      %s160 = sshll.u32 %s11, 4
      %s161 = int_to_ptr.hbm [resolvable:$true] %s160
      %s162 = sshll.u32 [#allocation17], 4
      %s163 = int_to_ptr.vmem [resolvable:$true] %s162
      %168 = dma.hbm_to_vmem [thread:$0]  %s161, 80, %s163, [#allocation18], 16, 16, 1
    $region49: #{tpu_custom_call.1} parent=1 // pred_fallthru
      _
    // Predicated region
    $region50: #{tpu_custom_call.1} parent=1 // pred_check
      _
    $region51: #{tpu_custom_call.1} parent=1 // pred_check_branch
      %170 = sbr.rel (0) target = $region53
    $region52: #{tpu_custom_call.1} parent=1 // pred_region
      %172 = vsyncadd [#allocation18], 0
      %s173 = sshll.u32 %s12, 4
      %s174 = int_to_ptr.hbm [resolvable:$true] %s173
      %s175 = sshll.u32 [#allocation19], 4
      %s176 = int_to_ptr.vmem [resolvable:$true] %s175
      %181 = dma.hbm_to_vmem [thread:$0]  %s174, 80, %s176, [#allocation18], 16, 16, 1
    $region53: #{tpu_custom_call.1} parent=1 // pred_fallthru
      _
    // Predicated region
    $region54: #{tpu_custom_call.1} parent=1 // pred_check
      _
    $region55: #{tpu_custom_call.1} parent=1 // pred_check_branch
      %183 = sbr.rel (0) target = $region57
    $region56: #{tpu_custom_call.1} parent=1 // pred_region
      %185 = vsyncadd [#allocation21], 0
      %s186 = sshll.u32 %s13, 4
      %s187 = int_to_ptr.hbm [resolvable:$true] %s186
      %s188 = sshll.u32 [#allocation20], 4
      %s189 = int_to_ptr.vmem [resolvable:$true] %s188
      %194 = dma.hbm_to_vmem [thread:$0]  %s187, 80, %s189, [#allocation21], 16, 16, 1
    $region57: #{tpu_custom_call.1} parent=1 // pred_fallthru
      _
    // Predicated region
    $region58: #{tpu_custom_call.1} parent=1 // pred_check
      _
    $region59: #{tpu_custom_call.1} parent=1 // pred_check_branch
      %196 = sbr.rel (0) target = $region61
    $region60: #{tpu_custom_call.1} parent=1 // pred_region
      %198 = vsyncadd [#allocation21], 0
      %s199 = sshll.u32 %s14, 4
      %s200 = int_to_ptr.hbm [resolvable:$true] %s199
      %s201 = sshll.u32 [#allocation22], 4
      %s202 = int_to_ptr.vmem [resolvable:$true] %s201
      %207 = dma.hbm_to_vmem [thread:$0]  %s200, 20480, %s202, [#allocation21], 256, 256, 16
    $region61: #{tpu_custom_call.1} parent=1 // pred_fallthru
      _
    // Predicated region
    $region62: #{tpu_custom_call.1} parent=1 // pred_check
      _
    $region63: #{tpu_custom_call.1} parent=1 // pred_check_branch
      %209 = sbr.rel (0) target = $region65
    $region64: #{tpu_custom_call.1} parent=1 // pred_region
      _
    $region65: #{tpu_custom_call.1} parent=1 // pred_fallthru
      _
    // Predicated region
    $region66: #{tpu_custom_call.1} parent=1 // pred_check
      _
    $region67: #{tpu_custom_call.1} parent=1 // pred_check_branch
      %211 = sbr.rel (0) target = $region69
    $region68: #{tpu_custom_call.1} parent=1 // pred_region
      %213 = vsyncadd [#allocation24], 0
      %s214 = sshll.u32 %s16, 4
      %s215 = int_to_ptr.hbm [resolvable:$true] %s214
      %s216 = sshll.u32 [#allocation23], 4
      %s217 = int_to_ptr.vmem [resolvable:$true] %s216
      %222 = dma.hbm_to_vmem [thread:$0]  %s215, 20480, %s217, [#allocation24], 64, 64, 4
    $region69: #{tpu_custom_call.1} parent=1 // pred_fallthru
      _
    // Predicated region
    $region70: #{tpu_custom_call.1} parent=1 // pred_check
      _
    $region71: #{tpu_custom_call.1} parent=1 // pred_check_branch
      %224 = sbr.rel (0) target = $region73
    $region72: #{tpu_custom_call.1} parent=1 // pred_region
      %226 = vsyncadd [#allocation24], 0
      %s227 = sshll.u32 %s17, 4
      %s228 = int_to_ptr.hbm [resolvable:$true] %s227
      %s229 = sshll.u32 [#allocation25], 4
      %s230 = int_to_ptr.vmem [resolvable:$true] %s229
      %235 = dma.hbm_to_vmem [thread:$0]  %s228, 80, %s230, [#allocation24], 16, 16, 1
    $region73: #{tpu_custom_call.1} parent=1 // pred_fallthru
      _
    // Predicated region
    $region74: #{tpu_custom_call.1} parent=1 // pred_check
      _
    $region75: #{tpu_custom_call.1} parent=1 // pred_check_branch
      %237 = sbr.rel (0) target = $region77
    $region76: #{tpu_custom_call.1} parent=1 // pred_region
      %239 = vsyncadd [#allocation27], 0
      %s240 = sshll.u32 %s18, 4
      %s241 = int_to_ptr.hbm [resolvable:$true] %s240
      %s242 = sshll.u32 [#allocation26], 4
      %s243 = int_to_ptr.vmem [resolvable:$true] %s242
      %248 = dma.hbm_to_vmem [thread:$0]  %s241, 16384, %s243, [#allocation27], 64, 64, 4
    $region77: #{tpu_custom_call.1} parent=1 // pred_fallthru
      _
    // Predicated region
    $region78: #{tpu_custom_call.1} parent=1 // pred_check
      _
    $region79: #{tpu_custom_call.1} parent=1 // pred_check_branch
      %250 = sbr.rel (0) target = $region81
    $region80: #{tpu_custom_call.1} parent=1 // pred_region
      _
    $region81: #{tpu_custom_call.1} parent=1 // pred_fallthru
      _
    // Predicated region
    $region82: #{tpu_custom_call.1} parent=1 // pred_check
      _
    $region83: #{tpu_custom_call.1} parent=1 // pred_check_branch
      %252 = sbr.rel (0) target = $region85
    $region84: #{tpu_custom_call.1} parent=1 // pred_region
      %254 = vsyncadd [#allocation27], 0
      %s255 = sshll.u32 %s20, 4
      %s256 = int_to_ptr.hbm [resolvable:$true] %s255
      %s257 = sshll.u32 [#allocation28], 4
      %s258 = int_to_ptr.vmem [resolvable:$true] %s257
      %263 = dma.hbm_to_vmem [thread:$0]  %s256, 1024, %s258, [#allocation27], 64, 64, 4
    $region85: #{tpu_custom_call.1} parent=1 // pred_fallthru
      _
    // Predicated region
    $region86: #{tpu_custom_call.1} parent=1 // pred_check
      _
    $region87: #{tpu_custom_call.1} parent=1 // pred_check_branch
      %265 = sbr.rel (0) target = $region89
    $region88: #{tpu_custom_call.1} parent=1 // pred_region
      _
    $region89: #{tpu_custom_call.1} parent=1 // pred_fallthru
      _
    // Predicated region
    $region90: #{tpu_custom_call.1} parent=1 // pred_check
      _
    $region91: #{tpu_custom_call.1} parent=1 // pred_check_branch
      %267 = sbr.rel (0) target = $region93
    $region92: #{tpu_custom_call.1} parent=1 // pred_region
      %269 = dma.done [#allocation3], 64
    $region93: #{tpu_custom_call.1} parent=1 // pred_fallthru
      _
    // Predicated region
    $region94: #{tpu_custom_call.1} parent=1 // pred_check
      _
    $region95: #{tpu_custom_call.1} parent=1 // pred_check_branch
      %271 = sbr.rel (0) target = $region97
    $region96: #{tpu_custom_call.1} parent=1 // pred_region
      %273 = dma.done [#allocation6], 2048
    $region97: #{tpu_custom_call.1} parent=1 // pred_fallthru
      _
    // Predicated region
    $region98: #{tpu_custom_call.1} parent=1 // pred_check
      _
    $region99: #{tpu_custom_call.1} parent=1 // pred_check_branch
      %275 = sbr.rel (0) target = $region101
    $region100: #{tpu_custom_call.1} parent=1 // pred_region
      %277 = dma.done [#allocation6], 1024
    $region101: #{tpu_custom_call.1} parent=1 // pred_fallthru
      _
    // Predicated region
    $region102: #{tpu_custom_call.1} parent=1 // pred_check
      _
    $region103: #{tpu_custom_call.1} parent=1 // pred_check_branch
      %279 = sbr.rel (0) target = $region105
    $region104: #{tpu_custom_call.1} parent=1 // pred_region
      %281 = dma.done [#allocation9], 4096
    $region105: #{tpu_custom_call.1} parent=1 // pred_fallthru
      _
    // Predicated region
    $region106: #{tpu_custom_call.1} parent=1 // pred_check
      _
    $region107: #{tpu_custom_call.1} parent=1 // pred_check_branch
      %283 = sbr.rel (0) target = $region109
    $region108: #{tpu_custom_call.1} parent=1 // pred_region
      %285 = dma.done [#allocation9], 15360
    $region109: #{tpu_custom_call.1} parent=1 // pred_fallthru
      _
    // Predicated region
    $region110: #{tpu_custom_call.1} parent=1 // pred_check
      _
    $region111: #{tpu_custom_call.1} parent=1 // pred_check_branch
      %287 = sbr.rel (0) target = $region113
    $region112: #{tpu_custom_call.1} parent=1 // pred_region
      %289 = dma.done [#allocation12], 240
    $region113: #{tpu_custom_call.1} parent=1 // pred_fallthru
      _
    // Predicated region
    $region114: #{tpu_custom_call.1} parent=1 // pred_check
      _
    $region115: #{tpu_custom_call.1} parent=1 // pred_check_branch
      %291 = sbr.rel (0) target = $region117
    $region116: #{tpu_custom_call.1} parent=1 // pred_region
      %293 = dma.done [#allocation12], 5120
    $region117: #{tpu_custom_call.1} parent=1 // pred_fallthru
      _
    // Predicated region
    $region118: #{tpu_custom_call.1} parent=1 // pred_check
      _
    $region119: #{tpu_custom_call.1} parent=1 // pred_check_branch
      %295 = sbr.rel (0) target = $region121
    $region120: #{tpu_custom_call.1} parent=1 // pred_region
      %297 = dma.done [#allocation15], 80
    $region121: #{tpu_custom_call.1} parent=1 // pred_fallthru
      _
    // Predicated region
    $region122: #{tpu_custom_call.1} parent=1 // pred_check
      _
    $region123: #{tpu_custom_call.1} parent=1 // pred_check_branch
      %299 = sbr.rel (0) target = $region125
    $region124: #{tpu_custom_call.1} parent=1 // pred_region
      %301 = dma.done [#allocation15], 80
    $region125: #{tpu_custom_call.1} parent=1 // pred_fallthru
      _
    // Predicated region
    $region126: #{tpu_custom_call.1} parent=1 // pred_check
      _
    $region127: #{tpu_custom_call.1} parent=1 // pred_check_branch
      %303 = sbr.rel (0) target = $region129
    $region128: #{tpu_custom_call.1} parent=1 // pred_region
      %305 = dma.done [#allocation18], 80
    $region129: #{tpu_custom_call.1} parent=1 // pred_fallthru
      _
    // Predicated region
    $region130: #{tpu_custom_call.1} parent=1 // pred_check
      _
    $region131: #{tpu_custom_call.1} parent=1 // pred_check_branch
      %307 = sbr.rel (0) target = $region133
    $region132: #{tpu_custom_call.1} parent=1 // pred_region
      %309 = dma.done [#allocation18], 80
    $region133: #{tpu_custom_call.1} parent=1 // pred_fallthru
      _
    // Predicated region
    $region134: #{tpu_custom_call.1} parent=1 // pred_check
      _
    $region135: #{tpu_custom_call.1} parent=1 // pred_check_branch
      %311 = sbr.rel (0) target = $region137
    $region136: #{tpu_custom_call.1} parent=1 // pred_region
      %313 = dma.done [#allocation21], 80
    $region137: #{tpu_custom_call.1} parent=1 // pred_fallthru
      _
    // Predicated region
    $region138: #{tpu_custom_call.1} parent=1 // pred_check
      _
    $region139: #{tpu_custom_call.1} parent=1 // pred_check_branch
      %315 = sbr.rel (0) target = $region141
    $region140: #{tpu_custom_call.1} parent=1 // pred_region
      %317 = dma.done [#allocation21], 20480
    $region141: #{tpu_custom_call.1} parent=1 // pred_fallthru
      _
    // Predicated region
    $region142: #{tpu_custom_call.1} parent=1 // pred_check
      _
    $region143: #{tpu_custom_call.1} parent=1 // pred_check_branch
      %319 = sbr.rel (0) target = $region145
    $region144: #{tpu_custom_call.1} parent=1 // pred_region
      %321 = dma.done [#allocation24], 20480
    $region145: #{tpu_custom_call.1} parent=1 // pred_fallthru
      _
    // Predicated region
    $region146: #{tpu_custom_call.1} parent=1 // pred_check
      _
    $region147: #{tpu_custom_call.1} parent=1 // pred_check_branch
      %323 = sbr.rel (0) target = $region149
    $region148: #{tpu_custom_call.1} parent=1 // pred_region
      %325 = dma.done [#allocation24], 80
    $region149: #{tpu_custom_call.1} parent=1 // pred_fallthru
      _
    // Predicated region
    $region150: #{tpu_custom_call.1} parent=1 // pred_check
      _
    $region151: #{tpu_custom_call.1} parent=1 // pred_check_branch
      %327 = sbr.rel (0) target = $region153
    $region152: #{tpu_custom_call.1} parent=1 // pred_region
      %329 = dma.done [#allocation27], 16384
    $region153: #{tpu_custom_call.1} parent=1 // pred_fallthru
      _
    // Predicated region
    $region154: #{tpu_custom_call.1} parent=1 // pred_check
      _
    $region155: #{tpu_custom_call.1} parent=1 // pred_check_branch
      %331 = sbr.rel (0) target = $region157
    $region156: #{tpu_custom_call.1} parent=1 // pred_region
      %333 = dma.done [#allocation27], 1024
    $region157: #{tpu_custom_call.1} parent=1 // pred_fallthru
      _
    %v335 = vld [vmem:[%s0] sm:$0xff]
    %v336 = vld [vmem:[%s0 + $0x8] sm:$0xff]
    %v337 = vld [vmem:[%s0 + $0x10] sm:$0xff]
    %v338 = vld [vmem:[%s0 + $0x18] sm:$0xff]
    %v339 = vpack.c.bf16 %v336, %v335
    %v340 = vpack.c.bf16 %v338, %v337
    %v341 = vld [vmem:[#allocation2] sm:$0xf]
    %v342 = vld [vmem:[%s2] sm:$0xff]
    %v343 = vld [vmem:[%s2 + $0x8] sm:$0xff]
    %v344 = vld [vmem:[%s2 + $0x10] sm:$0xff]
    %v345 = vld [vmem:[%s2 + $0x18] sm:$0xff]
    %vm346 = vcmask 64512
    %v348 = vsel %vm346, %v339, 0
    %v351 = vsel %vm346, %v340, 0
    %vm353 = vcmask 1043456
    %v355 = vsel %vm353, %v341, 0
    %357 = vmatpush.bf16.msra.mxu0 0
    %358 = vmatpush.bf16.msra.mxu0 0
    %359 = vmatpush.bf16.msra.mxu0 0
    %360 = vmatpush.bf16.msra.mxu0 0
    %361 = vmatpush.bf16.msra.mxu0 0
    %362 = vmatpush.bf16.msra.mxu0 0
    %363 = vmatpush.bf16.msra.mxu0 0
    %364 = vmatpush.bf16.msra.mxu0 %v355
    %365 = vmatmul.bf16.gmra.mxu0 %v348
    %v366 = vpop.f32.mrf.mxu0
    %v367 = vadd.f32 %v342, %v366
    %v368 = vpop.f32.mrf.mxu0
    %v369 = vadd.f32 %v343, %v368
    %370 = vmatmul.bf16.gmra.mxu0 %v351
    %v371 = vpop.f32.mrf.mxu0
    %v372 = vadd.f32 %v344, %v371
    %v373 = vpop.f32.mrf.mxu0
    %v374 = vadd.f32 %v345, %v373
    %375 = vdwg.mxu0
    %v376 = vld [vmem:[#allocation5] sm:$0xf]
    %v377 = vld [vmem:[#allocation5 + $0x4] sm:$0xf]
    %v378 = vld [vmem:[#allocation5 + $0x8] sm:$0xf]
    %v379 = vld [vmem:[#allocation5 + $0xc] sm:$0xf]
    %v380 = vld [vmem:[#allocation5 + $0x10] sm:$0xf]
    %v381 = vld [vmem:[#allocation5 + $0x14] sm:$0xf]
    %v382 = vld [vmem:[#allocation5 + $0x18] sm:$0xf]
    %v383 = vld [vmem:[#allocation5 + $0x1c] sm:$0xf]
    %v384 = vld [vmem:[#allocation5 + $0x20] sm:$0xf]
    %v385 = vld [vmem:[#allocation5 + $0x24] sm:$0xf]
    %v386 = vld [vmem:[#allocation5 + $0x28] sm:$0xf]
    %v387 = vld [vmem:[#allocation5 + $0x2c] sm:$0xf]
    %v388 = vld [vmem:[#allocation5 + $0x30] sm:$0xf]
    %v389 = vld [vmem:[#allocation5 + $0x34] sm:$0xf]
    %v390 = vld [vmem:[#allocation5 + $0x38] sm:$0xf]
    %v391 = vld [vmem:[#allocation5 + $0x3c] sm:$0xf]
    %v392 = vld [vmem:[#allocation5 + $0x40] sm:$0xf]
    %v393 = vld [vmem:[#allocation5 + $0x44] sm:$0xf]
    %v394 = vld [vmem:[#allocation5 + $0x48] sm:$0xf]
    %v395 = vld [vmem:[#allocation5 + $0x4c] sm:$0xf]
    %v396 = vld [vmem:[#allocation5 + $0x50] sm:$0xf]
    %v397 = vld [vmem:[#allocation5 + $0x54] sm:$0xf]
    %v398 = vld [vmem:[#allocation5 + $0x58] sm:$0xf]
    %v399 = vld [vmem:[#allocation5 + $0x5c] sm:$0xf]
    %v400 = vld [vmem:[#allocation5 + $0x60] sm:$0xf]
    %v401 = vld [vmem:[#allocation5 + $0x64] sm:$0xf]
    %v402 = vld [vmem:[#allocation5 + $0x68] sm:$0xf]
    %v403 = vld [vmem:[#allocation5 + $0x6c] sm:$0xf]
    %v404 = vld [vmem:[#allocation5 + $0x70] sm:$0xf]
    %v405 = vld [vmem:[#allocation5 + $0x74] sm:$0xf]
    %v406 = vld [vmem:[#allocation5 + $0x78] sm:$0xf]
    %v407 = vld [vmem:[#allocation5 + $0x7c] sm:$0xf]
    %v408 = vld [vmem:[#allocation7] sm:$0xff]
    %v409 = vld [vmem:[#allocation7 + $0x8] sm:$0xff]
    %v410 = vld [vmem:[#allocation7 + $0x10] sm:$0xff]
    %v411 = vld [vmem:[#allocation7 + $0x18] sm:$0xff]
    %v412 = vld [vmem:[#allocation7 + $0x20] sm:$0xff]
    %v413 = vld [vmem:[#allocation7 + $0x28] sm:$0xff]
    %v414 = vld [vmem:[#allocation7 + $0x30] sm:$0xff]
    %v415 = vld [vmem:[#allocation7 + $0x38] sm:$0xff]
    %v416 = vld [vmem:[#allocation8] sm:$0xff]
    %v417 = vld [vmem:[#allocation8 + $0x8] sm:$0xff]
    %v418 = vld [vmem:[#allocation8 + $0x10] sm:$0xff]
    %v419 = vld [vmem:[#allocation8 + $0x18] sm:$0xff]
    %v420 = vld [vmem:[#allocation8 + $0x20] sm:$0xff]
    %v421 = vld [vmem:[#allocation8 + $0x28] sm:$0xff]
    %v422 = vld [vmem:[#allocation8 + $0x30] sm:$0xff]
    %v423 = vld [vmem:[#allocation8 + $0x38] sm:$0xff]
    %v424 = vld [vmem:[#allocation8 + $0x40] sm:$0xff]
    %v425 = vld [vmem:[#allocation8 + $0x48] sm:$0xff]
    %v426 = vld [vmem:[#allocation8 + $0x50] sm:$0xff]
    %v427 = vld [vmem:[#allocation8 + $0x58] sm:$0xff]
    %v428 = vld [vmem:[#allocation8 + $0x60] sm:$0xff]
    %v429 = vld [vmem:[#allocation8 + $0x68] sm:$0xff]
    %v430 = vld [vmem:[#allocation8 + $0x70] sm:$0xff]
    %v431 = vld [vmem:[#allocation8 + $0x78] sm:$0xff]
    %v432 = vld [vmem:[#allocation8 + $0x80] sm:$0xff]
    %v433 = vld [vmem:[#allocation8 + $0x88] sm:$0xff]
    %v434 = vld [vmem:[#allocation8 + $0x90] sm:$0xff]
    %v435 = vld [vmem:[#allocation8 + $0x98] sm:$0xff]
    %v436 = vld [vmem:[#allocation8 + $0xa0] sm:$0xff]
    %v437 = vld [vmem:[#allocation8 + $0xa8] sm:$0xff]
    %v438 = vld [vmem:[#allocation8 + $0xb0] sm:$0xff]
    %v439 = vld [vmem:[#allocation8 + $0xb8] sm:$0xff]
    %v440 = vld [vmem:[#allocation8 + $0xc0] sm:$0xff]
    %v441 = vld [vmem:[#allocation8 + $0xc8] sm:$0xff]
    %v442 = vld [vmem:[#allocation8 + $0xd0] sm:$0xff]
    %v443 = vld [vmem:[#allocation8 + $0xd8] sm:$0xff]
    %v444 = vld [vmem:[#allocation8 + $0xe0] sm:$0xff]
    %v445 = vld [vmem:[#allocation8 + $0xe8] sm:$0xff]
    %v446 = vld [vmem:[#allocation8 + $0xf0] sm:$0xff]
    %v447 = vld [vmem:[#allocation8 + $0xf8] sm:$0xff]
    %v448 = vpack.c.bf16 %v369, %v367
    %v449 = vpack.c.bf16 %v374, %v372
    %v450 = vld [vmem:[#allocation10] sm:$0xff]
    %v451 = vld [vmem:[#allocation10 + $0x8] sm:$0xf]
    %v452 = vld [vmem:[#allocation10 + $0xc] sm:$0xff]
    %v453 = vld [vmem:[#allocation10 + $0x14] sm:$0xf]
    %v454 = vld [vmem:[#allocation10 + $0x18] sm:$0xff]
    %v455 = vld [vmem:[#allocation10 + $0x20] sm:$0xf]
    %v456 = vld [vmem:[#allocation10 + $0x24] sm:$0xff]
    %v457 = vld [vmem:[#allocation10 + $0x2c] sm:$0xf]
    %v458 = vld [vmem:[#allocation10 + $0x30] sm:$0xff]
    %v459 = vld [vmem:[#allocation10 + $0x38] sm:$0xf]
    %v460 = vld [vmem:[#allocation10 + $0x3c] sm:$0xff]
    %v461 = vld [vmem:[#allocation10 + $0x44] sm:$0xf]
    %v462 = vld [vmem:[#allocation10 + $0x48] sm:$0xff]
    %v463 = vld [vmem:[#allocation10 + $0x50] sm:$0xf]
    %v464 = vld [vmem:[#allocation10 + $0x54] sm:$0xff]
    %v465 = vld [vmem:[#allocation10 + $0x5c] sm:$0xf]
    %v466 = vld [vmem:[#allocation10 + $0x60] sm:$0xff]
    %v467 = vld [vmem:[#allocation10 + $0x68] sm:$0xf]
    %v468 = vld [vmem:[#allocation10 + $0x6c] sm:$0xff]
    %v469 = vld [vmem:[#allocation10 + $0x74] sm:$0xf]
    %v470 = vld [vmem:[#allocation10 + $0x78] sm:$0xff]
    %v471 = vld [vmem:[#allocation10 + $0x80] sm:$0xf]
    %v472 = vld [vmem:[#allocation10 + $0x84] sm:$0xff]
    %v473 = vld [vmem:[#allocation10 + $0x8c] sm:$0xf]
    %v474 = vld [vmem:[#allocation10 + $0x90] sm:$0xff]
    %v475 = vld [vmem:[#allocation10 + $0x98] sm:$0xf]
    %v476 = vld [vmem:[#allocation10 + $0x9c] sm:$0xff]
    %v477 = vld [vmem:[#allocation10 + $0xa4] sm:$0xf]
    %v478 = vld [vmem:[#allocation10 + $0xa8] sm:$0xff]
    %v479 = vld [vmem:[#allocation10 + $0xb0] sm:$0xf]
    %v480 = vld [vmem:[#allocation10 + $0xb4] sm:$0xff]
    %v481 = vld [vmem:[#allocation10 + $0xbc] sm:$0xf]
    %v482 = vld [vmem:[#allocation11] sm:$0x7]
    %v484 = vperm.slane %v482, 0
    %v485 = vperm.slane %v482, 1
    %v486 = vperm.slane %v482, 2
    %v522 = vunpack.c.l.b16 %v450
    %v523 = vunpack.c.h.b16 %v450
    %v524 = vunpack.c.l.b16 %v451
    %v525 = vunpack.c.l.b16 %v452
    %v526 = vunpack.c.h.b16 %v452
    %v527 = vunpack.c.l.b16 %v453
    %v528 = vunpack.c.l.b16 %v454
    %v529 = vunpack.c.h.b16 %v454
    %v530 = vunpack.c.l.b16 %v455
    %v531 = vunpack.c.l.b16 %v456
    %v532 = vunpack.c.h.b16 %v456
    %v533 = vunpack.c.l.b16 %v457
    %v534 = vunpack.c.l.b16 %v458
    %v535 = vunpack.c.h.b16 %v458
    %v536 = vunpack.c.l.b16 %v459
    %v537 = vunpack.c.l.b16 %v460
    %v538 = vunpack.c.h.b16 %v460
    %v539 = vunpack.c.l.b16 %v461
    %v540 = vunpack.c.l.b16 %v462
    %v541 = vunpack.c.h.b16 %v462
    %v542 = vunpack.c.l.b16 %v463
    %v543 = vunpack.c.l.b16 %v464
    %v544 = vunpack.c.h.b16 %v464
    %v545 = vunpack.c.l.b16 %v465
    %v546 = vunpack.c.l.b16 %v466
    %v547 = vunpack.c.h.b16 %v466
    %v548 = vunpack.c.l.b16 %v467
    %v549 = vunpack.c.l.b16 %v468
    %v550 = vunpack.c.h.b16 %v468
    %v551 = vunpack.c.l.b16 %v469
    %v552 = vunpack.c.l.b16 %v470
    %v553 = vunpack.c.h.b16 %v470
    %v554 = vunpack.c.l.b16 %v471
    %v555 = vunpack.c.l.b16 %v472
    %v556 = vunpack.c.h.b16 %v472
    %v557 = vunpack.c.l.b16 %v473
    %v558 = vunpack.c.l.b16 %v474
    %v559 = vunpack.c.h.b16 %v474
    %v560 = vunpack.c.l.b16 %v475
    %v561 = vunpack.c.l.b16 %v476
    %v562 = vunpack.c.h.b16 %v476
    %v563 = vunpack.c.l.b16 %v477
    %v564 = vunpack.c.l.b16 %v478
    %v565 = vunpack.c.h.b16 %v478
    %v566 = vunpack.c.l.b16 %v479
    %v567 = vunpack.c.l.b16 %v480
    %v568 = vunpack.c.h.b16 %v480
    %v569 = vunpack.c.l.b16 %v481
    %v570 = vpack.c.b16 %v525, %v522
    %v571 = vpack.c.b16 %v526, %v523
    %v572 = vpack.c.b16 %v527, %v524
    %v573 = vpack.c.b16 %v531, %v528
    %v574 = vpack.c.b16 %v532, %v529
    %v575 = vpack.c.b16 %v533, %v530
    %v576 = vpack.c.b16 %v537, %v534
    %v577 = vpack.c.b16 %v538, %v535
    %v578 = vpack.c.b16 %v539, %v536
    %v579 = vpack.c.b16 %v543, %v540
    %v580 = vpack.c.b16 %v544, %v541
    %v581 = vpack.c.b16 %v545, %v542
    %v582 = vpack.c.b16 %v549, %v546
    %v583 = vpack.c.b16 %v550, %v547
    %v584 = vpack.c.b16 %v551, %v548
    %v585 = vpack.c.b16 %v555, %v552
    %v586 = vpack.c.b16 %v556, %v553
    %v587 = vpack.c.b16 %v557, %v554
    %v588 = vpack.c.b16 %v561, %v558
    %v589 = vpack.c.b16 %v562, %v559
    %v590 = vpack.c.b16 %v563, %v560
    %v591 = vpack.c.b16 %v567, %v564
    %v592 = vpack.c.b16 %v568, %v565
    %v593 = vpack.c.b16 %v569, %v566
    %618 = vmatpush.bf16.msra.mxu0 %v591
    %619 = vmatpush.bf16.msra.mxu0 %v588
    %620 = vmatpush.bf16.msra.mxu0 %v585
    %621 = vmatpush.bf16.msra.mxu0 %v582
    %622 = vmatpush.bf16.msra.mxu0 %v579
    %623 = vmatpush.bf16.msra.mxu0 %v576
    %624 = vmatpush.bf16.msra.mxu0 %v573
    %625 = vmatpush.bf16.msra.mxu0 %v570
    %626 = vmatmul.bf16.gmra.mxu0 %v448
    %v627 = vpop.f32.mrf.mxu0
    %v628 = vadd.f32 %v484, %v627
    %v629 = vpop.f32.mrf.mxu0
    %v630 = vadd.f32 %v484, %v629
    %631 = vmatmul.bf16.gmra.mxu0 %v449
    %v632 = vpop.f32.mrf.mxu0
    %v633 = vadd.f32 %v484, %v632
    %v634 = vpop.f32.mrf.mxu0
    %v635 = vadd.f32 %v484, %v634
    %636 = vdwg.mxu0
    %637 = vmatpush.bf16.msra.mxu0 %v592
    %638 = vmatpush.bf16.msra.mxu0 %v589
    %639 = vmatpush.bf16.msra.mxu0 %v586
    %640 = vmatpush.bf16.msra.mxu0 %v583
    %641 = vmatpush.bf16.msra.mxu0 %v580
    %642 = vmatpush.bf16.msra.mxu0 %v577
    %643 = vmatpush.bf16.msra.mxu0 %v574
    %644 = vmatpush.bf16.msra.mxu0 %v571
    %645 = vmatmul.bf16.gmra.mxu0 %v448
    %v646 = vpop.f32.mrf.mxu0
    %v647 = vadd.f32 %v485, %v646
    %v648 = vpop.f32.mrf.mxu0
    %v649 = vadd.f32 %v485, %v648
    %650 = vmatmul.bf16.gmra.mxu0 %v449
    %v651 = vpop.f32.mrf.mxu0
    %v652 = vadd.f32 %v485, %v651
    %v653 = vpop.f32.mrf.mxu0
    %v654 = vadd.f32 %v485, %v653
    %655 = vdwg.mxu0
    %656 = vmatpush.bf16.msra.mxu0 %v593
    %657 = vmatpush.bf16.msra.mxu0 %v590
    %658 = vmatpush.bf16.msra.mxu0 %v587
    %659 = vmatpush.bf16.msra.mxu0 %v584
    %660 = vmatpush.bf16.msra.mxu0 %v581
    %661 = vmatpush.bf16.msra.mxu0 %v578
    %662 = vmatpush.bf16.msra.mxu0 %v575
    %663 = vmatpush.bf16.msra.mxu0 %v572
    %664 = vmatmul.bf16.gmra.mxu0 %v448
    %v665 = vpop.f32.mrf.mxu0
    %v666 = vadd.f32 %v486, %v665
    %v667 = vpop.f32.mrf.mxu0
    %v668 = vadd.f32 %v486, %v667
    %669 = vmatmul.bf16.gmra.mxu0 %v449
    %v670 = vpop.f32.mrf.mxu0
    %v671 = vadd.f32 %v486, %v670
    %v672 = vpop.f32.mrf.mxu0
    %v673 = vadd.f32 %v486, %v672
    %674 = vdwg.mxu0
    %v675 = vpack.c.bf16 %v630, %v628
    %v676 = vpack.c.bf16 %v635, %v633
    %v677 = vpack.c.bf16 %v647, %v647
    %v678 = vpack.c.bf16 %v649, %v649
    %v679 = vpack.c.bf16 %v652, %v652
    %v680 = vpack.c.bf16 %v654, %v654
    %v681 = vpack.c.bf16 %v666, %v666
    %v682 = vpack.c.bf16 %v668, %v668
    %v683 = vpack.c.bf16 %v671, %v671
    %v684 = vpack.c.bf16 %v673, %v673
    %v689 = vunpack.c.l.b16 %v677
    %v690 = vunpack.c.l.b16 %v678
    %v691 = vunpack.c.l.b16 %v679
    %v692 = vunpack.c.l.b16 %v680
    %v693 = vpack.c.b16 %v690, %v689
    %v694 = vpack.c.b16 %v692, %v691
    %v697 = vunpack.c.l.bf16 %v693
    %v698 = vunpack.c.h.bf16 %v693
    %v699 = vunpack.c.l.bf16 %v694
    %v700 = vunpack.c.h.bf16 %v694
    %v701 = vunpack.c.l.bf16 %v376
    %v702 = vunpack.c.l.bf16 %v377
    %v703 = vunpack.c.l.bf16 %v378
    %v704 = vunpack.c.l.bf16 %v379
    %v705 = vunpack.c.l.bf16 %v380
    %v706 = vunpack.c.l.bf16 %v381
    %v707 = vunpack.c.l.bf16 %v382
    %v708 = vunpack.c.l.bf16 %v383
    %v709 = vunpack.c.l.bf16 %v384
    %v710 = vunpack.c.l.bf16 %v385
    %v711 = vunpack.c.l.bf16 %v386
    %v712 = vunpack.c.l.bf16 %v387
    %v713 = vunpack.c.l.bf16 %v388
    %v714 = vunpack.c.l.bf16 %v389
    %v715 = vunpack.c.l.bf16 %v390
    %v716 = vunpack.c.l.bf16 %v391
    %v717 = vunpack.c.l.bf16 %v392
    %v718 = vunpack.c.l.bf16 %v393
    %v719 = vunpack.c.l.bf16 %v394
    %v720 = vunpack.c.l.bf16 %v395
    %v721 = vunpack.c.l.bf16 %v396
    %v722 = vunpack.c.l.bf16 %v397
    %v723 = vunpack.c.l.bf16 %v398
    %v724 = vunpack.c.l.bf16 %v399
    %v725 = vunpack.c.l.bf16 %v400
    %v726 = vunpack.c.l.bf16 %v401
    %v727 = vunpack.c.l.bf16 %v402
    %v728 = vunpack.c.l.bf16 %v403
    %v729 = vunpack.c.l.bf16 %v404
    %v730 = vunpack.c.l.bf16 %v405
    %v731 = vunpack.c.l.bf16 %v406
    %v732 = vunpack.c.l.bf16 %v407
    %v733 = vmul.f32 %v697, %v701
    %v734 = vmul.f32 %v698, %v702
    %v735 = vmul.f32 %v699, %v703
    %v736 = vmul.f32 %v700, %v704
    %v737 = vmul.f32 %v697, %v705
    %v738 = vmul.f32 %v698, %v706
    %v739 = vmul.f32 %v699, %v707
    %v740 = vmul.f32 %v700, %v708
    %v741 = vmul.f32 %v697, %v709
    %v742 = vmul.f32 %v698, %v710
    %v743 = vmul.f32 %v699, %v711
    %v744 = vmul.f32 %v700, %v712
    %v745 = vmul.f32 %v697, %v713
    %v746 = vmul.f32 %v698, %v714
    %v747 = vmul.f32 %v699, %v715
    %v748 = vmul.f32 %v700, %v716
    %v749 = vmul.f32 %v697, %v717
    %v750 = vmul.f32 %v698, %v718
    %v751 = vmul.f32 %v699, %v719
    %v752 = vmul.f32 %v700, %v720
    %v753 = vmul.f32 %v697, %v721
    %v754 = vmul.f32 %v698, %v722
    %v755 = vmul.f32 %v699, %v723
    %v756 = vmul.f32 %v700, %v724
    %v757 = vmul.f32 %v697, %v725
    %v758 = vmul.f32 %v698, %v726
    %v759 = vmul.f32 %v699, %v727
    %v760 = vmul.f32 %v700, %v728
    %v761 = vmul.f32 %v697, %v729
    %v762 = vmul.f32 %v698, %v730
    %v763 = vmul.f32 %v699, %v731
    %v764 = vmul.f32 %v700, %v732
    %v765 = vpack.c.bf16 %v734, %v733
    %v766 = vpack.c.bf16 %v736, %v735
    %v767 = vpack.c.bf16 %v738, %v737
    %v768 = vpack.c.bf16 %v740, %v739
    %v769 = vpack.c.bf16 %v742, %v741
    %v770 = vpack.c.bf16 %v744, %v743
    %v771 = vpack.c.bf16 %v746, %v745
    %v772 = vpack.c.bf16 %v748, %v747
    %v773 = vpack.c.bf16 %v750, %v749
    %v774 = vpack.c.bf16 %v752, %v751
    %v775 = vpack.c.bf16 %v754, %v753
    %v776 = vpack.c.bf16 %v756, %v755
    %v777 = vpack.c.bf16 %v758, %v757
    %v778 = vpack.c.bf16 %v760, %v759
    %v779 = vpack.c.bf16 %v762, %v761
    %v780 = vpack.c.bf16 %v764, %v763
    %v785 = vunpack.c.l.b16 %v681
    %v786 = vunpack.c.l.b16 %v682
    %v787 = vunpack.c.l.b16 %v683
    %v788 = vunpack.c.l.b16 %v684
    %v789 = vpack.c.b16 %v786, %v785
    %v790 = vpack.c.b16 %v788, %v787
    %v793 = vunpack.c.l.bf16 %v789
    %v794 = vunpack.c.h.bf16 %v789
    %v795 = vunpack.c.l.bf16 %v790
    %v796 = vunpack.c.h.bf16 %v790
    %v797 = vmul.f32 %v793, %v701
    %v798 = vmul.f32 %v794, %v702
    %v799 = vmul.f32 %v795, %v703
    %v800 = vmul.f32 %v796, %v704
    %v801 = vmul.f32 %v793, %v705
    %v802 = vmul.f32 %v794, %v706
    %v803 = vmul.f32 %v795, %v707
    %v804 = vmul.f32 %v796, %v708
    %v805 = vmul.f32 %v793, %v709
    %v806 = vmul.f32 %v794, %v710
    %v807 = vmul.f32 %v795, %v711
    %v808 = vmul.f32 %v796, %v712
    %v809 = vmul.f32 %v793, %v713
    %v810 = vmul.f32 %v794, %v714
    %v811 = vmul.f32 %v795, %v715
    %v812 = vmul.f32 %v796, %v716
    %v813 = vmul.f32 %v793, %v717
    %v814 = vmul.f32 %v794, %v718
    %v815 = vmul.f32 %v795, %v719
    %v816 = vmul.f32 %v796, %v720
    %v817 = vmul.f32 %v793, %v721
    %v818 = vmul.f32 %v794, %v722
    %v819 = vmul.f32 %v795, %v723
    %v820 = vmul.f32 %v796, %v724
    %v821 = vmul.f32 %v793, %v725
    %v822 = vmul.f32 %v794, %v726
    %v823 = vmul.f32 %v795, %v727
    %v824 = vmul.f32 %v796, %v728
    %v825 = vmul.f32 %v793, %v729
    %v826 = vmul.f32 %v794, %v730
    %v827 = vmul.f32 %v795, %v731
    %v828 = vmul.f32 %v796, %v732
    %v829 = vpack.c.bf16 %v798, %v797
    %v830 = vpack.c.bf16 %v800, %v799
    %v831 = vpack.c.bf16 %v802, %v801
    %v832 = vpack.c.bf16 %v804, %v803
    %v833 = vpack.c.bf16 %v806, %v805
    %v834 = vpack.c.bf16 %v808, %v807
    %v835 = vpack.c.bf16 %v810, %v809
    %v836 = vpack.c.bf16 %v812, %v811
    %v837 = vpack.c.bf16 %v814, %v813
    %v838 = vpack.c.bf16 %v816, %v815
    %v839 = vpack.c.bf16 %v818, %v817
    %v840 = vpack.c.bf16 %v820, %v819
    %v841 = vpack.c.bf16 %v822, %v821
    %v842 = vpack.c.bf16 %v824, %v823
    %v843 = vpack.c.bf16 %v826, %v825
    %v844 = vpack.c.bf16 %v828, %v827
    %845 = vmatpush.bf16.xpose.msra.mxu0 %v772
    %846 = vmatpush.bf16.xpose.msra.mxu0 %v771
    %847 = vmatpush.bf16.xpose.msra.mxu0 %v770
    %848 = vmatpush.bf16.xpose.msra.mxu0 %v769
    %849 = vmatpush.bf16.xpose.msra.mxu0 %v768
    %850 = vmatpush.bf16.xpose.msra.mxu0 %v767
    %851 = vmatpush.bf16.xpose.msra.mxu0 %v766
    %852 = vmatpush.bf16.xpose.msra.mxu0 %v765
    %853 = vmatmul.bf16.gmra.mxu0 %v675
    %v854 = vpop.f32.mrf.mxu0
    %v855 = vadd.f32 %v408, %v854
    %v856 = vpop.f32.mrf.mxu0
    %v857 = vadd.f32 %v410, %v856
    %858 = vmatmul.bf16.gmra.mxu0 %v676
    %v859 = vpop.f32.mrf.mxu0
    %v860 = vadd.f32 %v412, %v859
    %v861 = vpop.f32.mrf.mxu0
    %v862 = vadd.f32 %v414, %v861
    %863 = vdwg.mxu0
    %864 = vmatpush.bf16.xpose.msra.mxu0 %v780
    %865 = vmatpush.bf16.xpose.msra.mxu0 %v779
    %866 = vmatpush.bf16.xpose.msra.mxu0 %v778
    %867 = vmatpush.bf16.xpose.msra.mxu0 %v777
    %868 = vmatpush.bf16.xpose.msra.mxu0 %v776
    %869 = vmatpush.bf16.xpose.msra.mxu0 %v775
    %870 = vmatpush.bf16.xpose.msra.mxu0 %v774
    %871 = vmatpush.bf16.xpose.msra.mxu0 %v773
    %872 = vmatmul.bf16.gmra.mxu0 %v675
    %v873 = vpop.f32.mrf.mxu0
    %v874 = vadd.f32 %v409, %v873
    %v875 = vpop.f32.mrf.mxu0
    %v876 = vadd.f32 %v411, %v875
    %877 = vmatmul.bf16.gmra.mxu0 %v676
    %v878 = vpop.f32.mrf.mxu0
    %v879 = vadd.f32 %v413, %v878
    %v880 = vpop.f32.mrf.mxu0
    %v881 = vadd.f32 %v415, %v880
    %882 = vdwg.mxu0
    %v883 = vmax.f32 %v855, %v874
    %884 = vmax.xlane.f32.xlu0 %v883
    %v885 = vpop.xlane.xlu0 %884
    %v886 = vmax.f32 %v857, %v876
    %887 = vmax.xlane.f32.xlu0 %v886
    %v888 = vpop.xlane.xlu0 %887
    %v889 = vmax.f32 %v860, %v879
    %890 = vmax.xlane.f32.xlu0 %v889
    %v891 = vpop.xlane.xlu0 %890
    %v892 = vmax.f32 %v862, %v881
    %893 = vmax.xlane.f32.xlu0 %v892
    %v894 = vpop.xlane.xlu0 %893
    %v895 = vsub.f32 %v855, %v885
    %v896 = vsub.f32 %v874, %v885
    %v897 = vsub.f32 %v857, %v888
    %v898 = vsub.f32 %v876, %v888
    %v899 = vsub.f32 %v860, %v891
    %v900 = vsub.f32 %v879, %v891
    %v901 = vsub.f32 %v862, %v894
    %v902 = vsub.f32 %v881, %v894
    %v903 = vmul.f32 %v895, 1.442695
    %v904 = vpow.pop %v903
    %v905 = vmul.f32 %v896, 1.442695
    %v906 = vpow.pop %v905
    %v907 = vmul.f32 %v897, 1.442695
    %v908 = vpow.pop %v907
    %v909 = vmul.f32 %v898, 1.442695
    %v910 = vpow.pop %v909
    %v911 = vmul.f32 %v899, 1.442695
    %v912 = vpow.pop %v911
    %v913 = vmul.f32 %v900, 1.442695
    %v914 = vpow.pop %v913
    %v915 = vmul.f32 %v901, 1.442695
    %v916 = vpow.pop %v915
    %v917 = vmul.f32 %v902, 1.442695
    %v918 = vpow.pop %v917
    %v919 = vpack.c.bf16 %v908, %v904
    %v920 = vpack.c.bf16 %v910, %v906
    %v921 = vpack.c.bf16 %v916, %v912
    %v922 = vpack.c.bf16 %v918, %v914
    %v955 = vunpack.c.l.b16 %v416
    %v956 = vunpack.c.h.b16 %v416
    %v957 = vunpack.c.l.b16 %v417
    %v958 = vunpack.c.h.b16 %v417
    %v959 = vunpack.c.l.b16 %v418
    %v960 = vunpack.c.h.b16 %v418
    %v961 = vunpack.c.l.b16 %v419
    %v962 = vunpack.c.h.b16 %v419
    %v963 = vunpack.c.l.b16 %v420
    %v964 = vunpack.c.h.b16 %v420
    %v965 = vunpack.c.l.b16 %v421
    %v966 = vunpack.c.h.b16 %v421
    %v967 = vunpack.c.l.b16 %v422
    %v968 = vunpack.c.h.b16 %v422
    %v969 = vunpack.c.l.b16 %v423
    %v970 = vunpack.c.h.b16 %v423
    %v971 = vunpack.c.l.b16 %v424
    %v972 = vunpack.c.h.b16 %v424
    %v973 = vunpack.c.l.b16 %v425
    %v974 = vunpack.c.h.b16 %v425
    %v975 = vunpack.c.l.b16 %v426
    %v976 = vunpack.c.h.b16 %v426
    %v977 = vunpack.c.l.b16 %v427
    %v978 = vunpack.c.h.b16 %v427
    %v979 = vunpack.c.l.b16 %v428
    %v980 = vunpack.c.h.b16 %v428
    %v981 = vunpack.c.l.b16 %v429
    %v982 = vunpack.c.h.b16 %v429
    %v983 = vunpack.c.l.b16 %v430
    %v984 = vunpack.c.h.b16 %v430
    %v985 = vunpack.c.l.b16 %v431
    %v986 = vunpack.c.h.b16 %v431
    %v987 = vunpack.c.l.b16 %v432
    %v988 = vunpack.c.h.b16 %v432
    %v989 = vunpack.c.l.b16 %v433
    %v990 = vunpack.c.h.b16 %v433
    %v991 = vunpack.c.l.b16 %v434
    %v992 = vunpack.c.h.b16 %v434
    %v993 = vunpack.c.l.b16 %v435
    %v994 = vunpack.c.h.b16 %v435
    %v995 = vunpack.c.l.b16 %v436
    %v996 = vunpack.c.h.b16 %v436
    %v997 = vunpack.c.l.b16 %v437
    %v998 = vunpack.c.h.b16 %v437
    %v999 = vunpack.c.l.b16 %v438
    %v1000 = vunpack.c.h.b16 %v438
    %v1001 = vunpack.c.l.b16 %v439
    %v1002 = vunpack.c.h.b16 %v439
    %v1003 = vunpack.c.l.b16 %v440
    %v1004 = vunpack.c.h.b16 %v440
    %v1005 = vunpack.c.l.b16 %v441
    %v1006 = vunpack.c.h.b16 %v441
    %v1007 = vunpack.c.l.b16 %v442
    %v1008 = vunpack.c.h.b16 %v442
    %v1009 = vunpack.c.l.b16 %v443
    %v1010 = vunpack.c.h.b16 %v443
    %v1011 = vunpack.c.l.b16 %v444
    %v1012 = vunpack.c.h.b16 %v444
    %v1013 = vunpack.c.l.b16 %v445
    %v1014 = vunpack.c.h.b16 %v445
    %v1015 = vunpack.c.l.b16 %v446
    %v1016 = vunpack.c.h.b16 %v446
    %v1017 = vunpack.c.l.b16 %v447
    %v1018 = vunpack.c.h.b16 %v447
    %v1019 = vpack.c.b16 %v957, %v955
    %v1020 = vpack.c.b16 %v958, %v956
    %v1021 = vpack.c.b16 %v961, %v959
    %v1022 = vpack.c.b16 %v962, %v960
    %v1023 = vpack.c.b16 %v965, %v963
    %v1024 = vpack.c.b16 %v966, %v964
    %v1025 = vpack.c.b16 %v969, %v967
    %v1026 = vpack.c.b16 %v970, %v968
    %v1027 = vpack.c.b16 %v973, %v971
    %v1028 = vpack.c.b16 %v974, %v972
    %v1029 = vpack.c.b16 %v977, %v975
    %v1030 = vpack.c.b16 %v978, %v976
    %v1031 = vpack.c.b16 %v981, %v979
    %v1032 = vpack.c.b16 %v982, %v980
    %v1033 = vpack.c.b16 %v985, %v983
    %v1034 = vpack.c.b16 %v986, %v984
    %v1035 = vpack.c.b16 %v989, %v987
    %v1036 = vpack.c.b16 %v990, %v988
    %v1037 = vpack.c.b16 %v993, %v991
    %v1038 = vpack.c.b16 %v994, %v992
    %v1039 = vpack.c.b16 %v997, %v995
    %v1040 = vpack.c.b16 %v998, %v996
    %v1041 = vpack.c.b16 %v1001, %v999
    %v1042 = vpack.c.b16 %v1002, %v1000
    %v1043 = vpack.c.b16 %v1005, %v1003
    %v1044 = vpack.c.b16 %v1006, %v1004
    %v1045 = vpack.c.b16 %v1009, %v1007
    %v1046 = vpack.c.b16 %v1010, %v1008
    %v1047 = vpack.c.b16 %v1013, %v1011
    %v1048 = vpack.c.b16 %v1014, %v1012
    %v1049 = vpack.c.b16 %v1017, %v1015
    %v1050 = vpack.c.b16 %v1018, %v1016
    %1083 = vmatpush.bf16.msra.mxu0 %v1033
    %1084 = vmatpush.bf16.msra.mxu0 %v1031
    %1085 = vmatpush.bf16.msra.mxu0 %v1029
    %1086 = vmatpush.bf16.msra.mxu0 %v1027
    %1087 = vmatpush.bf16.msra.mxu0 %v1025
    %1088 = vmatpush.bf16.msra.mxu0 %v1023
    %1089 = vmatpush.bf16.msra.mxu0 %v1021
    %1090 = vmatpush.bf16.msra.mxu0 %v1019
    %1091 = vmatmul.bf16.gmra.mxu0 %v919
    %v1092 = vpop.f32.mrf.mxu0
    %v1093 = vadd.f32 0.0, %v1092
    %v1094 = vpop.f32.mrf.mxu0
    %v1095 = vadd.f32 0.0, %v1094
    %1096 = vmatmul.bf16.gmra.mxu0 %v921
    %v1097 = vpop.f32.mrf.mxu0
    %v1098 = vadd.f32 0.0, %v1097
    %v1099 = vpop.f32.mrf.mxu0
    %v1100 = vadd.f32 0.0, %v1099
    %1101 = vdwg.mxu0
    %1102 = vmatpush.bf16.msra.mxu0 %v1049
    %1103 = vmatpush.bf16.msra.mxu0 %v1047
    %1104 = vmatpush.bf16.msra.mxu0 %v1045
    %1105 = vmatpush.bf16.msra.mxu0 %v1043
    %1106 = vmatpush.bf16.msra.mxu0 %v1041
    %1107 = vmatpush.bf16.msra.mxu0 %v1039
    %1108 = vmatpush.bf16.msra.mxu0 %v1037
    %1109 = vmatpush.bf16.msra.mxu0 %v1035
    %1110 = vmatmul.bf16.gmra.mxu0 %v920
    %v1111 = vpop.f32.mrf.mxu0
    %v1112 = vadd.f32 %v1093, %v1111
    %v1113 = vpop.f32.mrf.mxu0
    %v1114 = vadd.f32 %v1095, %v1113
    %1115 = vmatmul.bf16.gmra.mxu0 %v922
    %v1116 = vpop.f32.mrf.mxu0
    %v1117 = vadd.f32 %v1098, %v1116
    %v1118 = vpop.f32.mrf.mxu0
    %v1119 = vadd.f32 %v1100, %v1118
    %1120 = vdwg.mxu0
    %1121 = vmatpush.bf16.msra.mxu0 %v1034
    %1122 = vmatpush.bf16.msra.mxu0 %v1032
    %1123 = vmatpush.bf16.msra.mxu0 %v1030
    %1124 = vmatpush.bf16.msra.mxu0 %v1028
    %1125 = vmatpush.bf16.msra.mxu0 %v1026
    %1126 = vmatpush.bf16.msra.mxu0 %v1024
    %1127 = vmatpush.bf16.msra.mxu0 %v1022
    %1128 = vmatpush.bf16.msra.mxu0 %v1020
    %1129 = vmatmul.bf16.gmra.mxu0 %v919
    %v1130 = vpop.f32.mrf.mxu0
    %v1131 = vadd.f32 0.0, %v1130
    %v1132 = vpop.f32.mrf.mxu0
    %v1133 = vadd.f32 0.0, %v1132
    %1134 = vmatmul.bf16.gmra.mxu0 %v921
    %v1135 = vpop.f32.mrf.mxu0
    %v1136 = vadd.f32 0.0, %v1135
    %v1137 = vpop.f32.mrf.mxu0
    %v1138 = vadd.f32 0.0, %v1137
    %1139 = vdwg.mxu0
    %1140 = vmatpush.bf16.msra.mxu0 %v1050
    %1141 = vmatpush.bf16.msra.mxu0 %v1048
    %1142 = vmatpush.bf16.msra.mxu0 %v1046
    %1143 = vmatpush.bf16.msra.mxu0 %v1044
    %1144 = vmatpush.bf16.msra.mxu0 %v1042
    %1145 = vmatpush.bf16.msra.mxu0 %v1040
    %1146 = vmatpush.bf16.msra.mxu0 %v1038
    %1147 = vmatpush.bf16.msra.mxu0 %v1036
    %1148 = vmatmul.bf16.gmra.mxu0 %v920
    %v1149 = vpop.f32.mrf.mxu0
    %v1150 = vadd.f32 %v1131, %v1149
    %v1151 = vpop.f32.mrf.mxu0
    %v1152 = vadd.f32 %v1133, %v1151
    %1153 = vmatmul.bf16.gmra.mxu0 %v922
    %v1154 = vpop.f32.mrf.mxu0
    %v1155 = vadd.f32 %v1136, %v1154
    %v1156 = vpop.f32.mrf.mxu0
    %v1157 = vadd.f32 %v1138, %v1156
    %1158 = vdwg.mxu0
    %v1159 = vrcp.pop %v1112
    %v1160 = vrcp.pop %v1150
    %v1161 = vrcp.pop %v1114
    %v1162 = vrcp.pop %v1152
    %v1163 = vrcp.pop %v1117
    %v1164 = vrcp.pop %v1155
    %v1165 = vrcp.pop %v1119
    %v1166 = vrcp.pop %v1157
    %v1167 = vmul.f32 %v904, %v1159
    %v1168 = vmul.f32 %v906, %v1160
    %v1169 = vmul.f32 %v908, %v1161
    %v1170 = vmul.f32 %v910, %v1162
    %v1171 = vmul.f32 %v912, %v1163
    %v1172 = vmul.f32 %v914, %v1164
    %v1173 = vmul.f32 %v916, %v1165
    %v1174 = vmul.f32 %v918, %v1166
    %v1175 = vpack.c.bf16 %v1169, %v1167
    %v1176 = vpack.c.bf16 %v1170, %v1168
    %v1177 = vpack.c.bf16 %v1173, %v1171
    %v1178 = vpack.c.bf16 %v1174, %v1172
    %1179 = vmatpush.bf16.msra.mxu0 %v836
    %1180 = vmatpush.bf16.msra.mxu0 %v835
    %1181 = vmatpush.bf16.msra.mxu0 %v834
    %1182 = vmatpush.bf16.msra.mxu0 %v833
    %1183 = vmatpush.bf16.msra.mxu0 %v832
    %1184 = vmatpush.bf16.msra.mxu0 %v831
    %1185 = vmatpush.bf16.msra.mxu0 %v830
    %1186 = vmatpush.bf16.msra.mxu0 %v829
    %1187 = vmatmul.bf16.gmra.mxu0 %v1175
    %v1188 = vpop.f32.mrf.mxu0
    %v1189 = vadd.f32 0.0, %v1188
    %v1190 = vpop.f32.mrf.mxu0
    %v1191 = vadd.f32 0.0, %v1190
    %1192 = vmatmul.bf16.gmra.mxu0 %v1177
    %v1193 = vpop.f32.mrf.mxu0
    %v1194 = vadd.f32 0.0, %v1193
    %v1195 = vpop.f32.mrf.mxu0
    %v1196 = vadd.f32 0.0, %v1195
    %1197 = vdwg.mxu0
    %1198 = vmatpush.bf16.msra.mxu0 %v844
    %1199 = vmatpush.bf16.msra.mxu0 %v843
    %1200 = vmatpush.bf16.msra.mxu0 %v842
    %1201 = vmatpush.bf16.msra.mxu0 %v841
    %1202 = vmatpush.bf16.msra.mxu0 %v840
    %1203 = vmatpush.bf16.msra.mxu0 %v839
    %1204 = vmatpush.bf16.msra.mxu0 %v838
    %1205 = vmatpush.bf16.msra.mxu0 %v837
    %1206 = vmatmul.bf16.gmra.mxu0 %v1176
    %v1207 = vpop.f32.mrf.mxu0
    %v1208 = vadd.f32 %v1189, %v1207
    %v1209 = vpop.f32.mrf.mxu0
    %v1210 = vadd.f32 %v1191, %v1209
    %1211 = vmatmul.bf16.gmra.mxu0 %v1178
    %v1212 = vpop.f32.mrf.mxu0
    %v1213 = vadd.f32 %v1194, %v1212
    %v1214 = vpop.f32.mrf.mxu0
    %v1215 = vadd.f32 %v1196, %v1214
    %1216 = vdwg.mxu0
    %v1217 = vpack.c.bf16 %v1210, %v1208
    %v1218 = vpack.c.bf16 %v1215, %v1213
    %v1219 = vld [vmem:[#allocation13] sm:$0xf]
    %v1220 = vld [vmem:[#allocation13 + $0x4] sm:$0xf]
    %v1221 = vld [vmem:[#allocation13 + $0x8] sm:$0xf]
    %v1222 = vld [vmem:[#allocation13 + $0xc] sm:$0xf]
    %v1223 = vld [vmem:[#allocation13 + $0x10] sm:$0xf]
    %v1224 = vld [vmem:[#allocation13 + $0x14] sm:$0xf]
    %v1225 = vld [vmem:[#allocation13 + $0x18] sm:$0xf]
    %v1226 = vld [vmem:[#allocation13 + $0x1c] sm:$0xf]
    %v1227 = vld [vmem:[#allocation13 + $0x20] sm:$0xf]
    %v1228 = vld [vmem:[#allocation13 + $0x24] sm:$0xf]
    %v1229 = vld [vmem:[#allocation13 + $0x28] sm:$0xf]
    %v1230 = vld [vmem:[#allocation13 + $0x2c] sm:$0xf]
    %v1231 = vld [vmem:[#allocation13 + $0x30] sm:$0xf]
    %v1232 = vld [vmem:[#allocation13 + $0x34] sm:$0xf]
    %v1233 = vld [vmem:[#allocation13 + $0x38] sm:$0xf]
    %v1234 = vld [vmem:[#allocation13 + $0x3c] sm:$0xf]
    %v1235 = vld [vmem:[#allocation14] sm:$0x1]
    %v1237 = vperm.slane %v1235, 0
    %v1255 = vunpack.c.l.b16 %v1219
    %v1256 = vunpack.c.l.b16 %v1220
    %v1257 = vunpack.c.l.b16 %v1221
    %v1258 = vunpack.c.l.b16 %v1222
    %v1259 = vunpack.c.l.b16 %v1223
    %v1260 = vunpack.c.l.b16 %v1224
    %v1261 = vunpack.c.l.b16 %v1225
    %v1262 = vunpack.c.l.b16 %v1226
    %v1263 = vunpack.c.l.b16 %v1227
    %v1264 = vunpack.c.l.b16 %v1228
    %v1265 = vunpack.c.l.b16 %v1229
    %v1266 = vunpack.c.l.b16 %v1230
    %v1267 = vunpack.c.l.b16 %v1231
    %v1268 = vunpack.c.l.b16 %v1232
    %v1269 = vunpack.c.l.b16 %v1233
    %v1270 = vunpack.c.l.b16 %v1234
    %v1271 = vpack.c.b16 %v1256, %v1255
    %v1272 = vpack.c.b16 %v1258, %v1257
    %v1273 = vpack.c.b16 %v1260, %v1259
    %v1274 = vpack.c.b16 %v1262, %v1261
    %v1275 = vpack.c.b16 %v1264, %v1263
    %v1276 = vpack.c.b16 %v1266, %v1265
    %v1277 = vpack.c.b16 %v1268, %v1267
    %v1278 = vpack.c.b16 %v1270, %v1269
    %1287 = vmatpush.bf16.msra.mxu0 %v1278
    %1288 = vmatpush.bf16.msra.mxu0 %v1277
    %1289 = vmatpush.bf16.msra.mxu0 %v1276
    %1290 = vmatpush.bf16.msra.mxu0 %v1275
    %1291 = vmatpush.bf16.msra.mxu0 %v1274
    %1292 = vmatpush.bf16.msra.mxu0 %v1273
    %1293 = vmatpush.bf16.msra.mxu0 %v1272
    %1294 = vmatpush.bf16.msra.mxu0 %v1271
    %1295 = vmatmul.bf16.gmra.mxu0 %v1217
    %v1296 = vpop.f32.mrf.mxu0
    %v1297 = vadd.f32 %v1237, %v1296
    %v1298 = vpop.f32.mrf.mxu0
    %v1299 = vadd.f32 %v1237, %v1298
    %1300 = vmatmul.bf16.gmra.mxu0 %v1218
    %v1301 = vpop.f32.mrf.mxu0
    %v1302 = vadd.f32 %v1237, %v1301
    %v1303 = vpop.f32.mrf.mxu0
    %v1304 = vadd.f32 %v1237, %v1303
    %1305 = vdwg.mxu0
    %v1306 = vadd.f32 %v367, %v1297
    %v1307 = vadd.f32 %v369, %v1299
    %v1308 = vadd.f32 %v372, %v1302
    %v1309 = vadd.f32 %v374, %v1304
    %v1310 = vld [vmem:[#allocation16] sm:$0x1]
    %v1311 = vld [vmem:[#allocation17] sm:$0x1]
    %1312 = vadd.xlane.f32.xlu0 %v1306
    %v1313 = vpop.xlane.xlu0 %1312
    %1314 = vadd.xlane.f32.xlu0 %v1307
    %v1315 = vpop.xlane.xlu0 %1314
    %1316 = vadd.xlane.f32.xlu0 %v1308
    %v1317 = vpop.xlane.xlu0 %1316
    %1318 = vadd.xlane.f32.xlu0 %v1309
    %v1319 = vpop.xlane.xlu0 %1318
    %v1320 = vrcp.pop 128.0
    %v1321 = vmul.f32 128.0, %v1320
    %v1322 = vsub.f32 1.0, %v1321
    %v1323 = vmul.f32 %v1320, %v1322
    %v1324 = vadd.f32 %v1320, %v1323
    %vm1325 = vweird.f32 %v1320
    %v1326 = vsel %vm1325, %v1320, %v1324
    %v1327 = vmul.f32 %v1313, %v1326
    %v1328 = vmul.f32 %v1315, %v1326
    %v1329 = vmul.f32 %v1317, %v1326
    %v1330 = vmul.f32 %v1319, %v1326
    %v1331 = vsub.f32 %v1306, %v1327
    %v1332 = vsub.f32 %v1307, %v1328
    %v1333 = vsub.f32 %v1308, %v1329
    %v1334 = vsub.f32 %v1309, %v1330
    %v1335 = vmul.f32 %v1331, %v1331
    %v1336 = vmul.f32 %v1332, %v1332
    %v1337 = vmul.f32 %v1333, %v1333
    %v1338 = vmul.f32 %v1334, %v1334
    %1339 = vadd.xlane.f32.xlu0 %v1335
    %v1340 = vpop.xlane.xlu0 %1339
    %1341 = vadd.xlane.f32.xlu0 %v1336
    %v1342 = vpop.xlane.xlu0 %1341
    %1343 = vadd.xlane.f32.xlu0 %v1337
    %v1344 = vpop.xlane.xlu0 %1343
    %1345 = vadd.xlane.f32.xlu0 %v1338
    %v1346 = vpop.xlane.xlu0 %1345
    %v1347 = vmul.f32 %v1340, %v1326
    %v1348 = vmul.f32 %v1342, %v1326
    %v1349 = vmul.f32 %v1344, %v1326
    %v1350 = vmul.f32 %v1346, %v1326
    %v1351 = vadd.f32 %v1347, 1e-05
    %v1352 = vadd.f32 %v1348, 1e-05
    %v1353 = vadd.f32 %v1349, 1e-05
    %v1354 = vadd.f32 %v1350, 1e-05
    %v1355 = vrsqrt.pop %v1351
    %v1356 = vmul.f32 %v1355, %v1351
    %v1357 = vmul.f32 %v1356, %v1355
    %v1358 = vmul.f32 0.5, %v1357
    %v1359 = vsub.f32 1.5, %v1358
    %v1360 = vmul.f32 %v1355, %v1359
    %vm1361 = vweird.f32 %v1351
    %vm1362 = vweird.f32 %v1355
    %vm1363 = vmor %vm1361, %vm1362
    %v1364 = vsel %vm1363, %v1355, %v1360
    %v1365 = vrsqrt.pop %v1352
    %v1366 = vmul.f32 %v1365, %v1352
    %v1367 = vmul.f32 %v1366, %v1365
    %v1368 = vmul.f32 0.5, %v1367
    %v1369 = vsub.f32 1.5, %v1368
    %v1370 = vmul.f32 %v1365, %v1369
    %vm1371 = vweird.f32 %v1352
    %vm1372 = vweird.f32 %v1365
    %vm1373 = vmor %vm1371, %vm1372
    %v1374 = vsel %vm1373, %v1365, %v1370
    %v1375 = vrsqrt.pop %v1353
    %v1376 = vmul.f32 %v1375, %v1353
    %v1377 = vmul.f32 %v1376, %v1375
    %v1378 = vmul.f32 0.5, %v1377
    %v1379 = vsub.f32 1.5, %v1378
    %v1380 = vmul.f32 %v1375, %v1379
    %vm1381 = vweird.f32 %v1353
    %vm1382 = vweird.f32 %v1375
    %vm1383 = vmor %vm1381, %vm1382
    %v1384 = vsel %vm1383, %v1375, %v1380
    %v1385 = vrsqrt.pop %v1354
    %v1386 = vmul.f32 %v1385, %v1354
    %v1387 = vmul.f32 %v1386, %v1385
    %v1388 = vmul.f32 0.5, %v1387
    %v1389 = vsub.f32 1.5, %v1388
    %v1390 = vmul.f32 %v1385, %v1389
    %vm1391 = vweird.f32 %v1354
    %vm1392 = vweird.f32 %v1385
    %vm1393 = vmor %vm1391, %vm1392
    %v1394 = vsel %vm1393, %v1385, %v1390
    %v1395 = vmul.f32 %v1331, %v1364
    %v1396 = vmul.f32 %v1332, %v1374
    %v1397 = vmul.f32 %v1333, %v1384
    %v1398 = vmul.f32 %v1334, %v1394
    %v1400 = vperm.slane %v1310, 0
    %v1402 = vmul.f32 %v1395, %v1400
    %v1403 = vmul.f32 %v1396, %v1400
    %v1404 = vmul.f32 %v1397, %v1400
    %v1405 = vmul.f32 %v1398, %v1400
    %v1407 = vperm.slane %v1311, 0
    %v1409 = vadd.f32 %v1402, %v1407
    %v1410 = vadd.f32 %v1403, %v1407
    %v1411 = vadd.f32 %v1404, %v1407
    %v1412 = vadd.f32 %v1405, %v1407
    %v1413 = vpack.c.bf16 %v1410, %v1409
    %v1414 = vpack.c.bf16 %v1412, %v1411
    %v1415 = vld [vmem:[#allocation22] sm:$0xff]
    %v1416 = vld [vmem:[#allocation22 + $0x8] sm:$0xff]
    %v1417 = vld [vmem:[#allocation22 + $0x10] sm:$0xff]
    %v1418 = vld [vmem:[#allocation22 + $0x18] sm:$0xff]
    %v1419 = vld [vmem:[#allocation22 + $0x20] sm:$0xff]
    %v1420 = vld [vmem:[#allocation22 + $0x28] sm:$0xff]
    %v1421 = vld [vmem:[#allocation22 + $0x30] sm:$0xff]
    %v1422 = vld [vmem:[#allocation22 + $0x38] sm:$0xff]
    %v1423 = vld [vmem:[#allocation22 + $0x40] sm:$0xff]
    %v1424 = vld [vmem:[#allocation22 + $0x48] sm:$0xff]
    %v1425 = vld [vmem:[#allocation22 + $0x50] sm:$0xff]
    %v1426 = vld [vmem:[#allocation22 + $0x58] sm:$0xff]
    %v1427 = vld [vmem:[#allocation22 + $0x60] sm:$0xff]
    %v1428 = vld [vmem:[#allocation22 + $0x68] sm:$0xff]
    %v1429 = vld [vmem:[#allocation22 + $0x70] sm:$0xff]
    %v1430 = vld [vmem:[#allocation22 + $0x78] sm:$0xff]
    %v1431 = vld [vmem:[#allocation22 + $0x80] sm:$0xff]
    %v1432 = vld [vmem:[#allocation22 + $0x88] sm:$0xff]
    %v1433 = vld [vmem:[#allocation22 + $0x90] sm:$0xff]
    %v1434 = vld [vmem:[#allocation22 + $0x98] sm:$0xff]
    %v1435 = vld [vmem:[#allocation22 + $0xa0] sm:$0xff]
    %v1436 = vld [vmem:[#allocation22 + $0xa8] sm:$0xff]
    %v1437 = vld [vmem:[#allocation22 + $0xb0] sm:$0xff]
    %v1438 = vld [vmem:[#allocation22 + $0xb8] sm:$0xff]
    %v1439 = vld [vmem:[#allocation22 + $0xc0] sm:$0xff]
    %v1440 = vld [vmem:[#allocation22 + $0xc8] sm:$0xff]
    %v1441 = vld [vmem:[#allocation22 + $0xd0] sm:$0xff]
    %v1442 = vld [vmem:[#allocation22 + $0xd8] sm:$0xff]
    %v1443 = vld [vmem:[#allocation22 + $0xe0] sm:$0xff]
    %v1444 = vld [vmem:[#allocation22 + $0xe8] sm:$0xff]
    %v1445 = vld [vmem:[#allocation22 + $0xf0] sm:$0xff]
    %v1446 = vld [vmem:[#allocation22 + $0xf8] sm:$0xff]
    %v1447 = vld [vmem:[%s15] sm:$0xf]
    %v1449 = vperm.slane %v1447, 0
    %v1450 = vperm.slane %v1447, 1
    %v1451 = vperm.slane %v1447, 2
    %v1452 = vperm.slane %v1447, 3
    %v1489 = vunpack.c.l.b16 %v1415
    %v1490 = vunpack.c.h.b16 %v1415
    %v1491 = vunpack.c.l.b16 %v1416
    %v1492 = vunpack.c.h.b16 %v1416
    %v1493 = vunpack.c.l.b16 %v1417
    %v1494 = vunpack.c.h.b16 %v1417
    %v1495 = vunpack.c.l.b16 %v1418
    %v1496 = vunpack.c.h.b16 %v1418
    %v1497 = vunpack.c.l.b16 %v1419
    %v1498 = vunpack.c.h.b16 %v1419
    %v1499 = vunpack.c.l.b16 %v1420
    %v1500 = vunpack.c.h.b16 %v1420
    %v1501 = vunpack.c.l.b16 %v1421
    %v1502 = vunpack.c.h.b16 %v1421
    %v1503 = vunpack.c.l.b16 %v1422
    %v1504 = vunpack.c.h.b16 %v1422
    %v1505 = vunpack.c.l.b16 %v1423
    %v1506 = vunpack.c.h.b16 %v1423
    %v1507 = vunpack.c.l.b16 %v1424
    %v1508 = vunpack.c.h.b16 %v1424
    %v1509 = vunpack.c.l.b16 %v1425
    %v1510 = vunpack.c.h.b16 %v1425
    %v1511 = vunpack.c.l.b16 %v1426
    %v1512 = vunpack.c.h.b16 %v1426
    %v1513 = vunpack.c.l.b16 %v1427
    %v1514 = vunpack.c.h.b16 %v1427
    %v1515 = vunpack.c.l.b16 %v1428
    %v1516 = vunpack.c.h.b16 %v1428
    %v1517 = vunpack.c.l.b16 %v1429
    %v1518 = vunpack.c.h.b16 %v1429
    %v1519 = vunpack.c.l.b16 %v1430
    %v1520 = vunpack.c.h.b16 %v1430
    %v1521 = vunpack.c.l.b16 %v1431
    %v1522 = vunpack.c.h.b16 %v1431
    %v1523 = vunpack.c.l.b16 %v1432
    %v1524 = vunpack.c.h.b16 %v1432
    %v1525 = vunpack.c.l.b16 %v1433
    %v1526 = vunpack.c.h.b16 %v1433
    %v1527 = vunpack.c.l.b16 %v1434
    %v1528 = vunpack.c.h.b16 %v1434
    %v1529 = vunpack.c.l.b16 %v1435
    %v1530 = vunpack.c.h.b16 %v1435
    %v1531 = vunpack.c.l.b16 %v1436
    %v1532 = vunpack.c.h.b16 %v1436
    %v1533 = vunpack.c.l.b16 %v1437
    %v1534 = vunpack.c.h.b16 %v1437
    %v1535 = vunpack.c.l.b16 %v1438
    %v1536 = vunpack.c.h.b16 %v1438
    %v1537 = vunpack.c.l.b16 %v1439
    %v1538 = vunpack.c.h.b16 %v1439
    %v1539 = vunpack.c.l.b16 %v1440
    %v1540 = vunpack.c.h.b16 %v1440
    %v1541 = vunpack.c.l.b16 %v1441
    %v1542 = vunpack.c.h.b16 %v1441
    %v1543 = vunpack.c.l.b16 %v1442
    %v1544 = vunpack.c.h.b16 %v1442
    %v1545 = vunpack.c.l.b16 %v1443
    %v1546 = vunpack.c.h.b16 %v1443
    %v1547 = vunpack.c.l.b16 %v1444
    %v1548 = vunpack.c.h.b16 %v1444
    %v1549 = vunpack.c.l.b16 %v1445
    %v1550 = vunpack.c.h.b16 %v1445
    %v1551 = vunpack.c.l.b16 %v1446
    %v1552 = vunpack.c.h.b16 %v1446
    %v1553 = vpack.c.b16 %v1493, %v1489
    %v1554 = vpack.c.b16 %v1494, %v1490
    %v1555 = vpack.c.b16 %v1495, %v1491
    %v1556 = vpack.c.b16 %v1496, %v1492
    %v1557 = vpack.c.b16 %v1501, %v1497
    %v1558 = vpack.c.b16 %v1502, %v1498
    %v1559 = vpack.c.b16 %v1503, %v1499
    %v1560 = vpack.c.b16 %v1504, %v1500
    %v1561 = vpack.c.b16 %v1509, %v1505
    %v1562 = vpack.c.b16 %v1510, %v1506
    %v1563 = vpack.c.b16 %v1511, %v1507
    %v1564 = vpack.c.b16 %v1512, %v1508
    %v1565 = vpack.c.b16 %v1517, %v1513
    %v1566 = vpack.c.b16 %v1518, %v1514
    %v1567 = vpack.c.b16 %v1519, %v1515
    %v1568 = vpack.c.b16 %v1520, %v1516
    %v1569 = vpack.c.b16 %v1525, %v1521
    %v1570 = vpack.c.b16 %v1526, %v1522
    %v1571 = vpack.c.b16 %v1527, %v1523
    %v1572 = vpack.c.b16 %v1528, %v1524
    %v1573 = vpack.c.b16 %v1533, %v1529
    %v1574 = vpack.c.b16 %v1534, %v1530
    %v1575 = vpack.c.b16 %v1535, %v1531
    %v1576 = vpack.c.b16 %v1536, %v1532
    %v1577 = vpack.c.b16 %v1541, %v1537
    %v1578 = vpack.c.b16 %v1542, %v1538
    %v1579 = vpack.c.b16 %v1543, %v1539
    %v1580 = vpack.c.b16 %v1544, %v1540
    %v1581 = vpack.c.b16 %v1549, %v1545
    %v1582 = vpack.c.b16 %v1550, %v1546
    %v1583 = vpack.c.b16 %v1551, %v1547
    %v1584 = vpack.c.b16 %v1552, %v1548
    %1617 = vmatpush.bf16.msra.mxu0 %v1581
    %1618 = vmatpush.bf16.msra.mxu0 %v1577
    %1619 = vmatpush.bf16.msra.mxu0 %v1573
    %1620 = vmatpush.bf16.msra.mxu0 %v1569
    %1621 = vmatpush.bf16.msra.mxu0 %v1565
    %1622 = vmatpush.bf16.msra.mxu0 %v1561
    %1623 = vmatpush.bf16.msra.mxu0 %v1557
    %1624 = vmatpush.bf16.msra.mxu0 %v1553
    %1625 = vmatmul.bf16.gmra.mxu0 %v1413
    %v1626 = vpop.f32.mrf.mxu0
    %v1627 = vadd.f32 %v1449, %v1626
    %v1628 = vpop.f32.mrf.mxu0
    %v1629 = vadd.f32 %v1449, %v1628
    %1630 = vmatmul.bf16.gmra.mxu0 %v1414
    %v1631 = vpop.f32.mrf.mxu0
    %v1632 = vadd.f32 %v1449, %v1631
    %v1633 = vpop.f32.mrf.mxu0
    %v1634 = vadd.f32 %v1449, %v1633
    %1635 = vdwg.mxu0
    %1636 = vmatpush.bf16.msra.mxu0 %v1582
    %1637 = vmatpush.bf16.msra.mxu0 %v1578
    %1638 = vmatpush.bf16.msra.mxu0 %v1574
    %1639 = vmatpush.bf16.msra.mxu0 %v1570
    %1640 = vmatpush.bf16.msra.mxu0 %v1566
    %1641 = vmatpush.bf16.msra.mxu0 %v1562
    %1642 = vmatpush.bf16.msra.mxu0 %v1558
    %1643 = vmatpush.bf16.msra.mxu0 %v1554
    %1644 = vmatmul.bf16.gmra.mxu0 %v1413
    %v1645 = vpop.f32.mrf.mxu0
    %v1646 = vadd.f32 %v1450, %v1645
    %v1647 = vpop.f32.mrf.mxu0
    %v1648 = vadd.f32 %v1450, %v1647
    %1649 = vmatmul.bf16.gmra.mxu0 %v1414
    %v1650 = vpop.f32.mrf.mxu0
    %v1651 = vadd.f32 %v1450, %v1650
    %v1652 = vpop.f32.mrf.mxu0
    %v1653 = vadd.f32 %v1450, %v1652
    %1654 = vdwg.mxu0
    %1655 = vmatpush.bf16.msra.mxu0 %v1583
    %1656 = vmatpush.bf16.msra.mxu0 %v1579
    %1657 = vmatpush.bf16.msra.mxu0 %v1575
    %1658 = vmatpush.bf16.msra.mxu0 %v1571
    %1659 = vmatpush.bf16.msra.mxu0 %v1567
    %1660 = vmatpush.bf16.msra.mxu0 %v1563
    %1661 = vmatpush.bf16.msra.mxu0 %v1559
    %1662 = vmatpush.bf16.msra.mxu0 %v1555
    %1663 = vmatmul.bf16.gmra.mxu0 %v1413
    %v1664 = vpop.f32.mrf.mxu0
    %v1665 = vadd.f32 %v1451, %v1664
    %v1666 = vpop.f32.mrf.mxu0
    %v1667 = vadd.f32 %v1451, %v1666
    %1668 = vmatmul.bf16.gmra.mxu0 %v1414
    %v1669 = vpop.f32.mrf.mxu0
    %v1670 = vadd.f32 %v1451, %v1669
    %v1671 = vpop.f32.mrf.mxu0
    %v1672 = vadd.f32 %v1451, %v1671
    %1673 = vdwg.mxu0
    %1674 = vmatpush.bf16.msra.mxu0 %v1584
    %1675 = vmatpush.bf16.msra.mxu0 %v1580
    %1676 = vmatpush.bf16.msra.mxu0 %v1576
    %1677 = vmatpush.bf16.msra.mxu0 %v1572
    %1678 = vmatpush.bf16.msra.mxu0 %v1568
    %1679 = vmatpush.bf16.msra.mxu0 %v1564
    %1680 = vmatpush.bf16.msra.mxu0 %v1560
    %1681 = vmatpush.bf16.msra.mxu0 %v1556
    %1682 = vmatmul.bf16.gmra.mxu0 %v1413
    %v1683 = vpop.f32.mrf.mxu0
    %v1684 = vadd.f32 %v1452, %v1683
    %v1685 = vpop.f32.mrf.mxu0
    %v1686 = vadd.f32 %v1452, %v1685
    %1687 = vmatmul.bf16.gmra.mxu0 %v1414
    %v1688 = vpop.f32.mrf.mxu0
    %v1689 = vadd.f32 %v1452, %v1688
    %v1690 = vpop.f32.mrf.mxu0
    %v1691 = vadd.f32 %v1452, %v1690
    %1692 = vdwg.mxu0
    %v1693 = vmax.f32 %v1627, 0.0
    %v1694 = vmax.f32 %v1646, 0.0
    %v1695 = vmax.f32 %v1665, 0.0
    %v1696 = vmax.f32 %v1684, 0.0
    %v1697 = vmax.f32 %v1629, 0.0
    %v1698 = vmax.f32 %v1648, 0.0
    %v1699 = vmax.f32 %v1667, 0.0
    %v1700 = vmax.f32 %v1686, 0.0
    %v1701 = vmax.f32 %v1632, 0.0
    %v1702 = vmax.f32 %v1651, 0.0
    %v1703 = vmax.f32 %v1670, 0.0
    %v1704 = vmax.f32 %v1689, 0.0
    %v1705 = vmax.f32 %v1634, 0.0
    %v1706 = vmax.f32 %v1653, 0.0
    %v1707 = vmax.f32 %v1672, 0.0
    %v1708 = vmax.f32 %v1691, 0.0
    %v1709 = vpack.c.bf16 %v1697, %v1693
    %v1710 = vpack.c.bf16 %v1698, %v1694
    %v1711 = vpack.c.bf16 %v1699, %v1695
    %v1712 = vpack.c.bf16 %v1700, %v1696
    %v1713 = vpack.c.bf16 %v1705, %v1701
    %v1714 = vpack.c.bf16 %v1706, %v1702
    %v1715 = vpack.c.bf16 %v1707, %v1703
    %v1716 = vpack.c.bf16 %v1708, %v1704
    %v1717 = vld [vmem:[#allocation23] sm:$0xf]
    %v1718 = vld [vmem:[#allocation23 + $0x4] sm:$0xf]
    %v1719 = vld [vmem:[#allocation23 + $0x8] sm:$0xf]
    %v1720 = vld [vmem:[#allocation23 + $0xc] sm:$0xf]
    %v1721 = vld [vmem:[#allocation23 + $0x10] sm:$0xf]
    %v1722 = vld [vmem:[#allocation23 + $0x14] sm:$0xf]
    %v1723 = vld [vmem:[#allocation23 + $0x18] sm:$0xf]
    %v1724 = vld [vmem:[#allocation23 + $0x1c] sm:$0xf]
    %v1725 = vld [vmem:[#allocation23 + $0x20] sm:$0xf]
    %v1726 = vld [vmem:[#allocation23 + $0x24] sm:$0xf]
    %v1727 = vld [vmem:[#allocation23 + $0x28] sm:$0xf]
    %v1728 = vld [vmem:[#allocation23 + $0x2c] sm:$0xf]
    %v1729 = vld [vmem:[#allocation23 + $0x30] sm:$0xf]
    %v1730 = vld [vmem:[#allocation23 + $0x34] sm:$0xf]
    %v1731 = vld [vmem:[#allocation23 + $0x38] sm:$0xf]
    %v1732 = vld [vmem:[#allocation23 + $0x3c] sm:$0xf]
    %v1733 = vld [vmem:[#allocation23 + $0x40] sm:$0xf]
    %v1734 = vld [vmem:[#allocation23 + $0x44] sm:$0xf]
    %v1735 = vld [vmem:[#allocation23 + $0x48] sm:$0xf]
    %v1736 = vld [vmem:[#allocation23 + $0x4c] sm:$0xf]
    %v1737 = vld [vmem:[#allocation23 + $0x50] sm:$0xf]
    %v1738 = vld [vmem:[#allocation23 + $0x54] sm:$0xf]
    %v1739 = vld [vmem:[#allocation23 + $0x58] sm:$0xf]
    %v1740 = vld [vmem:[#allocation23 + $0x5c] sm:$0xf]
    %v1741 = vld [vmem:[#allocation23 + $0x60] sm:$0xf]
    %v1742 = vld [vmem:[#allocation23 + $0x64] sm:$0xf]
    %v1743 = vld [vmem:[#allocation23 + $0x68] sm:$0xf]
    %v1744 = vld [vmem:[#allocation23 + $0x6c] sm:$0xf]
    %v1745 = vld [vmem:[#allocation23 + $0x70] sm:$0xf]
    %v1746 = vld [vmem:[#allocation23 + $0x74] sm:$0xf]
    %v1747 = vld [vmem:[#allocation23 + $0x78] sm:$0xf]
    %v1748 = vld [vmem:[#allocation23 + $0x7c] sm:$0xf]
    %v1749 = vld [vmem:[#allocation23 + $0x80] sm:$0xf]
    %v1750 = vld [vmem:[#allocation23 + $0x84] sm:$0xf]
    %v1751 = vld [vmem:[#allocation23 + $0x88] sm:$0xf]
    %v1752 = vld [vmem:[#allocation23 + $0x8c] sm:$0xf]
    %v1753 = vld [vmem:[#allocation23 + $0x90] sm:$0xf]
    %v1754 = vld [vmem:[#allocation23 + $0x94] sm:$0xf]
    %v1755 = vld [vmem:[#allocation23 + $0x98] sm:$0xf]
    %v1756 = vld [vmem:[#allocation23 + $0x9c] sm:$0xf]
    %v1757 = vld [vmem:[#allocation23 + $0xa0] sm:$0xf]
    %v1758 = vld [vmem:[#allocation23 + $0xa4] sm:$0xf]
    %v1759 = vld [vmem:[#allocation23 + $0xa8] sm:$0xf]
    %v1760 = vld [vmem:[#allocation23 + $0xac] sm:$0xf]
    %v1761 = vld [vmem:[#allocation23 + $0xb0] sm:$0xf]
    %v1762 = vld [vmem:[#allocation23 + $0xb4] sm:$0xf]
    %v1763 = vld [vmem:[#allocation23 + $0xb8] sm:$0xf]
    %v1764 = vld [vmem:[#allocation23 + $0xbc] sm:$0xf]
    %v1765 = vld [vmem:[#allocation23 + $0xc0] sm:$0xf]
    %v1766 = vld [vmem:[#allocation23 + $0xc4] sm:$0xf]
    %v1767 = vld [vmem:[#allocation23 + $0xc8] sm:$0xf]
    %v1768 = vld [vmem:[#allocation23 + $0xcc] sm:$0xf]
    %v1769 = vld [vmem:[#allocation23 + $0xd0] sm:$0xf]
    %v1770 = vld [vmem:[#allocation23 + $0xd4] sm:$0xf]
    %v1771 = vld [vmem:[#allocation23 + $0xd8] sm:$0xf]
    %v1772 = vld [vmem:[#allocation23 + $0xdc] sm:$0xf]
    %v1773 = vld [vmem:[#allocation23 + $0xe0] sm:$0xf]
    %v1774 = vld [vmem:[#allocation23 + $0xe4] sm:$0xf]
    %v1775 = vld [vmem:[#allocation23 + $0xe8] sm:$0xf]
    %v1776 = vld [vmem:[#allocation23 + $0xec] sm:$0xf]
    %v1777 = vld [vmem:[#allocation23 + $0xf0] sm:$0xf]
    %v1778 = vld [vmem:[#allocation23 + $0xf4] sm:$0xf]
    %v1779 = vld [vmem:[#allocation23 + $0xf8] sm:$0xf]
    %v1780 = vld [vmem:[#allocation23 + $0xfc] sm:$0xf]
    %v1781 = vld [vmem:[#allocation25] sm:$0x1]
    %v1783 = vperm.slane %v1781, 0
    %v1849 = vunpack.c.l.b16 %v1717
    %v1850 = vunpack.c.l.b16 %v1718
    %v1851 = vunpack.c.l.b16 %v1719
    %v1852 = vunpack.c.l.b16 %v1720
    %v1853 = vunpack.c.l.b16 %v1721
    %v1854 = vunpack.c.l.b16 %v1722
    %v1855 = vunpack.c.l.b16 %v1723
    %v1856 = vunpack.c.l.b16 %v1724
    %v1857 = vunpack.c.l.b16 %v1725
    %v1858 = vunpack.c.l.b16 %v1726
    %v1859 = vunpack.c.l.b16 %v1727
    %v1860 = vunpack.c.l.b16 %v1728
    %v1861 = vunpack.c.l.b16 %v1729
    %v1862 = vunpack.c.l.b16 %v1730
    %v1863 = vunpack.c.l.b16 %v1731
    %v1864 = vunpack.c.l.b16 %v1732
    %v1865 = vunpack.c.l.b16 %v1733
    %v1866 = vunpack.c.l.b16 %v1734
    %v1867 = vunpack.c.l.b16 %v1735
    %v1868 = vunpack.c.l.b16 %v1736
    %v1869 = vunpack.c.l.b16 %v1737
    %v1870 = vunpack.c.l.b16 %v1738
    %v1871 = vunpack.c.l.b16 %v1739
    %v1872 = vunpack.c.l.b16 %v1740
    %v1873 = vunpack.c.l.b16 %v1741
    %v1874 = vunpack.c.l.b16 %v1742
    %v1875 = vunpack.c.l.b16 %v1743
    %v1876 = vunpack.c.l.b16 %v1744
    %v1877 = vunpack.c.l.b16 %v1745
    %v1878 = vunpack.c.l.b16 %v1746
    %v1879 = vunpack.c.l.b16 %v1747
    %v1880 = vunpack.c.l.b16 %v1748
    %v1881 = vunpack.c.l.b16 %v1749
    %v1882 = vunpack.c.l.b16 %v1750
    %v1883 = vunpack.c.l.b16 %v1751
    %v1884 = vunpack.c.l.b16 %v1752
    %v1885 = vunpack.c.l.b16 %v1753
    %v1886 = vunpack.c.l.b16 %v1754
    %v1887 = vunpack.c.l.b16 %v1755
    %v1888 = vunpack.c.l.b16 %v1756
    %v1889 = vunpack.c.l.b16 %v1757
    %v1890 = vunpack.c.l.b16 %v1758
    %v1891 = vunpack.c.l.b16 %v1759
    %v1892 = vunpack.c.l.b16 %v1760
    %v1893 = vunpack.c.l.b16 %v1761
    %v1894 = vunpack.c.l.b16 %v1762
    %v1895 = vunpack.c.l.b16 %v1763
    %v1896 = vunpack.c.l.b16 %v1764
    %v1897 = vunpack.c.l.b16 %v1765
    %v1898 = vunpack.c.l.b16 %v1766
    %v1899 = vunpack.c.l.b16 %v1767
    %v1900 = vunpack.c.l.b16 %v1768
    %v1901 = vunpack.c.l.b16 %v1769
    %v1902 = vunpack.c.l.b16 %v1770
    %v1903 = vunpack.c.l.b16 %v1771
    %v1904 = vunpack.c.l.b16 %v1772
    %v1905 = vunpack.c.l.b16 %v1773
    %v1906 = vunpack.c.l.b16 %v1774
    %v1907 = vunpack.c.l.b16 %v1775
    %v1908 = vunpack.c.l.b16 %v1776
    %v1909 = vunpack.c.l.b16 %v1777
    %v1910 = vunpack.c.l.b16 %v1778
    %v1911 = vunpack.c.l.b16 %v1779
    %v1912 = vunpack.c.l.b16 %v1780
    %v1913 = vpack.c.b16 %v1850, %v1849
    %v1914 = vpack.c.b16 %v1852, %v1851
    %v1915 = vpack.c.b16 %v1854, %v1853
    %v1916 = vpack.c.b16 %v1856, %v1855
    %v1917 = vpack.c.b16 %v1858, %v1857
    %v1918 = vpack.c.b16 %v1860, %v1859
    %v1919 = vpack.c.b16 %v1862, %v1861
    %v1920 = vpack.c.b16 %v1864, %v1863
    %v1921 = vpack.c.b16 %v1866, %v1865
    %v1922 = vpack.c.b16 %v1868, %v1867
    %v1923 = vpack.c.b16 %v1870, %v1869
    %v1924 = vpack.c.b16 %v1872, %v1871
    %v1925 = vpack.c.b16 %v1874, %v1873
    %v1926 = vpack.c.b16 %v1876, %v1875
    %v1927 = vpack.c.b16 %v1878, %v1877
    %v1928 = vpack.c.b16 %v1880, %v1879
    %v1929 = vpack.c.b16 %v1882, %v1881
    %v1930 = vpack.c.b16 %v1884, %v1883
    %v1931 = vpack.c.b16 %v1886, %v1885
    %v1932 = vpack.c.b16 %v1888, %v1887
    %v1933 = vpack.c.b16 %v1890, %v1889
    %v1934 = vpack.c.b16 %v1892, %v1891
    %v1935 = vpack.c.b16 %v1894, %v1893
    %v1936 = vpack.c.b16 %v1896, %v1895
    %v1937 = vpack.c.b16 %v1898, %v1897
    %v1938 = vpack.c.b16 %v1900, %v1899
    %v1939 = vpack.c.b16 %v1902, %v1901
    %v1940 = vpack.c.b16 %v1904, %v1903
    %v1941 = vpack.c.b16 %v1906, %v1905
    %v1942 = vpack.c.b16 %v1908, %v1907
    %v1943 = vpack.c.b16 %v1910, %v1909
    %v1944 = vpack.c.b16 %v1912, %v1911
    %1977 = vmatpush.bf16.msra.mxu0 %v1920
    %1978 = vmatpush.bf16.msra.mxu0 %v1919
    %1979 = vmatpush.bf16.msra.mxu0 %v1918
    %1980 = vmatpush.bf16.msra.mxu0 %v1917
    %1981 = vmatpush.bf16.msra.mxu0 %v1916
    %1982 = vmatpush.bf16.msra.mxu0 %v1915
    %1983 = vmatpush.bf16.msra.mxu0 %v1914
    %1984 = vmatpush.bf16.msra.mxu0 %v1913
    %1985 = vmatmul.bf16.gmra.mxu0 %v1709
    %v1986 = vpop.f32.mrf.mxu0
    %v1987 = vadd.f32 %v1783, %v1986
    %v1988 = vpop.f32.mrf.mxu0
    %v1989 = vadd.f32 %v1783, %v1988
    %1990 = vmatmul.bf16.gmra.mxu0 %v1713
    %v1991 = vpop.f32.mrf.mxu0
    %v1992 = vadd.f32 %v1783, %v1991
    %v1993 = vpop.f32.mrf.mxu0
    %v1994 = vadd.f32 %v1783, %v1993
    %1995 = vdwg.mxu0
    %1996 = vmatpush.bf16.msra.mxu0 %v1928
    %1997 = vmatpush.bf16.msra.mxu0 %v1927
    %1998 = vmatpush.bf16.msra.mxu0 %v1926
    %1999 = vmatpush.bf16.msra.mxu0 %v1925
    %2000 = vmatpush.bf16.msra.mxu0 %v1924
    %2001 = vmatpush.bf16.msra.mxu0 %v1923
    %2002 = vmatpush.bf16.msra.mxu0 %v1922
    %2003 = vmatpush.bf16.msra.mxu0 %v1921
    %2004 = vmatmul.bf16.gmra.mxu0 %v1710
    %v2005 = vpop.f32.mrf.mxu0
    %v2006 = vadd.f32 %v1987, %v2005
    %v2007 = vpop.f32.mrf.mxu0
    %v2008 = vadd.f32 %v1989, %v2007
    %2009 = vmatmul.bf16.gmra.mxu0 %v1714
    %v2010 = vpop.f32.mrf.mxu0
    %v2011 = vadd.f32 %v1992, %v2010
    %v2012 = vpop.f32.mrf.mxu0
    %v2013 = vadd.f32 %v1994, %v2012
    %2014 = vdwg.mxu0
    %2015 = vmatpush.bf16.msra.mxu0 %v1936
    %2016 = vmatpush.bf16.msra.mxu0 %v1935
    %2017 = vmatpush.bf16.msra.mxu0 %v1934
    %2018 = vmatpush.bf16.msra.mxu0 %v1933
    %2019 = vmatpush.bf16.msra.mxu0 %v1932
    %2020 = vmatpush.bf16.msra.mxu0 %v1931
    %2021 = vmatpush.bf16.msra.mxu0 %v1930
    %2022 = vmatpush.bf16.msra.mxu0 %v1929
    %2023 = vmatmul.bf16.gmra.mxu0 %v1711
    %v2024 = vpop.f32.mrf.mxu0
    %v2025 = vadd.f32 %v2006, %v2024
    %v2026 = vpop.f32.mrf.mxu0
    %v2027 = vadd.f32 %v2008, %v2026
    %2028 = vmatmul.bf16.gmra.mxu0 %v1715
    %v2029 = vpop.f32.mrf.mxu0
    %v2030 = vadd.f32 %v2011, %v2029
    %v2031 = vpop.f32.mrf.mxu0
    %v2032 = vadd.f32 %v2013, %v2031
    %2033 = vdwg.mxu0
    %2034 = vmatpush.bf16.msra.mxu0 %v1944
    %2035 = vmatpush.bf16.msra.mxu0 %v1943
    %2036 = vmatpush.bf16.msra.mxu0 %v1942
    %2037 = vmatpush.bf16.msra.mxu0 %v1941
    %2038 = vmatpush.bf16.msra.mxu0 %v1940
    %2039 = vmatpush.bf16.msra.mxu0 %v1939
    %2040 = vmatpush.bf16.msra.mxu0 %v1938
    %2041 = vmatpush.bf16.msra.mxu0 %v1937
    %2042 = vmatmul.bf16.gmra.mxu0 %v1712
    %v2043 = vpop.f32.mrf.mxu0
    %v2044 = vadd.f32 %v2025, %v2043
    %v2045 = vpop.f32.mrf.mxu0
    %v2046 = vadd.f32 %v2027, %v2045
    %2047 = vmatmul.bf16.gmra.mxu0 %v1716
    %v2048 = vpop.f32.mrf.mxu0
    %v2049 = vadd.f32 %v2030, %v2048
    %v2050 = vpop.f32.mrf.mxu0
    %v2051 = vadd.f32 %v2032, %v2050
    %2052 = vdwg.mxu0
    %v2053 = vadd.f32 %v1409, %v2044
    %v2054 = vadd.f32 %v1410, %v2046
    %v2055 = vadd.f32 %v1411, %v2049
    %v2056 = vadd.f32 %v1412, %v2051
    %v2057 = vld [vmem:[#allocation19] sm:$0x1]
    %v2058 = vld [vmem:[#allocation20] sm:$0x1]
    %2059 = vadd.xlane.f32.xlu0 %v2053
    %v2060 = vpop.xlane.xlu0 %2059
    %2061 = vadd.xlane.f32.xlu0 %v2054
    %v2062 = vpop.xlane.xlu0 %2061
    %2063 = vadd.xlane.f32.xlu0 %v2055
    %v2064 = vpop.xlane.xlu0 %2063
    %2065 = vadd.xlane.f32.xlu0 %v2056
    %v2066 = vpop.xlane.xlu0 %2065
    %v2067 = vmul.f32 %v2060, %v1326
    %v2068 = vmul.f32 %v2062, %v1326
    %v2069 = vmul.f32 %v2064, %v1326
    %v2070 = vmul.f32 %v2066, %v1326
    %v2071 = vsub.f32 %v2053, %v2067
    %v2072 = vsub.f32 %v2054, %v2068
    %v2073 = vsub.f32 %v2055, %v2069
    %v2074 = vsub.f32 %v2056, %v2070
    %v2075 = vmul.f32 %v2071, %v2071
    %v2076 = vmul.f32 %v2072, %v2072
    %v2077 = vmul.f32 %v2073, %v2073
    %v2078 = vmul.f32 %v2074, %v2074
    %2079 = vadd.xlane.f32.xlu0 %v2075
    %v2080 = vpop.xlane.xlu0 %2079
    %2081 = vadd.xlane.f32.xlu0 %v2076
    %v2082 = vpop.xlane.xlu0 %2081
    %2083 = vadd.xlane.f32.xlu0 %v2077
    %v2084 = vpop.xlane.xlu0 %2083
    %2085 = vadd.xlane.f32.xlu0 %v2078
    %v2086 = vpop.xlane.xlu0 %2085
    %v2087 = vmul.f32 %v2080, %v1326
    %v2088 = vmul.f32 %v2082, %v1326
    %v2089 = vmul.f32 %v2084, %v1326
    %v2090 = vmul.f32 %v2086, %v1326
    %v2091 = vadd.f32 %v2087, 1e-05
    %v2092 = vadd.f32 %v2088, 1e-05
    %v2093 = vadd.f32 %v2089, 1e-05
    %v2094 = vadd.f32 %v2090, 1e-05
    %v2095 = vrsqrt.pop %v2091
    %v2096 = vmul.f32 %v2095, %v2091
    %v2097 = vmul.f32 %v2096, %v2095
    %v2098 = vmul.f32 0.5, %v2097
    %v2099 = vsub.f32 1.5, %v2098
    %v2100 = vmul.f32 %v2095, %v2099
    %vm2101 = vweird.f32 %v2091
    %vm2102 = vweird.f32 %v2095
    %vm2103 = vmor %vm2101, %vm2102
    %v2104 = vsel %vm2103, %v2095, %v2100
    %v2105 = vrsqrt.pop %v2092
    %v2106 = vmul.f32 %v2105, %v2092
    %v2107 = vmul.f32 %v2106, %v2105
    %v2108 = vmul.f32 0.5, %v2107
    %v2109 = vsub.f32 1.5, %v2108
    %v2110 = vmul.f32 %v2105, %v2109
    %vm2111 = vweird.f32 %v2092
    %vm2112 = vweird.f32 %v2105
    %vm2113 = vmor %vm2111, %vm2112
    %v2114 = vsel %vm2113, %v2105, %v2110
    %v2115 = vrsqrt.pop %v2093
    %v2116 = vmul.f32 %v2115, %v2093
    %v2117 = vmul.f32 %v2116, %v2115
    %v2118 = vmul.f32 0.5, %v2117
    %v2119 = vsub.f32 1.5, %v2118
    %v2120 = vmul.f32 %v2115, %v2119
    %vm2121 = vweird.f32 %v2093
    %vm2122 = vweird.f32 %v2115
    %vm2123 = vmor %vm2121, %vm2122
    %v2124 = vsel %vm2123, %v2115, %v2120
    %v2125 = vrsqrt.pop %v2094
    %v2126 = vmul.f32 %v2125, %v2094
    %v2127 = vmul.f32 %v2126, %v2125
    %v2128 = vmul.f32 0.5, %v2127
    %v2129 = vsub.f32 1.5, %v2128
    %v2130 = vmul.f32 %v2125, %v2129
    %vm2131 = vweird.f32 %v2094
    %vm2132 = vweird.f32 %v2125
    %vm2133 = vmor %vm2131, %vm2132
    %v2134 = vsel %vm2133, %v2125, %v2130
    %v2135 = vmul.f32 %v2071, %v2104
    %v2136 = vmul.f32 %v2072, %v2114
    %v2137 = vmul.f32 %v2073, %v2124
    %v2138 = vmul.f32 %v2074, %v2134
    %v2140 = vperm.slane %v2057, 0
    %v2142 = vmul.f32 %v2135, %v2140
    %v2143 = vmul.f32 %v2136, %v2140
    %v2144 = vmul.f32 %v2137, %v2140
    %v2145 = vmul.f32 %v2138, %v2140
    %v2147 = vperm.slane %v2058, 0
    %v2149 = vadd.f32 %v2142, %v2147
    %v2150 = vadd.f32 %v2143, %v2147
    %v2151 = vadd.f32 %v2144, %v2147
    %v2152 = vadd.f32 %v2145, %v2147
    %v2153 = vpack.c.bf16 %v2150, %v2149
    %v2154 = vpack.c.bf16 %v2152, %v2151
    %s2155 = scalar_lea.vmem [#allocation10], 192
    %v2156 = vld [vmem:[%s2155] sm:$0xff]
    %v2157 = vld [vmem:[%s2155 + $0x8] sm:$0xf]
    %v2158 = vld [vmem:[%s2155 + $0xc] sm:$0xff]
    %v2159 = vld [vmem:[%s2155 + $0x14] sm:$0xf]
    %v2160 = vld [vmem:[%s2155 + $0x18] sm:$0xff]
    %v2161 = vld [vmem:[%s2155 + $0x20] sm:$0xf]
    %v2162 = vld [vmem:[%s2155 + $0x24] sm:$0xff]
    %v2163 = vld [vmem:[%s2155 + $0x2c] sm:$0xf]
    %v2164 = vld [vmem:[%s2155 + $0x30] sm:$0xff]
    %v2165 = vld [vmem:[%s2155 + $0x38] sm:$0xf]
    %v2166 = vld [vmem:[%s2155 + $0x3c] sm:$0xff]
    %v2167 = vld [vmem:[%s2155 + $0x44] sm:$0xf]
    %v2168 = vld [vmem:[%s2155 + $0x48] sm:$0xff]
    %v2169 = vld [vmem:[%s2155 + $0x50] sm:$0xf]
    %v2170 = vld [vmem:[%s2155 + $0x54] sm:$0xff]
    %v2171 = vld [vmem:[%s2155 + $0x5c] sm:$0xf]
    %v2172 = vld [vmem:[%s2155 + $0x60] sm:$0xff]
    %v2173 = vld [vmem:[%s2155 + $0x68] sm:$0xf]
    %v2174 = vld [vmem:[%s2155 + $0x6c] sm:$0xff]
    %v2175 = vld [vmem:[%s2155 + $0x74] sm:$0xf]
    %v2176 = vld [vmem:[%s2155 + $0x78] sm:$0xff]
    %v2177 = vld [vmem:[%s2155 + $0x80] sm:$0xf]
    %v2178 = vld [vmem:[%s2155 + $0x84] sm:$0xff]
    %v2179 = vld [vmem:[%s2155 + $0x8c] sm:$0xf]
    %v2180 = vld [vmem:[%s2155 + $0x90] sm:$0xff]
    %v2181 = vld [vmem:[%s2155 + $0x98] sm:$0xf]
    %v2182 = vld [vmem:[%s2155 + $0x9c] sm:$0xff]
    %v2183 = vld [vmem:[%s2155 + $0xa4] sm:$0xf]
    %v2184 = vld [vmem:[%s2155 + $0xa8] sm:$0xff]
    %v2185 = vld [vmem:[%s2155 + $0xb0] sm:$0xf]
    %v2186 = vld [vmem:[%s2155 + $0xb4] sm:$0xff]
    %v2187 = vld [vmem:[%s2155 + $0xbc] sm:$0xf]
    %s2188 = scalar_lea.vmem [#allocation11], 3
    %v2189 = vld [vmem:[%s2188] sm:$0x7]
    %v2191 = vperm.slane %v2189, 0
    %v2192 = vperm.slane %v2189, 1
    %v2193 = vperm.slane %v2189, 2
    %v2229 = vunpack.c.l.b16 %v2156
    %v2230 = vunpack.c.h.b16 %v2156
    %v2231 = vunpack.c.l.b16 %v2157
    %v2232 = vunpack.c.l.b16 %v2158
    %v2233 = vunpack.c.h.b16 %v2158
    %v2234 = vunpack.c.l.b16 %v2159
    %v2235 = vunpack.c.l.b16 %v2160
    %v2236 = vunpack.c.h.b16 %v2160
    %v2237 = vunpack.c.l.b16 %v2161
    %v2238 = vunpack.c.l.b16 %v2162
    %v2239 = vunpack.c.h.b16 %v2162
    %v2240 = vunpack.c.l.b16 %v2163
    %v2241 = vunpack.c.l.b16 %v2164
    %v2242 = vunpack.c.h.b16 %v2164
    %v2243 = vunpack.c.l.b16 %v2165
    %v2244 = vunpack.c.l.b16 %v2166
    %v2245 = vunpack.c.h.b16 %v2166
    %v2246 = vunpack.c.l.b16 %v2167
    %v2247 = vunpack.c.l.b16 %v2168
    %v2248 = vunpack.c.h.b16 %v2168
    %v2249 = vunpack.c.l.b16 %v2169
    %v2250 = vunpack.c.l.b16 %v2170
    %v2251 = vunpack.c.h.b16 %v2170
    %v2252 = vunpack.c.l.b16 %v2171
    %v2253 = vunpack.c.l.b16 %v2172
    %v2254 = vunpack.c.h.b16 %v2172
    %v2255 = vunpack.c.l.b16 %v2173
    %v2256 = vunpack.c.l.b16 %v2174
    %v2257 = vunpack.c.h.b16 %v2174
    %v2258 = vunpack.c.l.b16 %v2175
    %v2259 = vunpack.c.l.b16 %v2176
    %v2260 = vunpack.c.h.b16 %v2176
    %v2261 = vunpack.c.l.b16 %v2177
    %v2262 = vunpack.c.l.b16 %v2178
    %v2263 = vunpack.c.h.b16 %v2178
    %v2264 = vunpack.c.l.b16 %v2179
    %v2265 = vunpack.c.l.b16 %v2180
    %v2266 = vunpack.c.h.b16 %v2180
    %v2267 = vunpack.c.l.b16 %v2181
    %v2268 = vunpack.c.l.b16 %v2182
    %v2269 = vunpack.c.h.b16 %v2182
    %v2270 = vunpack.c.l.b16 %v2183
    %v2271 = vunpack.c.l.b16 %v2184
    %v2272 = vunpack.c.h.b16 %v2184
    %v2273 = vunpack.c.l.b16 %v2185
    %v2274 = vunpack.c.l.b16 %v2186
    %v2275 = vunpack.c.h.b16 %v2186
    %v2276 = vunpack.c.l.b16 %v2187
    %v2277 = vpack.c.b16 %v2232, %v2229
    %v2278 = vpack.c.b16 %v2233, %v2230
    %v2279 = vpack.c.b16 %v2234, %v2231
    %v2280 = vpack.c.b16 %v2238, %v2235
    %v2281 = vpack.c.b16 %v2239, %v2236
    %v2282 = vpack.c.b16 %v2240, %v2237
    %v2283 = vpack.c.b16 %v2244, %v2241
    %v2284 = vpack.c.b16 %v2245, %v2242
    %v2285 = vpack.c.b16 %v2246, %v2243
    %v2286 = vpack.c.b16 %v2250, %v2247
    %v2287 = vpack.c.b16 %v2251, %v2248
    %v2288 = vpack.c.b16 %v2252, %v2249
    %v2289 = vpack.c.b16 %v2256, %v2253
    %v2290 = vpack.c.b16 %v2257, %v2254
    %v2291 = vpack.c.b16 %v2258, %v2255
    %v2292 = vpack.c.b16 %v2262, %v2259
    %v2293 = vpack.c.b16 %v2263, %v2260
    %v2294 = vpack.c.b16 %v2264, %v2261
    %v2295 = vpack.c.b16 %v2268, %v2265
    %v2296 = vpack.c.b16 %v2269, %v2266
    %v2297 = vpack.c.b16 %v2270, %v2267
    %v2298 = vpack.c.b16 %v2274, %v2271
    %v2299 = vpack.c.b16 %v2275, %v2272
    %v2300 = vpack.c.b16 %v2276, %v2273
    %2325 = vmatpush.bf16.msra.mxu0 %v2298
    %2326 = vmatpush.bf16.msra.mxu0 %v2295
    %2327 = vmatpush.bf16.msra.mxu0 %v2292
    %2328 = vmatpush.bf16.msra.mxu0 %v2289
    %2329 = vmatpush.bf16.msra.mxu0 %v2286
    %2330 = vmatpush.bf16.msra.mxu0 %v2283
    %2331 = vmatpush.bf16.msra.mxu0 %v2280
    %2332 = vmatpush.bf16.msra.mxu0 %v2277
    %2333 = vmatmul.bf16.gmra.mxu0 %v2153
    %v2334 = vpop.f32.mrf.mxu0
    %v2335 = vadd.f32 %v2191, %v2334
    %v2336 = vpop.f32.mrf.mxu0
    %v2337 = vadd.f32 %v2191, %v2336
    %2338 = vmatmul.bf16.gmra.mxu0 %v2154
    %v2339 = vpop.f32.mrf.mxu0
    %v2340 = vadd.f32 %v2191, %v2339
    %v2341 = vpop.f32.mrf.mxu0
    %v2342 = vadd.f32 %v2191, %v2341
    %2343 = vdwg.mxu0
    %2344 = vmatpush.bf16.msra.mxu0 %v2299
    %2345 = vmatpush.bf16.msra.mxu0 %v2296
    %2346 = vmatpush.bf16.msra.mxu0 %v2293
    %2347 = vmatpush.bf16.msra.mxu0 %v2290
    %2348 = vmatpush.bf16.msra.mxu0 %v2287
    %2349 = vmatpush.bf16.msra.mxu0 %v2284
    %2350 = vmatpush.bf16.msra.mxu0 %v2281
    %2351 = vmatpush.bf16.msra.mxu0 %v2278
    %2352 = vmatmul.bf16.gmra.mxu0 %v2153
    %v2353 = vpop.f32.mrf.mxu0
    %v2354 = vadd.f32 %v2192, %v2353
    %v2355 = vpop.f32.mrf.mxu0
    %v2356 = vadd.f32 %v2192, %v2355
    %2357 = vmatmul.bf16.gmra.mxu0 %v2154
    %v2358 = vpop.f32.mrf.mxu0
    %v2359 = vadd.f32 %v2192, %v2358
    %v2360 = vpop.f32.mrf.mxu0
    %v2361 = vadd.f32 %v2192, %v2360
    %2362 = vdwg.mxu0
    %2363 = vmatpush.bf16.msra.mxu0 %v2300
    %2364 = vmatpush.bf16.msra.mxu0 %v2297
    %2365 = vmatpush.bf16.msra.mxu0 %v2294
    %2366 = vmatpush.bf16.msra.mxu0 %v2291
    %2367 = vmatpush.bf16.msra.mxu0 %v2288
    %2368 = vmatpush.bf16.msra.mxu0 %v2285
    %2369 = vmatpush.bf16.msra.mxu0 %v2282
    %2370 = vmatpush.bf16.msra.mxu0 %v2279
    %2371 = vmatmul.bf16.gmra.mxu0 %v2153
    %v2372 = vpop.f32.mrf.mxu0
    %v2373 = vadd.f32 %v2193, %v2372
    %v2374 = vpop.f32.mrf.mxu0
    %v2375 = vadd.f32 %v2193, %v2374
    %2376 = vmatmul.bf16.gmra.mxu0 %v2154
    %v2377 = vpop.f32.mrf.mxu0
    %v2378 = vadd.f32 %v2193, %v2377
    %v2379 = vpop.f32.mrf.mxu0
    %v2380 = vadd.f32 %v2193, %v2379
    %2381 = vdwg.mxu0
    %v2382 = vpack.c.bf16 %v2337, %v2335
    %v2383 = vpack.c.bf16 %v2342, %v2340
    %v2384 = vpack.c.bf16 %v2354, %v2354
    %v2385 = vpack.c.bf16 %v2356, %v2356
    %v2386 = vpack.c.bf16 %v2359, %v2359
    %v2387 = vpack.c.bf16 %v2361, %v2361
    %v2388 = vpack.c.bf16 %v2373, %v2373
    %v2389 = vpack.c.bf16 %v2375, %v2375
    %v2390 = vpack.c.bf16 %v2378, %v2378
    %v2391 = vpack.c.bf16 %v2380, %v2380
    %v2396 = vunpack.c.l.b16 %v2384
    %v2397 = vunpack.c.l.b16 %v2385
    %v2398 = vunpack.c.l.b16 %v2386
    %v2399 = vunpack.c.l.b16 %v2387
    %v2400 = vpack.c.b16 %v2397, %v2396
    %v2401 = vpack.c.b16 %v2399, %v2398
    %v2404 = vunpack.c.l.bf16 %v2400
    %v2405 = vunpack.c.h.bf16 %v2400
    %v2406 = vunpack.c.l.bf16 %v2401
    %v2407 = vunpack.c.h.bf16 %v2401
    %v2408 = vmul.f32 %v2404, %v701
    %v2409 = vmul.f32 %v2405, %v702
    %v2410 = vmul.f32 %v2406, %v703
    %v2411 = vmul.f32 %v2407, %v704
    %v2412 = vmul.f32 %v2404, %v705
    %v2413 = vmul.f32 %v2405, %v706
    %v2414 = vmul.f32 %v2406, %v707
    %v2415 = vmul.f32 %v2407, %v708
    %v2416 = vmul.f32 %v2404, %v709
    %v2417 = vmul.f32 %v2405, %v710
    %v2418 = vmul.f32 %v2406, %v711
    %v2419 = vmul.f32 %v2407, %v712
    %v2420 = vmul.f32 %v2404, %v713
    %v2421 = vmul.f32 %v2405, %v714
    %v2422 = vmul.f32 %v2406, %v715
    %v2423 = vmul.f32 %v2407, %v716
    %v2424 = vmul.f32 %v2404, %v717
    %v2425 = vmul.f32 %v2405, %v718
    %v2426 = vmul.f32 %v2406, %v719
    %v2427 = vmul.f32 %v2407, %v720
    %v2428 = vmul.f32 %v2404, %v721
    %v2429 = vmul.f32 %v2405, %v722
    %v2430 = vmul.f32 %v2406, %v723
    %v2431 = vmul.f32 %v2407, %v724
    %v2432 = vmul.f32 %v2404, %v725
    %v2433 = vmul.f32 %v2405, %v726
    %v2434 = vmul.f32 %v2406, %v727
    %v2435 = vmul.f32 %v2407, %v728
    %v2436 = vmul.f32 %v2404, %v729
    %v2437 = vmul.f32 %v2405, %v730
    %v2438 = vmul.f32 %v2406, %v731
    %v2439 = vmul.f32 %v2407, %v732
    %v2440 = vpack.c.bf16 %v2409, %v2408
    %v2441 = vpack.c.bf16 %v2411, %v2410
    %v2442 = vpack.c.bf16 %v2413, %v2412
    %v2443 = vpack.c.bf16 %v2415, %v2414
    %v2444 = vpack.c.bf16 %v2417, %v2416
    %v2445 = vpack.c.bf16 %v2419, %v2418
    %v2446 = vpack.c.bf16 %v2421, %v2420
    %v2447 = vpack.c.bf16 %v2423, %v2422
    %v2448 = vpack.c.bf16 %v2425, %v2424
    %v2449 = vpack.c.bf16 %v2427, %v2426
    %v2450 = vpack.c.bf16 %v2429, %v2428
    %v2451 = vpack.c.bf16 %v2431, %v2430
    %v2452 = vpack.c.bf16 %v2433, %v2432
    %v2453 = vpack.c.bf16 %v2435, %v2434
    %v2454 = vpack.c.bf16 %v2437, %v2436
    %v2455 = vpack.c.bf16 %v2439, %v2438
    %v2460 = vunpack.c.l.b16 %v2388
    %v2461 = vunpack.c.l.b16 %v2389
    %v2462 = vunpack.c.l.b16 %v2390
    %v2463 = vunpack.c.l.b16 %v2391
    %v2464 = vpack.c.b16 %v2461, %v2460
    %v2465 = vpack.c.b16 %v2463, %v2462
    %v2468 = vunpack.c.l.bf16 %v2464
    %v2469 = vunpack.c.h.bf16 %v2464
    %v2470 = vunpack.c.l.bf16 %v2465
    %v2471 = vunpack.c.h.bf16 %v2465
    %v2472 = vmul.f32 %v2468, %v701
    %v2473 = vmul.f32 %v2469, %v702
    %v2474 = vmul.f32 %v2470, %v703
    %v2475 = vmul.f32 %v2471, %v704
    %v2476 = vmul.f32 %v2468, %v705
    %v2477 = vmul.f32 %v2469, %v706
    %v2478 = vmul.f32 %v2470, %v707
    %v2479 = vmul.f32 %v2471, %v708
    %v2480 = vmul.f32 %v2468, %v709
    %v2481 = vmul.f32 %v2469, %v710
    %v2482 = vmul.f32 %v2470, %v711
    %v2483 = vmul.f32 %v2471, %v712
    %v2484 = vmul.f32 %v2468, %v713
    %v2485 = vmul.f32 %v2469, %v714
    %v2486 = vmul.f32 %v2470, %v715
    %v2487 = vmul.f32 %v2471, %v716
    %v2488 = vmul.f32 %v2468, %v717
    %v2489 = vmul.f32 %v2469, %v718
    %v2490 = vmul.f32 %v2470, %v719
    %v2491 = vmul.f32 %v2471, %v720
    %v2492 = vmul.f32 %v2468, %v721
    %v2493 = vmul.f32 %v2469, %v722
    %v2494 = vmul.f32 %v2470, %v723
    %v2495 = vmul.f32 %v2471, %v724
    %v2496 = vmul.f32 %v2468, %v725
    %v2497 = vmul.f32 %v2469, %v726
    %v2498 = vmul.f32 %v2470, %v727
    %v2499 = vmul.f32 %v2471, %v728
    %v2500 = vmul.f32 %v2468, %v729
    %v2501 = vmul.f32 %v2469, %v730
    %v2502 = vmul.f32 %v2470, %v731
    %v2503 = vmul.f32 %v2471, %v732
    %v2504 = vpack.c.bf16 %v2473, %v2472
    %v2505 = vpack.c.bf16 %v2475, %v2474
    %v2506 = vpack.c.bf16 %v2477, %v2476
    %v2507 = vpack.c.bf16 %v2479, %v2478
    %v2508 = vpack.c.bf16 %v2481, %v2480
    %v2509 = vpack.c.bf16 %v2483, %v2482
    %v2510 = vpack.c.bf16 %v2485, %v2484
    %v2511 = vpack.c.bf16 %v2487, %v2486
    %v2512 = vpack.c.bf16 %v2489, %v2488
    %v2513 = vpack.c.bf16 %v2491, %v2490
    %v2514 = vpack.c.bf16 %v2493, %v2492
    %v2515 = vpack.c.bf16 %v2495, %v2494
    %v2516 = vpack.c.bf16 %v2497, %v2496
    %v2517 = vpack.c.bf16 %v2499, %v2498
    %v2518 = vpack.c.bf16 %v2501, %v2500
    %v2519 = vpack.c.bf16 %v2503, %v2502
    %2520 = vmatpush.bf16.xpose.msra.mxu0 %v2447
    %2521 = vmatpush.bf16.xpose.msra.mxu0 %v2446
    %2522 = vmatpush.bf16.xpose.msra.mxu0 %v2445
    %2523 = vmatpush.bf16.xpose.msra.mxu0 %v2444
    %2524 = vmatpush.bf16.xpose.msra.mxu0 %v2443
    %2525 = vmatpush.bf16.xpose.msra.mxu0 %v2442
    %2526 = vmatpush.bf16.xpose.msra.mxu0 %v2441
    %2527 = vmatpush.bf16.xpose.msra.mxu0 %v2440
    %2528 = vmatmul.bf16.gmra.mxu0 %v2382
    %v2529 = vpop.f32.mrf.mxu0
    %v2530 = vadd.f32 %v408, %v2529
    %v2531 = vpop.f32.mrf.mxu0
    %v2532 = vadd.f32 %v410, %v2531
    %2533 = vmatmul.bf16.gmra.mxu0 %v2383
    %v2534 = vpop.f32.mrf.mxu0
    %v2535 = vadd.f32 %v412, %v2534
    %v2536 = vpop.f32.mrf.mxu0
    %v2537 = vadd.f32 %v414, %v2536
    %2538 = vdwg.mxu0
    %2539 = vmatpush.bf16.xpose.msra.mxu0 %v2455
    %2540 = vmatpush.bf16.xpose.msra.mxu0 %v2454
    %2541 = vmatpush.bf16.xpose.msra.mxu0 %v2453
    %2542 = vmatpush.bf16.xpose.msra.mxu0 %v2452
    %2543 = vmatpush.bf16.xpose.msra.mxu0 %v2451
    %2544 = vmatpush.bf16.xpose.msra.mxu0 %v2450
    %2545 = vmatpush.bf16.xpose.msra.mxu0 %v2449
    %2546 = vmatpush.bf16.xpose.msra.mxu0 %v2448
    %2547 = vmatmul.bf16.gmra.mxu0 %v2382
    %v2548 = vpop.f32.mrf.mxu0
    %v2549 = vadd.f32 %v409, %v2548
    %v2550 = vpop.f32.mrf.mxu0
    %v2551 = vadd.f32 %v411, %v2550
    %2552 = vmatmul.bf16.gmra.mxu0 %v2383
    %v2553 = vpop.f32.mrf.mxu0
    %v2554 = vadd.f32 %v413, %v2553
    %v2555 = vpop.f32.mrf.mxu0
    %v2556 = vadd.f32 %v415, %v2555
    %2557 = vdwg.mxu0
    %v2558 = vmax.f32 %v2530, %v2549
    %2559 = vmax.xlane.f32.xlu0 %v2558
    %v2560 = vpop.xlane.xlu0 %2559
    %v2561 = vmax.f32 %v2532, %v2551
    %2562 = vmax.xlane.f32.xlu0 %v2561
    %v2563 = vpop.xlane.xlu0 %2562
    %v2564 = vmax.f32 %v2535, %v2554
    %2565 = vmax.xlane.f32.xlu0 %v2564
    %v2566 = vpop.xlane.xlu0 %2565
    %v2567 = vmax.f32 %v2537, %v2556
    %2568 = vmax.xlane.f32.xlu0 %v2567
    %v2569 = vpop.xlane.xlu0 %2568
    %v2570 = vsub.f32 %v2530, %v2560
    %v2571 = vsub.f32 %v2549, %v2560
    %v2572 = vsub.f32 %v2532, %v2563
    %v2573 = vsub.f32 %v2551, %v2563
    %v2574 = vsub.f32 %v2535, %v2566
    %v2575 = vsub.f32 %v2554, %v2566
    %v2576 = vsub.f32 %v2537, %v2569
    %v2577 = vsub.f32 %v2556, %v2569
    %v2578 = vmul.f32 %v2570, 1.442695
    %v2579 = vpow.pop %v2578
    %v2580 = vmul.f32 %v2571, 1.442695
    %v2581 = vpow.pop %v2580
    %v2582 = vmul.f32 %v2572, 1.442695
    %v2583 = vpow.pop %v2582
    %v2584 = vmul.f32 %v2573, 1.442695
    %v2585 = vpow.pop %v2584
    %v2586 = vmul.f32 %v2574, 1.442695
    %v2587 = vpow.pop %v2586
    %v2588 = vmul.f32 %v2575, 1.442695
    %v2589 = vpow.pop %v2588
    %v2590 = vmul.f32 %v2576, 1.442695
    %v2591 = vpow.pop %v2590
    %v2592 = vmul.f32 %v2577, 1.442695
    %v2593 = vpow.pop %v2592
    %v2594 = vpack.c.bf16 %v2583, %v2579
    %v2595 = vpack.c.bf16 %v2585, %v2581
    %v2596 = vpack.c.bf16 %v2591, %v2587
    %v2597 = vpack.c.bf16 %v2593, %v2589
    %2598 = vmatpush.bf16.msra.mxu0 %v1033
    %2599 = vmatpush.bf16.msra.mxu0 %v1031
    %2600 = vmatpush.bf16.msra.mxu0 %v1029
    %2601 = vmatpush.bf16.msra.mxu0 %v1027
    %2602 = vmatpush.bf16.msra.mxu0 %v1025
    %2603 = vmatpush.bf16.msra.mxu0 %v1023
    %2604 = vmatpush.bf16.msra.mxu0 %v1021
    %2605 = vmatpush.bf16.msra.mxu0 %v1019
    %2606 = vmatmul.bf16.gmra.mxu0 %v2594
    %v2607 = vpop.f32.mrf.mxu0
    %v2608 = vadd.f32 0.0, %v2607
    %v2609 = vpop.f32.mrf.mxu0
    %v2610 = vadd.f32 0.0, %v2609
    %2611 = vmatmul.bf16.gmra.mxu0 %v2596
    %v2612 = vpop.f32.mrf.mxu0
    %v2613 = vadd.f32 0.0, %v2612
    %v2614 = vpop.f32.mrf.mxu0
    %v2615 = vadd.f32 0.0, %v2614
    %2616 = vdwg.mxu0
    %2617 = vmatpush.bf16.msra.mxu0 %v1049
    %2618 = vmatpush.bf16.msra.mxu0 %v1047
    %2619 = vmatpush.bf16.msra.mxu0 %v1045
    %2620 = vmatpush.bf16.msra.mxu0 %v1043
    %2621 = vmatpush.bf16.msra.mxu0 %v1041
    %2622 = vmatpush.bf16.msra.mxu0 %v1039
    %2623 = vmatpush.bf16.msra.mxu0 %v1037
    %2624 = vmatpush.bf16.msra.mxu0 %v1035
    %2625 = vmatmul.bf16.gmra.mxu0 %v2595
    %v2626 = vpop.f32.mrf.mxu0
    %v2627 = vadd.f32 %v2608, %v2626
    %v2628 = vpop.f32.mrf.mxu0
    %v2629 = vadd.f32 %v2610, %v2628
    %2630 = vmatmul.bf16.gmra.mxu0 %v2597
    %v2631 = vpop.f32.mrf.mxu0
    %v2632 = vadd.f32 %v2613, %v2631
    %v2633 = vpop.f32.mrf.mxu0
    %v2634 = vadd.f32 %v2615, %v2633
    %2635 = vdwg.mxu0
    %2636 = vmatpush.bf16.msra.mxu0 %v1034
    %2637 = vmatpush.bf16.msra.mxu0 %v1032
    %2638 = vmatpush.bf16.msra.mxu0 %v1030
    %2639 = vmatpush.bf16.msra.mxu0 %v1028
    %2640 = vmatpush.bf16.msra.mxu0 %v1026
    %2641 = vmatpush.bf16.msra.mxu0 %v1024
    %2642 = vmatpush.bf16.msra.mxu0 %v1022
    %2643 = vmatpush.bf16.msra.mxu0 %v1020
    %2644 = vmatmul.bf16.gmra.mxu0 %v2594
    %v2645 = vpop.f32.mrf.mxu0
    %v2646 = vadd.f32 0.0, %v2645
    %v2647 = vpop.f32.mrf.mxu0
    %v2648 = vadd.f32 0.0, %v2647
    %2649 = vmatmul.bf16.gmra.mxu0 %v2596
    %v2650 = vpop.f32.mrf.mxu0
    %v2651 = vadd.f32 0.0, %v2650
    %v2652 = vpop.f32.mrf.mxu0
    %v2653 = vadd.f32 0.0, %v2652
    %2654 = vdwg.mxu0
    %2655 = vmatpush.bf16.msra.mxu0 %v1050
    %2656 = vmatpush.bf16.msra.mxu0 %v1048
    %2657 = vmatpush.bf16.msra.mxu0 %v1046
    %2658 = vmatpush.bf16.msra.mxu0 %v1044
    %2659 = vmatpush.bf16.msra.mxu0 %v1042
    %2660 = vmatpush.bf16.msra.mxu0 %v1040
    %2661 = vmatpush.bf16.msra.mxu0 %v1038
    %2662 = vmatpush.bf16.msra.mxu0 %v1036
    %2663 = vmatmul.bf16.gmra.mxu0 %v2595
    %v2664 = vpop.f32.mrf.mxu0
    %v2665 = vadd.f32 %v2646, %v2664
    %v2666 = vpop.f32.mrf.mxu0
    %v2667 = vadd.f32 %v2648, %v2666
    %2668 = vmatmul.bf16.gmra.mxu0 %v2597
    %v2669 = vpop.f32.mrf.mxu0
    %v2670 = vadd.f32 %v2651, %v2669
    %v2671 = vpop.f32.mrf.mxu0
    %v2672 = vadd.f32 %v2653, %v2671
    %2673 = vdwg.mxu0
    %v2674 = vrcp.pop %v2627
    %v2675 = vrcp.pop %v2665
    %v2676 = vrcp.pop %v2629
    %v2677 = vrcp.pop %v2667
    %v2678 = vrcp.pop %v2632
    %v2679 = vrcp.pop %v2670
    %v2680 = vrcp.pop %v2634
    %v2681 = vrcp.pop %v2672
    %v2682 = vmul.f32 %v2579, %v2674
    %v2683 = vmul.f32 %v2581, %v2675
    %v2684 = vmul.f32 %v2583, %v2676
    %v2685 = vmul.f32 %v2585, %v2677
    %v2686 = vmul.f32 %v2587, %v2678
    %v2687 = vmul.f32 %v2589, %v2679
    %v2688 = vmul.f32 %v2591, %v2680
    %v2689 = vmul.f32 %v2593, %v2681
    %v2690 = vpack.c.bf16 %v2684, %v2682
    %v2691 = vpack.c.bf16 %v2685, %v2683
    %v2692 = vpack.c.bf16 %v2688, %v2686
    %v2693 = vpack.c.bf16 %v2689, %v2687
    %2694 = vmatpush.bf16.msra.mxu0 %v2511
    %2695 = vmatpush.bf16.msra.mxu0 %v2510
    %2696 = vmatpush.bf16.msra.mxu0 %v2509
    %2697 = vmatpush.bf16.msra.mxu0 %v2508
    %2698 = vmatpush.bf16.msra.mxu0 %v2507
    %2699 = vmatpush.bf16.msra.mxu0 %v2506
    %2700 = vmatpush.bf16.msra.mxu0 %v2505
    %2701 = vmatpush.bf16.msra.mxu0 %v2504
    %2702 = vmatmul.bf16.gmra.mxu0 %v2690
    %v2703 = vpop.f32.mrf.mxu0
    %v2704 = vadd.f32 0.0, %v2703
    %v2705 = vpop.f32.mrf.mxu0
    %v2706 = vadd.f32 0.0, %v2705
    %2707 = vmatmul.bf16.gmra.mxu0 %v2692
    %v2708 = vpop.f32.mrf.mxu0
    %v2709 = vadd.f32 0.0, %v2708
    %v2710 = vpop.f32.mrf.mxu0
    %v2711 = vadd.f32 0.0, %v2710
    %2712 = vdwg.mxu0
    %2713 = vmatpush.bf16.msra.mxu0 %v2519
    %2714 = vmatpush.bf16.msra.mxu0 %v2518
    %2715 = vmatpush.bf16.msra.mxu0 %v2517
    %2716 = vmatpush.bf16.msra.mxu0 %v2516
    %2717 = vmatpush.bf16.msra.mxu0 %v2515
    %2718 = vmatpush.bf16.msra.mxu0 %v2514
    %2719 = vmatpush.bf16.msra.mxu0 %v2513
    %2720 = vmatpush.bf16.msra.mxu0 %v2512
    %2721 = vmatmul.bf16.gmra.mxu0 %v2691
    %v2722 = vpop.f32.mrf.mxu0
    %v2723 = vadd.f32 %v2704, %v2722
    %v2724 = vpop.f32.mrf.mxu0
    %v2725 = vadd.f32 %v2706, %v2724
    %2726 = vmatmul.bf16.gmra.mxu0 %v2693
    %v2727 = vpop.f32.mrf.mxu0
    %v2728 = vadd.f32 %v2709, %v2727
    %v2729 = vpop.f32.mrf.mxu0
    %v2730 = vadd.f32 %v2711, %v2729
    %2731 = vdwg.mxu0
    %v2732 = vpack.c.bf16 %v2725, %v2723
    %v2733 = vpack.c.bf16 %v2730, %v2728
    %s2734 = scalar_lea.vmem [#allocation13], 64
    %v2735 = vld [vmem:[%s2734] sm:$0xf]
    %v2736 = vld [vmem:[%s2734 + $0x4] sm:$0xf]
    %v2737 = vld [vmem:[%s2734 + $0x8] sm:$0xf]
    %v2738 = vld [vmem:[%s2734 + $0xc] sm:$0xf]
    %v2739 = vld [vmem:[%s2734 + $0x10] sm:$0xf]
    %v2740 = vld [vmem:[%s2734 + $0x14] sm:$0xf]
    %v2741 = vld [vmem:[%s2734 + $0x18] sm:$0xf]
    %v2742 = vld [vmem:[%s2734 + $0x1c] sm:$0xf]
    %v2743 = vld [vmem:[%s2734 + $0x20] sm:$0xf]
    %v2744 = vld [vmem:[%s2734 + $0x24] sm:$0xf]
    %v2745 = vld [vmem:[%s2734 + $0x28] sm:$0xf]
    %v2746 = vld [vmem:[%s2734 + $0x2c] sm:$0xf]
    %v2747 = vld [vmem:[%s2734 + $0x30] sm:$0xf]
    %v2748 = vld [vmem:[%s2734 + $0x34] sm:$0xf]
    %v2749 = vld [vmem:[%s2734 + $0x38] sm:$0xf]
    %v2750 = vld [vmem:[%s2734 + $0x3c] sm:$0xf]
    %s2751 = scalar_lea.vmem [#allocation14], 1
    %v2752 = vld [vmem:[%s2751] sm:$0x1]
    %v2754 = vperm.slane %v2752, 0
    %v2772 = vunpack.c.l.b16 %v2735
    %v2773 = vunpack.c.l.b16 %v2736
    %v2774 = vunpack.c.l.b16 %v2737
    %v2775 = vunpack.c.l.b16 %v2738
    %v2776 = vunpack.c.l.b16 %v2739
    %v2777 = vunpack.c.l.b16 %v2740
    %v2778 = vunpack.c.l.b16 %v2741
    %v2779 = vunpack.c.l.b16 %v2742
    %v2780 = vunpack.c.l.b16 %v2743
    %v2781 = vunpack.c.l.b16 %v2744
    %v2782 = vunpack.c.l.b16 %v2745
    %v2783 = vunpack.c.l.b16 %v2746
    %v2784 = vunpack.c.l.b16 %v2747
    %v2785 = vunpack.c.l.b16 %v2748
    %v2786 = vunpack.c.l.b16 %v2749
    %v2787 = vunpack.c.l.b16 %v2750
    %v2788 = vpack.c.b16 %v2773, %v2772
    %v2789 = vpack.c.b16 %v2775, %v2774
    %v2790 = vpack.c.b16 %v2777, %v2776
    %v2791 = vpack.c.b16 %v2779, %v2778
    %v2792 = vpack.c.b16 %v2781, %v2780
    %v2793 = vpack.c.b16 %v2783, %v2782
    %v2794 = vpack.c.b16 %v2785, %v2784
    %v2795 = vpack.c.b16 %v2787, %v2786
    %2804 = vmatpush.bf16.msra.mxu0 %v2795
    %2805 = vmatpush.bf16.msra.mxu0 %v2794
    %2806 = vmatpush.bf16.msra.mxu0 %v2793
    %2807 = vmatpush.bf16.msra.mxu0 %v2792
    %2808 = vmatpush.bf16.msra.mxu0 %v2791
    %2809 = vmatpush.bf16.msra.mxu0 %v2790
    %2810 = vmatpush.bf16.msra.mxu0 %v2789
    %2811 = vmatpush.bf16.msra.mxu0 %v2788
    %2812 = vmatmul.bf16.gmra.mxu0 %v2732
    %v2813 = vpop.f32.mrf.mxu0
    %v2814 = vadd.f32 %v2754, %v2813
    %v2815 = vpop.f32.mrf.mxu0
    %v2816 = vadd.f32 %v2754, %v2815
    %2817 = vmatmul.bf16.gmra.mxu0 %v2733
    %v2818 = vpop.f32.mrf.mxu0
    %v2819 = vadd.f32 %v2754, %v2818
    %v2820 = vpop.f32.mrf.mxu0
    %v2821 = vadd.f32 %v2754, %v2820
    %2822 = vdwg.mxu0
    %v2823 = vadd.f32 %v2149, %v2814
    %v2824 = vadd.f32 %v2150, %v2816
    %v2825 = vadd.f32 %v2151, %v2819
    %v2826 = vadd.f32 %v2152, %v2821
    %s2827 = scalar_lea.vmem [#allocation16], 1
    %v2828 = vld [vmem:[%s2827] sm:$0x1]
    %s2829 = scalar_lea.vmem [#allocation17], 1
    %v2830 = vld [vmem:[%s2829] sm:$0x1]
    %2831 = vadd.xlane.f32.xlu0 %v2823
    %v2832 = vpop.xlane.xlu0 %2831
    %2833 = vadd.xlane.f32.xlu0 %v2824
    %v2834 = vpop.xlane.xlu0 %2833
    %2835 = vadd.xlane.f32.xlu0 %v2825
    %v2836 = vpop.xlane.xlu0 %2835
    %2837 = vadd.xlane.f32.xlu0 %v2826
    %v2838 = vpop.xlane.xlu0 %2837
    %v2839 = vmul.f32 %v2832, %v1326
    %v2840 = vmul.f32 %v2834, %v1326
    %v2841 = vmul.f32 %v2836, %v1326
    %v2842 = vmul.f32 %v2838, %v1326
    %v2843 = vsub.f32 %v2823, %v2839
    %v2844 = vsub.f32 %v2824, %v2840
    %v2845 = vsub.f32 %v2825, %v2841
    %v2846 = vsub.f32 %v2826, %v2842
    %v2847 = vmul.f32 %v2843, %v2843
    %v2848 = vmul.f32 %v2844, %v2844
    %v2849 = vmul.f32 %v2845, %v2845
    %v2850 = vmul.f32 %v2846, %v2846
    %2851 = vadd.xlane.f32.xlu0 %v2847
    %v2852 = vpop.xlane.xlu0 %2851
    %2853 = vadd.xlane.f32.xlu0 %v2848
    %v2854 = vpop.xlane.xlu0 %2853
    %2855 = vadd.xlane.f32.xlu0 %v2849
    %v2856 = vpop.xlane.xlu0 %2855
    %2857 = vadd.xlane.f32.xlu0 %v2850
    %v2858 = vpop.xlane.xlu0 %2857
    %v2859 = vmul.f32 %v2852, %v1326
    %v2860 = vmul.f32 %v2854, %v1326
    %v2861 = vmul.f32 %v2856, %v1326
    %v2862 = vmul.f32 %v2858, %v1326
    %v2863 = vadd.f32 %v2859, 1e-05
    %v2864 = vadd.f32 %v2860, 1e-05
    %v2865 = vadd.f32 %v2861, 1e-05
    %v2866 = vadd.f32 %v2862, 1e-05
    %v2867 = vrsqrt.pop %v2863
    %v2868 = vmul.f32 %v2867, %v2863
    %v2869 = vmul.f32 %v2868, %v2867
    %v2870 = vmul.f32 0.5, %v2869
    %v2871 = vsub.f32 1.5, %v2870
    %v2872 = vmul.f32 %v2867, %v2871
    %vm2873 = vweird.f32 %v2863
    %vm2874 = vweird.f32 %v2867
    %vm2875 = vmor %vm2873, %vm2874
    %v2876 = vsel %vm2875, %v2867, %v2872
    %v2877 = vrsqrt.pop %v2864
    %v2878 = vmul.f32 %v2877, %v2864
    %v2879 = vmul.f32 %v2878, %v2877
    %v2880 = vmul.f32 0.5, %v2879
    %v2881 = vsub.f32 1.5, %v2880
    %v2882 = vmul.f32 %v2877, %v2881
    %vm2883 = vweird.f32 %v2864
    %vm2884 = vweird.f32 %v2877
    %vm2885 = vmor %vm2883, %vm2884
    %v2886 = vsel %vm2885, %v2877, %v2882
    %v2887 = vrsqrt.pop %v2865
    %v2888 = vmul.f32 %v2887, %v2865
    %v2889 = vmul.f32 %v2888, %v2887
    %v2890 = vmul.f32 0.5, %v2889
    %v2891 = vsub.f32 1.5, %v2890
    %v2892 = vmul.f32 %v2887, %v2891
    %vm2893 = vweird.f32 %v2865
    %vm2894 = vweird.f32 %v2887
    %vm2895 = vmor %vm2893, %vm2894
    %v2896 = vsel %vm2895, %v2887, %v2892
    %v2897 = vrsqrt.pop %v2866
    %v2898 = vmul.f32 %v2897, %v2866
    %v2899 = vmul.f32 %v2898, %v2897
    %v2900 = vmul.f32 0.5, %v2899
    %v2901 = vsub.f32 1.5, %v2900
    %v2902 = vmul.f32 %v2897, %v2901
    %vm2903 = vweird.f32 %v2866
    %vm2904 = vweird.f32 %v2897
    %vm2905 = vmor %vm2903, %vm2904
    %v2906 = vsel %vm2905, %v2897, %v2902
    %v2907 = vmul.f32 %v2843, %v2876
    %v2908 = vmul.f32 %v2844, %v2886
    %v2909 = vmul.f32 %v2845, %v2896
    %v2910 = vmul.f32 %v2846, %v2906
    %v2912 = vperm.slane %v2828, 0
    %v2914 = vmul.f32 %v2907, %v2912
    %v2915 = vmul.f32 %v2908, %v2912
    %v2916 = vmul.f32 %v2909, %v2912
    %v2917 = vmul.f32 %v2910, %v2912
    %v2919 = vperm.slane %v2830, 0
    %v2921 = vadd.f32 %v2914, %v2919
    %v2922 = vadd.f32 %v2915, %v2919
    %v2923 = vadd.f32 %v2916, %v2919
    %v2924 = vadd.f32 %v2917, %v2919
    %v2925 = vpack.c.bf16 %v2922, %v2921
    %v2926 = vpack.c.bf16 %v2924, %v2923
    %s2927 = scalar_lea.vmem [#allocation22], 256
    %v2928 = vld [vmem:[%s2927] sm:$0xff]
    %v2929 = vld [vmem:[%s2927 + $0x8] sm:$0xff]
    %v2930 = vld [vmem:[%s2927 + $0x10] sm:$0xff]
    %v2931 = vld [vmem:[%s2927 + $0x18] sm:$0xff]
    %v2932 = vld [vmem:[%s2927 + $0x20] sm:$0xff]
    %v2933 = vld [vmem:[%s2927 + $0x28] sm:$0xff]
    %v2934 = vld [vmem:[%s2927 + $0x30] sm:$0xff]
    %v2935 = vld [vmem:[%s2927 + $0x38] sm:$0xff]
    %v2936 = vld [vmem:[%s2927 + $0x40] sm:$0xff]
    %v2937 = vld [vmem:[%s2927 + $0x48] sm:$0xff]
    %v2938 = vld [vmem:[%s2927 + $0x50] sm:$0xff]
    %v2939 = vld [vmem:[%s2927 + $0x58] sm:$0xff]
    %v2940 = vld [vmem:[%s2927 + $0x60] sm:$0xff]
    %v2941 = vld [vmem:[%s2927 + $0x68] sm:$0xff]
    %v2942 = vld [vmem:[%s2927 + $0x70] sm:$0xff]
    %v2943 = vld [vmem:[%s2927 + $0x78] sm:$0xff]
    %v2944 = vld [vmem:[%s2927 + $0x80] sm:$0xff]
    %v2945 = vld [vmem:[%s2927 + $0x88] sm:$0xff]
    %v2946 = vld [vmem:[%s2927 + $0x90] sm:$0xff]
    %v2947 = vld [vmem:[%s2927 + $0x98] sm:$0xff]
    %v2948 = vld [vmem:[%s2927 + $0xa0] sm:$0xff]
    %v2949 = vld [vmem:[%s2927 + $0xa8] sm:$0xff]
    %v2950 = vld [vmem:[%s2927 + $0xb0] sm:$0xff]
    %v2951 = vld [vmem:[%s2927 + $0xb8] sm:$0xff]
    %v2952 = vld [vmem:[%s2927 + $0xc0] sm:$0xff]
    %v2953 = vld [vmem:[%s2927 + $0xc8] sm:$0xff]
    %v2954 = vld [vmem:[%s2927 + $0xd0] sm:$0xff]
    %v2955 = vld [vmem:[%s2927 + $0xd8] sm:$0xff]
    %v2956 = vld [vmem:[%s2927 + $0xe0] sm:$0xff]
    %v2957 = vld [vmem:[%s2927 + $0xe8] sm:$0xff]
    %v2958 = vld [vmem:[%s2927 + $0xf0] sm:$0xff]
    %v2959 = vld [vmem:[%s2927 + $0xf8] sm:$0xff]
    %s2960 = scalar_lea.vmem %s15, 4
    %v2961 = vld [vmem:[%s2960] sm:$0xf]
    %v2963 = vperm.slane %v2961, 0
    %v2964 = vperm.slane %v2961, 1
    %v2965 = vperm.slane %v2961, 2
    %v2966 = vperm.slane %v2961, 3
    %v3003 = vunpack.c.l.b16 %v2928
    %v3004 = vunpack.c.h.b16 %v2928
    %v3005 = vunpack.c.l.b16 %v2929
    %v3006 = vunpack.c.h.b16 %v2929
    %v3007 = vunpack.c.l.b16 %v2930
    %v3008 = vunpack.c.h.b16 %v2930
    %v3009 = vunpack.c.l.b16 %v2931
    %v3010 = vunpack.c.h.b16 %v2931
    %v3011 = vunpack.c.l.b16 %v2932
    %v3012 = vunpack.c.h.b16 %v2932
    %v3013 = vunpack.c.l.b16 %v2933
    %v3014 = vunpack.c.h.b16 %v2933
    %v3015 = vunpack.c.l.b16 %v2934
    %v3016 = vunpack.c.h.b16 %v2934
    %v3017 = vunpack.c.l.b16 %v2935
    %v3018 = vunpack.c.h.b16 %v2935
    %v3019 = vunpack.c.l.b16 %v2936
    %v3020 = vunpack.c.h.b16 %v2936
    %v3021 = vunpack.c.l.b16 %v2937
    %v3022 = vunpack.c.h.b16 %v2937
    %v3023 = vunpack.c.l.b16 %v2938
    %v3024 = vunpack.c.h.b16 %v2938
    %v3025 = vunpack.c.l.b16 %v2939
    %v3026 = vunpack.c.h.b16 %v2939
    %v3027 = vunpack.c.l.b16 %v2940
    %v3028 = vunpack.c.h.b16 %v2940
    %v3029 = vunpack.c.l.b16 %v2941
    %v3030 = vunpack.c.h.b16 %v2941
    %v3031 = vunpack.c.l.b16 %v2942
    %v3032 = vunpack.c.h.b16 %v2942
    %v3033 = vunpack.c.l.b16 %v2943
    %v3034 = vunpack.c.h.b16 %v2943
    %v3035 = vunpack.c.l.b16 %v2944
    %v3036 = vunpack.c.h.b16 %v2944
    %v3037 = vunpack.c.l.b16 %v2945
    %v3038 = vunpack.c.h.b16 %v2945
    %v3039 = vunpack.c.l.b16 %v2946
    %v3040 = vunpack.c.h.b16 %v2946
    %v3041 = vunpack.c.l.b16 %v2947
    %v3042 = vunpack.c.h.b16 %v2947
    %v3043 = vunpack.c.l.b16 %v2948
    %v3044 = vunpack.c.h.b16 %v2948
    %v3045 = vunpack.c.l.b16 %v2949
    %v3046 = vunpack.c.h.b16 %v2949
    %v3047 = vunpack.c.l.b16 %v2950
    %v3048 = vunpack.c.h.b16 %v2950
    %v3049 = vunpack.c.l.b16 %v2951
    %v3050 = vunpack.c.h.b16 %v2951
    %v3051 = vunpack.c.l.b16 %v2952
    %v3052 = vunpack.c.h.b16 %v2952
    %v3053 = vunpack.c.l.b16 %v2953
    %v3054 = vunpack.c.h.b16 %v2953
    %v3055 = vunpack.c.l.b16 %v2954
    %v3056 = vunpack.c.h.b16 %v2954
    %v3057 = vunpack.c.l.b16 %v2955
    %v3058 = vunpack.c.h.b16 %v2955
    %v3059 = vunpack.c.l.b16 %v2956
    %v3060 = vunpack.c.h.b16 %v2956
    %v3061 = vunpack.c.l.b16 %v2957
    %v3062 = vunpack.c.h.b16 %v2957
    %v3063 = vunpack.c.l.b16 %v2958
    %v3064 = vunpack.c.h.b16 %v2958
    %v3065 = vunpack.c.l.b16 %v2959
    %v3066 = vunpack.c.h.b16 %v2959
    %v3067 = vpack.c.b16 %v3007, %v3003
    %v3068 = vpack.c.b16 %v3008, %v3004
    %v3069 = vpack.c.b16 %v3009, %v3005
    %v3070 = vpack.c.b16 %v3010, %v3006
    %v3071 = vpack.c.b16 %v3015, %v3011
    %v3072 = vpack.c.b16 %v3016, %v3012
    %v3073 = vpack.c.b16 %v3017, %v3013
    %v3074 = vpack.c.b16 %v3018, %v3014
    %v3075 = vpack.c.b16 %v3023, %v3019
    %v3076 = vpack.c.b16 %v3024, %v3020
    %v3077 = vpack.c.b16 %v3025, %v3021
    %v3078 = vpack.c.b16 %v3026, %v3022
    %v3079 = vpack.c.b16 %v3031, %v3027
    %v3080 = vpack.c.b16 %v3032, %v3028
    %v3081 = vpack.c.b16 %v3033, %v3029
    %v3082 = vpack.c.b16 %v3034, %v3030
    %v3083 = vpack.c.b16 %v3039, %v3035
    %v3084 = vpack.c.b16 %v3040, %v3036
    %v3085 = vpack.c.b16 %v3041, %v3037
    %v3086 = vpack.c.b16 %v3042, %v3038
    %v3087 = vpack.c.b16 %v3047, %v3043
    %v3088 = vpack.c.b16 %v3048, %v3044
    %v3089 = vpack.c.b16 %v3049, %v3045
    %v3090 = vpack.c.b16 %v3050, %v3046
    %v3091 = vpack.c.b16 %v3055, %v3051
    %v3092 = vpack.c.b16 %v3056, %v3052
    %v3093 = vpack.c.b16 %v3057, %v3053
    %v3094 = vpack.c.b16 %v3058, %v3054
    %v3095 = vpack.c.b16 %v3063, %v3059
    %v3096 = vpack.c.b16 %v3064, %v3060
    %v3097 = vpack.c.b16 %v3065, %v3061
    %v3098 = vpack.c.b16 %v3066, %v3062
    %3131 = vmatpush.bf16.msra.mxu0 %v3095
    %3132 = vmatpush.bf16.msra.mxu0 %v3091
    %3133 = vmatpush.bf16.msra.mxu0 %v3087
    %3134 = vmatpush.bf16.msra.mxu0 %v3083
    %3135 = vmatpush.bf16.msra.mxu0 %v3079
    %3136 = vmatpush.bf16.msra.mxu0 %v3075
    %3137 = vmatpush.bf16.msra.mxu0 %v3071
    %3138 = vmatpush.bf16.msra.mxu0 %v3067
    %3139 = vmatmul.bf16.gmra.mxu0 %v2925
    %v3140 = vpop.f32.mrf.mxu0
    %v3141 = vadd.f32 %v2963, %v3140
    %v3142 = vpop.f32.mrf.mxu0
    %v3143 = vadd.f32 %v2963, %v3142
    %3144 = vmatmul.bf16.gmra.mxu0 %v2926
    %v3145 = vpop.f32.mrf.mxu0
    %v3146 = vadd.f32 %v2963, %v3145
    %v3147 = vpop.f32.mrf.mxu0
    %v3148 = vadd.f32 %v2963, %v3147
    %3149 = vdwg.mxu0
    %3150 = vmatpush.bf16.msra.mxu0 %v3096
    %3151 = vmatpush.bf16.msra.mxu0 %v3092
    %3152 = vmatpush.bf16.msra.mxu0 %v3088
    %3153 = vmatpush.bf16.msra.mxu0 %v3084
    %3154 = vmatpush.bf16.msra.mxu0 %v3080
    %3155 = vmatpush.bf16.msra.mxu0 %v3076
    %3156 = vmatpush.bf16.msra.mxu0 %v3072
    %3157 = vmatpush.bf16.msra.mxu0 %v3068
    %3158 = vmatmul.bf16.gmra.mxu0 %v2925
    %v3159 = vpop.f32.mrf.mxu0
    %v3160 = vadd.f32 %v2964, %v3159
    %v3161 = vpop.f32.mrf.mxu0
    %v3162 = vadd.f32 %v2964, %v3161
    %3163 = vmatmul.bf16.gmra.mxu0 %v2926
    %v3164 = vpop.f32.mrf.mxu0
    %v3165 = vadd.f32 %v2964, %v3164
    %v3166 = vpop.f32.mrf.mxu0
    %v3167 = vadd.f32 %v2964, %v3166
    %3168 = vdwg.mxu0
    %3169 = vmatpush.bf16.msra.mxu0 %v3097
    %3170 = vmatpush.bf16.msra.mxu0 %v3093
    %3171 = vmatpush.bf16.msra.mxu0 %v3089
    %3172 = vmatpush.bf16.msra.mxu0 %v3085
    %3173 = vmatpush.bf16.msra.mxu0 %v3081
    %3174 = vmatpush.bf16.msra.mxu0 %v3077
    %3175 = vmatpush.bf16.msra.mxu0 %v3073
    %3176 = vmatpush.bf16.msra.mxu0 %v3069
    %3177 = vmatmul.bf16.gmra.mxu0 %v2925
    %v3178 = vpop.f32.mrf.mxu0
    %v3179 = vadd.f32 %v2965, %v3178
    %v3180 = vpop.f32.mrf.mxu0
    %v3181 = vadd.f32 %v2965, %v3180
    %3182 = vmatmul.bf16.gmra.mxu0 %v2926
    %v3183 = vpop.f32.mrf.mxu0
    %v3184 = vadd.f32 %v2965, %v3183
    %v3185 = vpop.f32.mrf.mxu0
    %v3186 = vadd.f32 %v2965, %v3185
    %3187 = vdwg.mxu0
    %3188 = vmatpush.bf16.msra.mxu0 %v3098
    %3189 = vmatpush.bf16.msra.mxu0 %v3094
    %3190 = vmatpush.bf16.msra.mxu0 %v3090
    %3191 = vmatpush.bf16.msra.mxu0 %v3086
    %3192 = vmatpush.bf16.msra.mxu0 %v3082
    %3193 = vmatpush.bf16.msra.mxu0 %v3078
    %3194 = vmatpush.bf16.msra.mxu0 %v3074
    %3195 = vmatpush.bf16.msra.mxu0 %v3070
    %3196 = vmatmul.bf16.gmra.mxu0 %v2925
    %v3197 = vpop.f32.mrf.mxu0
    %v3198 = vadd.f32 %v2966, %v3197
    %v3199 = vpop.f32.mrf.mxu0
    %v3200 = vadd.f32 %v2966, %v3199
    %3201 = vmatmul.bf16.gmra.mxu0 %v2926
    %v3202 = vpop.f32.mrf.mxu0
    %v3203 = vadd.f32 %v2966, %v3202
    %v3204 = vpop.f32.mrf.mxu0
    %v3205 = vadd.f32 %v2966, %v3204
    %3206 = vdwg.mxu0
    %v3207 = vmax.f32 %v3141, 0.0
    %v3208 = vmax.f32 %v3160, 0.0
    %v3209 = vmax.f32 %v3179, 0.0
    %v3210 = vmax.f32 %v3198, 0.0
    %v3211 = vmax.f32 %v3143, 0.0
    %v3212 = vmax.f32 %v3162, 0.0
    %v3213 = vmax.f32 %v3181, 0.0
    %v3214 = vmax.f32 %v3200, 0.0
    %v3215 = vmax.f32 %v3146, 0.0
    %v3216 = vmax.f32 %v3165, 0.0
    %v3217 = vmax.f32 %v3184, 0.0
    %v3218 = vmax.f32 %v3203, 0.0
    %v3219 = vmax.f32 %v3148, 0.0
    %v3220 = vmax.f32 %v3167, 0.0
    %v3221 = vmax.f32 %v3186, 0.0
    %v3222 = vmax.f32 %v3205, 0.0
    %v3223 = vpack.c.bf16 %v3211, %v3207
    %v3224 = vpack.c.bf16 %v3212, %v3208
    %v3225 = vpack.c.bf16 %v3213, %v3209
    %v3226 = vpack.c.bf16 %v3214, %v3210
    %v3227 = vpack.c.bf16 %v3219, %v3215
    %v3228 = vpack.c.bf16 %v3220, %v3216
    %v3229 = vpack.c.bf16 %v3221, %v3217
    %v3230 = vpack.c.bf16 %v3222, %v3218
    %s3231 = scalar_lea.vmem [#allocation23], 256
    %v3232 = vld [vmem:[%s3231] sm:$0xf]
    %v3233 = vld [vmem:[%s3231 + $0x4] sm:$0xf]
    %v3234 = vld [vmem:[%s3231 + $0x8] sm:$0xf]
    %v3235 = vld [vmem:[%s3231 + $0xc] sm:$0xf]
    %v3236 = vld [vmem:[%s3231 + $0x10] sm:$0xf]
    %v3237 = vld [vmem:[%s3231 + $0x14] sm:$0xf]
    %v3238 = vld [vmem:[%s3231 + $0x18] sm:$0xf]
    %v3239 = vld [vmem:[%s3231 + $0x1c] sm:$0xf]
    %v3240 = vld [vmem:[%s3231 + $0x20] sm:$0xf]
    %v3241 = vld [vmem:[%s3231 + $0x24] sm:$0xf]
    %v3242 = vld [vmem:[%s3231 + $0x28] sm:$0xf]
    %v3243 = vld [vmem:[%s3231 + $0x2c] sm:$0xf]
    %v3244 = vld [vmem:[%s3231 + $0x30] sm:$0xf]
    %v3245 = vld [vmem:[%s3231 + $0x34] sm:$0xf]
    %v3246 = vld [vmem:[%s3231 + $0x38] sm:$0xf]
    %v3247 = vld [vmem:[%s3231 + $0x3c] sm:$0xf]
    %v3248 = vld [vmem:[%s3231 + $0x40] sm:$0xf]
    %v3249 = vld [vmem:[%s3231 + $0x44] sm:$0xf]
    %v3250 = vld [vmem:[%s3231 + $0x48] sm:$0xf]
    %v3251 = vld [vmem:[%s3231 + $0x4c] sm:$0xf]
    %v3252 = vld [vmem:[%s3231 + $0x50] sm:$0xf]
    %v3253 = vld [vmem:[%s3231 + $0x54] sm:$0xf]
    %v3254 = vld [vmem:[%s3231 + $0x58] sm:$0xf]
    %v3255 = vld [vmem:[%s3231 + $0x5c] sm:$0xf]
    %v3256 = vld [vmem:[%s3231 + $0x60] sm:$0xf]
    %v3257 = vld [vmem:[%s3231 + $0x64] sm:$0xf]
    %v3258 = vld [vmem:[%s3231 + $0x68] sm:$0xf]
    %v3259 = vld [vmem:[%s3231 + $0x6c] sm:$0xf]
    %v3260 = vld [vmem:[%s3231 + $0x70] sm:$0xf]
    %v3261 = vld [vmem:[%s3231 + $0x74] sm:$0xf]
    %v3262 = vld [vmem:[%s3231 + $0x78] sm:$0xf]
    %v3263 = vld [vmem:[%s3231 + $0x7c] sm:$0xf]
    %v3264 = vld [vmem:[%s3231 + $0x80] sm:$0xf]
    %v3265 = vld [vmem:[%s3231 + $0x84] sm:$0xf]
    %v3266 = vld [vmem:[%s3231 + $0x88] sm:$0xf]
    %v3267 = vld [vmem:[%s3231 + $0x8c] sm:$0xf]
    %v3268 = vld [vmem:[%s3231 + $0x90] sm:$0xf]
    %v3269 = vld [vmem:[%s3231 + $0x94] sm:$0xf]
    %v3270 = vld [vmem:[%s3231 + $0x98] sm:$0xf]
    %v3271 = vld [vmem:[%s3231 + $0x9c] sm:$0xf]
    %v3272 = vld [vmem:[%s3231 + $0xa0] sm:$0xf]
    %v3273 = vld [vmem:[%s3231 + $0xa4] sm:$0xf]
    %v3274 = vld [vmem:[%s3231 + $0xa8] sm:$0xf]
    %v3275 = vld [vmem:[%s3231 + $0xac] sm:$0xf]
    %v3276 = vld [vmem:[%s3231 + $0xb0] sm:$0xf]
    %v3277 = vld [vmem:[%s3231 + $0xb4] sm:$0xf]
    %v3278 = vld [vmem:[%s3231 + $0xb8] sm:$0xf]
    %v3279 = vld [vmem:[%s3231 + $0xbc] sm:$0xf]
    %v3280 = vld [vmem:[%s3231 + $0xc0] sm:$0xf]
    %v3281 = vld [vmem:[%s3231 + $0xc4] sm:$0xf]
    %v3282 = vld [vmem:[%s3231 + $0xc8] sm:$0xf]
    %v3283 = vld [vmem:[%s3231 + $0xcc] sm:$0xf]
    %v3284 = vld [vmem:[%s3231 + $0xd0] sm:$0xf]
    %v3285 = vld [vmem:[%s3231 + $0xd4] sm:$0xf]
    %v3286 = vld [vmem:[%s3231 + $0xd8] sm:$0xf]
    %v3287 = vld [vmem:[%s3231 + $0xdc] sm:$0xf]
    %v3288 = vld [vmem:[%s3231 + $0xe0] sm:$0xf]
    %v3289 = vld [vmem:[%s3231 + $0xe4] sm:$0xf]
    %v3290 = vld [vmem:[%s3231 + $0xe8] sm:$0xf]
    %v3291 = vld [vmem:[%s3231 + $0xec] sm:$0xf]
    %v3292 = vld [vmem:[%s3231 + $0xf0] sm:$0xf]
    %v3293 = vld [vmem:[%s3231 + $0xf4] sm:$0xf]
    %v3294 = vld [vmem:[%s3231 + $0xf8] sm:$0xf]
    %v3295 = vld [vmem:[%s3231 + $0xfc] sm:$0xf]
    %s3296 = scalar_lea.vmem [#allocation25], 1
    %v3297 = vld [vmem:[%s3296] sm:$0x1]
    %v3299 = vperm.slane %v3297, 0
    %v3365 = vunpack.c.l.b16 %v3232
    %v3366 = vunpack.c.l.b16 %v3233
    %v3367 = vunpack.c.l.b16 %v3234
    %v3368 = vunpack.c.l.b16 %v3235
    %v3369 = vunpack.c.l.b16 %v3236
    %v3370 = vunpack.c.l.b16 %v3237
    %v3371 = vunpack.c.l.b16 %v3238
    %v3372 = vunpack.c.l.b16 %v3239
    %v3373 = vunpack.c.l.b16 %v3240
    %v3374 = vunpack.c.l.b16 %v3241
    %v3375 = vunpack.c.l.b16 %v3242
    %v3376 = vunpack.c.l.b16 %v3243
    %v3377 = vunpack.c.l.b16 %v3244
    %v3378 = vunpack.c.l.b16 %v3245
    %v3379 = vunpack.c.l.b16 %v3246
    %v3380 = vunpack.c.l.b16 %v3247
    %v3381 = vunpack.c.l.b16 %v3248
    %v3382 = vunpack.c.l.b16 %v3249
    %v3383 = vunpack.c.l.b16 %v3250
    %v3384 = vunpack.c.l.b16 %v3251
    %v3385 = vunpack.c.l.b16 %v3252
    %v3386 = vunpack.c.l.b16 %v3253
    %v3387 = vunpack.c.l.b16 %v3254
    %v3388 = vunpack.c.l.b16 %v3255
    %v3389 = vunpack.c.l.b16 %v3256
    %v3390 = vunpack.c.l.b16 %v3257
    %v3391 = vunpack.c.l.b16 %v3258
    %v3392 = vunpack.c.l.b16 %v3259
    %v3393 = vunpack.c.l.b16 %v3260
    %v3394 = vunpack.c.l.b16 %v3261
    %v3395 = vunpack.c.l.b16 %v3262
    %v3396 = vunpack.c.l.b16 %v3263
    %v3397 = vunpack.c.l.b16 %v3264
    %v3398 = vunpack.c.l.b16 %v3265
    %v3399 = vunpack.c.l.b16 %v3266
    %v3400 = vunpack.c.l.b16 %v3267
    %v3401 = vunpack.c.l.b16 %v3268
    %v3402 = vunpack.c.l.b16 %v3269
    %v3403 = vunpack.c.l.b16 %v3270
    %v3404 = vunpack.c.l.b16 %v3271
    %v3405 = vunpack.c.l.b16 %v3272
    %v3406 = vunpack.c.l.b16 %v3273
    %v3407 = vunpack.c.l.b16 %v3274
    %v3408 = vunpack.c.l.b16 %v3275
    %v3409 = vunpack.c.l.b16 %v3276
    %v3410 = vunpack.c.l.b16 %v3277
    %v3411 = vunpack.c.l.b16 %v3278
    %v3412 = vunpack.c.l.b16 %v3279
    %v3413 = vunpack.c.l.b16 %v3280
    %v3414 = vunpack.c.l.b16 %v3281
    %v3415 = vunpack.c.l.b16 %v3282
    %v3416 = vunpack.c.l.b16 %v3283
    %v3417 = vunpack.c.l.b16 %v3284
    %v3418 = vunpack.c.l.b16 %v3285
    %v3419 = vunpack.c.l.b16 %v3286
    %v3420 = vunpack.c.l.b16 %v3287
    %v3421 = vunpack.c.l.b16 %v3288
    %v3422 = vunpack.c.l.b16 %v3289
    %v3423 = vunpack.c.l.b16 %v3290
    %v3424 = vunpack.c.l.b16 %v3291
    %v3425 = vunpack.c.l.b16 %v3292
    %v3426 = vunpack.c.l.b16 %v3293
    %v3427 = vunpack.c.l.b16 %v3294
    %v3428 = vunpack.c.l.b16 %v3295
    %v3429 = vpack.c.b16 %v3366, %v3365
    %v3430 = vpack.c.b16 %v3368, %v3367
    %v3431 = vpack.c.b16 %v3370, %v3369
    %v3432 = vpack.c.b16 %v3372, %v3371
    %v3433 = vpack.c.b16 %v3374, %v3373
    %v3434 = vpack.c.b16 %v3376, %v3375
    %v3435 = vpack.c.b16 %v3378, %v3377
    %v3436 = vpack.c.b16 %v3380, %v3379
    %v3437 = vpack.c.b16 %v3382, %v3381
    %v3438 = vpack.c.b16 %v3384, %v3383
    %v3439 = vpack.c.b16 %v3386, %v3385
    %v3440 = vpack.c.b16 %v3388, %v3387
    %v3441 = vpack.c.b16 %v3390, %v3389
    %v3442 = vpack.c.b16 %v3392, %v3391
    %v3443 = vpack.c.b16 %v3394, %v3393
    %v3444 = vpack.c.b16 %v3396, %v3395
    %v3445 = vpack.c.b16 %v3398, %v3397
    %v3446 = vpack.c.b16 %v3400, %v3399
    %v3447 = vpack.c.b16 %v3402, %v3401
    %v3448 = vpack.c.b16 %v3404, %v3403
    %v3449 = vpack.c.b16 %v3406, %v3405
    %v3450 = vpack.c.b16 %v3408, %v3407
    %v3451 = vpack.c.b16 %v3410, %v3409
    %v3452 = vpack.c.b16 %v3412, %v3411
    %v3453 = vpack.c.b16 %v3414, %v3413
    %v3454 = vpack.c.b16 %v3416, %v3415
    %v3455 = vpack.c.b16 %v3418, %v3417
    %v3456 = vpack.c.b16 %v3420, %v3419
    %v3457 = vpack.c.b16 %v3422, %v3421
    %v3458 = vpack.c.b16 %v3424, %v3423
    %v3459 = vpack.c.b16 %v3426, %v3425
    %v3460 = vpack.c.b16 %v3428, %v3427
    %3493 = vmatpush.bf16.msra.mxu0 %v3436
    %3494 = vmatpush.bf16.msra.mxu0 %v3435
    %3495 = vmatpush.bf16.msra.mxu0 %v3434
    %3496 = vmatpush.bf16.msra.mxu0 %v3433
    %3497 = vmatpush.bf16.msra.mxu0 %v3432
    %3498 = vmatpush.bf16.msra.mxu0 %v3431
    %3499 = vmatpush.bf16.msra.mxu0 %v3430
    %3500 = vmatpush.bf16.msra.mxu0 %v3429
    %3501 = vmatmul.bf16.gmra.mxu0 %v3223
    %v3502 = vpop.f32.mrf.mxu0
    %v3503 = vadd.f32 %v3299, %v3502
    %v3504 = vpop.f32.mrf.mxu0
    %v3505 = vadd.f32 %v3299, %v3504
    %3506 = vmatmul.bf16.gmra.mxu0 %v3227
    %v3507 = vpop.f32.mrf.mxu0
    %v3508 = vadd.f32 %v3299, %v3507
    %v3509 = vpop.f32.mrf.mxu0
    %v3510 = vadd.f32 %v3299, %v3509
    %3511 = vdwg.mxu0
    %3512 = vmatpush.bf16.msra.mxu0 %v3444
    %3513 = vmatpush.bf16.msra.mxu0 %v3443
    %3514 = vmatpush.bf16.msra.mxu0 %v3442
    %3515 = vmatpush.bf16.msra.mxu0 %v3441
    %3516 = vmatpush.bf16.msra.mxu0 %v3440
    %3517 = vmatpush.bf16.msra.mxu0 %v3439
    %3518 = vmatpush.bf16.msra.mxu0 %v3438
    %3519 = vmatpush.bf16.msra.mxu0 %v3437
    %3520 = vmatmul.bf16.gmra.mxu0 %v3224
    %v3521 = vpop.f32.mrf.mxu0
    %v3522 = vadd.f32 %v3503, %v3521
    %v3523 = vpop.f32.mrf.mxu0
    %v3524 = vadd.f32 %v3505, %v3523
    %3525 = vmatmul.bf16.gmra.mxu0 %v3228
    %v3526 = vpop.f32.mrf.mxu0
    %v3527 = vadd.f32 %v3508, %v3526
    %v3528 = vpop.f32.mrf.mxu0
    %v3529 = vadd.f32 %v3510, %v3528
    %3530 = vdwg.mxu0
    %3531 = vmatpush.bf16.msra.mxu0 %v3452
    %3532 = vmatpush.bf16.msra.mxu0 %v3451
    %3533 = vmatpush.bf16.msra.mxu0 %v3450
    %3534 = vmatpush.bf16.msra.mxu0 %v3449
    %3535 = vmatpush.bf16.msra.mxu0 %v3448
    %3536 = vmatpush.bf16.msra.mxu0 %v3447
    %3537 = vmatpush.bf16.msra.mxu0 %v3446
    %3538 = vmatpush.bf16.msra.mxu0 %v3445
    %3539 = vmatmul.bf16.gmra.mxu0 %v3225
    %v3540 = vpop.f32.mrf.mxu0
    %v3541 = vadd.f32 %v3522, %v3540
    %v3542 = vpop.f32.mrf.mxu0
    %v3543 = vadd.f32 %v3524, %v3542
    %3544 = vmatmul.bf16.gmra.mxu0 %v3229
    %v3545 = vpop.f32.mrf.mxu0
    %v3546 = vadd.f32 %v3527, %v3545
    %v3547 = vpop.f32.mrf.mxu0
    %v3548 = vadd.f32 %v3529, %v3547
    %3549 = vdwg.mxu0
    %3550 = vmatpush.bf16.msra.mxu0 %v3460
    %3551 = vmatpush.bf16.msra.mxu0 %v3459
    %3552 = vmatpush.bf16.msra.mxu0 %v3458
    %3553 = vmatpush.bf16.msra.mxu0 %v3457
    %3554 = vmatpush.bf16.msra.mxu0 %v3456
    %3555 = vmatpush.bf16.msra.mxu0 %v3455
    %3556 = vmatpush.bf16.msra.mxu0 %v3454
    %3557 = vmatpush.bf16.msra.mxu0 %v3453
    %3558 = vmatmul.bf16.gmra.mxu0 %v3226
    %v3559 = vpop.f32.mrf.mxu0
    %v3560 = vadd.f32 %v3541, %v3559
    %v3561 = vpop.f32.mrf.mxu0
    %v3562 = vadd.f32 %v3543, %v3561
    %3563 = vmatmul.bf16.gmra.mxu0 %v3230
    %v3564 = vpop.f32.mrf.mxu0
    %v3565 = vadd.f32 %v3546, %v3564
    %v3566 = vpop.f32.mrf.mxu0
    %v3567 = vadd.f32 %v3548, %v3566
    %3568 = vdwg.mxu0
    %v3569 = vadd.f32 %v2921, %v3560
    %v3570 = vadd.f32 %v2922, %v3562
    %v3571 = vadd.f32 %v2923, %v3565
    %v3572 = vadd.f32 %v2924, %v3567
    %s3573 = scalar_lea.vmem [#allocation19], 1
    %v3574 = vld [vmem:[%s3573] sm:$0x1]
    %s3575 = scalar_lea.vmem [#allocation20], 1
    %v3576 = vld [vmem:[%s3575] sm:$0x1]
    %3577 = vadd.xlane.f32.xlu0 %v3569
    %v3578 = vpop.xlane.xlu0 %3577
    %3579 = vadd.xlane.f32.xlu0 %v3570
    %v3580 = vpop.xlane.xlu0 %3579
    %3581 = vadd.xlane.f32.xlu0 %v3571
    %v3582 = vpop.xlane.xlu0 %3581
    %3583 = vadd.xlane.f32.xlu0 %v3572
    %v3584 = vpop.xlane.xlu0 %3583
    %v3585 = vmul.f32 %v3578, %v1326
    %v3586 = vmul.f32 %v3580, %v1326
    %v3587 = vmul.f32 %v3582, %v1326
    %v3588 = vmul.f32 %v3584, %v1326
    %v3589 = vsub.f32 %v3569, %v3585
    %v3590 = vsub.f32 %v3570, %v3586
    %v3591 = vsub.f32 %v3571, %v3587
    %v3592 = vsub.f32 %v3572, %v3588
    %v3593 = vmul.f32 %v3589, %v3589
    %v3594 = vmul.f32 %v3590, %v3590
    %v3595 = vmul.f32 %v3591, %v3591
    %v3596 = vmul.f32 %v3592, %v3592
    %3597 = vadd.xlane.f32.xlu0 %v3593
    %v3598 = vpop.xlane.xlu0 %3597
    %3599 = vadd.xlane.f32.xlu0 %v3594
    %v3600 = vpop.xlane.xlu0 %3599
    %3601 = vadd.xlane.f32.xlu0 %v3595
    %v3602 = vpop.xlane.xlu0 %3601
    %3603 = vadd.xlane.f32.xlu0 %v3596
    %v3604 = vpop.xlane.xlu0 %3603
    %v3605 = vmul.f32 %v3598, %v1326
    %v3606 = vmul.f32 %v3600, %v1326
    %v3607 = vmul.f32 %v3602, %v1326
    %v3608 = vmul.f32 %v3604, %v1326
    %v3609 = vadd.f32 %v3605, 1e-05
    %v3610 = vadd.f32 %v3606, 1e-05
    %v3611 = vadd.f32 %v3607, 1e-05
    %v3612 = vadd.f32 %v3608, 1e-05
    %v3613 = vrsqrt.pop %v3609
    %v3614 = vmul.f32 %v3613, %v3609
    %v3615 = vmul.f32 %v3614, %v3613
    %v3616 = vmul.f32 0.5, %v3615
    %v3617 = vsub.f32 1.5, %v3616
    %v3618 = vmul.f32 %v3613, %v3617
    %vm3619 = vweird.f32 %v3609
    %vm3620 = vweird.f32 %v3613
    %vm3621 = vmor %vm3619, %vm3620
    %v3622 = vsel %vm3621, %v3613, %v3618
    %v3623 = vrsqrt.pop %v3610
    %v3624 = vmul.f32 %v3623, %v3610
    %v3625 = vmul.f32 %v3624, %v3623
    %v3626 = vmul.f32 0.5, %v3625
    %v3627 = vsub.f32 1.5, %v3626
    %v3628 = vmul.f32 %v3623, %v3627
    %vm3629 = vweird.f32 %v3610
    %vm3630 = vweird.f32 %v3623
    %vm3631 = vmor %vm3629, %vm3630
    %v3632 = vsel %vm3631, %v3623, %v3628
    %v3633 = vrsqrt.pop %v3611
    %v3634 = vmul.f32 %v3633, %v3611
    %v3635 = vmul.f32 %v3634, %v3633
    %v3636 = vmul.f32 0.5, %v3635
    %v3637 = vsub.f32 1.5, %v3636
    %v3638 = vmul.f32 %v3633, %v3637
    %vm3639 = vweird.f32 %v3611
    %vm3640 = vweird.f32 %v3633
    %vm3641 = vmor %vm3639, %vm3640
    %v3642 = vsel %vm3641, %v3633, %v3638
    %v3643 = vrsqrt.pop %v3612
    %v3644 = vmul.f32 %v3643, %v3612
    %v3645 = vmul.f32 %v3644, %v3643
    %v3646 = vmul.f32 0.5, %v3645
    %v3647 = vsub.f32 1.5, %v3646
    %v3648 = vmul.f32 %v3643, %v3647
    %vm3649 = vweird.f32 %v3612
    %vm3650 = vweird.f32 %v3643
    %vm3651 = vmor %vm3649, %vm3650
    %v3652 = vsel %vm3651, %v3643, %v3648
    %v3653 = vmul.f32 %v3589, %v3622
    %v3654 = vmul.f32 %v3590, %v3632
    %v3655 = vmul.f32 %v3591, %v3642
    %v3656 = vmul.f32 %v3592, %v3652
    %v3658 = vperm.slane %v3574, 0
    %v3660 = vmul.f32 %v3653, %v3658
    %v3661 = vmul.f32 %v3654, %v3658
    %v3662 = vmul.f32 %v3655, %v3658
    %v3663 = vmul.f32 %v3656, %v3658
    %v3665 = vperm.slane %v3576, 0
    %v3667 = vadd.f32 %v3660, %v3665
    %v3668 = vadd.f32 %v3661, %v3665
    %v3669 = vadd.f32 %v3662, %v3665
    %v3670 = vadd.f32 %v3663, %v3665
    %v3671 = vpack.c.bf16 %v3668, %v3667
    %v3672 = vpack.c.bf16 %v3670, %v3669
    %s3673 = scalar_lea.vmem [#allocation10], 384
    %v3674 = vld [vmem:[%s3673] sm:$0xff]
    %v3675 = vld [vmem:[%s3673 + $0x8] sm:$0xf]
    %v3676 = vld [vmem:[%s3673 + $0xc] sm:$0xff]
    %v3677 = vld [vmem:[%s3673 + $0x14] sm:$0xf]
    %v3678 = vld [vmem:[%s3673 + $0x18] sm:$0xff]
    %v3679 = vld [vmem:[%s3673 + $0x20] sm:$0xf]
    %v3680 = vld [vmem:[%s3673 + $0x24] sm:$0xff]
    %v3681 = vld [vmem:[%s3673 + $0x2c] sm:$0xf]
    %v3682 = vld [vmem:[%s3673 + $0x30] sm:$0xff]
    %v3683 = vld [vmem:[%s3673 + $0x38] sm:$0xf]
    %v3684 = vld [vmem:[%s3673 + $0x3c] sm:$0xff]
    %v3685 = vld [vmem:[%s3673 + $0x44] sm:$0xf]
    %v3686 = vld [vmem:[%s3673 + $0x48] sm:$0xff]
    %v3687 = vld [vmem:[%s3673 + $0x50] sm:$0xf]
    %v3688 = vld [vmem:[%s3673 + $0x54] sm:$0xff]
    %v3689 = vld [vmem:[%s3673 + $0x5c] sm:$0xf]
    %v3690 = vld [vmem:[%s3673 + $0x60] sm:$0xff]
    %v3691 = vld [vmem:[%s3673 + $0x68] sm:$0xf]
    %v3692 = vld [vmem:[%s3673 + $0x6c] sm:$0xff]
    %v3693 = vld [vmem:[%s3673 + $0x74] sm:$0xf]
    %v3694 = vld [vmem:[%s3673 + $0x78] sm:$0xff]
    %v3695 = vld [vmem:[%s3673 + $0x80] sm:$0xf]
    %v3696 = vld [vmem:[%s3673 + $0x84] sm:$0xff]
    %v3697 = vld [vmem:[%s3673 + $0x8c] sm:$0xf]
    %v3698 = vld [vmem:[%s3673 + $0x90] sm:$0xff]
    %v3699 = vld [vmem:[%s3673 + $0x98] sm:$0xf]
    %v3700 = vld [vmem:[%s3673 + $0x9c] sm:$0xff]
    %v3701 = vld [vmem:[%s3673 + $0xa4] sm:$0xf]
    %v3702 = vld [vmem:[%s3673 + $0xa8] sm:$0xff]
    %v3703 = vld [vmem:[%s3673 + $0xb0] sm:$0xf]
    %v3704 = vld [vmem:[%s3673 + $0xb4] sm:$0xff]
    %v3705 = vld [vmem:[%s3673 + $0xbc] sm:$0xf]
    %s3706 = scalar_lea.vmem [#allocation11], 6
    %v3707 = vld [vmem:[%s3706] sm:$0x7]
    %v3709 = vperm.slane %v3707, 0
    %v3710 = vperm.slane %v3707, 1
    %v3711 = vperm.slane %v3707, 2
    %v3747 = vunpack.c.l.b16 %v3674
    %v3748 = vunpack.c.h.b16 %v3674
    %v3749 = vunpack.c.l.b16 %v3675
    %v3750 = vunpack.c.l.b16 %v3676
    %v3751 = vunpack.c.h.b16 %v3676
    %v3752 = vunpack.c.l.b16 %v3677
    %v3753 = vunpack.c.l.b16 %v3678
    %v3754 = vunpack.c.h.b16 %v3678
    %v3755 = vunpack.c.l.b16 %v3679
    %v3756 = vunpack.c.l.b16 %v3680
    %v3757 = vunpack.c.h.b16 %v3680
    %v3758 = vunpack.c.l.b16 %v3681
    %v3759 = vunpack.c.l.b16 %v3682
    %v3760 = vunpack.c.h.b16 %v3682
    %v3761 = vunpack.c.l.b16 %v3683
    %v3762 = vunpack.c.l.b16 %v3684
    %v3763 = vunpack.c.h.b16 %v3684
    %v3764 = vunpack.c.l.b16 %v3685
    %v3765 = vunpack.c.l.b16 %v3686
    %v3766 = vunpack.c.h.b16 %v3686
    %v3767 = vunpack.c.l.b16 %v3687
    %v3768 = vunpack.c.l.b16 %v3688
    %v3769 = vunpack.c.h.b16 %v3688
    %v3770 = vunpack.c.l.b16 %v3689
    %v3771 = vunpack.c.l.b16 %v3690
    %v3772 = vunpack.c.h.b16 %v3690
    %v3773 = vunpack.c.l.b16 %v3691
    %v3774 = vunpack.c.l.b16 %v3692
    %v3775 = vunpack.c.h.b16 %v3692
    %v3776 = vunpack.c.l.b16 %v3693
    %v3777 = vunpack.c.l.b16 %v3694
    %v3778 = vunpack.c.h.b16 %v3694
    %v3779 = vunpack.c.l.b16 %v3695
    %v3780 = vunpack.c.l.b16 %v3696
    %v3781 = vunpack.c.h.b16 %v3696
    %v3782 = vunpack.c.l.b16 %v3697
    %v3783 = vunpack.c.l.b16 %v3698
    %v3784 = vunpack.c.h.b16 %v3698
    %v3785 = vunpack.c.l.b16 %v3699
    %v3786 = vunpack.c.l.b16 %v3700
    %v3787 = vunpack.c.h.b16 %v3700
    %v3788 = vunpack.c.l.b16 %v3701
    %v3789 = vunpack.c.l.b16 %v3702
    %v3790 = vunpack.c.h.b16 %v3702
    %v3791 = vunpack.c.l.b16 %v3703
    %v3792 = vunpack.c.l.b16 %v3704
    %v3793 = vunpack.c.h.b16 %v3704
    %v3794 = vunpack.c.l.b16 %v3705
    %v3795 = vpack.c.b16 %v3750, %v3747
    %v3796 = vpack.c.b16 %v3751, %v3748
    %v3797 = vpack.c.b16 %v3752, %v3749
    %v3798 = vpack.c.b16 %v3756, %v3753
    %v3799 = vpack.c.b16 %v3757, %v3754
    %v3800 = vpack.c.b16 %v3758, %v3755
    %v3801 = vpack.c.b16 %v3762, %v3759
    %v3802 = vpack.c.b16 %v3763, %v3760
    %v3803 = vpack.c.b16 %v3764, %v3761
    %v3804 = vpack.c.b16 %v3768, %v3765
    %v3805 = vpack.c.b16 %v3769, %v3766
    %v3806 = vpack.c.b16 %v3770, %v3767
    %v3807 = vpack.c.b16 %v3774, %v3771
    %v3808 = vpack.c.b16 %v3775, %v3772
    %v3809 = vpack.c.b16 %v3776, %v3773
    %v3810 = vpack.c.b16 %v3780, %v3777
    %v3811 = vpack.c.b16 %v3781, %v3778
    %v3812 = vpack.c.b16 %v3782, %v3779
    %v3813 = vpack.c.b16 %v3786, %v3783
    %v3814 = vpack.c.b16 %v3787, %v3784
    %v3815 = vpack.c.b16 %v3788, %v3785
    %v3816 = vpack.c.b16 %v3792, %v3789
    %v3817 = vpack.c.b16 %v3793, %v3790
    %v3818 = vpack.c.b16 %v3794, %v3791
    %3843 = vmatpush.bf16.msra.mxu0 %v3816
    %3844 = vmatpush.bf16.msra.mxu0 %v3813
    %3845 = vmatpush.bf16.msra.mxu0 %v3810
    %3846 = vmatpush.bf16.msra.mxu0 %v3807
    %3847 = vmatpush.bf16.msra.mxu0 %v3804
    %3848 = vmatpush.bf16.msra.mxu0 %v3801
    %3849 = vmatpush.bf16.msra.mxu0 %v3798
    %3850 = vmatpush.bf16.msra.mxu0 %v3795
    %3851 = vmatmul.bf16.gmra.mxu0 %v3671
    %v3852 = vpop.f32.mrf.mxu0
    %v3853 = vadd.f32 %v3709, %v3852
    %v3854 = vpop.f32.mrf.mxu0
    %v3855 = vadd.f32 %v3709, %v3854
    %3856 = vmatmul.bf16.gmra.mxu0 %v3672
    %v3857 = vpop.f32.mrf.mxu0
    %v3858 = vadd.f32 %v3709, %v3857
    %v3859 = vpop.f32.mrf.mxu0
    %v3860 = vadd.f32 %v3709, %v3859
    %3861 = vdwg.mxu0
    %3862 = vmatpush.bf16.msra.mxu0 %v3817
    %3863 = vmatpush.bf16.msra.mxu0 %v3814
    %3864 = vmatpush.bf16.msra.mxu0 %v3811
    %3865 = vmatpush.bf16.msra.mxu0 %v3808
    %3866 = vmatpush.bf16.msra.mxu0 %v3805
    %3867 = vmatpush.bf16.msra.mxu0 %v3802
    %3868 = vmatpush.bf16.msra.mxu0 %v3799
    %3869 = vmatpush.bf16.msra.mxu0 %v3796
    %3870 = vmatmul.bf16.gmra.mxu0 %v3671
    %v3871 = vpop.f32.mrf.mxu0
    %v3872 = vadd.f32 %v3710, %v3871
    %v3873 = vpop.f32.mrf.mxu0
    %v3874 = vadd.f32 %v3710, %v3873
    %3875 = vmatmul.bf16.gmra.mxu0 %v3672
    %v3876 = vpop.f32.mrf.mxu0
    %v3877 = vadd.f32 %v3710, %v3876
    %v3878 = vpop.f32.mrf.mxu0
    %v3879 = vadd.f32 %v3710, %v3878
    %3880 = vdwg.mxu0
    %3881 = vmatpush.bf16.msra.mxu0 %v3818
    %3882 = vmatpush.bf16.msra.mxu0 %v3815
    %3883 = vmatpush.bf16.msra.mxu0 %v3812
    %3884 = vmatpush.bf16.msra.mxu0 %v3809
    %3885 = vmatpush.bf16.msra.mxu0 %v3806
    %3886 = vmatpush.bf16.msra.mxu0 %v3803
    %3887 = vmatpush.bf16.msra.mxu0 %v3800
    %3888 = vmatpush.bf16.msra.mxu0 %v3797
    %3889 = vmatmul.bf16.gmra.mxu0 %v3671
    %v3890 = vpop.f32.mrf.mxu0
    %v3891 = vadd.f32 %v3711, %v3890
    %v3892 = vpop.f32.mrf.mxu0
    %v3893 = vadd.f32 %v3711, %v3892
    %3894 = vmatmul.bf16.gmra.mxu0 %v3672
    %v3895 = vpop.f32.mrf.mxu0
    %v3896 = vadd.f32 %v3711, %v3895
    %v3897 = vpop.f32.mrf.mxu0
    %v3898 = vadd.f32 %v3711, %v3897
    %3899 = vdwg.mxu0
    %v3900 = vpack.c.bf16 %v3855, %v3853
    %v3901 = vpack.c.bf16 %v3860, %v3858
    %v3902 = vpack.c.bf16 %v3872, %v3872
    %v3903 = vpack.c.bf16 %v3874, %v3874
    %v3904 = vpack.c.bf16 %v3877, %v3877
    %v3905 = vpack.c.bf16 %v3879, %v3879
    %v3906 = vpack.c.bf16 %v3891, %v3891
    %v3907 = vpack.c.bf16 %v3893, %v3893
    %v3908 = vpack.c.bf16 %v3896, %v3896
    %v3909 = vpack.c.bf16 %v3898, %v3898
    %v3914 = vunpack.c.l.b16 %v3902
    %v3915 = vunpack.c.l.b16 %v3903
    %v3916 = vunpack.c.l.b16 %v3904
    %v3917 = vunpack.c.l.b16 %v3905
    %v3918 = vpack.c.b16 %v3915, %v3914
    %v3919 = vpack.c.b16 %v3917, %v3916
    %v3922 = vunpack.c.l.bf16 %v3918
    %v3923 = vunpack.c.h.bf16 %v3918
    %v3924 = vunpack.c.l.bf16 %v3919
    %v3925 = vunpack.c.h.bf16 %v3919
    %v3926 = vmul.f32 %v3922, %v701
    %v3927 = vmul.f32 %v3923, %v702
    %v3928 = vmul.f32 %v3924, %v703
    %v3929 = vmul.f32 %v3925, %v704
    %v3930 = vmul.f32 %v3922, %v705
    %v3931 = vmul.f32 %v3923, %v706
    %v3932 = vmul.f32 %v3924, %v707
    %v3933 = vmul.f32 %v3925, %v708
    %v3934 = vmul.f32 %v3922, %v709
    %v3935 = vmul.f32 %v3923, %v710
    %v3936 = vmul.f32 %v3924, %v711
    %v3937 = vmul.f32 %v3925, %v712
    %v3938 = vmul.f32 %v3922, %v713
    %v3939 = vmul.f32 %v3923, %v714
    %v3940 = vmul.f32 %v3924, %v715
    %v3941 = vmul.f32 %v3925, %v716
    %v3942 = vmul.f32 %v3922, %v717
    %v3943 = vmul.f32 %v3923, %v718
    %v3944 = vmul.f32 %v3924, %v719
    %v3945 = vmul.f32 %v3925, %v720
    %v3946 = vmul.f32 %v3922, %v721
    %v3947 = vmul.f32 %v3923, %v722
    %v3948 = vmul.f32 %v3924, %v723
    %v3949 = vmul.f32 %v3925, %v724
    %v3950 = vmul.f32 %v3922, %v725
    %v3951 = vmul.f32 %v3923, %v726
    %v3952 = vmul.f32 %v3924, %v727
    %v3953 = vmul.f32 %v3925, %v728
    %v3954 = vmul.f32 %v3922, %v729
    %v3955 = vmul.f32 %v3923, %v730
    %v3956 = vmul.f32 %v3924, %v731
    %v3957 = vmul.f32 %v3925, %v732
    %v3958 = vpack.c.bf16 %v3927, %v3926
    %v3959 = vpack.c.bf16 %v3929, %v3928
    %v3960 = vpack.c.bf16 %v3931, %v3930
    %v3961 = vpack.c.bf16 %v3933, %v3932
    %v3962 = vpack.c.bf16 %v3935, %v3934
    %v3963 = vpack.c.bf16 %v3937, %v3936
    %v3964 = vpack.c.bf16 %v3939, %v3938
    %v3965 = vpack.c.bf16 %v3941, %v3940
    %v3966 = vpack.c.bf16 %v3943, %v3942
    %v3967 = vpack.c.bf16 %v3945, %v3944
    %v3968 = vpack.c.bf16 %v3947, %v3946
    %v3969 = vpack.c.bf16 %v3949, %v3948
    %v3970 = vpack.c.bf16 %v3951, %v3950
    %v3971 = vpack.c.bf16 %v3953, %v3952
    %v3972 = vpack.c.bf16 %v3955, %v3954
    %v3973 = vpack.c.bf16 %v3957, %v3956
    %v3978 = vunpack.c.l.b16 %v3906
    %v3979 = vunpack.c.l.b16 %v3907
    %v3980 = vunpack.c.l.b16 %v3908
    %v3981 = vunpack.c.l.b16 %v3909
    %v3982 = vpack.c.b16 %v3979, %v3978
    %v3983 = vpack.c.b16 %v3981, %v3980
    %v3986 = vunpack.c.l.bf16 %v3982
    %v3987 = vunpack.c.h.bf16 %v3982
    %v3988 = vunpack.c.l.bf16 %v3983
    %v3989 = vunpack.c.h.bf16 %v3983
    %v3990 = vmul.f32 %v3986, %v701
    %v3991 = vmul.f32 %v3987, %v702
    %v3992 = vmul.f32 %v3988, %v703
    %v3993 = vmul.f32 %v3989, %v704
    %v3994 = vmul.f32 %v3986, %v705
    %v3995 = vmul.f32 %v3987, %v706
    %v3996 = vmul.f32 %v3988, %v707
    %v3997 = vmul.f32 %v3989, %v708
    %v3998 = vmul.f32 %v3986, %v709
    %v3999 = vmul.f32 %v3987, %v710
    %v4000 = vmul.f32 %v3988, %v711
    %v4001 = vmul.f32 %v3989, %v712
    %v4002 = vmul.f32 %v3986, %v713
    %v4003 = vmul.f32 %v3987, %v714
    %v4004 = vmul.f32 %v3988, %v715
    %v4005 = vmul.f32 %v3989, %v716
    %v4006 = vmul.f32 %v3986, %v717
    %v4007 = vmul.f32 %v3987, %v718
    %v4008 = vmul.f32 %v3988, %v719
    %v4009 = vmul.f32 %v3989, %v720
    %v4010 = vmul.f32 %v3986, %v721
    %v4011 = vmul.f32 %v3987, %v722
    %v4012 = vmul.f32 %v3988, %v723
    %v4013 = vmul.f32 %v3989, %v724
    %v4014 = vmul.f32 %v3986, %v725
    %v4015 = vmul.f32 %v3987, %v726
    %v4016 = vmul.f32 %v3988, %v727
    %v4017 = vmul.f32 %v3989, %v728
    %v4018 = vmul.f32 %v3986, %v729
    %v4019 = vmul.f32 %v3987, %v730
    %v4020 = vmul.f32 %v3988, %v731
    %v4021 = vmul.f32 %v3989, %v732
    %v4022 = vpack.c.bf16 %v3991, %v3990
    %v4023 = vpack.c.bf16 %v3993, %v3992
    %v4024 = vpack.c.bf16 %v3995, %v3994
    %v4025 = vpack.c.bf16 %v3997, %v3996
    %v4026 = vpack.c.bf16 %v3999, %v3998
    %v4027 = vpack.c.bf16 %v4001, %v4000
    %v4028 = vpack.c.bf16 %v4003, %v4002
    %v4029 = vpack.c.bf16 %v4005, %v4004
    %v4030 = vpack.c.bf16 %v4007, %v4006
    %v4031 = vpack.c.bf16 %v4009, %v4008
    %v4032 = vpack.c.bf16 %v4011, %v4010
    %v4033 = vpack.c.bf16 %v4013, %v4012
    %v4034 = vpack.c.bf16 %v4015, %v4014
    %v4035 = vpack.c.bf16 %v4017, %v4016
    %v4036 = vpack.c.bf16 %v4019, %v4018
    %v4037 = vpack.c.bf16 %v4021, %v4020
    %4038 = vmatpush.bf16.xpose.msra.mxu0 %v3965
    %4039 = vmatpush.bf16.xpose.msra.mxu0 %v3964
    %4040 = vmatpush.bf16.xpose.msra.mxu0 %v3963
    %4041 = vmatpush.bf16.xpose.msra.mxu0 %v3962
    %4042 = vmatpush.bf16.xpose.msra.mxu0 %v3961
    %4043 = vmatpush.bf16.xpose.msra.mxu0 %v3960
    %4044 = vmatpush.bf16.xpose.msra.mxu0 %v3959
    %4045 = vmatpush.bf16.xpose.msra.mxu0 %v3958
    %4046 = vmatmul.bf16.gmra.mxu0 %v3900
    %v4047 = vpop.f32.mrf.mxu0
    %v4048 = vadd.f32 %v408, %v4047
    %v4049 = vpop.f32.mrf.mxu0
    %v4050 = vadd.f32 %v410, %v4049
    %4051 = vmatmul.bf16.gmra.mxu0 %v3901
    %v4052 = vpop.f32.mrf.mxu0
    %v4053 = vadd.f32 %v412, %v4052
    %v4054 = vpop.f32.mrf.mxu0
    %v4055 = vadd.f32 %v414, %v4054
    %4056 = vdwg.mxu0
    %4057 = vmatpush.bf16.xpose.msra.mxu0 %v3973
    %4058 = vmatpush.bf16.xpose.msra.mxu0 %v3972
    %4059 = vmatpush.bf16.xpose.msra.mxu0 %v3971
    %4060 = vmatpush.bf16.xpose.msra.mxu0 %v3970
    %4061 = vmatpush.bf16.xpose.msra.mxu0 %v3969
    %4062 = vmatpush.bf16.xpose.msra.mxu0 %v3968
    %4063 = vmatpush.bf16.xpose.msra.mxu0 %v3967
    %4064 = vmatpush.bf16.xpose.msra.mxu0 %v3966
    %4065 = vmatmul.bf16.gmra.mxu0 %v3900
    %v4066 = vpop.f32.mrf.mxu0
    %v4067 = vadd.f32 %v409, %v4066
    %v4068 = vpop.f32.mrf.mxu0
    %v4069 = vadd.f32 %v411, %v4068
    %4070 = vmatmul.bf16.gmra.mxu0 %v3901
    %v4071 = vpop.f32.mrf.mxu0
    %v4072 = vadd.f32 %v413, %v4071
    %v4073 = vpop.f32.mrf.mxu0
    %v4074 = vadd.f32 %v415, %v4073
    %4075 = vdwg.mxu0
    %v4076 = vmax.f32 %v4048, %v4067
    %4077 = vmax.xlane.f32.xlu0 %v4076
    %v4078 = vpop.xlane.xlu0 %4077
    %v4079 = vmax.f32 %v4050, %v4069
    %4080 = vmax.xlane.f32.xlu0 %v4079
    %v4081 = vpop.xlane.xlu0 %4080
    %v4082 = vmax.f32 %v4053, %v4072
    %4083 = vmax.xlane.f32.xlu0 %v4082
    %v4084 = vpop.xlane.xlu0 %4083
    %v4085 = vmax.f32 %v4055, %v4074
    %4086 = vmax.xlane.f32.xlu0 %v4085
    %v4087 = vpop.xlane.xlu0 %4086
    %v4088 = vsub.f32 %v4048, %v4078
    %v4089 = vsub.f32 %v4067, %v4078
    %v4090 = vsub.f32 %v4050, %v4081
    %v4091 = vsub.f32 %v4069, %v4081
    %v4092 = vsub.f32 %v4053, %v4084
    %v4093 = vsub.f32 %v4072, %v4084
    %v4094 = vsub.f32 %v4055, %v4087
    %v4095 = vsub.f32 %v4074, %v4087
    %v4096 = vmul.f32 %v4088, 1.442695
    %v4097 = vpow.pop %v4096
    %v4098 = vmul.f32 %v4089, 1.442695
    %v4099 = vpow.pop %v4098
    %v4100 = vmul.f32 %v4090, 1.442695
    %v4101 = vpow.pop %v4100
    %v4102 = vmul.f32 %v4091, 1.442695
    %v4103 = vpow.pop %v4102
    %v4104 = vmul.f32 %v4092, 1.442695
    %v4105 = vpow.pop %v4104
    %v4106 = vmul.f32 %v4093, 1.442695
    %v4107 = vpow.pop %v4106
    %v4108 = vmul.f32 %v4094, 1.442695
    %v4109 = vpow.pop %v4108
    %v4110 = vmul.f32 %v4095, 1.442695
    %v4111 = vpow.pop %v4110
    %v4112 = vpack.c.bf16 %v4101, %v4097
    %v4113 = vpack.c.bf16 %v4103, %v4099
    %v4114 = vpack.c.bf16 %v4109, %v4105
    %v4115 = vpack.c.bf16 %v4111, %v4107
    %4116 = vmatpush.bf16.msra.mxu0 %v1033
    %4117 = vmatpush.bf16.msra.mxu0 %v1031
    %4118 = vmatpush.bf16.msra.mxu0 %v1029
    %4119 = vmatpush.bf16.msra.mxu0 %v1027
    %4120 = vmatpush.bf16.msra.mxu0 %v1025
    %4121 = vmatpush.bf16.msra.mxu0 %v1023
    %4122 = vmatpush.bf16.msra.mxu0 %v1021
    %4123 = vmatpush.bf16.msra.mxu0 %v1019
    %4124 = vmatmul.bf16.gmra.mxu0 %v4112
    %v4125 = vpop.f32.mrf.mxu0
    %v4126 = vadd.f32 0.0, %v4125
    %v4127 = vpop.f32.mrf.mxu0
    %v4128 = vadd.f32 0.0, %v4127
    %4129 = vmatmul.bf16.gmra.mxu0 %v4114
    %v4130 = vpop.f32.mrf.mxu0
    %v4131 = vadd.f32 0.0, %v4130
    %v4132 = vpop.f32.mrf.mxu0
    %v4133 = vadd.f32 0.0, %v4132
    %4134 = vdwg.mxu0
    %4135 = vmatpush.bf16.msra.mxu0 %v1049
    %4136 = vmatpush.bf16.msra.mxu0 %v1047
    %4137 = vmatpush.bf16.msra.mxu0 %v1045
    %4138 = vmatpush.bf16.msra.mxu0 %v1043
    %4139 = vmatpush.bf16.msra.mxu0 %v1041
    %4140 = vmatpush.bf16.msra.mxu0 %v1039
    %4141 = vmatpush.bf16.msra.mxu0 %v1037
    %4142 = vmatpush.bf16.msra.mxu0 %v1035
    %4143 = vmatmul.bf16.gmra.mxu0 %v4113
    %v4144 = vpop.f32.mrf.mxu0
    %v4145 = vadd.f32 %v4126, %v4144
    %v4146 = vpop.f32.mrf.mxu0
    %v4147 = vadd.f32 %v4128, %v4146
    %4148 = vmatmul.bf16.gmra.mxu0 %v4115
    %v4149 = vpop.f32.mrf.mxu0
    %v4150 = vadd.f32 %v4131, %v4149
    %v4151 = vpop.f32.mrf.mxu0
    %v4152 = vadd.f32 %v4133, %v4151
    %4153 = vdwg.mxu0
    %4154 = vmatpush.bf16.msra.mxu0 %v1034
    %4155 = vmatpush.bf16.msra.mxu0 %v1032
    %4156 = vmatpush.bf16.msra.mxu0 %v1030
    %4157 = vmatpush.bf16.msra.mxu0 %v1028
    %4158 = vmatpush.bf16.msra.mxu0 %v1026
    %4159 = vmatpush.bf16.msra.mxu0 %v1024
    %4160 = vmatpush.bf16.msra.mxu0 %v1022
    %4161 = vmatpush.bf16.msra.mxu0 %v1020
    %4162 = vmatmul.bf16.gmra.mxu0 %v4112
    %v4163 = vpop.f32.mrf.mxu0
    %v4164 = vadd.f32 0.0, %v4163
    %v4165 = vpop.f32.mrf.mxu0
    %v4166 = vadd.f32 0.0, %v4165
    %4167 = vmatmul.bf16.gmra.mxu0 %v4114
    %v4168 = vpop.f32.mrf.mxu0
    %v4169 = vadd.f32 0.0, %v4168
    %v4170 = vpop.f32.mrf.mxu0
    %v4171 = vadd.f32 0.0, %v4170
    %4172 = vdwg.mxu0
    %4173 = vmatpush.bf16.msra.mxu0 %v1050
    %4174 = vmatpush.bf16.msra.mxu0 %v1048
    %4175 = vmatpush.bf16.msra.mxu0 %v1046
    %4176 = vmatpush.bf16.msra.mxu0 %v1044
    %4177 = vmatpush.bf16.msra.mxu0 %v1042
    %4178 = vmatpush.bf16.msra.mxu0 %v1040
    %4179 = vmatpush.bf16.msra.mxu0 %v1038
    %4180 = vmatpush.bf16.msra.mxu0 %v1036
    %4181 = vmatmul.bf16.gmra.mxu0 %v4113
    %v4182 = vpop.f32.mrf.mxu0
    %v4183 = vadd.f32 %v4164, %v4182
    %v4184 = vpop.f32.mrf.mxu0
    %v4185 = vadd.f32 %v4166, %v4184
    %4186 = vmatmul.bf16.gmra.mxu0 %v4115
    %v4187 = vpop.f32.mrf.mxu0
    %v4188 = vadd.f32 %v4169, %v4187
    %v4189 = vpop.f32.mrf.mxu0
    %v4190 = vadd.f32 %v4171, %v4189
    %4191 = vdwg.mxu0
    %v4192 = vrcp.pop %v4145
    %v4193 = vrcp.pop %v4183
    %v4194 = vrcp.pop %v4147
    %v4195 = vrcp.pop %v4185
    %v4196 = vrcp.pop %v4150
    %v4197 = vrcp.pop %v4188
    %v4198 = vrcp.pop %v4152
    %v4199 = vrcp.pop %v4190
    %v4200 = vmul.f32 %v4097, %v4192
    %v4201 = vmul.f32 %v4099, %v4193
    %v4202 = vmul.f32 %v4101, %v4194
    %v4203 = vmul.f32 %v4103, %v4195
    %v4204 = vmul.f32 %v4105, %v4196
    %v4205 = vmul.f32 %v4107, %v4197
    %v4206 = vmul.f32 %v4109, %v4198
    %v4207 = vmul.f32 %v4111, %v4199
    %v4208 = vpack.c.bf16 %v4202, %v4200
    %v4209 = vpack.c.bf16 %v4203, %v4201
    %v4210 = vpack.c.bf16 %v4206, %v4204
    %v4211 = vpack.c.bf16 %v4207, %v4205
    %4212 = vmatpush.bf16.msra.mxu0 %v4029
    %4213 = vmatpush.bf16.msra.mxu0 %v4028
    %4214 = vmatpush.bf16.msra.mxu0 %v4027
    %4215 = vmatpush.bf16.msra.mxu0 %v4026
    %4216 = vmatpush.bf16.msra.mxu0 %v4025
    %4217 = vmatpush.bf16.msra.mxu0 %v4024
    %4218 = vmatpush.bf16.msra.mxu0 %v4023
    %4219 = vmatpush.bf16.msra.mxu0 %v4022
    %4220 = vmatmul.bf16.gmra.mxu0 %v4208
    %v4221 = vpop.f32.mrf.mxu0
    %v4222 = vadd.f32 0.0, %v4221
    %v4223 = vpop.f32.mrf.mxu0
    %v4224 = vadd.f32 0.0, %v4223
    %4225 = vmatmul.bf16.gmra.mxu0 %v4210
    %v4226 = vpop.f32.mrf.mxu0
    %v4227 = vadd.f32 0.0, %v4226
    %v4228 = vpop.f32.mrf.mxu0
    %v4229 = vadd.f32 0.0, %v4228
    %4230 = vdwg.mxu0
    %4231 = vmatpush.bf16.msra.mxu0 %v4037
    %4232 = vmatpush.bf16.msra.mxu0 %v4036
    %4233 = vmatpush.bf16.msra.mxu0 %v4035
    %4234 = vmatpush.bf16.msra.mxu0 %v4034
    %4235 = vmatpush.bf16.msra.mxu0 %v4033
    %4236 = vmatpush.bf16.msra.mxu0 %v4032
    %4237 = vmatpush.bf16.msra.mxu0 %v4031
    %4238 = vmatpush.bf16.msra.mxu0 %v4030
    %4239 = vmatmul.bf16.gmra.mxu0 %v4209
    %v4240 = vpop.f32.mrf.mxu0
    %v4241 = vadd.f32 %v4222, %v4240
    %v4242 = vpop.f32.mrf.mxu0
    %v4243 = vadd.f32 %v4224, %v4242
    %4244 = vmatmul.bf16.gmra.mxu0 %v4211
    %v4245 = vpop.f32.mrf.mxu0
    %v4246 = vadd.f32 %v4227, %v4245
    %v4247 = vpop.f32.mrf.mxu0
    %v4248 = vadd.f32 %v4229, %v4247
    %4249 = vdwg.mxu0
    %v4250 = vpack.c.bf16 %v4243, %v4241
    %v4251 = vpack.c.bf16 %v4248, %v4246
    %s4252 = scalar_lea.vmem [#allocation13], 128
    %v4253 = vld [vmem:[%s4252] sm:$0xf]
    %v4254 = vld [vmem:[%s4252 + $0x4] sm:$0xf]
    %v4255 = vld [vmem:[%s4252 + $0x8] sm:$0xf]
    %v4256 = vld [vmem:[%s4252 + $0xc] sm:$0xf]
    %v4257 = vld [vmem:[%s4252 + $0x10] sm:$0xf]
    %v4258 = vld [vmem:[%s4252 + $0x14] sm:$0xf]
    %v4259 = vld [vmem:[%s4252 + $0x18] sm:$0xf]
    %v4260 = vld [vmem:[%s4252 + $0x1c] sm:$0xf]
    %v4261 = vld [vmem:[%s4252 + $0x20] sm:$0xf]
    %v4262 = vld [vmem:[%s4252 + $0x24] sm:$0xf]
    %v4263 = vld [vmem:[%s4252 + $0x28] sm:$0xf]
    %v4264 = vld [vmem:[%s4252 + $0x2c] sm:$0xf]
    %v4265 = vld [vmem:[%s4252 + $0x30] sm:$0xf]
    %v4266 = vld [vmem:[%s4252 + $0x34] sm:$0xf]
    %v4267 = vld [vmem:[%s4252 + $0x38] sm:$0xf]
    %v4268 = vld [vmem:[%s4252 + $0x3c] sm:$0xf]
    %s4269 = scalar_lea.vmem [#allocation14], 2
    %v4270 = vld [vmem:[%s4269] sm:$0x1]
    %v4272 = vperm.slane %v4270, 0
    %v4290 = vunpack.c.l.b16 %v4253
    %v4291 = vunpack.c.l.b16 %v4254
    %v4292 = vunpack.c.l.b16 %v4255
    %v4293 = vunpack.c.l.b16 %v4256
    %v4294 = vunpack.c.l.b16 %v4257
    %v4295 = vunpack.c.l.b16 %v4258
    %v4296 = vunpack.c.l.b16 %v4259
    %v4297 = vunpack.c.l.b16 %v4260
    %v4298 = vunpack.c.l.b16 %v4261
    %v4299 = vunpack.c.l.b16 %v4262
    %v4300 = vunpack.c.l.b16 %v4263
    %v4301 = vunpack.c.l.b16 %v4264
    %v4302 = vunpack.c.l.b16 %v4265
    %v4303 = vunpack.c.l.b16 %v4266
    %v4304 = vunpack.c.l.b16 %v4267
    %v4305 = vunpack.c.l.b16 %v4268
    %v4306 = vpack.c.b16 %v4291, %v4290
    %v4307 = vpack.c.b16 %v4293, %v4292
    %v4308 = vpack.c.b16 %v4295, %v4294
    %v4309 = vpack.c.b16 %v4297, %v4296
    %v4310 = vpack.c.b16 %v4299, %v4298
    %v4311 = vpack.c.b16 %v4301, %v4300
    %v4312 = vpack.c.b16 %v4303, %v4302
    %v4313 = vpack.c.b16 %v4305, %v4304
    %4322 = vmatpush.bf16.msra.mxu0 %v4313
    %4323 = vmatpush.bf16.msra.mxu0 %v4312
    %4324 = vmatpush.bf16.msra.mxu0 %v4311
    %4325 = vmatpush.bf16.msra.mxu0 %v4310
    %4326 = vmatpush.bf16.msra.mxu0 %v4309
    %4327 = vmatpush.bf16.msra.mxu0 %v4308
    %4328 = vmatpush.bf16.msra.mxu0 %v4307
    %4329 = vmatpush.bf16.msra.mxu0 %v4306
    %4330 = vmatmul.bf16.gmra.mxu0 %v4250
    %v4331 = vpop.f32.mrf.mxu0
    %v4332 = vadd.f32 %v4272, %v4331
    %v4333 = vpop.f32.mrf.mxu0
    %v4334 = vadd.f32 %v4272, %v4333
    %4335 = vmatmul.bf16.gmra.mxu0 %v4251
    %v4336 = vpop.f32.mrf.mxu0
    %v4337 = vadd.f32 %v4272, %v4336
    %v4338 = vpop.f32.mrf.mxu0
    %v4339 = vadd.f32 %v4272, %v4338
    %4340 = vdwg.mxu0
    %v4341 = vadd.f32 %v3667, %v4332
    %v4342 = vadd.f32 %v3668, %v4334
    %v4343 = vadd.f32 %v3669, %v4337
    %v4344 = vadd.f32 %v3670, %v4339
    %s4345 = scalar_lea.vmem [#allocation16], 2
    %v4346 = vld [vmem:[%s4345] sm:$0x1]
    %s4347 = scalar_lea.vmem [#allocation17], 2
    %v4348 = vld [vmem:[%s4347] sm:$0x1]
    %4349 = vadd.xlane.f32.xlu0 %v4341
    %v4350 = vpop.xlane.xlu0 %4349
    %4351 = vadd.xlane.f32.xlu0 %v4342
    %v4352 = vpop.xlane.xlu0 %4351
    %4353 = vadd.xlane.f32.xlu0 %v4343
    %v4354 = vpop.xlane.xlu0 %4353
    %4355 = vadd.xlane.f32.xlu0 %v4344
    %v4356 = vpop.xlane.xlu0 %4355
    %v4357 = vmul.f32 %v4350, %v1326
    %v4358 = vmul.f32 %v4352, %v1326
    %v4359 = vmul.f32 %v4354, %v1326
    %v4360 = vmul.f32 %v4356, %v1326
    %v4361 = vsub.f32 %v4341, %v4357
    %v4362 = vsub.f32 %v4342, %v4358
    %v4363 = vsub.f32 %v4343, %v4359
    %v4364 = vsub.f32 %v4344, %v4360
    %v4365 = vmul.f32 %v4361, %v4361
    %v4366 = vmul.f32 %v4362, %v4362
    %v4367 = vmul.f32 %v4363, %v4363
    %v4368 = vmul.f32 %v4364, %v4364
    %4369 = vadd.xlane.f32.xlu0 %v4365
    %v4370 = vpop.xlane.xlu0 %4369
    %4371 = vadd.xlane.f32.xlu0 %v4366
    %v4372 = vpop.xlane.xlu0 %4371
    %4373 = vadd.xlane.f32.xlu0 %v4367
    %v4374 = vpop.xlane.xlu0 %4373
    %4375 = vadd.xlane.f32.xlu0 %v4368
    %v4376 = vpop.xlane.xlu0 %4375
    %v4377 = vmul.f32 %v4370, %v1326
    %v4378 = vmul.f32 %v4372, %v1326
    %v4379 = vmul.f32 %v4374, %v1326
    %v4380 = vmul.f32 %v4376, %v1326
    %v4381 = vadd.f32 %v4377, 1e-05
    %v4382 = vadd.f32 %v4378, 1e-05
    %v4383 = vadd.f32 %v4379, 1e-05
    %v4384 = vadd.f32 %v4380, 1e-05
    %v4385 = vrsqrt.pop %v4381
    %v4386 = vmul.f32 %v4385, %v4381
    %v4387 = vmul.f32 %v4386, %v4385
    %v4388 = vmul.f32 0.5, %v4387
    %v4389 = vsub.f32 1.5, %v4388
    %v4390 = vmul.f32 %v4385, %v4389
    %vm4391 = vweird.f32 %v4381
    %vm4392 = vweird.f32 %v4385
    %vm4393 = vmor %vm4391, %vm4392
    %v4394 = vsel %vm4393, %v4385, %v4390
    %v4395 = vrsqrt.pop %v4382
    %v4396 = vmul.f32 %v4395, %v4382
    %v4397 = vmul.f32 %v4396, %v4395
    %v4398 = vmul.f32 0.5, %v4397
    %v4399 = vsub.f32 1.5, %v4398
    %v4400 = vmul.f32 %v4395, %v4399
    %vm4401 = vweird.f32 %v4382
    %vm4402 = vweird.f32 %v4395
    %vm4403 = vmor %vm4401, %vm4402
    %v4404 = vsel %vm4403, %v4395, %v4400
    %v4405 = vrsqrt.pop %v4383
    %v4406 = vmul.f32 %v4405, %v4383
    %v4407 = vmul.f32 %v4406, %v4405
    %v4408 = vmul.f32 0.5, %v4407
    %v4409 = vsub.f32 1.5, %v4408
    %v4410 = vmul.f32 %v4405, %v4409
    %vm4411 = vweird.f32 %v4383
    %vm4412 = vweird.f32 %v4405
    %vm4413 = vmor %vm4411, %vm4412
    %v4414 = vsel %vm4413, %v4405, %v4410
    %v4415 = vrsqrt.pop %v4384
    %v4416 = vmul.f32 %v4415, %v4384
    %v4417 = vmul.f32 %v4416, %v4415
    %v4418 = vmul.f32 0.5, %v4417
    %v4419 = vsub.f32 1.5, %v4418
    %v4420 = vmul.f32 %v4415, %v4419
    %vm4421 = vweird.f32 %v4384
    %vm4422 = vweird.f32 %v4415
    %vm4423 = vmor %vm4421, %vm4422
    %v4424 = vsel %vm4423, %v4415, %v4420
    %v4425 = vmul.f32 %v4361, %v4394
    %v4426 = vmul.f32 %v4362, %v4404
    %v4427 = vmul.f32 %v4363, %v4414
    %v4428 = vmul.f32 %v4364, %v4424
    %v4430 = vperm.slane %v4346, 0
    %v4432 = vmul.f32 %v4425, %v4430
    %v4433 = vmul.f32 %v4426, %v4430
    %v4434 = vmul.f32 %v4427, %v4430
    %v4435 = vmul.f32 %v4428, %v4430
    %v4437 = vperm.slane %v4348, 0
    %v4439 = vadd.f32 %v4432, %v4437
    %v4440 = vadd.f32 %v4433, %v4437
    %v4441 = vadd.f32 %v4434, %v4437
    %v4442 = vadd.f32 %v4435, %v4437
    %v4443 = vpack.c.bf16 %v4440, %v4439
    %v4444 = vpack.c.bf16 %v4442, %v4441
    %s4445 = scalar_lea.vmem [#allocation22], 512
    %v4446 = vld [vmem:[%s4445] sm:$0xff]
    %v4447 = vld [vmem:[%s4445 + $0x8] sm:$0xff]
    %v4448 = vld [vmem:[%s4445 + $0x10] sm:$0xff]
    %v4449 = vld [vmem:[%s4445 + $0x18] sm:$0xff]
    %v4450 = vld [vmem:[%s4445 + $0x20] sm:$0xff]
    %v4451 = vld [vmem:[%s4445 + $0x28] sm:$0xff]
    %v4452 = vld [vmem:[%s4445 + $0x30] sm:$0xff]
    %v4453 = vld [vmem:[%s4445 + $0x38] sm:$0xff]
    %v4454 = vld [vmem:[%s4445 + $0x40] sm:$0xff]
    %v4455 = vld [vmem:[%s4445 + $0x48] sm:$0xff]
    %v4456 = vld [vmem:[%s4445 + $0x50] sm:$0xff]
    %v4457 = vld [vmem:[%s4445 + $0x58] sm:$0xff]
    %v4458 = vld [vmem:[%s4445 + $0x60] sm:$0xff]
    %v4459 = vld [vmem:[%s4445 + $0x68] sm:$0xff]
    %v4460 = vld [vmem:[%s4445 + $0x70] sm:$0xff]
    %v4461 = vld [vmem:[%s4445 + $0x78] sm:$0xff]
    %v4462 = vld [vmem:[%s4445 + $0x80] sm:$0xff]
    %v4463 = vld [vmem:[%s4445 + $0x88] sm:$0xff]
    %v4464 = vld [vmem:[%s4445 + $0x90] sm:$0xff]
    %v4465 = vld [vmem:[%s4445 + $0x98] sm:$0xff]
    %v4466 = vld [vmem:[%s4445 + $0xa0] sm:$0xff]
    %v4467 = vld [vmem:[%s4445 + $0xa8] sm:$0xff]
    %v4468 = vld [vmem:[%s4445 + $0xb0] sm:$0xff]
    %v4469 = vld [vmem:[%s4445 + $0xb8] sm:$0xff]
    %v4470 = vld [vmem:[%s4445 + $0xc0] sm:$0xff]
    %v4471 = vld [vmem:[%s4445 + $0xc8] sm:$0xff]
    %v4472 = vld [vmem:[%s4445 + $0xd0] sm:$0xff]
    %v4473 = vld [vmem:[%s4445 + $0xd8] sm:$0xff]
    %v4474 = vld [vmem:[%s4445 + $0xe0] sm:$0xff]
    %v4475 = vld [vmem:[%s4445 + $0xe8] sm:$0xff]
    %v4476 = vld [vmem:[%s4445 + $0xf0] sm:$0xff]
    %v4477 = vld [vmem:[%s4445 + $0xf8] sm:$0xff]
    %s4478 = scalar_lea.vmem %s15, 8
    %v4479 = vld [vmem:[%s4478] sm:$0xf]
    %v4481 = vperm.slane %v4479, 0
    %v4482 = vperm.slane %v4479, 1
    %v4483 = vperm.slane %v4479, 2
    %v4484 = vperm.slane %v4479, 3
    %v4521 = vunpack.c.l.b16 %v4446
    %v4522 = vunpack.c.h.b16 %v4446
    %v4523 = vunpack.c.l.b16 %v4447
    %v4524 = vunpack.c.h.b16 %v4447
    %v4525 = vunpack.c.l.b16 %v4448
    %v4526 = vunpack.c.h.b16 %v4448
    %v4527 = vunpack.c.l.b16 %v4449
    %v4528 = vunpack.c.h.b16 %v4449
    %v4529 = vunpack.c.l.b16 %v4450
    %v4530 = vunpack.c.h.b16 %v4450
    %v4531 = vunpack.c.l.b16 %v4451
    %v4532 = vunpack.c.h.b16 %v4451
    %v4533 = vunpack.c.l.b16 %v4452
    %v4534 = vunpack.c.h.b16 %v4452
    %v4535 = vunpack.c.l.b16 %v4453
    %v4536 = vunpack.c.h.b16 %v4453
    %v4537 = vunpack.c.l.b16 %v4454
    %v4538 = vunpack.c.h.b16 %v4454
    %v4539 = vunpack.c.l.b16 %v4455
    %v4540 = vunpack.c.h.b16 %v4455
    %v4541 = vunpack.c.l.b16 %v4456
    %v4542 = vunpack.c.h.b16 %v4456
    %v4543 = vunpack.c.l.b16 %v4457
    %v4544 = vunpack.c.h.b16 %v4457
    %v4545 = vunpack.c.l.b16 %v4458
    %v4546 = vunpack.c.h.b16 %v4458
    %v4547 = vunpack.c.l.b16 %v4459
    %v4548 = vunpack.c.h.b16 %v4459
    %v4549 = vunpack.c.l.b16 %v4460
    %v4550 = vunpack.c.h.b16 %v4460
    %v4551 = vunpack.c.l.b16 %v4461
    %v4552 = vunpack.c.h.b16 %v4461
    %v4553 = vunpack.c.l.b16 %v4462
    %v4554 = vunpack.c.h.b16 %v4462
    %v4555 = vunpack.c.l.b16 %v4463
    %v4556 = vunpack.c.h.b16 %v4463
    %v4557 = vunpack.c.l.b16 %v4464
    %v4558 = vunpack.c.h.b16 %v4464
    %v4559 = vunpack.c.l.b16 %v4465
    %v4560 = vunpack.c.h.b16 %v4465
    %v4561 = vunpack.c.l.b16 %v4466
    %v4562 = vunpack.c.h.b16 %v4466
    %v4563 = vunpack.c.l.b16 %v4467
    %v4564 = vunpack.c.h.b16 %v4467
    %v4565 = vunpack.c.l.b16 %v4468
    %v4566 = vunpack.c.h.b16 %v4468
    %v4567 = vunpack.c.l.b16 %v4469
    %v4568 = vunpack.c.h.b16 %v4469
    %v4569 = vunpack.c.l.b16 %v4470
    %v4570 = vunpack.c.h.b16 %v4470
    %v4571 = vunpack.c.l.b16 %v4471
    %v4572 = vunpack.c.h.b16 %v4471
    %v4573 = vunpack.c.l.b16 %v4472
    %v4574 = vunpack.c.h.b16 %v4472
    %v4575 = vunpack.c.l.b16 %v4473
    %v4576 = vunpack.c.h.b16 %v4473
    %v4577 = vunpack.c.l.b16 %v4474
    %v4578 = vunpack.c.h.b16 %v4474
    %v4579 = vunpack.c.l.b16 %v4475
    %v4580 = vunpack.c.h.b16 %v4475
    %v4581 = vunpack.c.l.b16 %v4476
    %v4582 = vunpack.c.h.b16 %v4476
    %v4583 = vunpack.c.l.b16 %v4477
    %v4584 = vunpack.c.h.b16 %v4477
    %v4585 = vpack.c.b16 %v4525, %v4521
    %v4586 = vpack.c.b16 %v4526, %v4522
    %v4587 = vpack.c.b16 %v4527, %v4523
    %v4588 = vpack.c.b16 %v4528, %v4524
    %v4589 = vpack.c.b16 %v4533, %v4529
    %v4590 = vpack.c.b16 %v4534, %v4530
    %v4591 = vpack.c.b16 %v4535, %v4531
    %v4592 = vpack.c.b16 %v4536, %v4532
    %v4593 = vpack.c.b16 %v4541, %v4537
    %v4594 = vpack.c.b16 %v4542, %v4538
    %v4595 = vpack.c.b16 %v4543, %v4539
    %v4596 = vpack.c.b16 %v4544, %v4540
    %v4597 = vpack.c.b16 %v4549, %v4545
    %v4598 = vpack.c.b16 %v4550, %v4546
    %v4599 = vpack.c.b16 %v4551, %v4547
    %v4600 = vpack.c.b16 %v4552, %v4548
    %v4601 = vpack.c.b16 %v4557, %v4553
    %v4602 = vpack.c.b16 %v4558, %v4554
    %v4603 = vpack.c.b16 %v4559, %v4555
    %v4604 = vpack.c.b16 %v4560, %v4556
    %v4605 = vpack.c.b16 %v4565, %v4561
    %v4606 = vpack.c.b16 %v4566, %v4562
    %v4607 = vpack.c.b16 %v4567, %v4563
    %v4608 = vpack.c.b16 %v4568, %v4564
    %v4609 = vpack.c.b16 %v4573, %v4569
    %v4610 = vpack.c.b16 %v4574, %v4570
    %v4611 = vpack.c.b16 %v4575, %v4571
    %v4612 = vpack.c.b16 %v4576, %v4572
    %v4613 = vpack.c.b16 %v4581, %v4577
    %v4614 = vpack.c.b16 %v4582, %v4578
    %v4615 = vpack.c.b16 %v4583, %v4579
    %v4616 = vpack.c.b16 %v4584, %v4580
    %4649 = vmatpush.bf16.msra.mxu0 %v4613
    %4650 = vmatpush.bf16.msra.mxu0 %v4609
    %4651 = vmatpush.bf16.msra.mxu0 %v4605
    %4652 = vmatpush.bf16.msra.mxu0 %v4601
    %4653 = vmatpush.bf16.msra.mxu0 %v4597
    %4654 = vmatpush.bf16.msra.mxu0 %v4593
    %4655 = vmatpush.bf16.msra.mxu0 %v4589
    %4656 = vmatpush.bf16.msra.mxu0 %v4585
    %4657 = vmatmul.bf16.gmra.mxu0 %v4443
    %v4658 = vpop.f32.mrf.mxu0
    %v4659 = vadd.f32 %v4481, %v4658
    %v4660 = vpop.f32.mrf.mxu0
    %v4661 = vadd.f32 %v4481, %v4660
    %4662 = vmatmul.bf16.gmra.mxu0 %v4444
    %v4663 = vpop.f32.mrf.mxu0
    %v4664 = vadd.f32 %v4481, %v4663
    %v4665 = vpop.f32.mrf.mxu0
    %v4666 = vadd.f32 %v4481, %v4665
    %4667 = vdwg.mxu0
    %4668 = vmatpush.bf16.msra.mxu0 %v4614
    %4669 = vmatpush.bf16.msra.mxu0 %v4610
    %4670 = vmatpush.bf16.msra.mxu0 %v4606
    %4671 = vmatpush.bf16.msra.mxu0 %v4602
    %4672 = vmatpush.bf16.msra.mxu0 %v4598
    %4673 = vmatpush.bf16.msra.mxu0 %v4594
    %4674 = vmatpush.bf16.msra.mxu0 %v4590
    %4675 = vmatpush.bf16.msra.mxu0 %v4586
    %4676 = vmatmul.bf16.gmra.mxu0 %v4443
    %v4677 = vpop.f32.mrf.mxu0
    %v4678 = vadd.f32 %v4482, %v4677
    %v4679 = vpop.f32.mrf.mxu0
    %v4680 = vadd.f32 %v4482, %v4679
    %4681 = vmatmul.bf16.gmra.mxu0 %v4444
    %v4682 = vpop.f32.mrf.mxu0
    %v4683 = vadd.f32 %v4482, %v4682
    %v4684 = vpop.f32.mrf.mxu0
    %v4685 = vadd.f32 %v4482, %v4684
    %4686 = vdwg.mxu0
    %4687 = vmatpush.bf16.msra.mxu0 %v4615
    %4688 = vmatpush.bf16.msra.mxu0 %v4611
    %4689 = vmatpush.bf16.msra.mxu0 %v4607
    %4690 = vmatpush.bf16.msra.mxu0 %v4603
    %4691 = vmatpush.bf16.msra.mxu0 %v4599
    %4692 = vmatpush.bf16.msra.mxu0 %v4595
    %4693 = vmatpush.bf16.msra.mxu0 %v4591
    %4694 = vmatpush.bf16.msra.mxu0 %v4587
    %4695 = vmatmul.bf16.gmra.mxu0 %v4443
    %v4696 = vpop.f32.mrf.mxu0
    %v4697 = vadd.f32 %v4483, %v4696
    %v4698 = vpop.f32.mrf.mxu0
    %v4699 = vadd.f32 %v4483, %v4698
    %4700 = vmatmul.bf16.gmra.mxu0 %v4444
    %v4701 = vpop.f32.mrf.mxu0
    %v4702 = vadd.f32 %v4483, %v4701
    %v4703 = vpop.f32.mrf.mxu0
    %v4704 = vadd.f32 %v4483, %v4703
    %4705 = vdwg.mxu0
    %4706 = vmatpush.bf16.msra.mxu0 %v4616
    %4707 = vmatpush.bf16.msra.mxu0 %v4612
    %4708 = vmatpush.bf16.msra.mxu0 %v4608
    %4709 = vmatpush.bf16.msra.mxu0 %v4604
    %4710 = vmatpush.bf16.msra.mxu0 %v4600
    %4711 = vmatpush.bf16.msra.mxu0 %v4596
    %4712 = vmatpush.bf16.msra.mxu0 %v4592
    %4713 = vmatpush.bf16.msra.mxu0 %v4588
    %4714 = vmatmul.bf16.gmra.mxu0 %v4443
    %v4715 = vpop.f32.mrf.mxu0
    %v4716 = vadd.f32 %v4484, %v4715
    %v4717 = vpop.f32.mrf.mxu0
    %v4718 = vadd.f32 %v4484, %v4717
    %4719 = vmatmul.bf16.gmra.mxu0 %v4444
    %v4720 = vpop.f32.mrf.mxu0
    %v4721 = vadd.f32 %v4484, %v4720
    %v4722 = vpop.f32.mrf.mxu0
    %v4723 = vadd.f32 %v4484, %v4722
    %4724 = vdwg.mxu0
    %v4725 = vmax.f32 %v4659, 0.0
    %v4726 = vmax.f32 %v4678, 0.0
    %v4727 = vmax.f32 %v4697, 0.0
    %v4728 = vmax.f32 %v4716, 0.0
    %v4729 = vmax.f32 %v4661, 0.0
    %v4730 = vmax.f32 %v4680, 0.0
    %v4731 = vmax.f32 %v4699, 0.0
    %v4732 = vmax.f32 %v4718, 0.0
    %v4733 = vmax.f32 %v4664, 0.0
    %v4734 = vmax.f32 %v4683, 0.0
    %v4735 = vmax.f32 %v4702, 0.0
    %v4736 = vmax.f32 %v4721, 0.0
    %v4737 = vmax.f32 %v4666, 0.0
    %v4738 = vmax.f32 %v4685, 0.0
    %v4739 = vmax.f32 %v4704, 0.0
    %v4740 = vmax.f32 %v4723, 0.0
    %v4741 = vpack.c.bf16 %v4729, %v4725
    %v4742 = vpack.c.bf16 %v4730, %v4726
    %v4743 = vpack.c.bf16 %v4731, %v4727
    %v4744 = vpack.c.bf16 %v4732, %v4728
    %v4745 = vpack.c.bf16 %v4737, %v4733
    %v4746 = vpack.c.bf16 %v4738, %v4734
    %v4747 = vpack.c.bf16 %v4739, %v4735
    %v4748 = vpack.c.bf16 %v4740, %v4736
    %s4749 = scalar_lea.vmem [#allocation23], 512
    %v4750 = vld [vmem:[%s4749] sm:$0xf]
    %v4751 = vld [vmem:[%s4749 + $0x4] sm:$0xf]
    %v4752 = vld [vmem:[%s4749 + $0x8] sm:$0xf]
    %v4753 = vld [vmem:[%s4749 + $0xc] sm:$0xf]
    %v4754 = vld [vmem:[%s4749 + $0x10] sm:$0xf]
    %v4755 = vld [vmem:[%s4749 + $0x14] sm:$0xf]
    %v4756 = vld [vmem:[%s4749 + $0x18] sm:$0xf]
    %v4757 = vld [vmem:[%s4749 + $0x1c] sm:$0xf]
    %v4758 = vld [vmem:[%s4749 + $0x20] sm:$0xf]
    %v4759 = vld [vmem:[%s4749 + $0x24] sm:$0xf]
    %v4760 = vld [vmem:[%s4749 + $0x28] sm:$0xf]
    %v4761 = vld [vmem:[%s4749 + $0x2c] sm:$0xf]
    %v4762 = vld [vmem:[%s4749 + $0x30] sm:$0xf]
    %v4763 = vld [vmem:[%s4749 + $0x34] sm:$0xf]
    %v4764 = vld [vmem:[%s4749 + $0x38] sm:$0xf]
    %v4765 = vld [vmem:[%s4749 + $0x3c] sm:$0xf]
    %v4766 = vld [vmem:[%s4749 + $0x40] sm:$0xf]
    %v4767 = vld [vmem:[%s4749 + $0x44] sm:$0xf]
    %v4768 = vld [vmem:[%s4749 + $0x48] sm:$0xf]
    %v4769 = vld [vmem:[%s4749 + $0x4c] sm:$0xf]
    %v4770 = vld [vmem:[%s4749 + $0x50] sm:$0xf]
    %v4771 = vld [vmem:[%s4749 + $0x54] sm:$0xf]
    %v4772 = vld [vmem:[%s4749 + $0x58] sm:$0xf]
    %v4773 = vld [vmem:[%s4749 + $0x5c] sm:$0xf]
    %v4774 = vld [vmem:[%s4749 + $0x60] sm:$0xf]
    %v4775 = vld [vmem:[%s4749 + $0x64] sm:$0xf]
    %v4776 = vld [vmem:[%s4749 + $0x68] sm:$0xf]
    %v4777 = vld [vmem:[%s4749 + $0x6c] sm:$0xf]
    %v4778 = vld [vmem:[%s4749 + $0x70] sm:$0xf]
    %v4779 = vld [vmem:[%s4749 + $0x74] sm:$0xf]
    %v4780 = vld [vmem:[%s4749 + $0x78] sm:$0xf]
    %v4781 = vld [vmem:[%s4749 + $0x7c] sm:$0xf]
    %v4782 = vld [vmem:[%s4749 + $0x80] sm:$0xf]
    %v4783 = vld [vmem:[%s4749 + $0x84] sm:$0xf]
    %v4784 = vld [vmem:[%s4749 + $0x88] sm:$0xf]
    %v4785 = vld [vmem:[%s4749 + $0x8c] sm:$0xf]
    %v4786 = vld [vmem:[%s4749 + $0x90] sm:$0xf]
    %v4787 = vld [vmem:[%s4749 + $0x94] sm:$0xf]
    %v4788 = vld [vmem:[%s4749 + $0x98] sm:$0xf]
    %v4789 = vld [vmem:[%s4749 + $0x9c] sm:$0xf]
    %v4790 = vld [vmem:[%s4749 + $0xa0] sm:$0xf]
    %v4791 = vld [vmem:[%s4749 + $0xa4] sm:$0xf]
    %v4792 = vld [vmem:[%s4749 + $0xa8] sm:$0xf]
    %v4793 = vld [vmem:[%s4749 + $0xac] sm:$0xf]
    %v4794 = vld [vmem:[%s4749 + $0xb0] sm:$0xf]
    %v4795 = vld [vmem:[%s4749 + $0xb4] sm:$0xf]
    %v4796 = vld [vmem:[%s4749 + $0xb8] sm:$0xf]
    %v4797 = vld [vmem:[%s4749 + $0xbc] sm:$0xf]
    %v4798 = vld [vmem:[%s4749 + $0xc0] sm:$0xf]
    %v4799 = vld [vmem:[%s4749 + $0xc4] sm:$0xf]
    %v4800 = vld [vmem:[%s4749 + $0xc8] sm:$0xf]
    %v4801 = vld [vmem:[%s4749 + $0xcc] sm:$0xf]
    %v4802 = vld [vmem:[%s4749 + $0xd0] sm:$0xf]
    %v4803 = vld [vmem:[%s4749 + $0xd4] sm:$0xf]
    %v4804 = vld [vmem:[%s4749 + $0xd8] sm:$0xf]
    %v4805 = vld [vmem:[%s4749 + $0xdc] sm:$0xf]
    %v4806 = vld [vmem:[%s4749 + $0xe0] sm:$0xf]
    %v4807 = vld [vmem:[%s4749 + $0xe4] sm:$0xf]
    %v4808 = vld [vmem:[%s4749 + $0xe8] sm:$0xf]
    %v4809 = vld [vmem:[%s4749 + $0xec] sm:$0xf]
    %v4810 = vld [vmem:[%s4749 + $0xf0] sm:$0xf]
    %v4811 = vld [vmem:[%s4749 + $0xf4] sm:$0xf]
    %v4812 = vld [vmem:[%s4749 + $0xf8] sm:$0xf]
    %v4813 = vld [vmem:[%s4749 + $0xfc] sm:$0xf]
    %s4814 = scalar_lea.vmem [#allocation25], 2
    %v4815 = vld [vmem:[%s4814] sm:$0x1]
    %v4817 = vperm.slane %v4815, 0
    %v4883 = vunpack.c.l.b16 %v4750
    %v4884 = vunpack.c.l.b16 %v4751
    %v4885 = vunpack.c.l.b16 %v4752
    %v4886 = vunpack.c.l.b16 %v4753
    %v4887 = vunpack.c.l.b16 %v4754
    %v4888 = vunpack.c.l.b16 %v4755
    %v4889 = vunpack.c.l.b16 %v4756
    %v4890 = vunpack.c.l.b16 %v4757
    %v4891 = vunpack.c.l.b16 %v4758
    %v4892 = vunpack.c.l.b16 %v4759
    %v4893 = vunpack.c.l.b16 %v4760
    %v4894 = vunpack.c.l.b16 %v4761
    %v4895 = vunpack.c.l.b16 %v4762
    %v4896 = vunpack.c.l.b16 %v4763
    %v4897 = vunpack.c.l.b16 %v4764
    %v4898 = vunpack.c.l.b16 %v4765
    %v4899 = vunpack.c.l.b16 %v4766
    %v4900 = vunpack.c.l.b16 %v4767
    %v4901 = vunpack.c.l.b16 %v4768
    %v4902 = vunpack.c.l.b16 %v4769
    %v4903 = vunpack.c.l.b16 %v4770
    %v4904 = vunpack.c.l.b16 %v4771
    %v4905 = vunpack.c.l.b16 %v4772
    %v4906 = vunpack.c.l.b16 %v4773
    %v4907 = vunpack.c.l.b16 %v4774
    %v4908 = vunpack.c.l.b16 %v4775
    %v4909 = vunpack.c.l.b16 %v4776
    %v4910 = vunpack.c.l.b16 %v4777
    %v4911 = vunpack.c.l.b16 %v4778
    %v4912 = vunpack.c.l.b16 %v4779
    %v4913 = vunpack.c.l.b16 %v4780
    %v4914 = vunpack.c.l.b16 %v4781
    %v4915 = vunpack.c.l.b16 %v4782
    %v4916 = vunpack.c.l.b16 %v4783
    %v4917 = vunpack.c.l.b16 %v4784
    %v4918 = vunpack.c.l.b16 %v4785
    %v4919 = vunpack.c.l.b16 %v4786
    %v4920 = vunpack.c.l.b16 %v4787
    %v4921 = vunpack.c.l.b16 %v4788
    %v4922 = vunpack.c.l.b16 %v4789
    %v4923 = vunpack.c.l.b16 %v4790
    %v4924 = vunpack.c.l.b16 %v4791
    %v4925 = vunpack.c.l.b16 %v4792
    %v4926 = vunpack.c.l.b16 %v4793
    %v4927 = vunpack.c.l.b16 %v4794
    %v4928 = vunpack.c.l.b16 %v4795
    %v4929 = vunpack.c.l.b16 %v4796
    %v4930 = vunpack.c.l.b16 %v4797
    %v4931 = vunpack.c.l.b16 %v4798
    %v4932 = vunpack.c.l.b16 %v4799
    %v4933 = vunpack.c.l.b16 %v4800
    %v4934 = vunpack.c.l.b16 %v4801
    %v4935 = vunpack.c.l.b16 %v4802
    %v4936 = vunpack.c.l.b16 %v4803
    %v4937 = vunpack.c.l.b16 %v4804
    %v4938 = vunpack.c.l.b16 %v4805
    %v4939 = vunpack.c.l.b16 %v4806
    %v4940 = vunpack.c.l.b16 %v4807
    %v4941 = vunpack.c.l.b16 %v4808
    %v4942 = vunpack.c.l.b16 %v4809
    %v4943 = vunpack.c.l.b16 %v4810
    %v4944 = vunpack.c.l.b16 %v4811
    %v4945 = vunpack.c.l.b16 %v4812
    %v4946 = vunpack.c.l.b16 %v4813
    %v4947 = vpack.c.b16 %v4884, %v4883
    %v4948 = vpack.c.b16 %v4886, %v4885
    %v4949 = vpack.c.b16 %v4888, %v4887
    %v4950 = vpack.c.b16 %v4890, %v4889
    %v4951 = vpack.c.b16 %v4892, %v4891
    %v4952 = vpack.c.b16 %v4894, %v4893
    %v4953 = vpack.c.b16 %v4896, %v4895
    %v4954 = vpack.c.b16 %v4898, %v4897
    %v4955 = vpack.c.b16 %v4900, %v4899
    %v4956 = vpack.c.b16 %v4902, %v4901
    %v4957 = vpack.c.b16 %v4904, %v4903
    %v4958 = vpack.c.b16 %v4906, %v4905
    %v4959 = vpack.c.b16 %v4908, %v4907
    %v4960 = vpack.c.b16 %v4910, %v4909
    %v4961 = vpack.c.b16 %v4912, %v4911
    %v4962 = vpack.c.b16 %v4914, %v4913
    %v4963 = vpack.c.b16 %v4916, %v4915
    %v4964 = vpack.c.b16 %v4918, %v4917
    %v4965 = vpack.c.b16 %v4920, %v4919
    %v4966 = vpack.c.b16 %v4922, %v4921
    %v4967 = vpack.c.b16 %v4924, %v4923
    %v4968 = vpack.c.b16 %v4926, %v4925
    %v4969 = vpack.c.b16 %v4928, %v4927
    %v4970 = vpack.c.b16 %v4930, %v4929
    %v4971 = vpack.c.b16 %v4932, %v4931
    %v4972 = vpack.c.b16 %v4934, %v4933
    %v4973 = vpack.c.b16 %v4936, %v4935
    %v4974 = vpack.c.b16 %v4938, %v4937
    %v4975 = vpack.c.b16 %v4940, %v4939
    %v4976 = vpack.c.b16 %v4942, %v4941
    %v4977 = vpack.c.b16 %v4944, %v4943
    %v4978 = vpack.c.b16 %v4946, %v4945
    %5011 = vmatpush.bf16.msra.mxu0 %v4954
    %5012 = vmatpush.bf16.msra.mxu0 %v4953
    %5013 = vmatpush.bf16.msra.mxu0 %v4952
    %5014 = vmatpush.bf16.msra.mxu0 %v4951
    %5015 = vmatpush.bf16.msra.mxu0 %v4950
    %5016 = vmatpush.bf16.msra.mxu0 %v4949
    %5017 = vmatpush.bf16.msra.mxu0 %v4948
    %5018 = vmatpush.bf16.msra.mxu0 %v4947
    %5019 = vmatmul.bf16.gmra.mxu0 %v4741
    %v5020 = vpop.f32.mrf.mxu0
    %v5021 = vadd.f32 %v4817, %v5020
    %v5022 = vpop.f32.mrf.mxu0
    %v5023 = vadd.f32 %v4817, %v5022
    %5024 = vmatmul.bf16.gmra.mxu0 %v4745
    %v5025 = vpop.f32.mrf.mxu0
    %v5026 = vadd.f32 %v4817, %v5025
    %v5027 = vpop.f32.mrf.mxu0
    %v5028 = vadd.f32 %v4817, %v5027
    %5029 = vdwg.mxu0
    %5030 = vmatpush.bf16.msra.mxu0 %v4962
    %5031 = vmatpush.bf16.msra.mxu0 %v4961
    %5032 = vmatpush.bf16.msra.mxu0 %v4960
    %5033 = vmatpush.bf16.msra.mxu0 %v4959
    %5034 = vmatpush.bf16.msra.mxu0 %v4958
    %5035 = vmatpush.bf16.msra.mxu0 %v4957
    %5036 = vmatpush.bf16.msra.mxu0 %v4956
    %5037 = vmatpush.bf16.msra.mxu0 %v4955
    %5038 = vmatmul.bf16.gmra.mxu0 %v4742
    %v5039 = vpop.f32.mrf.mxu0
    %v5040 = vadd.f32 %v5021, %v5039
    %v5041 = vpop.f32.mrf.mxu0
    %v5042 = vadd.f32 %v5023, %v5041
    %5043 = vmatmul.bf16.gmra.mxu0 %v4746
    %v5044 = vpop.f32.mrf.mxu0
    %v5045 = vadd.f32 %v5026, %v5044
    %v5046 = vpop.f32.mrf.mxu0
    %v5047 = vadd.f32 %v5028, %v5046
    %5048 = vdwg.mxu0
    %5049 = vmatpush.bf16.msra.mxu0 %v4970
    %5050 = vmatpush.bf16.msra.mxu0 %v4969
    %5051 = vmatpush.bf16.msra.mxu0 %v4968
    %5052 = vmatpush.bf16.msra.mxu0 %v4967
    %5053 = vmatpush.bf16.msra.mxu0 %v4966
    %5054 = vmatpush.bf16.msra.mxu0 %v4965
    %5055 = vmatpush.bf16.msra.mxu0 %v4964
    %5056 = vmatpush.bf16.msra.mxu0 %v4963
    %5057 = vmatmul.bf16.gmra.mxu0 %v4743
    %v5058 = vpop.f32.mrf.mxu0
    %v5059 = vadd.f32 %v5040, %v5058
    %v5060 = vpop.f32.mrf.mxu0
    %v5061 = vadd.f32 %v5042, %v5060
    %5062 = vmatmul.bf16.gmra.mxu0 %v4747
    %v5063 = vpop.f32.mrf.mxu0
    %v5064 = vadd.f32 %v5045, %v5063
    %v5065 = vpop.f32.mrf.mxu0
    %v5066 = vadd.f32 %v5047, %v5065
    %5067 = vdwg.mxu0
    %5068 = vmatpush.bf16.msra.mxu0 %v4978
    %5069 = vmatpush.bf16.msra.mxu0 %v4977
    %5070 = vmatpush.bf16.msra.mxu0 %v4976
    %5071 = vmatpush.bf16.msra.mxu0 %v4975
    %5072 = vmatpush.bf16.msra.mxu0 %v4974
    %5073 = vmatpush.bf16.msra.mxu0 %v4973
    %5074 = vmatpush.bf16.msra.mxu0 %v4972
    %5075 = vmatpush.bf16.msra.mxu0 %v4971
    %5076 = vmatmul.bf16.gmra.mxu0 %v4744
    %v5077 = vpop.f32.mrf.mxu0
    %v5078 = vadd.f32 %v5059, %v5077
    %v5079 = vpop.f32.mrf.mxu0
    %v5080 = vadd.f32 %v5061, %v5079
    %5081 = vmatmul.bf16.gmra.mxu0 %v4748
    %v5082 = vpop.f32.mrf.mxu0
    %v5083 = vadd.f32 %v5064, %v5082
    %v5084 = vpop.f32.mrf.mxu0
    %v5085 = vadd.f32 %v5066, %v5084
    %5086 = vdwg.mxu0
    %v5087 = vadd.f32 %v4439, %v5078
    %v5088 = vadd.f32 %v4440, %v5080
    %v5089 = vadd.f32 %v4441, %v5083
    %v5090 = vadd.f32 %v4442, %v5085
    %s5091 = scalar_lea.vmem [#allocation19], 2
    %v5092 = vld [vmem:[%s5091] sm:$0x1]
    %s5093 = scalar_lea.vmem [#allocation20], 2
    %v5094 = vld [vmem:[%s5093] sm:$0x1]
    %5095 = vadd.xlane.f32.xlu0 %v5087
    %v5096 = vpop.xlane.xlu0 %5095
    %5097 = vadd.xlane.f32.xlu0 %v5088
    %v5098 = vpop.xlane.xlu0 %5097
    %5099 = vadd.xlane.f32.xlu0 %v5089
    %v5100 = vpop.xlane.xlu0 %5099
    %5101 = vadd.xlane.f32.xlu0 %v5090
    %v5102 = vpop.xlane.xlu0 %5101
    %v5103 = vmul.f32 %v5096, %v1326
    %v5104 = vmul.f32 %v5098, %v1326
    %v5105 = vmul.f32 %v5100, %v1326
    %v5106 = vmul.f32 %v5102, %v1326
    %v5107 = vsub.f32 %v5087, %v5103
    %v5108 = vsub.f32 %v5088, %v5104
    %v5109 = vsub.f32 %v5089, %v5105
    %v5110 = vsub.f32 %v5090, %v5106
    %v5111 = vmul.f32 %v5107, %v5107
    %v5112 = vmul.f32 %v5108, %v5108
    %v5113 = vmul.f32 %v5109, %v5109
    %v5114 = vmul.f32 %v5110, %v5110
    %5115 = vadd.xlane.f32.xlu0 %v5111
    %v5116 = vpop.xlane.xlu0 %5115
    %5117 = vadd.xlane.f32.xlu0 %v5112
    %v5118 = vpop.xlane.xlu0 %5117
    %5119 = vadd.xlane.f32.xlu0 %v5113
    %v5120 = vpop.xlane.xlu0 %5119
    %5121 = vadd.xlane.f32.xlu0 %v5114
    %v5122 = vpop.xlane.xlu0 %5121
    %v5123 = vmul.f32 %v5116, %v1326
    %v5124 = vmul.f32 %v5118, %v1326
    %v5125 = vmul.f32 %v5120, %v1326
    %v5126 = vmul.f32 %v5122, %v1326
    %v5127 = vadd.f32 %v5123, 1e-05
    %v5128 = vadd.f32 %v5124, 1e-05
    %v5129 = vadd.f32 %v5125, 1e-05
    %v5130 = vadd.f32 %v5126, 1e-05
    %v5131 = vrsqrt.pop %v5127
    %v5132 = vmul.f32 %v5131, %v5127
    %v5133 = vmul.f32 %v5132, %v5131
    %v5134 = vmul.f32 0.5, %v5133
    %v5135 = vsub.f32 1.5, %v5134
    %v5136 = vmul.f32 %v5131, %v5135
    %vm5137 = vweird.f32 %v5127
    %vm5138 = vweird.f32 %v5131
    %vm5139 = vmor %vm5137, %vm5138
    %v5140 = vsel %vm5139, %v5131, %v5136
    %v5141 = vrsqrt.pop %v5128
    %v5142 = vmul.f32 %v5141, %v5128
    %v5143 = vmul.f32 %v5142, %v5141
    %v5144 = vmul.f32 0.5, %v5143
    %v5145 = vsub.f32 1.5, %v5144
    %v5146 = vmul.f32 %v5141, %v5145
    %vm5147 = vweird.f32 %v5128
    %vm5148 = vweird.f32 %v5141
    %vm5149 = vmor %vm5147, %vm5148
    %v5150 = vsel %vm5149, %v5141, %v5146
    %v5151 = vrsqrt.pop %v5129
    %v5152 = vmul.f32 %v5151, %v5129
    %v5153 = vmul.f32 %v5152, %v5151
    %v5154 = vmul.f32 0.5, %v5153
    %v5155 = vsub.f32 1.5, %v5154
    %v5156 = vmul.f32 %v5151, %v5155
    %vm5157 = vweird.f32 %v5129
    %vm5158 = vweird.f32 %v5151
    %vm5159 = vmor %vm5157, %vm5158
    %v5160 = vsel %vm5159, %v5151, %v5156
    %v5161 = vrsqrt.pop %v5130
    %v5162 = vmul.f32 %v5161, %v5130
    %v5163 = vmul.f32 %v5162, %v5161
    %v5164 = vmul.f32 0.5, %v5163
    %v5165 = vsub.f32 1.5, %v5164
    %v5166 = vmul.f32 %v5161, %v5165
    %vm5167 = vweird.f32 %v5130
    %vm5168 = vweird.f32 %v5161
    %vm5169 = vmor %vm5167, %vm5168
    %v5170 = vsel %vm5169, %v5161, %v5166
    %v5171 = vmul.f32 %v5107, %v5140
    %v5172 = vmul.f32 %v5108, %v5150
    %v5173 = vmul.f32 %v5109, %v5160
    %v5174 = vmul.f32 %v5110, %v5170
    %v5176 = vperm.slane %v5092, 0
    %v5178 = vmul.f32 %v5171, %v5176
    %v5179 = vmul.f32 %v5172, %v5176
    %v5180 = vmul.f32 %v5173, %v5176
    %v5181 = vmul.f32 %v5174, %v5176
    %v5183 = vperm.slane %v5094, 0
    %v5185 = vadd.f32 %v5178, %v5183
    %v5186 = vadd.f32 %v5179, %v5183
    %v5187 = vadd.f32 %v5180, %v5183
    %v5188 = vadd.f32 %v5181, %v5183
    %v5189 = vpack.c.bf16 %v5186, %v5185
    %v5190 = vpack.c.bf16 %v5188, %v5187
    %s5191 = scalar_lea.vmem [#allocation10], 576
    %v5192 = vld [vmem:[%s5191] sm:$0xff]
    %v5193 = vld [vmem:[%s5191 + $0x8] sm:$0xf]
    %v5194 = vld [vmem:[%s5191 + $0xc] sm:$0xff]
    %v5195 = vld [vmem:[%s5191 + $0x14] sm:$0xf]
    %v5196 = vld [vmem:[%s5191 + $0x18] sm:$0xff]
    %v5197 = vld [vmem:[%s5191 + $0x20] sm:$0xf]
    %v5198 = vld [vmem:[%s5191 + $0x24] sm:$0xff]
    %v5199 = vld [vmem:[%s5191 + $0x2c] sm:$0xf]
    %v5200 = vld [vmem:[%s5191 + $0x30] sm:$0xff]
    %v5201 = vld [vmem:[%s5191 + $0x38] sm:$0xf]
    %v5202 = vld [vmem:[%s5191 + $0x3c] sm:$0xff]
    %v5203 = vld [vmem:[%s5191 + $0x44] sm:$0xf]
    %v5204 = vld [vmem:[%s5191 + $0x48] sm:$0xff]
    %v5205 = vld [vmem:[%s5191 + $0x50] sm:$0xf]
    %v5206 = vld [vmem:[%s5191 + $0x54] sm:$0xff]
    %v5207 = vld [vmem:[%s5191 + $0x5c] sm:$0xf]
    %v5208 = vld [vmem:[%s5191 + $0x60] sm:$0xff]
    %v5209 = vld [vmem:[%s5191 + $0x68] sm:$0xf]
    %v5210 = vld [vmem:[%s5191 + $0x6c] sm:$0xff]
    %v5211 = vld [vmem:[%s5191 + $0x74] sm:$0xf]
    %v5212 = vld [vmem:[%s5191 + $0x78] sm:$0xff]
    %v5213 = vld [vmem:[%s5191 + $0x80] sm:$0xf]
    %v5214 = vld [vmem:[%s5191 + $0x84] sm:$0xff]
    %v5215 = vld [vmem:[%s5191 + $0x8c] sm:$0xf]
    %v5216 = vld [vmem:[%s5191 + $0x90] sm:$0xff]
    %v5217 = vld [vmem:[%s5191 + $0x98] sm:$0xf]
    %v5218 = vld [vmem:[%s5191 + $0x9c] sm:$0xff]
    %v5219 = vld [vmem:[%s5191 + $0xa4] sm:$0xf]
    %v5220 = vld [vmem:[%s5191 + $0xa8] sm:$0xff]
    %v5221 = vld [vmem:[%s5191 + $0xb0] sm:$0xf]
    %v5222 = vld [vmem:[%s5191 + $0xb4] sm:$0xff]
    %v5223 = vld [vmem:[%s5191 + $0xbc] sm:$0xf]
    %s5224 = scalar_lea.vmem [#allocation11], 9
    %v5225 = vld [vmem:[%s5224] sm:$0x7]
    %v5227 = vperm.slane %v5225, 0
    %v5228 = vperm.slane %v5225, 1
    %v5229 = vperm.slane %v5225, 2
    %v5265 = vunpack.c.l.b16 %v5192
    %v5266 = vunpack.c.h.b16 %v5192
    %v5267 = vunpack.c.l.b16 %v5193
    %v5268 = vunpack.c.l.b16 %v5194
    %v5269 = vunpack.c.h.b16 %v5194
    %v5270 = vunpack.c.l.b16 %v5195
    %v5271 = vunpack.c.l.b16 %v5196
    %v5272 = vunpack.c.h.b16 %v5196
    %v5273 = vunpack.c.l.b16 %v5197
    %v5274 = vunpack.c.l.b16 %v5198
    %v5275 = vunpack.c.h.b16 %v5198
    %v5276 = vunpack.c.l.b16 %v5199
    %v5277 = vunpack.c.l.b16 %v5200
    %v5278 = vunpack.c.h.b16 %v5200
    %v5279 = vunpack.c.l.b16 %v5201
    %v5280 = vunpack.c.l.b16 %v5202
    %v5281 = vunpack.c.h.b16 %v5202
    %v5282 = vunpack.c.l.b16 %v5203
    %v5283 = vunpack.c.l.b16 %v5204
    %v5284 = vunpack.c.h.b16 %v5204
    %v5285 = vunpack.c.l.b16 %v5205
    %v5286 = vunpack.c.l.b16 %v5206
    %v5287 = vunpack.c.h.b16 %v5206
    %v5288 = vunpack.c.l.b16 %v5207
    %v5289 = vunpack.c.l.b16 %v5208
    %v5290 = vunpack.c.h.b16 %v5208
    %v5291 = vunpack.c.l.b16 %v5209
    %v5292 = vunpack.c.l.b16 %v5210
    %v5293 = vunpack.c.h.b16 %v5210
    %v5294 = vunpack.c.l.b16 %v5211
    %v5295 = vunpack.c.l.b16 %v5212
    %v5296 = vunpack.c.h.b16 %v5212
    %v5297 = vunpack.c.l.b16 %v5213
    %v5298 = vunpack.c.l.b16 %v5214
    %v5299 = vunpack.c.h.b16 %v5214
    %v5300 = vunpack.c.l.b16 %v5215
    %v5301 = vunpack.c.l.b16 %v5216
    %v5302 = vunpack.c.h.b16 %v5216
    %v5303 = vunpack.c.l.b16 %v5217
    %v5304 = vunpack.c.l.b16 %v5218
    %v5305 = vunpack.c.h.b16 %v5218
    %v5306 = vunpack.c.l.b16 %v5219
    %v5307 = vunpack.c.l.b16 %v5220
    %v5308 = vunpack.c.h.b16 %v5220
    %v5309 = vunpack.c.l.b16 %v5221
    %v5310 = vunpack.c.l.b16 %v5222
    %v5311 = vunpack.c.h.b16 %v5222
    %v5312 = vunpack.c.l.b16 %v5223
    %v5313 = vpack.c.b16 %v5268, %v5265
    %v5314 = vpack.c.b16 %v5269, %v5266
    %v5315 = vpack.c.b16 %v5270, %v5267
    %v5316 = vpack.c.b16 %v5274, %v5271
    %v5317 = vpack.c.b16 %v5275, %v5272
    %v5318 = vpack.c.b16 %v5276, %v5273
    %v5319 = vpack.c.b16 %v5280, %v5277
    %v5320 = vpack.c.b16 %v5281, %v5278
    %v5321 = vpack.c.b16 %v5282, %v5279
    %v5322 = vpack.c.b16 %v5286, %v5283
    %v5323 = vpack.c.b16 %v5287, %v5284
    %v5324 = vpack.c.b16 %v5288, %v5285
    %v5325 = vpack.c.b16 %v5292, %v5289
    %v5326 = vpack.c.b16 %v5293, %v5290
    %v5327 = vpack.c.b16 %v5294, %v5291
    %v5328 = vpack.c.b16 %v5298, %v5295
    %v5329 = vpack.c.b16 %v5299, %v5296
    %v5330 = vpack.c.b16 %v5300, %v5297
    %v5331 = vpack.c.b16 %v5304, %v5301
    %v5332 = vpack.c.b16 %v5305, %v5302
    %v5333 = vpack.c.b16 %v5306, %v5303
    %v5334 = vpack.c.b16 %v5310, %v5307
    %v5335 = vpack.c.b16 %v5311, %v5308
    %v5336 = vpack.c.b16 %v5312, %v5309
    %5361 = vmatpush.bf16.msra.mxu0 %v5334
    %5362 = vmatpush.bf16.msra.mxu0 %v5331
    %5363 = vmatpush.bf16.msra.mxu0 %v5328
    %5364 = vmatpush.bf16.msra.mxu0 %v5325
    %5365 = vmatpush.bf16.msra.mxu0 %v5322
    %5366 = vmatpush.bf16.msra.mxu0 %v5319
    %5367 = vmatpush.bf16.msra.mxu0 %v5316
    %5368 = vmatpush.bf16.msra.mxu0 %v5313
    %5369 = vmatmul.bf16.gmra.mxu0 %v5189
    %v5370 = vpop.f32.mrf.mxu0
    %v5371 = vadd.f32 %v5227, %v5370
    %v5372 = vpop.f32.mrf.mxu0
    %v5373 = vadd.f32 %v5227, %v5372
    %5374 = vmatmul.bf16.gmra.mxu0 %v5190
    %v5375 = vpop.f32.mrf.mxu0
    %v5376 = vadd.f32 %v5227, %v5375
    %v5377 = vpop.f32.mrf.mxu0
    %v5378 = vadd.f32 %v5227, %v5377
    %5379 = vdwg.mxu0
    %5380 = vmatpush.bf16.msra.mxu0 %v5335
    %5381 = vmatpush.bf16.msra.mxu0 %v5332
    %5382 = vmatpush.bf16.msra.mxu0 %v5329
    %5383 = vmatpush.bf16.msra.mxu0 %v5326
    %5384 = vmatpush.bf16.msra.mxu0 %v5323
    %5385 = vmatpush.bf16.msra.mxu0 %v5320
    %5386 = vmatpush.bf16.msra.mxu0 %v5317
    %5387 = vmatpush.bf16.msra.mxu0 %v5314
    %5388 = vmatmul.bf16.gmra.mxu0 %v5189
    %v5389 = vpop.f32.mrf.mxu0
    %v5390 = vadd.f32 %v5228, %v5389
    %v5391 = vpop.f32.mrf.mxu0
    %v5392 = vadd.f32 %v5228, %v5391
    %5393 = vmatmul.bf16.gmra.mxu0 %v5190
    %v5394 = vpop.f32.mrf.mxu0
    %v5395 = vadd.f32 %v5228, %v5394
    %v5396 = vpop.f32.mrf.mxu0
    %v5397 = vadd.f32 %v5228, %v5396
    %5398 = vdwg.mxu0
    %5399 = vmatpush.bf16.msra.mxu0 %v5336
    %5400 = vmatpush.bf16.msra.mxu0 %v5333
    %5401 = vmatpush.bf16.msra.mxu0 %v5330
    %5402 = vmatpush.bf16.msra.mxu0 %v5327
    %5403 = vmatpush.bf16.msra.mxu0 %v5324
    %5404 = vmatpush.bf16.msra.mxu0 %v5321
    %5405 = vmatpush.bf16.msra.mxu0 %v5318
    %5406 = vmatpush.bf16.msra.mxu0 %v5315
    %5407 = vmatmul.bf16.gmra.mxu0 %v5189
    %v5408 = vpop.f32.mrf.mxu0
    %v5409 = vadd.f32 %v5229, %v5408
    %v5410 = vpop.f32.mrf.mxu0
    %v5411 = vadd.f32 %v5229, %v5410
    %5412 = vmatmul.bf16.gmra.mxu0 %v5190
    %v5413 = vpop.f32.mrf.mxu0
    %v5414 = vadd.f32 %v5229, %v5413
    %v5415 = vpop.f32.mrf.mxu0
    %v5416 = vadd.f32 %v5229, %v5415
    %5417 = vdwg.mxu0
    %v5418 = vpack.c.bf16 %v5373, %v5371
    %v5419 = vpack.c.bf16 %v5378, %v5376
    %v5420 = vpack.c.bf16 %v5390, %v5390
    %v5421 = vpack.c.bf16 %v5392, %v5392
    %v5422 = vpack.c.bf16 %v5395, %v5395
    %v5423 = vpack.c.bf16 %v5397, %v5397
    %v5424 = vpack.c.bf16 %v5409, %v5409
    %v5425 = vpack.c.bf16 %v5411, %v5411
    %v5426 = vpack.c.bf16 %v5414, %v5414
    %v5427 = vpack.c.bf16 %v5416, %v5416
    %v5432 = vunpack.c.l.b16 %v5420
    %v5433 = vunpack.c.l.b16 %v5421
    %v5434 = vunpack.c.l.b16 %v5422
    %v5435 = vunpack.c.l.b16 %v5423
    %v5436 = vpack.c.b16 %v5433, %v5432
    %v5437 = vpack.c.b16 %v5435, %v5434
    %v5440 = vunpack.c.l.bf16 %v5436
    %v5441 = vunpack.c.h.bf16 %v5436
    %v5442 = vunpack.c.l.bf16 %v5437
    %v5443 = vunpack.c.h.bf16 %v5437
    %v5444 = vmul.f32 %v5440, %v701
    %v5445 = vmul.f32 %v5441, %v702
    %v5446 = vmul.f32 %v5442, %v703
    %v5447 = vmul.f32 %v5443, %v704
    %v5448 = vmul.f32 %v5440, %v705
    %v5449 = vmul.f32 %v5441, %v706
    %v5450 = vmul.f32 %v5442, %v707
    %v5451 = vmul.f32 %v5443, %v708
    %v5452 = vmul.f32 %v5440, %v709
    %v5453 = vmul.f32 %v5441, %v710
    %v5454 = vmul.f32 %v5442, %v711
    %v5455 = vmul.f32 %v5443, %v712
    %v5456 = vmul.f32 %v5440, %v713
    %v5457 = vmul.f32 %v5441, %v714
    %v5458 = vmul.f32 %v5442, %v715
    %v5459 = vmul.f32 %v5443, %v716
    %v5460 = vmul.f32 %v5440, %v717
    %v5461 = vmul.f32 %v5441, %v718
    %v5462 = vmul.f32 %v5442, %v719
    %v5463 = vmul.f32 %v5443, %v720
    %v5464 = vmul.f32 %v5440, %v721
    %v5465 = vmul.f32 %v5441, %v722
    %v5466 = vmul.f32 %v5442, %v723
    %v5467 = vmul.f32 %v5443, %v724
    %v5468 = vmul.f32 %v5440, %v725
    %v5469 = vmul.f32 %v5441, %v726
    %v5470 = vmul.f32 %v5442, %v727
    %v5471 = vmul.f32 %v5443, %v728
    %v5472 = vmul.f32 %v5440, %v729
    %v5473 = vmul.f32 %v5441, %v730
    %v5474 = vmul.f32 %v5442, %v731
    %v5475 = vmul.f32 %v5443, %v732
    %v5476 = vpack.c.bf16 %v5445, %v5444
    %v5477 = vpack.c.bf16 %v5447, %v5446
    %v5478 = vpack.c.bf16 %v5449, %v5448
    %v5479 = vpack.c.bf16 %v5451, %v5450
    %v5480 = vpack.c.bf16 %v5453, %v5452
    %v5481 = vpack.c.bf16 %v5455, %v5454
    %v5482 = vpack.c.bf16 %v5457, %v5456
    %v5483 = vpack.c.bf16 %v5459, %v5458
    %v5484 = vpack.c.bf16 %v5461, %v5460
    %v5485 = vpack.c.bf16 %v5463, %v5462
    %v5486 = vpack.c.bf16 %v5465, %v5464
    %v5487 = vpack.c.bf16 %v5467, %v5466
    %v5488 = vpack.c.bf16 %v5469, %v5468
    %v5489 = vpack.c.bf16 %v5471, %v5470
    %v5490 = vpack.c.bf16 %v5473, %v5472
    %v5491 = vpack.c.bf16 %v5475, %v5474
    %v5496 = vunpack.c.l.b16 %v5424
    %v5497 = vunpack.c.l.b16 %v5425
    %v5498 = vunpack.c.l.b16 %v5426
    %v5499 = vunpack.c.l.b16 %v5427
    %v5500 = vpack.c.b16 %v5497, %v5496
    %v5501 = vpack.c.b16 %v5499, %v5498
    %v5504 = vunpack.c.l.bf16 %v5500
    %v5505 = vunpack.c.h.bf16 %v5500
    %v5506 = vunpack.c.l.bf16 %v5501
    %v5507 = vunpack.c.h.bf16 %v5501
    %v5508 = vmul.f32 %v5504, %v701
    %v5509 = vmul.f32 %v5505, %v702
    %v5510 = vmul.f32 %v5506, %v703
    %v5511 = vmul.f32 %v5507, %v704
    %v5512 = vmul.f32 %v5504, %v705
    %v5513 = vmul.f32 %v5505, %v706
    %v5514 = vmul.f32 %v5506, %v707
    %v5515 = vmul.f32 %v5507, %v708
    %v5516 = vmul.f32 %v5504, %v709
    %v5517 = vmul.f32 %v5505, %v710
    %v5518 = vmul.f32 %v5506, %v711
    %v5519 = vmul.f32 %v5507, %v712
    %v5520 = vmul.f32 %v5504, %v713
    %v5521 = vmul.f32 %v5505, %v714
    %v5522 = vmul.f32 %v5506, %v715
    %v5523 = vmul.f32 %v5507, %v716
    %v5524 = vmul.f32 %v5504, %v717
    %v5525 = vmul.f32 %v5505, %v718
    %v5526 = vmul.f32 %v5506, %v719
    %v5527 = vmul.f32 %v5507, %v720
    %v5528 = vmul.f32 %v5504, %v721
    %v5529 = vmul.f32 %v5505, %v722
    %v5530 = vmul.f32 %v5506, %v723
    %v5531 = vmul.f32 %v5507, %v724
    %v5532 = vmul.f32 %v5504, %v725
    %v5533 = vmul.f32 %v5505, %v726
    %v5534 = vmul.f32 %v5506, %v727
    %v5535 = vmul.f32 %v5507, %v728
    %v5536 = vmul.f32 %v5504, %v729
    %v5537 = vmul.f32 %v5505, %v730
    %v5538 = vmul.f32 %v5506, %v731
    %v5539 = vmul.f32 %v5507, %v732
    %v5540 = vpack.c.bf16 %v5509, %v5508
    %v5541 = vpack.c.bf16 %v5511, %v5510
    %v5542 = vpack.c.bf16 %v5513, %v5512
    %v5543 = vpack.c.bf16 %v5515, %v5514
    %v5544 = vpack.c.bf16 %v5517, %v5516
    %v5545 = vpack.c.bf16 %v5519, %v5518
    %v5546 = vpack.c.bf16 %v5521, %v5520
    %v5547 = vpack.c.bf16 %v5523, %v5522
    %v5548 = vpack.c.bf16 %v5525, %v5524
    %v5549 = vpack.c.bf16 %v5527, %v5526
    %v5550 = vpack.c.bf16 %v5529, %v5528
    %v5551 = vpack.c.bf16 %v5531, %v5530
    %v5552 = vpack.c.bf16 %v5533, %v5532
    %v5553 = vpack.c.bf16 %v5535, %v5534
    %v5554 = vpack.c.bf16 %v5537, %v5536
    %v5555 = vpack.c.bf16 %v5539, %v5538
    %5556 = vmatpush.bf16.xpose.msra.mxu0 %v5483
    %5557 = vmatpush.bf16.xpose.msra.mxu0 %v5482
    %5558 = vmatpush.bf16.xpose.msra.mxu0 %v5481
    %5559 = vmatpush.bf16.xpose.msra.mxu0 %v5480
    %5560 = vmatpush.bf16.xpose.msra.mxu0 %v5479
    %5561 = vmatpush.bf16.xpose.msra.mxu0 %v5478
    %5562 = vmatpush.bf16.xpose.msra.mxu0 %v5477
    %5563 = vmatpush.bf16.xpose.msra.mxu0 %v5476
    %5564 = vmatmul.bf16.gmra.mxu0 %v5418
    %v5565 = vpop.f32.mrf.mxu0
    %v5566 = vadd.f32 %v408, %v5565
    %v5567 = vpop.f32.mrf.mxu0
    %v5568 = vadd.f32 %v410, %v5567
    %5569 = vmatmul.bf16.gmra.mxu0 %v5419
    %v5570 = vpop.f32.mrf.mxu0
    %v5571 = vadd.f32 %v412, %v5570
    %v5572 = vpop.f32.mrf.mxu0
    %v5573 = vadd.f32 %v414, %v5572
    %5574 = vdwg.mxu0
    %5575 = vmatpush.bf16.xpose.msra.mxu0 %v5491
    %5576 = vmatpush.bf16.xpose.msra.mxu0 %v5490
    %5577 = vmatpush.bf16.xpose.msra.mxu0 %v5489
    %5578 = vmatpush.bf16.xpose.msra.mxu0 %v5488
    %5579 = vmatpush.bf16.xpose.msra.mxu0 %v5487
    %5580 = vmatpush.bf16.xpose.msra.mxu0 %v5486
    %5581 = vmatpush.bf16.xpose.msra.mxu0 %v5485
    %5582 = vmatpush.bf16.xpose.msra.mxu0 %v5484
    %5583 = vmatmul.bf16.gmra.mxu0 %v5418
    %v5584 = vpop.f32.mrf.mxu0
    %v5585 = vadd.f32 %v409, %v5584
    %v5586 = vpop.f32.mrf.mxu0
    %v5587 = vadd.f32 %v411, %v5586
    %5588 = vmatmul.bf16.gmra.mxu0 %v5419
    %v5589 = vpop.f32.mrf.mxu0
    %v5590 = vadd.f32 %v413, %v5589
    %v5591 = vpop.f32.mrf.mxu0
    %v5592 = vadd.f32 %v415, %v5591
    %5593 = vdwg.mxu0
    %v5594 = vmax.f32 %v5566, %v5585
    %5595 = vmax.xlane.f32.xlu0 %v5594
    %v5596 = vpop.xlane.xlu0 %5595
    %v5597 = vmax.f32 %v5568, %v5587
    %5598 = vmax.xlane.f32.xlu0 %v5597
    %v5599 = vpop.xlane.xlu0 %5598
    %v5600 = vmax.f32 %v5571, %v5590
    %5601 = vmax.xlane.f32.xlu0 %v5600
    %v5602 = vpop.xlane.xlu0 %5601
    %v5603 = vmax.f32 %v5573, %v5592
    %5604 = vmax.xlane.f32.xlu0 %v5603
    %v5605 = vpop.xlane.xlu0 %5604
    %v5606 = vsub.f32 %v5566, %v5596
    %v5607 = vsub.f32 %v5585, %v5596
    %v5608 = vsub.f32 %v5568, %v5599
    %v5609 = vsub.f32 %v5587, %v5599
    %v5610 = vsub.f32 %v5571, %v5602
    %v5611 = vsub.f32 %v5590, %v5602
    %v5612 = vsub.f32 %v5573, %v5605
    %v5613 = vsub.f32 %v5592, %v5605
    %v5614 = vmul.f32 %v5606, 1.442695
    %v5615 = vpow.pop %v5614
    %v5616 = vmul.f32 %v5607, 1.442695
    %v5617 = vpow.pop %v5616
    %v5618 = vmul.f32 %v5608, 1.442695
    %v5619 = vpow.pop %v5618
    %v5620 = vmul.f32 %v5609, 1.442695
    %v5621 = vpow.pop %v5620
    %v5622 = vmul.f32 %v5610, 1.442695
    %v5623 = vpow.pop %v5622
    %v5624 = vmul.f32 %v5611, 1.442695
    %v5625 = vpow.pop %v5624
    %v5626 = vmul.f32 %v5612, 1.442695
    %v5627 = vpow.pop %v5626
    %v5628 = vmul.f32 %v5613, 1.442695
    %v5629 = vpow.pop %v5628
    %v5630 = vpack.c.bf16 %v5619, %v5615
    %v5631 = vpack.c.bf16 %v5621, %v5617
    %v5632 = vpack.c.bf16 %v5627, %v5623
    %v5633 = vpack.c.bf16 %v5629, %v5625
    %5634 = vmatpush.bf16.msra.mxu0 %v1033
    %5635 = vmatpush.bf16.msra.mxu0 %v1031
    %5636 = vmatpush.bf16.msra.mxu0 %v1029
    %5637 = vmatpush.bf16.msra.mxu0 %v1027
    %5638 = vmatpush.bf16.msra.mxu0 %v1025
    %5639 = vmatpush.bf16.msra.mxu0 %v1023
    %5640 = vmatpush.bf16.msra.mxu0 %v1021
    %5641 = vmatpush.bf16.msra.mxu0 %v1019
    %5642 = vmatmul.bf16.gmra.mxu0 %v5630
    %v5643 = vpop.f32.mrf.mxu0
    %v5644 = vadd.f32 0.0, %v5643
    %v5645 = vpop.f32.mrf.mxu0
    %v5646 = vadd.f32 0.0, %v5645
    %5647 = vmatmul.bf16.gmra.mxu0 %v5632
    %v5648 = vpop.f32.mrf.mxu0
    %v5649 = vadd.f32 0.0, %v5648
    %v5650 = vpop.f32.mrf.mxu0
    %v5651 = vadd.f32 0.0, %v5650
    %5652 = vdwg.mxu0
    %5653 = vmatpush.bf16.msra.mxu0 %v1049
    %5654 = vmatpush.bf16.msra.mxu0 %v1047
    %5655 = vmatpush.bf16.msra.mxu0 %v1045
    %5656 = vmatpush.bf16.msra.mxu0 %v1043
    %5657 = vmatpush.bf16.msra.mxu0 %v1041
    %5658 = vmatpush.bf16.msra.mxu0 %v1039
    %5659 = vmatpush.bf16.msra.mxu0 %v1037
    %5660 = vmatpush.bf16.msra.mxu0 %v1035
    %5661 = vmatmul.bf16.gmra.mxu0 %v5631
    %v5662 = vpop.f32.mrf.mxu0
    %v5663 = vadd.f32 %v5644, %v5662
    %v5664 = vpop.f32.mrf.mxu0
    %v5665 = vadd.f32 %v5646, %v5664
    %5666 = vmatmul.bf16.gmra.mxu0 %v5633
    %v5667 = vpop.f32.mrf.mxu0
    %v5668 = vadd.f32 %v5649, %v5667
    %v5669 = vpop.f32.mrf.mxu0
    %v5670 = vadd.f32 %v5651, %v5669
    %5671 = vdwg.mxu0
    %5672 = vmatpush.bf16.msra.mxu0 %v1034
    %5673 = vmatpush.bf16.msra.mxu0 %v1032
    %5674 = vmatpush.bf16.msra.mxu0 %v1030
    %5675 = vmatpush.bf16.msra.mxu0 %v1028
    %5676 = vmatpush.bf16.msra.mxu0 %v1026
    %5677 = vmatpush.bf16.msra.mxu0 %v1024
    %5678 = vmatpush.bf16.msra.mxu0 %v1022
    %5679 = vmatpush.bf16.msra.mxu0 %v1020
    %5680 = vmatmul.bf16.gmra.mxu0 %v5630
    %v5681 = vpop.f32.mrf.mxu0
    %v5682 = vadd.f32 0.0, %v5681
    %v5683 = vpop.f32.mrf.mxu0
    %v5684 = vadd.f32 0.0, %v5683
    %5685 = vmatmul.bf16.gmra.mxu0 %v5632
    %v5686 = vpop.f32.mrf.mxu0
    %v5687 = vadd.f32 0.0, %v5686
    %v5688 = vpop.f32.mrf.mxu0
    %v5689 = vadd.f32 0.0, %v5688
    %5690 = vdwg.mxu0
    %5691 = vmatpush.bf16.msra.mxu0 %v1050
    %5692 = vmatpush.bf16.msra.mxu0 %v1048
    %5693 = vmatpush.bf16.msra.mxu0 %v1046
    %5694 = vmatpush.bf16.msra.mxu0 %v1044
    %5695 = vmatpush.bf16.msra.mxu0 %v1042
    %5696 = vmatpush.bf16.msra.mxu0 %v1040
    %5697 = vmatpush.bf16.msra.mxu0 %v1038
    %5698 = vmatpush.bf16.msra.mxu0 %v1036
    %5699 = vmatmul.bf16.gmra.mxu0 %v5631
    %v5700 = vpop.f32.mrf.mxu0
    %v5701 = vadd.f32 %v5682, %v5700
    %v5702 = vpop.f32.mrf.mxu0
    %v5703 = vadd.f32 %v5684, %v5702
    %5704 = vmatmul.bf16.gmra.mxu0 %v5633
    %v5705 = vpop.f32.mrf.mxu0
    %v5706 = vadd.f32 %v5687, %v5705
    %v5707 = vpop.f32.mrf.mxu0
    %v5708 = vadd.f32 %v5689, %v5707
    %5709 = vdwg.mxu0
    %v5710 = vrcp.pop %v5663
    %v5711 = vrcp.pop %v5701
    %v5712 = vrcp.pop %v5665
    %v5713 = vrcp.pop %v5703
    %v5714 = vrcp.pop %v5668
    %v5715 = vrcp.pop %v5706
    %v5716 = vrcp.pop %v5670
    %v5717 = vrcp.pop %v5708
    %v5718 = vmul.f32 %v5615, %v5710
    %v5719 = vmul.f32 %v5617, %v5711
    %v5720 = vmul.f32 %v5619, %v5712
    %v5721 = vmul.f32 %v5621, %v5713
    %v5722 = vmul.f32 %v5623, %v5714
    %v5723 = vmul.f32 %v5625, %v5715
    %v5724 = vmul.f32 %v5627, %v5716
    %v5725 = vmul.f32 %v5629, %v5717
    %v5726 = vpack.c.bf16 %v5720, %v5718
    %v5727 = vpack.c.bf16 %v5721, %v5719
    %v5728 = vpack.c.bf16 %v5724, %v5722
    %v5729 = vpack.c.bf16 %v5725, %v5723
    %5730 = vmatpush.bf16.msra.mxu0 %v5547
    %5731 = vmatpush.bf16.msra.mxu0 %v5546
    %5732 = vmatpush.bf16.msra.mxu0 %v5545
    %5733 = vmatpush.bf16.msra.mxu0 %v5544
    %5734 = vmatpush.bf16.msra.mxu0 %v5543
    %5735 = vmatpush.bf16.msra.mxu0 %v5542
    %5736 = vmatpush.bf16.msra.mxu0 %v5541
    %5737 = vmatpush.bf16.msra.mxu0 %v5540
    %5738 = vmatmul.bf16.gmra.mxu0 %v5726
    %v5739 = vpop.f32.mrf.mxu0
    %v5740 = vadd.f32 0.0, %v5739
    %v5741 = vpop.f32.mrf.mxu0
    %v5742 = vadd.f32 0.0, %v5741
    %5743 = vmatmul.bf16.gmra.mxu0 %v5728
    %v5744 = vpop.f32.mrf.mxu0
    %v5745 = vadd.f32 0.0, %v5744
    %v5746 = vpop.f32.mrf.mxu0
    %v5747 = vadd.f32 0.0, %v5746
    %5748 = vdwg.mxu0
    %5749 = vmatpush.bf16.msra.mxu0 %v5555
    %5750 = vmatpush.bf16.msra.mxu0 %v5554
    %5751 = vmatpush.bf16.msra.mxu0 %v5553
    %5752 = vmatpush.bf16.msra.mxu0 %v5552
    %5753 = vmatpush.bf16.msra.mxu0 %v5551
    %5754 = vmatpush.bf16.msra.mxu0 %v5550
    %5755 = vmatpush.bf16.msra.mxu0 %v5549
    %5756 = vmatpush.bf16.msra.mxu0 %v5548
    %5757 = vmatmul.bf16.gmra.mxu0 %v5727
    %v5758 = vpop.f32.mrf.mxu0
    %v5759 = vadd.f32 %v5740, %v5758
    %v5760 = vpop.f32.mrf.mxu0
    %v5761 = vadd.f32 %v5742, %v5760
    %5762 = vmatmul.bf16.gmra.mxu0 %v5729
    %v5763 = vpop.f32.mrf.mxu0
    %v5764 = vadd.f32 %v5745, %v5763
    %v5765 = vpop.f32.mrf.mxu0
    %v5766 = vadd.f32 %v5747, %v5765
    %5767 = vdwg.mxu0
    %v5768 = vpack.c.bf16 %v5761, %v5759
    %v5769 = vpack.c.bf16 %v5766, %v5764
    %s5770 = scalar_lea.vmem [#allocation13], 192
    %v5771 = vld [vmem:[%s5770] sm:$0xf]
    %v5772 = vld [vmem:[%s5770 + $0x4] sm:$0xf]
    %v5773 = vld [vmem:[%s5770 + $0x8] sm:$0xf]
    %v5774 = vld [vmem:[%s5770 + $0xc] sm:$0xf]
    %v5775 = vld [vmem:[%s5770 + $0x10] sm:$0xf]
    %v5776 = vld [vmem:[%s5770 + $0x14] sm:$0xf]
    %v5777 = vld [vmem:[%s5770 + $0x18] sm:$0xf]
    %v5778 = vld [vmem:[%s5770 + $0x1c] sm:$0xf]
    %v5779 = vld [vmem:[%s5770 + $0x20] sm:$0xf]
    %v5780 = vld [vmem:[%s5770 + $0x24] sm:$0xf]
    %v5781 = vld [vmem:[%s5770 + $0x28] sm:$0xf]
    %v5782 = vld [vmem:[%s5770 + $0x2c] sm:$0xf]
    %v5783 = vld [vmem:[%s5770 + $0x30] sm:$0xf]
    %v5784 = vld [vmem:[%s5770 + $0x34] sm:$0xf]
    %v5785 = vld [vmem:[%s5770 + $0x38] sm:$0xf]
    %v5786 = vld [vmem:[%s5770 + $0x3c] sm:$0xf]
    %s5787 = scalar_lea.vmem [#allocation14], 3
    %v5788 = vld [vmem:[%s5787] sm:$0x1]
    %v5790 = vperm.slane %v5788, 0
    %v5808 = vunpack.c.l.b16 %v5771
    %v5809 = vunpack.c.l.b16 %v5772
    %v5810 = vunpack.c.l.b16 %v5773
    %v5811 = vunpack.c.l.b16 %v5774
    %v5812 = vunpack.c.l.b16 %v5775
    %v5813 = vunpack.c.l.b16 %v5776
    %v5814 = vunpack.c.l.b16 %v5777
    %v5815 = vunpack.c.l.b16 %v5778
    %v5816 = vunpack.c.l.b16 %v5779
    %v5817 = vunpack.c.l.b16 %v5780
    %v5818 = vunpack.c.l.b16 %v5781
    %v5819 = vunpack.c.l.b16 %v5782
    %v5820 = vunpack.c.l.b16 %v5783
    %v5821 = vunpack.c.l.b16 %v5784
    %v5822 = vunpack.c.l.b16 %v5785
    %v5823 = vunpack.c.l.b16 %v5786
    %v5824 = vpack.c.b16 %v5809, %v5808
    %v5825 = vpack.c.b16 %v5811, %v5810
    %v5826 = vpack.c.b16 %v5813, %v5812
    %v5827 = vpack.c.b16 %v5815, %v5814
    %v5828 = vpack.c.b16 %v5817, %v5816
    %v5829 = vpack.c.b16 %v5819, %v5818
    %v5830 = vpack.c.b16 %v5821, %v5820
    %v5831 = vpack.c.b16 %v5823, %v5822
    %5840 = vmatpush.bf16.msra.mxu0 %v5831
    %5841 = vmatpush.bf16.msra.mxu0 %v5830
    %5842 = vmatpush.bf16.msra.mxu0 %v5829
    %5843 = vmatpush.bf16.msra.mxu0 %v5828
    %5844 = vmatpush.bf16.msra.mxu0 %v5827
    %5845 = vmatpush.bf16.msra.mxu0 %v5826
    %5846 = vmatpush.bf16.msra.mxu0 %v5825
    %5847 = vmatpush.bf16.msra.mxu0 %v5824
    %5848 = vmatmul.bf16.gmra.mxu0 %v5768
    %v5849 = vpop.f32.mrf.mxu0
    %v5850 = vadd.f32 %v5790, %v5849
    %v5851 = vpop.f32.mrf.mxu0
    %v5852 = vadd.f32 %v5790, %v5851
    %5853 = vmatmul.bf16.gmra.mxu0 %v5769
    %v5854 = vpop.f32.mrf.mxu0
    %v5855 = vadd.f32 %v5790, %v5854
    %v5856 = vpop.f32.mrf.mxu0
    %v5857 = vadd.f32 %v5790, %v5856
    %5858 = vdwg.mxu0
    %v5859 = vadd.f32 %v5185, %v5850
    %v5860 = vadd.f32 %v5186, %v5852
    %v5861 = vadd.f32 %v5187, %v5855
    %v5862 = vadd.f32 %v5188, %v5857
    %s5863 = scalar_lea.vmem [#allocation16], 3
    %v5864 = vld [vmem:[%s5863] sm:$0x1]
    %s5865 = scalar_lea.vmem [#allocation17], 3
    %v5866 = vld [vmem:[%s5865] sm:$0x1]
    %5867 = vadd.xlane.f32.xlu0 %v5859
    %v5868 = vpop.xlane.xlu0 %5867
    %5869 = vadd.xlane.f32.xlu0 %v5860
    %v5870 = vpop.xlane.xlu0 %5869
    %5871 = vadd.xlane.f32.xlu0 %v5861
    %v5872 = vpop.xlane.xlu0 %5871
    %5873 = vadd.xlane.f32.xlu0 %v5862
    %v5874 = vpop.xlane.xlu0 %5873
    %v5875 = vmul.f32 %v5868, %v1326
    %v5876 = vmul.f32 %v5870, %v1326
    %v5877 = vmul.f32 %v5872, %v1326
    %v5878 = vmul.f32 %v5874, %v1326
    %v5879 = vsub.f32 %v5859, %v5875
    %v5880 = vsub.f32 %v5860, %v5876
    %v5881 = vsub.f32 %v5861, %v5877
    %v5882 = vsub.f32 %v5862, %v5878
    %v5883 = vmul.f32 %v5879, %v5879
    %v5884 = vmul.f32 %v5880, %v5880
    %v5885 = vmul.f32 %v5881, %v5881
    %v5886 = vmul.f32 %v5882, %v5882
    %5887 = vadd.xlane.f32.xlu0 %v5883
    %v5888 = vpop.xlane.xlu0 %5887
    %5889 = vadd.xlane.f32.xlu0 %v5884
    %v5890 = vpop.xlane.xlu0 %5889
    %5891 = vadd.xlane.f32.xlu0 %v5885
    %v5892 = vpop.xlane.xlu0 %5891
    %5893 = vadd.xlane.f32.xlu0 %v5886
    %v5894 = vpop.xlane.xlu0 %5893
    %v5895 = vmul.f32 %v5888, %v1326
    %v5896 = vmul.f32 %v5890, %v1326
    %v5897 = vmul.f32 %v5892, %v1326
    %v5898 = vmul.f32 %v5894, %v1326
    %v5899 = vadd.f32 %v5895, 1e-05
    %v5900 = vadd.f32 %v5896, 1e-05
    %v5901 = vadd.f32 %v5897, 1e-05
    %v5902 = vadd.f32 %v5898, 1e-05
    %v5903 = vrsqrt.pop %v5899
    %v5904 = vmul.f32 %v5903, %v5899
    %v5905 = vmul.f32 %v5904, %v5903
    %v5906 = vmul.f32 0.5, %v5905
    %v5907 = vsub.f32 1.5, %v5906
    %v5908 = vmul.f32 %v5903, %v5907
    %vm5909 = vweird.f32 %v5899
    %vm5910 = vweird.f32 %v5903
    %vm5911 = vmor %vm5909, %vm5910
    %v5912 = vsel %vm5911, %v5903, %v5908
    %v5913 = vrsqrt.pop %v5900
    %v5914 = vmul.f32 %v5913, %v5900
    %v5915 = vmul.f32 %v5914, %v5913
    %v5916 = vmul.f32 0.5, %v5915
    %v5917 = vsub.f32 1.5, %v5916
    %v5918 = vmul.f32 %v5913, %v5917
    %vm5919 = vweird.f32 %v5900
    %vm5920 = vweird.f32 %v5913
    %vm5921 = vmor %vm5919, %vm5920
    %v5922 = vsel %vm5921, %v5913, %v5918
    %v5923 = vrsqrt.pop %v5901
    %v5924 = vmul.f32 %v5923, %v5901
    %v5925 = vmul.f32 %v5924, %v5923
    %v5926 = vmul.f32 0.5, %v5925
    %v5927 = vsub.f32 1.5, %v5926
    %v5928 = vmul.f32 %v5923, %v5927
    %vm5929 = vweird.f32 %v5901
    %vm5930 = vweird.f32 %v5923
    %vm5931 = vmor %vm5929, %vm5930
    %v5932 = vsel %vm5931, %v5923, %v5928
    %v5933 = vrsqrt.pop %v5902
    %v5934 = vmul.f32 %v5933, %v5902
    %v5935 = vmul.f32 %v5934, %v5933
    %v5936 = vmul.f32 0.5, %v5935
    %v5937 = vsub.f32 1.5, %v5936
    %v5938 = vmul.f32 %v5933, %v5937
    %vm5939 = vweird.f32 %v5902
    %vm5940 = vweird.f32 %v5933
    %vm5941 = vmor %vm5939, %vm5940
    %v5942 = vsel %vm5941, %v5933, %v5938
    %v5943 = vmul.f32 %v5879, %v5912
    %v5944 = vmul.f32 %v5880, %v5922
    %v5945 = vmul.f32 %v5881, %v5932
    %v5946 = vmul.f32 %v5882, %v5942
    %v5948 = vperm.slane %v5864, 0
    %v5950 = vmul.f32 %v5943, %v5948
    %v5951 = vmul.f32 %v5944, %v5948
    %v5952 = vmul.f32 %v5945, %v5948
    %v5953 = vmul.f32 %v5946, %v5948
    %v5955 = vperm.slane %v5866, 0
    %v5957 = vadd.f32 %v5950, %v5955
    %v5958 = vadd.f32 %v5951, %v5955
    %v5959 = vadd.f32 %v5952, %v5955
    %v5960 = vadd.f32 %v5953, %v5955
    %v5961 = vpack.c.bf16 %v5958, %v5957
    %v5962 = vpack.c.bf16 %v5960, %v5959
    %s5963 = scalar_lea.vmem [#allocation22], 768
    %v5964 = vld [vmem:[%s5963] sm:$0xff]
    %v5965 = vld [vmem:[%s5963 + $0x8] sm:$0xff]
    %v5966 = vld [vmem:[%s5963 + $0x10] sm:$0xff]
    %v5967 = vld [vmem:[%s5963 + $0x18] sm:$0xff]
    %v5968 = vld [vmem:[%s5963 + $0x20] sm:$0xff]
    %v5969 = vld [vmem:[%s5963 + $0x28] sm:$0xff]
    %v5970 = vld [vmem:[%s5963 + $0x30] sm:$0xff]
    %v5971 = vld [vmem:[%s5963 + $0x38] sm:$0xff]
    %v5972 = vld [vmem:[%s5963 + $0x40] sm:$0xff]
    %v5973 = vld [vmem:[%s5963 + $0x48] sm:$0xff]
    %v5974 = vld [vmem:[%s5963 + $0x50] sm:$0xff]
    %v5975 = vld [vmem:[%s5963 + $0x58] sm:$0xff]
    %v5976 = vld [vmem:[%s5963 + $0x60] sm:$0xff]
    %v5977 = vld [vmem:[%s5963 + $0x68] sm:$0xff]
    %v5978 = vld [vmem:[%s5963 + $0x70] sm:$0xff]
    %v5979 = vld [vmem:[%s5963 + $0x78] sm:$0xff]
    %v5980 = vld [vmem:[%s5963 + $0x80] sm:$0xff]
    %v5981 = vld [vmem:[%s5963 + $0x88] sm:$0xff]
    %v5982 = vld [vmem:[%s5963 + $0x90] sm:$0xff]
    %v5983 = vld [vmem:[%s5963 + $0x98] sm:$0xff]
    %v5984 = vld [vmem:[%s5963 + $0xa0] sm:$0xff]
    %v5985 = vld [vmem:[%s5963 + $0xa8] sm:$0xff]
    %v5986 = vld [vmem:[%s5963 + $0xb0] sm:$0xff]
    %v5987 = vld [vmem:[%s5963 + $0xb8] sm:$0xff]
    %v5988 = vld [vmem:[%s5963 + $0xc0] sm:$0xff]
    %v5989 = vld [vmem:[%s5963 + $0xc8] sm:$0xff]
    %v5990 = vld [vmem:[%s5963 + $0xd0] sm:$0xff]
    %v5991 = vld [vmem:[%s5963 + $0xd8] sm:$0xff]
    %v5992 = vld [vmem:[%s5963 + $0xe0] sm:$0xff]
    %v5993 = vld [vmem:[%s5963 + $0xe8] sm:$0xff]
    %v5994 = vld [vmem:[%s5963 + $0xf0] sm:$0xff]
    %v5995 = vld [vmem:[%s5963 + $0xf8] sm:$0xff]
    %s5996 = scalar_lea.vmem %s15, 12
    %v5997 = vld [vmem:[%s5996] sm:$0xf]
    %v5999 = vperm.slane %v5997, 0
    %v6000 = vperm.slane %v5997, 1
    %v6001 = vperm.slane %v5997, 2
    %v6002 = vperm.slane %v5997, 3
    %v6039 = vunpack.c.l.b16 %v5964
    %v6040 = vunpack.c.h.b16 %v5964
    %v6041 = vunpack.c.l.b16 %v5965
    %v6042 = vunpack.c.h.b16 %v5965
    %v6043 = vunpack.c.l.b16 %v5966
    %v6044 = vunpack.c.h.b16 %v5966
    %v6045 = vunpack.c.l.b16 %v5967
    %v6046 = vunpack.c.h.b16 %v5967
    %v6047 = vunpack.c.l.b16 %v5968
    %v6048 = vunpack.c.h.b16 %v5968
    %v6049 = vunpack.c.l.b16 %v5969
    %v6050 = vunpack.c.h.b16 %v5969
    %v6051 = vunpack.c.l.b16 %v5970
    %v6052 = vunpack.c.h.b16 %v5970
    %v6053 = vunpack.c.l.b16 %v5971
    %v6054 = vunpack.c.h.b16 %v5971
    %v6055 = vunpack.c.l.b16 %v5972
    %v6056 = vunpack.c.h.b16 %v5972
    %v6057 = vunpack.c.l.b16 %v5973
    %v6058 = vunpack.c.h.b16 %v5973
    %v6059 = vunpack.c.l.b16 %v5974
    %v6060 = vunpack.c.h.b16 %v5974
    %v6061 = vunpack.c.l.b16 %v5975
    %v6062 = vunpack.c.h.b16 %v5975
    %v6063 = vunpack.c.l.b16 %v5976
    %v6064 = vunpack.c.h.b16 %v5976
    %v6065 = vunpack.c.l.b16 %v5977
    %v6066 = vunpack.c.h.b16 %v5977
    %v6067 = vunpack.c.l.b16 %v5978
    %v6068 = vunpack.c.h.b16 %v5978
    %v6069 = vunpack.c.l.b16 %v5979
    %v6070 = vunpack.c.h.b16 %v5979
    %v6071 = vunpack.c.l.b16 %v5980
    %v6072 = vunpack.c.h.b16 %v5980
    %v6073 = vunpack.c.l.b16 %v5981
    %v6074 = vunpack.c.h.b16 %v5981
    %v6075 = vunpack.c.l.b16 %v5982
    %v6076 = vunpack.c.h.b16 %v5982
    %v6077 = vunpack.c.l.b16 %v5983
    %v6078 = vunpack.c.h.b16 %v5983
    %v6079 = vunpack.c.l.b16 %v5984
    %v6080 = vunpack.c.h.b16 %v5984
    %v6081 = vunpack.c.l.b16 %v5985
    %v6082 = vunpack.c.h.b16 %v5985
    %v6083 = vunpack.c.l.b16 %v5986
    %v6084 = vunpack.c.h.b16 %v5986
    %v6085 = vunpack.c.l.b16 %v5987
    %v6086 = vunpack.c.h.b16 %v5987
    %v6087 = vunpack.c.l.b16 %v5988
    %v6088 = vunpack.c.h.b16 %v5988
    %v6089 = vunpack.c.l.b16 %v5989
    %v6090 = vunpack.c.h.b16 %v5989
    %v6091 = vunpack.c.l.b16 %v5990
    %v6092 = vunpack.c.h.b16 %v5990
    %v6093 = vunpack.c.l.b16 %v5991
    %v6094 = vunpack.c.h.b16 %v5991
    %v6095 = vunpack.c.l.b16 %v5992
    %v6096 = vunpack.c.h.b16 %v5992
    %v6097 = vunpack.c.l.b16 %v5993
    %v6098 = vunpack.c.h.b16 %v5993
    %v6099 = vunpack.c.l.b16 %v5994
    %v6100 = vunpack.c.h.b16 %v5994
    %v6101 = vunpack.c.l.b16 %v5995
    %v6102 = vunpack.c.h.b16 %v5995
    %v6103 = vpack.c.b16 %v6043, %v6039
    %v6104 = vpack.c.b16 %v6044, %v6040
    %v6105 = vpack.c.b16 %v6045, %v6041
    %v6106 = vpack.c.b16 %v6046, %v6042
    %v6107 = vpack.c.b16 %v6051, %v6047
    %v6108 = vpack.c.b16 %v6052, %v6048
    %v6109 = vpack.c.b16 %v6053, %v6049
    %v6110 = vpack.c.b16 %v6054, %v6050
    %v6111 = vpack.c.b16 %v6059, %v6055
    %v6112 = vpack.c.b16 %v6060, %v6056
    %v6113 = vpack.c.b16 %v6061, %v6057
    %v6114 = vpack.c.b16 %v6062, %v6058
    %v6115 = vpack.c.b16 %v6067, %v6063
    %v6116 = vpack.c.b16 %v6068, %v6064
    %v6117 = vpack.c.b16 %v6069, %v6065
    %v6118 = vpack.c.b16 %v6070, %v6066
    %v6119 = vpack.c.b16 %v6075, %v6071
    %v6120 = vpack.c.b16 %v6076, %v6072
    %v6121 = vpack.c.b16 %v6077, %v6073
    %v6122 = vpack.c.b16 %v6078, %v6074
    %v6123 = vpack.c.b16 %v6083, %v6079
    %v6124 = vpack.c.b16 %v6084, %v6080
    %v6125 = vpack.c.b16 %v6085, %v6081
    %v6126 = vpack.c.b16 %v6086, %v6082
    %v6127 = vpack.c.b16 %v6091, %v6087
    %v6128 = vpack.c.b16 %v6092, %v6088
    %v6129 = vpack.c.b16 %v6093, %v6089
    %v6130 = vpack.c.b16 %v6094, %v6090
    %v6131 = vpack.c.b16 %v6099, %v6095
    %v6132 = vpack.c.b16 %v6100, %v6096
    %v6133 = vpack.c.b16 %v6101, %v6097
    %v6134 = vpack.c.b16 %v6102, %v6098
    %6167 = vmatpush.bf16.msra.mxu0 %v6131
    %6168 = vmatpush.bf16.msra.mxu0 %v6127
    %6169 = vmatpush.bf16.msra.mxu0 %v6123
    %6170 = vmatpush.bf16.msra.mxu0 %v6119
    %6171 = vmatpush.bf16.msra.mxu0 %v6115
    %6172 = vmatpush.bf16.msra.mxu0 %v6111
    %6173 = vmatpush.bf16.msra.mxu0 %v6107
    %6174 = vmatpush.bf16.msra.mxu0 %v6103
    %6175 = vmatmul.bf16.gmra.mxu0 %v5961
    %v6176 = vpop.f32.mrf.mxu0
    %v6177 = vadd.f32 %v5999, %v6176
    %v6178 = vpop.f32.mrf.mxu0
    %v6179 = vadd.f32 %v5999, %v6178
    %6180 = vmatmul.bf16.gmra.mxu0 %v5962
    %v6181 = vpop.f32.mrf.mxu0
    %v6182 = vadd.f32 %v5999, %v6181
    %v6183 = vpop.f32.mrf.mxu0
    %v6184 = vadd.f32 %v5999, %v6183
    %6185 = vdwg.mxu0
    %6186 = vmatpush.bf16.msra.mxu0 %v6132
    %6187 = vmatpush.bf16.msra.mxu0 %v6128
    %6188 = vmatpush.bf16.msra.mxu0 %v6124
    %6189 = vmatpush.bf16.msra.mxu0 %v6120
    %6190 = vmatpush.bf16.msra.mxu0 %v6116
    %6191 = vmatpush.bf16.msra.mxu0 %v6112
    %6192 = vmatpush.bf16.msra.mxu0 %v6108
    %6193 = vmatpush.bf16.msra.mxu0 %v6104
    %6194 = vmatmul.bf16.gmra.mxu0 %v5961
    %v6195 = vpop.f32.mrf.mxu0
    %v6196 = vadd.f32 %v6000, %v6195
    %v6197 = vpop.f32.mrf.mxu0
    %v6198 = vadd.f32 %v6000, %v6197
    %6199 = vmatmul.bf16.gmra.mxu0 %v5962
    %v6200 = vpop.f32.mrf.mxu0
    %v6201 = vadd.f32 %v6000, %v6200
    %v6202 = vpop.f32.mrf.mxu0
    %v6203 = vadd.f32 %v6000, %v6202
    %6204 = vdwg.mxu0
    %6205 = vmatpush.bf16.msra.mxu0 %v6133
    %6206 = vmatpush.bf16.msra.mxu0 %v6129
    %6207 = vmatpush.bf16.msra.mxu0 %v6125
    %6208 = vmatpush.bf16.msra.mxu0 %v6121
    %6209 = vmatpush.bf16.msra.mxu0 %v6117
    %6210 = vmatpush.bf16.msra.mxu0 %v6113
    %6211 = vmatpush.bf16.msra.mxu0 %v6109
    %6212 = vmatpush.bf16.msra.mxu0 %v6105
    %6213 = vmatmul.bf16.gmra.mxu0 %v5961
    %v6214 = vpop.f32.mrf.mxu0
    %v6215 = vadd.f32 %v6001, %v6214
    %v6216 = vpop.f32.mrf.mxu0
    %v6217 = vadd.f32 %v6001, %v6216
    %6218 = vmatmul.bf16.gmra.mxu0 %v5962
    %v6219 = vpop.f32.mrf.mxu0
    %v6220 = vadd.f32 %v6001, %v6219
    %v6221 = vpop.f32.mrf.mxu0
    %v6222 = vadd.f32 %v6001, %v6221
    %6223 = vdwg.mxu0
    %6224 = vmatpush.bf16.msra.mxu0 %v6134
    %6225 = vmatpush.bf16.msra.mxu0 %v6130
    %6226 = vmatpush.bf16.msra.mxu0 %v6126
    %6227 = vmatpush.bf16.msra.mxu0 %v6122
    %6228 = vmatpush.bf16.msra.mxu0 %v6118
    %6229 = vmatpush.bf16.msra.mxu0 %v6114
    %6230 = vmatpush.bf16.msra.mxu0 %v6110
    %6231 = vmatpush.bf16.msra.mxu0 %v6106
    %6232 = vmatmul.bf16.gmra.mxu0 %v5961
    %v6233 = vpop.f32.mrf.mxu0
    %v6234 = vadd.f32 %v6002, %v6233
    %v6235 = vpop.f32.mrf.mxu0
    %v6236 = vadd.f32 %v6002, %v6235
    %6237 = vmatmul.bf16.gmra.mxu0 %v5962
    %v6238 = vpop.f32.mrf.mxu0
    %v6239 = vadd.f32 %v6002, %v6238
    %v6240 = vpop.f32.mrf.mxu0
    %v6241 = vadd.f32 %v6002, %v6240
    %6242 = vdwg.mxu0
    %v6243 = vmax.f32 %v6177, 0.0
    %v6244 = vmax.f32 %v6196, 0.0
    %v6245 = vmax.f32 %v6215, 0.0
    %v6246 = vmax.f32 %v6234, 0.0
    %v6247 = vmax.f32 %v6179, 0.0
    %v6248 = vmax.f32 %v6198, 0.0
    %v6249 = vmax.f32 %v6217, 0.0
    %v6250 = vmax.f32 %v6236, 0.0
    %v6251 = vmax.f32 %v6182, 0.0
    %v6252 = vmax.f32 %v6201, 0.0
    %v6253 = vmax.f32 %v6220, 0.0
    %v6254 = vmax.f32 %v6239, 0.0
    %v6255 = vmax.f32 %v6184, 0.0
    %v6256 = vmax.f32 %v6203, 0.0
    %v6257 = vmax.f32 %v6222, 0.0
    %v6258 = vmax.f32 %v6241, 0.0
    %v6259 = vpack.c.bf16 %v6247, %v6243
    %v6260 = vpack.c.bf16 %v6248, %v6244
    %v6261 = vpack.c.bf16 %v6249, %v6245
    %v6262 = vpack.c.bf16 %v6250, %v6246
    %v6263 = vpack.c.bf16 %v6255, %v6251
    %v6264 = vpack.c.bf16 %v6256, %v6252
    %v6265 = vpack.c.bf16 %v6257, %v6253
    %v6266 = vpack.c.bf16 %v6258, %v6254
    %s6267 = scalar_lea.vmem [#allocation23], 768
    %v6268 = vld [vmem:[%s6267] sm:$0xf]
    %v6269 = vld [vmem:[%s6267 + $0x4] sm:$0xf]
    %v6270 = vld [vmem:[%s6267 + $0x8] sm:$0xf]
    %v6271 = vld [vmem:[%s6267 + $0xc] sm:$0xf]
    %v6272 = vld [vmem:[%s6267 + $0x10] sm:$0xf]
    %v6273 = vld [vmem:[%s6267 + $0x14] sm:$0xf]
    %v6274 = vld [vmem:[%s6267 + $0x18] sm:$0xf]
    %v6275 = vld [vmem:[%s6267 + $0x1c] sm:$0xf]
    %v6276 = vld [vmem:[%s6267 + $0x20] sm:$0xf]
    %v6277 = vld [vmem:[%s6267 + $0x24] sm:$0xf]
    %v6278 = vld [vmem:[%s6267 + $0x28] sm:$0xf]
    %v6279 = vld [vmem:[%s6267 + $0x2c] sm:$0xf]
    %v6280 = vld [vmem:[%s6267 + $0x30] sm:$0xf]
    %v6281 = vld [vmem:[%s6267 + $0x34] sm:$0xf]
    %v6282 = vld [vmem:[%s6267 + $0x38] sm:$0xf]
    %v6283 = vld [vmem:[%s6267 + $0x3c] sm:$0xf]
    %v6284 = vld [vmem:[%s6267 + $0x40] sm:$0xf]
    %v6285 = vld [vmem:[%s6267 + $0x44] sm:$0xf]
    %v6286 = vld [vmem:[%s6267 + $0x48] sm:$0xf]
    %v6287 = vld [vmem:[%s6267 + $0x4c] sm:$0xf]
    %v6288 = vld [vmem:[%s6267 + $0x50] sm:$0xf]
    %v6289 = vld [vmem:[%s6267 + $0x54] sm:$0xf]
    %v6290 = vld [vmem:[%s6267 + $0x58] sm:$0xf]
    %v6291 = vld [vmem:[%s6267 + $0x5c] sm:$0xf]
    %v6292 = vld [vmem:[%s6267 + $0x60] sm:$0xf]
    %v6293 = vld [vmem:[%s6267 + $0x64] sm:$0xf]
    %v6294 = vld [vmem:[%s6267 + $0x68] sm:$0xf]
    %v6295 = vld [vmem:[%s6267 + $0x6c] sm:$0xf]
    %v6296 = vld [vmem:[%s6267 + $0x70] sm:$0xf]
    %v6297 = vld [vmem:[%s6267 + $0x74] sm:$0xf]
    %v6298 = vld [vmem:[%s6267 + $0x78] sm:$0xf]
    %v6299 = vld [vmem:[%s6267 + $0x7c] sm:$0xf]
    %v6300 = vld [vmem:[%s6267 + $0x80] sm:$0xf]
    %v6301 = vld [vmem:[%s6267 + $0x84] sm:$0xf]
    %v6302 = vld [vmem:[%s6267 + $0x88] sm:$0xf]
    %v6303 = vld [vmem:[%s6267 + $0x8c] sm:$0xf]
    %v6304 = vld [vmem:[%s6267 + $0x90] sm:$0xf]
    %v6305 = vld [vmem:[%s6267 + $0x94] sm:$0xf]
    %v6306 = vld [vmem:[%s6267 + $0x98] sm:$0xf]
    %v6307 = vld [vmem:[%s6267 + $0x9c] sm:$0xf]
    %v6308 = vld [vmem:[%s6267 + $0xa0] sm:$0xf]
    %v6309 = vld [vmem:[%s6267 + $0xa4] sm:$0xf]
    %v6310 = vld [vmem:[%s6267 + $0xa8] sm:$0xf]
    %v6311 = vld [vmem:[%s6267 + $0xac] sm:$0xf]
    %v6312 = vld [vmem:[%s6267 + $0xb0] sm:$0xf]
    %v6313 = vld [vmem:[%s6267 + $0xb4] sm:$0xf]
    %v6314 = vld [vmem:[%s6267 + $0xb8] sm:$0xf]
    %v6315 = vld [vmem:[%s6267 + $0xbc] sm:$0xf]
    %v6316 = vld [vmem:[%s6267 + $0xc0] sm:$0xf]
    %v6317 = vld [vmem:[%s6267 + $0xc4] sm:$0xf]
    %v6318 = vld [vmem:[%s6267 + $0xc8] sm:$0xf]
    %v6319 = vld [vmem:[%s6267 + $0xcc] sm:$0xf]
    %v6320 = vld [vmem:[%s6267 + $0xd0] sm:$0xf]
    %v6321 = vld [vmem:[%s6267 + $0xd4] sm:$0xf]
    %v6322 = vld [vmem:[%s6267 + $0xd8] sm:$0xf]
    %v6323 = vld [vmem:[%s6267 + $0xdc] sm:$0xf]
    %v6324 = vld [vmem:[%s6267 + $0xe0] sm:$0xf]
    %v6325 = vld [vmem:[%s6267 + $0xe4] sm:$0xf]
    %v6326 = vld [vmem:[%s6267 + $0xe8] sm:$0xf]
    %v6327 = vld [vmem:[%s6267 + $0xec] sm:$0xf]
    %v6328 = vld [vmem:[%s6267 + $0xf0] sm:$0xf]
    %v6329 = vld [vmem:[%s6267 + $0xf4] sm:$0xf]
    %v6330 = vld [vmem:[%s6267 + $0xf8] sm:$0xf]
    %v6331 = vld [vmem:[%s6267 + $0xfc] sm:$0xf]
    %s6332 = scalar_lea.vmem [#allocation25], 3
    %v6333 = vld [vmem:[%s6332] sm:$0x1]
    %v6335 = vperm.slane %v6333, 0
    %v6401 = vunpack.c.l.b16 %v6268
    %v6402 = vunpack.c.l.b16 %v6269
    %v6403 = vunpack.c.l.b16 %v6270
    %v6404 = vunpack.c.l.b16 %v6271
    %v6405 = vunpack.c.l.b16 %v6272
    %v6406 = vunpack.c.l.b16 %v6273
    %v6407 = vunpack.c.l.b16 %v6274
    %v6408 = vunpack.c.l.b16 %v6275
    %v6409 = vunpack.c.l.b16 %v6276
    %v6410 = vunpack.c.l.b16 %v6277
    %v6411 = vunpack.c.l.b16 %v6278
    %v6412 = vunpack.c.l.b16 %v6279
    %v6413 = vunpack.c.l.b16 %v6280
    %v6414 = vunpack.c.l.b16 %v6281
    %v6415 = vunpack.c.l.b16 %v6282
    %v6416 = vunpack.c.l.b16 %v6283
    %v6417 = vunpack.c.l.b16 %v6284
    %v6418 = vunpack.c.l.b16 %v6285
    %v6419 = vunpack.c.l.b16 %v6286
    %v6420 = vunpack.c.l.b16 %v6287
    %v6421 = vunpack.c.l.b16 %v6288
    %v6422 = vunpack.c.l.b16 %v6289
    %v6423 = vunpack.c.l.b16 %v6290
    %v6424 = vunpack.c.l.b16 %v6291
    %v6425 = vunpack.c.l.b16 %v6292
    %v6426 = vunpack.c.l.b16 %v6293
    %v6427 = vunpack.c.l.b16 %v6294
    %v6428 = vunpack.c.l.b16 %v6295
    %v6429 = vunpack.c.l.b16 %v6296
    %v6430 = vunpack.c.l.b16 %v6297
    %v6431 = vunpack.c.l.b16 %v6298
    %v6432 = vunpack.c.l.b16 %v6299
    %v6433 = vunpack.c.l.b16 %v6300
    %v6434 = vunpack.c.l.b16 %v6301
    %v6435 = vunpack.c.l.b16 %v6302
    %v6436 = vunpack.c.l.b16 %v6303
    %v6437 = vunpack.c.l.b16 %v6304
    %v6438 = vunpack.c.l.b16 %v6305
    %v6439 = vunpack.c.l.b16 %v6306
    %v6440 = vunpack.c.l.b16 %v6307
    %v6441 = vunpack.c.l.b16 %v6308
    %v6442 = vunpack.c.l.b16 %v6309
    %v6443 = vunpack.c.l.b16 %v6310
    %v6444 = vunpack.c.l.b16 %v6311
    %v6445 = vunpack.c.l.b16 %v6312
    %v6446 = vunpack.c.l.b16 %v6313
    %v6447 = vunpack.c.l.b16 %v6314
    %v6448 = vunpack.c.l.b16 %v6315
    %v6449 = vunpack.c.l.b16 %v6316
    %v6450 = vunpack.c.l.b16 %v6317
    %v6451 = vunpack.c.l.b16 %v6318
    %v6452 = vunpack.c.l.b16 %v6319
    %v6453 = vunpack.c.l.b16 %v6320
    %v6454 = vunpack.c.l.b16 %v6321
    %v6455 = vunpack.c.l.b16 %v6322
    %v6456 = vunpack.c.l.b16 %v6323
    %v6457 = vunpack.c.l.b16 %v6324
    %v6458 = vunpack.c.l.b16 %v6325
    %v6459 = vunpack.c.l.b16 %v6326
    %v6460 = vunpack.c.l.b16 %v6327
    %v6461 = vunpack.c.l.b16 %v6328
    %v6462 = vunpack.c.l.b16 %v6329
    %v6463 = vunpack.c.l.b16 %v6330
    %v6464 = vunpack.c.l.b16 %v6331
    %v6465 = vpack.c.b16 %v6402, %v6401
    %v6466 = vpack.c.b16 %v6404, %v6403
    %v6467 = vpack.c.b16 %v6406, %v6405
    %v6468 = vpack.c.b16 %v6408, %v6407
    %v6469 = vpack.c.b16 %v6410, %v6409
    %v6470 = vpack.c.b16 %v6412, %v6411
    %v6471 = vpack.c.b16 %v6414, %v6413
    %v6472 = vpack.c.b16 %v6416, %v6415
    %v6473 = vpack.c.b16 %v6418, %v6417
    %v6474 = vpack.c.b16 %v6420, %v6419
    %v6475 = vpack.c.b16 %v6422, %v6421
    %v6476 = vpack.c.b16 %v6424, %v6423
    %v6477 = vpack.c.b16 %v6426, %v6425
    %v6478 = vpack.c.b16 %v6428, %v6427
    %v6479 = vpack.c.b16 %v6430, %v6429
    %v6480 = vpack.c.b16 %v6432, %v6431
    %v6481 = vpack.c.b16 %v6434, %v6433
    %v6482 = vpack.c.b16 %v6436, %v6435
    %v6483 = vpack.c.b16 %v6438, %v6437
    %v6484 = vpack.c.b16 %v6440, %v6439
    %v6485 = vpack.c.b16 %v6442, %v6441
    %v6486 = vpack.c.b16 %v6444, %v6443
    %v6487 = vpack.c.b16 %v6446, %v6445
    %v6488 = vpack.c.b16 %v6448, %v6447
    %v6489 = vpack.c.b16 %v6450, %v6449
    %v6490 = vpack.c.b16 %v6452, %v6451
    %v6491 = vpack.c.b16 %v6454, %v6453
    %v6492 = vpack.c.b16 %v6456, %v6455
    %v6493 = vpack.c.b16 %v6458, %v6457
    %v6494 = vpack.c.b16 %v6460, %v6459
    %v6495 = vpack.c.b16 %v6462, %v6461
    %v6496 = vpack.c.b16 %v6464, %v6463
    %6529 = vmatpush.bf16.msra.mxu0 %v6472
    %6530 = vmatpush.bf16.msra.mxu0 %v6471
    %6531 = vmatpush.bf16.msra.mxu0 %v6470
    %6532 = vmatpush.bf16.msra.mxu0 %v6469
    %6533 = vmatpush.bf16.msra.mxu0 %v6468
    %6534 = vmatpush.bf16.msra.mxu0 %v6467
    %6535 = vmatpush.bf16.msra.mxu0 %v6466
    %6536 = vmatpush.bf16.msra.mxu0 %v6465
    %6537 = vmatmul.bf16.gmra.mxu0 %v6259
    %v6538 = vpop.f32.mrf.mxu0
    %v6539 = vadd.f32 %v6335, %v6538
    %v6540 = vpop.f32.mrf.mxu0
    %v6541 = vadd.f32 %v6335, %v6540
    %6542 = vmatmul.bf16.gmra.mxu0 %v6263
    %v6543 = vpop.f32.mrf.mxu0
    %v6544 = vadd.f32 %v6335, %v6543
    %v6545 = vpop.f32.mrf.mxu0
    %v6546 = vadd.f32 %v6335, %v6545
    %6547 = vdwg.mxu0
    %6548 = vmatpush.bf16.msra.mxu0 %v6480
    %6549 = vmatpush.bf16.msra.mxu0 %v6479
    %6550 = vmatpush.bf16.msra.mxu0 %v6478
    %6551 = vmatpush.bf16.msra.mxu0 %v6477
    %6552 = vmatpush.bf16.msra.mxu0 %v6476
    %6553 = vmatpush.bf16.msra.mxu0 %v6475
    %6554 = vmatpush.bf16.msra.mxu0 %v6474
    %6555 = vmatpush.bf16.msra.mxu0 %v6473
    %6556 = vmatmul.bf16.gmra.mxu0 %v6260
    %v6557 = vpop.f32.mrf.mxu0
    %v6558 = vadd.f32 %v6539, %v6557
    %v6559 = vpop.f32.mrf.mxu0
    %v6560 = vadd.f32 %v6541, %v6559
    %6561 = vmatmul.bf16.gmra.mxu0 %v6264
    %v6562 = vpop.f32.mrf.mxu0
    %v6563 = vadd.f32 %v6544, %v6562
    %v6564 = vpop.f32.mrf.mxu0
    %v6565 = vadd.f32 %v6546, %v6564
    %6566 = vdwg.mxu0
    %6567 = vmatpush.bf16.msra.mxu0 %v6488
    %6568 = vmatpush.bf16.msra.mxu0 %v6487
    %6569 = vmatpush.bf16.msra.mxu0 %v6486
    %6570 = vmatpush.bf16.msra.mxu0 %v6485
    %6571 = vmatpush.bf16.msra.mxu0 %v6484
    %6572 = vmatpush.bf16.msra.mxu0 %v6483
    %6573 = vmatpush.bf16.msra.mxu0 %v6482
    %6574 = vmatpush.bf16.msra.mxu0 %v6481
    %6575 = vmatmul.bf16.gmra.mxu0 %v6261
    %v6576 = vpop.f32.mrf.mxu0
    %v6577 = vadd.f32 %v6558, %v6576
    %v6578 = vpop.f32.mrf.mxu0
    %v6579 = vadd.f32 %v6560, %v6578
    %6580 = vmatmul.bf16.gmra.mxu0 %v6265
    %v6581 = vpop.f32.mrf.mxu0
    %v6582 = vadd.f32 %v6563, %v6581
    %v6583 = vpop.f32.mrf.mxu0
    %v6584 = vadd.f32 %v6565, %v6583
    %6585 = vdwg.mxu0
    %6586 = vmatpush.bf16.msra.mxu0 %v6496
    %6587 = vmatpush.bf16.msra.mxu0 %v6495
    %6588 = vmatpush.bf16.msra.mxu0 %v6494
    %6589 = vmatpush.bf16.msra.mxu0 %v6493
    %6590 = vmatpush.bf16.msra.mxu0 %v6492
    %6591 = vmatpush.bf16.msra.mxu0 %v6491
    %6592 = vmatpush.bf16.msra.mxu0 %v6490
    %6593 = vmatpush.bf16.msra.mxu0 %v6489
    %6594 = vmatmul.bf16.gmra.mxu0 %v6262
    %v6595 = vpop.f32.mrf.mxu0
    %v6596 = vadd.f32 %v6577, %v6595
    %v6597 = vpop.f32.mrf.mxu0
    %v6598 = vadd.f32 %v6579, %v6597
    %6599 = vmatmul.bf16.gmra.mxu0 %v6266
    %v6600 = vpop.f32.mrf.mxu0
    %v6601 = vadd.f32 %v6582, %v6600
    %v6602 = vpop.f32.mrf.mxu0
    %v6603 = vadd.f32 %v6584, %v6602
    %6604 = vdwg.mxu0
    %v6605 = vadd.f32 %v5957, %v6596
    %v6606 = vadd.f32 %v5958, %v6598
    %v6607 = vadd.f32 %v5959, %v6601
    %v6608 = vadd.f32 %v5960, %v6603
    %s6609 = scalar_lea.vmem [#allocation19], 3
    %v6610 = vld [vmem:[%s6609] sm:$0x1]
    %s6611 = scalar_lea.vmem [#allocation20], 3
    %v6612 = vld [vmem:[%s6611] sm:$0x1]
    %6613 = vadd.xlane.f32.xlu0 %v6605
    %v6614 = vpop.xlane.xlu0 %6613
    %6615 = vadd.xlane.f32.xlu0 %v6606
    %v6616 = vpop.xlane.xlu0 %6615
    %6617 = vadd.xlane.f32.xlu0 %v6607
    %v6618 = vpop.xlane.xlu0 %6617
    %6619 = vadd.xlane.f32.xlu0 %v6608
    %v6620 = vpop.xlane.xlu0 %6619
    %v6621 = vmul.f32 %v6614, %v1326
    %v6622 = vmul.f32 %v6616, %v1326
    %v6623 = vmul.f32 %v6618, %v1326
    %v6624 = vmul.f32 %v6620, %v1326
    %v6625 = vsub.f32 %v6605, %v6621
    %v6626 = vsub.f32 %v6606, %v6622
    %v6627 = vsub.f32 %v6607, %v6623
    %v6628 = vsub.f32 %v6608, %v6624
    %v6629 = vmul.f32 %v6625, %v6625
    %v6630 = vmul.f32 %v6626, %v6626
    %v6631 = vmul.f32 %v6627, %v6627
    %v6632 = vmul.f32 %v6628, %v6628
    %6633 = vadd.xlane.f32.xlu0 %v6629
    %v6634 = vpop.xlane.xlu0 %6633
    %6635 = vadd.xlane.f32.xlu0 %v6630
    %v6636 = vpop.xlane.xlu0 %6635
    %6637 = vadd.xlane.f32.xlu0 %v6631
    %v6638 = vpop.xlane.xlu0 %6637
    %6639 = vadd.xlane.f32.xlu0 %v6632
    %v6640 = vpop.xlane.xlu0 %6639
    %v6641 = vmul.f32 %v6634, %v1326
    %v6642 = vmul.f32 %v6636, %v1326
    %v6643 = vmul.f32 %v6638, %v1326
    %v6644 = vmul.f32 %v6640, %v1326
    %v6645 = vadd.f32 %v6641, 1e-05
    %v6646 = vadd.f32 %v6642, 1e-05
    %v6647 = vadd.f32 %v6643, 1e-05
    %v6648 = vadd.f32 %v6644, 1e-05
    %v6649 = vrsqrt.pop %v6645
    %v6650 = vmul.f32 %v6649, %v6645
    %v6651 = vmul.f32 %v6650, %v6649
    %v6652 = vmul.f32 0.5, %v6651
    %v6653 = vsub.f32 1.5, %v6652
    %v6654 = vmul.f32 %v6649, %v6653
    %vm6655 = vweird.f32 %v6645
    %vm6656 = vweird.f32 %v6649
    %vm6657 = vmor %vm6655, %vm6656
    %v6658 = vsel %vm6657, %v6649, %v6654
    %v6659 = vrsqrt.pop %v6646
    %v6660 = vmul.f32 %v6659, %v6646
    %v6661 = vmul.f32 %v6660, %v6659
    %v6662 = vmul.f32 0.5, %v6661
    %v6663 = vsub.f32 1.5, %v6662
    %v6664 = vmul.f32 %v6659, %v6663
    %vm6665 = vweird.f32 %v6646
    %vm6666 = vweird.f32 %v6659
    %vm6667 = vmor %vm6665, %vm6666
    %v6668 = vsel %vm6667, %v6659, %v6664
    %v6669 = vrsqrt.pop %v6647
    %v6670 = vmul.f32 %v6669, %v6647
    %v6671 = vmul.f32 %v6670, %v6669
    %v6672 = vmul.f32 0.5, %v6671
    %v6673 = vsub.f32 1.5, %v6672
    %v6674 = vmul.f32 %v6669, %v6673
    %vm6675 = vweird.f32 %v6647
    %vm6676 = vweird.f32 %v6669
    %vm6677 = vmor %vm6675, %vm6676
    %v6678 = vsel %vm6677, %v6669, %v6674
    %v6679 = vrsqrt.pop %v6648
    %v6680 = vmul.f32 %v6679, %v6648
    %v6681 = vmul.f32 %v6680, %v6679
    %v6682 = vmul.f32 0.5, %v6681
    %v6683 = vsub.f32 1.5, %v6682
    %v6684 = vmul.f32 %v6679, %v6683
    %vm6685 = vweird.f32 %v6648
    %vm6686 = vweird.f32 %v6679
    %vm6687 = vmor %vm6685, %vm6686
    %v6688 = vsel %vm6687, %v6679, %v6684
    %v6689 = vmul.f32 %v6625, %v6658
    %v6690 = vmul.f32 %v6626, %v6668
    %v6691 = vmul.f32 %v6627, %v6678
    %v6692 = vmul.f32 %v6628, %v6688
    %v6694 = vperm.slane %v6610, 0
    %v6696 = vmul.f32 %v6689, %v6694
    %v6697 = vmul.f32 %v6690, %v6694
    %v6698 = vmul.f32 %v6691, %v6694
    %v6699 = vmul.f32 %v6692, %v6694
    %v6701 = vperm.slane %v6612, 0
    %v6703 = vadd.f32 %v6696, %v6701
    %v6704 = vadd.f32 %v6697, %v6701
    %v6705 = vadd.f32 %v6698, %v6701
    %v6706 = vadd.f32 %v6699, %v6701
    %v6707 = vpack.c.bf16 %v6704, %v6703
    %v6708 = vpack.c.bf16 %v6706, %v6705
    %s6709 = scalar_lea.vmem [#allocation10], 768
    %v6710 = vld [vmem:[%s6709] sm:$0xff]
    %v6711 = vld [vmem:[%s6709 + $0x8] sm:$0xf]
    %v6712 = vld [vmem:[%s6709 + $0xc] sm:$0xff]
    %v6713 = vld [vmem:[%s6709 + $0x14] sm:$0xf]
    %v6714 = vld [vmem:[%s6709 + $0x18] sm:$0xff]
    %v6715 = vld [vmem:[%s6709 + $0x20] sm:$0xf]
    %v6716 = vld [vmem:[%s6709 + $0x24] sm:$0xff]
    %v6717 = vld [vmem:[%s6709 + $0x2c] sm:$0xf]
    %v6718 = vld [vmem:[%s6709 + $0x30] sm:$0xff]
    %v6719 = vld [vmem:[%s6709 + $0x38] sm:$0xf]
    %v6720 = vld [vmem:[%s6709 + $0x3c] sm:$0xff]
    %v6721 = vld [vmem:[%s6709 + $0x44] sm:$0xf]
    %v6722 = vld [vmem:[%s6709 + $0x48] sm:$0xff]
    %v6723 = vld [vmem:[%s6709 + $0x50] sm:$0xf]
    %v6724 = vld [vmem:[%s6709 + $0x54] sm:$0xff]
    %v6725 = vld [vmem:[%s6709 + $0x5c] sm:$0xf]
    %v6726 = vld [vmem:[%s6709 + $0x60] sm:$0xff]
    %v6727 = vld [vmem:[%s6709 + $0x68] sm:$0xf]
    %v6728 = vld [vmem:[%s6709 + $0x6c] sm:$0xff]
    %v6729 = vld [vmem:[%s6709 + $0x74] sm:$0xf]
    %v6730 = vld [vmem:[%s6709 + $0x78] sm:$0xff]
    %v6731 = vld [vmem:[%s6709 + $0x80] sm:$0xf]
    %v6732 = vld [vmem:[%s6709 + $0x84] sm:$0xff]
    %v6733 = vld [vmem:[%s6709 + $0x8c] sm:$0xf]
    %v6734 = vld [vmem:[%s6709 + $0x90] sm:$0xff]
    %v6735 = vld [vmem:[%s6709 + $0x98] sm:$0xf]
    %v6736 = vld [vmem:[%s6709 + $0x9c] sm:$0xff]
    %v6737 = vld [vmem:[%s6709 + $0xa4] sm:$0xf]
    %v6738 = vld [vmem:[%s6709 + $0xa8] sm:$0xff]
    %v6739 = vld [vmem:[%s6709 + $0xb0] sm:$0xf]
    %v6740 = vld [vmem:[%s6709 + $0xb4] sm:$0xff]
    %v6741 = vld [vmem:[%s6709 + $0xbc] sm:$0xf]
    %s6742 = scalar_lea.vmem [#allocation11], 12
    %v6743 = vld [vmem:[%s6742] sm:$0x7]
    %v6745 = vperm.slane %v6743, 0
    %v6746 = vperm.slane %v6743, 1
    %v6747 = vperm.slane %v6743, 2
    %v6783 = vunpack.c.l.b16 %v6710
    %v6784 = vunpack.c.h.b16 %v6710
    %v6785 = vunpack.c.l.b16 %v6711
    %v6786 = vunpack.c.l.b16 %v6712
    %v6787 = vunpack.c.h.b16 %v6712
    %v6788 = vunpack.c.l.b16 %v6713
    %v6789 = vunpack.c.l.b16 %v6714
    %v6790 = vunpack.c.h.b16 %v6714
    %v6791 = vunpack.c.l.b16 %v6715
    %v6792 = vunpack.c.l.b16 %v6716
    %v6793 = vunpack.c.h.b16 %v6716
    %v6794 = vunpack.c.l.b16 %v6717
    %v6795 = vunpack.c.l.b16 %v6718
    %v6796 = vunpack.c.h.b16 %v6718
    %v6797 = vunpack.c.l.b16 %v6719
    %v6798 = vunpack.c.l.b16 %v6720
    %v6799 = vunpack.c.h.b16 %v6720
    %v6800 = vunpack.c.l.b16 %v6721
    %v6801 = vunpack.c.l.b16 %v6722
    %v6802 = vunpack.c.h.b16 %v6722
    %v6803 = vunpack.c.l.b16 %v6723
    %v6804 = vunpack.c.l.b16 %v6724
    %v6805 = vunpack.c.h.b16 %v6724
    %v6806 = vunpack.c.l.b16 %v6725
    %v6807 = vunpack.c.l.b16 %v6726
    %v6808 = vunpack.c.h.b16 %v6726
    %v6809 = vunpack.c.l.b16 %v6727
    %v6810 = vunpack.c.l.b16 %v6728
    %v6811 = vunpack.c.h.b16 %v6728
    %v6812 = vunpack.c.l.b16 %v6729
    %v6813 = vunpack.c.l.b16 %v6730
    %v6814 = vunpack.c.h.b16 %v6730
    %v6815 = vunpack.c.l.b16 %v6731
    %v6816 = vunpack.c.l.b16 %v6732
    %v6817 = vunpack.c.h.b16 %v6732
    %v6818 = vunpack.c.l.b16 %v6733
    %v6819 = vunpack.c.l.b16 %v6734
    %v6820 = vunpack.c.h.b16 %v6734
    %v6821 = vunpack.c.l.b16 %v6735
    %v6822 = vunpack.c.l.b16 %v6736
    %v6823 = vunpack.c.h.b16 %v6736
    %v6824 = vunpack.c.l.b16 %v6737
    %v6825 = vunpack.c.l.b16 %v6738
    %v6826 = vunpack.c.h.b16 %v6738
    %v6827 = vunpack.c.l.b16 %v6739
    %v6828 = vunpack.c.l.b16 %v6740
    %v6829 = vunpack.c.h.b16 %v6740
    %v6830 = vunpack.c.l.b16 %v6741
    %v6831 = vpack.c.b16 %v6786, %v6783
    %v6832 = vpack.c.b16 %v6787, %v6784
    %v6833 = vpack.c.b16 %v6788, %v6785
    %v6834 = vpack.c.b16 %v6792, %v6789
    %v6835 = vpack.c.b16 %v6793, %v6790
    %v6836 = vpack.c.b16 %v6794, %v6791
    %v6837 = vpack.c.b16 %v6798, %v6795
    %v6838 = vpack.c.b16 %v6799, %v6796
    %v6839 = vpack.c.b16 %v6800, %v6797
    %v6840 = vpack.c.b16 %v6804, %v6801
    %v6841 = vpack.c.b16 %v6805, %v6802
    %v6842 = vpack.c.b16 %v6806, %v6803
    %v6843 = vpack.c.b16 %v6810, %v6807
    %v6844 = vpack.c.b16 %v6811, %v6808
    %v6845 = vpack.c.b16 %v6812, %v6809
    %v6846 = vpack.c.b16 %v6816, %v6813
    %v6847 = vpack.c.b16 %v6817, %v6814
    %v6848 = vpack.c.b16 %v6818, %v6815
    %v6849 = vpack.c.b16 %v6822, %v6819
    %v6850 = vpack.c.b16 %v6823, %v6820
    %v6851 = vpack.c.b16 %v6824, %v6821
    %v6852 = vpack.c.b16 %v6828, %v6825
    %v6853 = vpack.c.b16 %v6829, %v6826
    %v6854 = vpack.c.b16 %v6830, %v6827
    %6879 = vmatpush.bf16.msra.mxu0 %v6852
    %6880 = vmatpush.bf16.msra.mxu0 %v6849
    %6881 = vmatpush.bf16.msra.mxu0 %v6846
    %6882 = vmatpush.bf16.msra.mxu0 %v6843
    %6883 = vmatpush.bf16.msra.mxu0 %v6840
    %6884 = vmatpush.bf16.msra.mxu0 %v6837
    %6885 = vmatpush.bf16.msra.mxu0 %v6834
    %6886 = vmatpush.bf16.msra.mxu0 %v6831
    %6887 = vmatmul.bf16.gmra.mxu0 %v6707
    %v6888 = vpop.f32.mrf.mxu0
    %v6889 = vadd.f32 %v6745, %v6888
    %v6890 = vpop.f32.mrf.mxu0
    %v6891 = vadd.f32 %v6745, %v6890
    %6892 = vmatmul.bf16.gmra.mxu0 %v6708
    %v6893 = vpop.f32.mrf.mxu0
    %v6894 = vadd.f32 %v6745, %v6893
    %v6895 = vpop.f32.mrf.mxu0
    %v6896 = vadd.f32 %v6745, %v6895
    %6897 = vdwg.mxu0
    %6898 = vmatpush.bf16.msra.mxu0 %v6853
    %6899 = vmatpush.bf16.msra.mxu0 %v6850
    %6900 = vmatpush.bf16.msra.mxu0 %v6847
    %6901 = vmatpush.bf16.msra.mxu0 %v6844
    %6902 = vmatpush.bf16.msra.mxu0 %v6841
    %6903 = vmatpush.bf16.msra.mxu0 %v6838
    %6904 = vmatpush.bf16.msra.mxu0 %v6835
    %6905 = vmatpush.bf16.msra.mxu0 %v6832
    %6906 = vmatmul.bf16.gmra.mxu0 %v6707
    %v6907 = vpop.f32.mrf.mxu0
    %v6908 = vadd.f32 %v6746, %v6907
    %v6909 = vpop.f32.mrf.mxu0
    %v6910 = vadd.f32 %v6746, %v6909
    %6911 = vmatmul.bf16.gmra.mxu0 %v6708
    %v6912 = vpop.f32.mrf.mxu0
    %v6913 = vadd.f32 %v6746, %v6912
    %v6914 = vpop.f32.mrf.mxu0
    %v6915 = vadd.f32 %v6746, %v6914
    %6916 = vdwg.mxu0
    %6917 = vmatpush.bf16.msra.mxu0 %v6854
    %6918 = vmatpush.bf16.msra.mxu0 %v6851
    %6919 = vmatpush.bf16.msra.mxu0 %v6848
    %6920 = vmatpush.bf16.msra.mxu0 %v6845
    %6921 = vmatpush.bf16.msra.mxu0 %v6842
    %6922 = vmatpush.bf16.msra.mxu0 %v6839
    %6923 = vmatpush.bf16.msra.mxu0 %v6836
    %6924 = vmatpush.bf16.msra.mxu0 %v6833
    %6925 = vmatmul.bf16.gmra.mxu0 %v6707
    %v6926 = vpop.f32.mrf.mxu0
    %v6927 = vadd.f32 %v6747, %v6926
    %v6928 = vpop.f32.mrf.mxu0
    %v6929 = vadd.f32 %v6747, %v6928
    %6930 = vmatmul.bf16.gmra.mxu0 %v6708
    %v6931 = vpop.f32.mrf.mxu0
    %v6932 = vadd.f32 %v6747, %v6931
    %v6933 = vpop.f32.mrf.mxu0
    %v6934 = vadd.f32 %v6747, %v6933
    %6935 = vdwg.mxu0
    %v6936 = vpack.c.bf16 %v6891, %v6889
    %v6937 = vpack.c.bf16 %v6896, %v6894
    %v6938 = vpack.c.bf16 %v6908, %v6908
    %v6939 = vpack.c.bf16 %v6910, %v6910
    %v6940 = vpack.c.bf16 %v6913, %v6913
    %v6941 = vpack.c.bf16 %v6915, %v6915
    %v6942 = vpack.c.bf16 %v6927, %v6927
    %v6943 = vpack.c.bf16 %v6929, %v6929
    %v6944 = vpack.c.bf16 %v6932, %v6932
    %v6945 = vpack.c.bf16 %v6934, %v6934
    %v6950 = vunpack.c.l.b16 %v6938
    %v6951 = vunpack.c.l.b16 %v6939
    %v6952 = vunpack.c.l.b16 %v6940
    %v6953 = vunpack.c.l.b16 %v6941
    %v6954 = vpack.c.b16 %v6951, %v6950
    %v6955 = vpack.c.b16 %v6953, %v6952
    %v6958 = vunpack.c.l.bf16 %v6954
    %v6959 = vunpack.c.h.bf16 %v6954
    %v6960 = vunpack.c.l.bf16 %v6955
    %v6961 = vunpack.c.h.bf16 %v6955
    %v6962 = vmul.f32 %v6958, %v701
    %v6963 = vmul.f32 %v6959, %v702
    %v6964 = vmul.f32 %v6960, %v703
    %v6965 = vmul.f32 %v6961, %v704
    %v6966 = vmul.f32 %v6958, %v705
    %v6967 = vmul.f32 %v6959, %v706
    %v6968 = vmul.f32 %v6960, %v707
    %v6969 = vmul.f32 %v6961, %v708
    %v6970 = vmul.f32 %v6958, %v709
    %v6971 = vmul.f32 %v6959, %v710
    %v6972 = vmul.f32 %v6960, %v711
    %v6973 = vmul.f32 %v6961, %v712
    %v6974 = vmul.f32 %v6958, %v713
    %v6975 = vmul.f32 %v6959, %v714
    %v6976 = vmul.f32 %v6960, %v715
    %v6977 = vmul.f32 %v6961, %v716
    %v6978 = vmul.f32 %v6958, %v717
    %v6979 = vmul.f32 %v6959, %v718
    %v6980 = vmul.f32 %v6960, %v719
    %v6981 = vmul.f32 %v6961, %v720
    %v6982 = vmul.f32 %v6958, %v721
    %v6983 = vmul.f32 %v6959, %v722
    %v6984 = vmul.f32 %v6960, %v723
    %v6985 = vmul.f32 %v6961, %v724
    %v6986 = vmul.f32 %v6958, %v725
    %v6987 = vmul.f32 %v6959, %v726
    %v6988 = vmul.f32 %v6960, %v727
    %v6989 = vmul.f32 %v6961, %v728
    %v6990 = vmul.f32 %v6958, %v729
    %v6991 = vmul.f32 %v6959, %v730
    %v6992 = vmul.f32 %v6960, %v731
    %v6993 = vmul.f32 %v6961, %v732
    %v6994 = vpack.c.bf16 %v6963, %v6962
    %v6995 = vpack.c.bf16 %v6965, %v6964
    %v6996 = vpack.c.bf16 %v6967, %v6966
    %v6997 = vpack.c.bf16 %v6969, %v6968
    %v6998 = vpack.c.bf16 %v6971, %v6970
    %v6999 = vpack.c.bf16 %v6973, %v6972
    %v7000 = vpack.c.bf16 %v6975, %v6974
    %v7001 = vpack.c.bf16 %v6977, %v6976
    %v7002 = vpack.c.bf16 %v6979, %v6978
    %v7003 = vpack.c.bf16 %v6981, %v6980
    %v7004 = vpack.c.bf16 %v6983, %v6982
    %v7005 = vpack.c.bf16 %v6985, %v6984
    %v7006 = vpack.c.bf16 %v6987, %v6986
    %v7007 = vpack.c.bf16 %v6989, %v6988
    %v7008 = vpack.c.bf16 %v6991, %v6990
    %v7009 = vpack.c.bf16 %v6993, %v6992
    %v7014 = vunpack.c.l.b16 %v6942
    %v7015 = vunpack.c.l.b16 %v6943
    %v7016 = vunpack.c.l.b16 %v6944
    %v7017 = vunpack.c.l.b16 %v6945
    %v7018 = vpack.c.b16 %v7015, %v7014
    %v7019 = vpack.c.b16 %v7017, %v7016
    %v7022 = vunpack.c.l.bf16 %v7018
    %v7023 = vunpack.c.h.bf16 %v7018
    %v7024 = vunpack.c.l.bf16 %v7019
    %v7025 = vunpack.c.h.bf16 %v7019
    %v7026 = vmul.f32 %v7022, %v701
    %v7027 = vmul.f32 %v7023, %v702
    %v7028 = vmul.f32 %v7024, %v703
    %v7029 = vmul.f32 %v7025, %v704
    %v7030 = vmul.f32 %v7022, %v705
    %v7031 = vmul.f32 %v7023, %v706
    %v7032 = vmul.f32 %v7024, %v707
    %v7033 = vmul.f32 %v7025, %v708
    %v7034 = vmul.f32 %v7022, %v709
    %v7035 = vmul.f32 %v7023, %v710
    %v7036 = vmul.f32 %v7024, %v711
    %v7037 = vmul.f32 %v7025, %v712
    %v7038 = vmul.f32 %v7022, %v713
    %v7039 = vmul.f32 %v7023, %v714
    %v7040 = vmul.f32 %v7024, %v715
    %v7041 = vmul.f32 %v7025, %v716
    %v7042 = vmul.f32 %v7022, %v717
    %v7043 = vmul.f32 %v7023, %v718
    %v7044 = vmul.f32 %v7024, %v719
    %v7045 = vmul.f32 %v7025, %v720
    %v7046 = vmul.f32 %v7022, %v721
    %v7047 = vmul.f32 %v7023, %v722
    %v7048 = vmul.f32 %v7024, %v723
    %v7049 = vmul.f32 %v7025, %v724
    %v7050 = vmul.f32 %v7022, %v725
    %v7051 = vmul.f32 %v7023, %v726
    %v7052 = vmul.f32 %v7024, %v727
    %v7053 = vmul.f32 %v7025, %v728
    %v7054 = vmul.f32 %v7022, %v729
    %v7055 = vmul.f32 %v7023, %v730
    %v7056 = vmul.f32 %v7024, %v731
    %v7057 = vmul.f32 %v7025, %v732
    %v7058 = vpack.c.bf16 %v7027, %v7026
    %v7059 = vpack.c.bf16 %v7029, %v7028
    %v7060 = vpack.c.bf16 %v7031, %v7030
    %v7061 = vpack.c.bf16 %v7033, %v7032
    %v7062 = vpack.c.bf16 %v7035, %v7034
    %v7063 = vpack.c.bf16 %v7037, %v7036
    %v7064 = vpack.c.bf16 %v7039, %v7038
    %v7065 = vpack.c.bf16 %v7041, %v7040
    %v7066 = vpack.c.bf16 %v7043, %v7042
    %v7067 = vpack.c.bf16 %v7045, %v7044
    %v7068 = vpack.c.bf16 %v7047, %v7046
    %v7069 = vpack.c.bf16 %v7049, %v7048
    %v7070 = vpack.c.bf16 %v7051, %v7050
    %v7071 = vpack.c.bf16 %v7053, %v7052
    %v7072 = vpack.c.bf16 %v7055, %v7054
    %v7073 = vpack.c.bf16 %v7057, %v7056
    %7074 = vmatpush.bf16.xpose.msra.mxu0 %v7001
    %7075 = vmatpush.bf16.xpose.msra.mxu0 %v7000
    %7076 = vmatpush.bf16.xpose.msra.mxu0 %v6999
    %7077 = vmatpush.bf16.xpose.msra.mxu0 %v6998
    %7078 = vmatpush.bf16.xpose.msra.mxu0 %v6997
    %7079 = vmatpush.bf16.xpose.msra.mxu0 %v6996
    %7080 = vmatpush.bf16.xpose.msra.mxu0 %v6995
    %7081 = vmatpush.bf16.xpose.msra.mxu0 %v6994
    %7082 = vmatmul.bf16.gmra.mxu0 %v6936
    %v7083 = vpop.f32.mrf.mxu0
    %v7084 = vadd.f32 %v408, %v7083
    %v7085 = vpop.f32.mrf.mxu0
    %v7086 = vadd.f32 %v410, %v7085
    %7087 = vmatmul.bf16.gmra.mxu0 %v6937
    %v7088 = vpop.f32.mrf.mxu0
    %v7089 = vadd.f32 %v412, %v7088
    %v7090 = vpop.f32.mrf.mxu0
    %v7091 = vadd.f32 %v414, %v7090
    %7092 = vdwg.mxu0
    %7093 = vmatpush.bf16.xpose.msra.mxu0 %v7009
    %7094 = vmatpush.bf16.xpose.msra.mxu0 %v7008
    %7095 = vmatpush.bf16.xpose.msra.mxu0 %v7007
    %7096 = vmatpush.bf16.xpose.msra.mxu0 %v7006
    %7097 = vmatpush.bf16.xpose.msra.mxu0 %v7005
    %7098 = vmatpush.bf16.xpose.msra.mxu0 %v7004
    %7099 = vmatpush.bf16.xpose.msra.mxu0 %v7003
    %7100 = vmatpush.bf16.xpose.msra.mxu0 %v7002
    %7101 = vmatmul.bf16.gmra.mxu0 %v6936
    %v7102 = vpop.f32.mrf.mxu0
    %v7103 = vadd.f32 %v409, %v7102
    %v7104 = vpop.f32.mrf.mxu0
    %v7105 = vadd.f32 %v411, %v7104
    %7106 = vmatmul.bf16.gmra.mxu0 %v6937
    %v7107 = vpop.f32.mrf.mxu0
    %v7108 = vadd.f32 %v413, %v7107
    %v7109 = vpop.f32.mrf.mxu0
    %v7110 = vadd.f32 %v415, %v7109
    %7111 = vdwg.mxu0
    %v7112 = vmax.f32 %v7084, %v7103
    %7113 = vmax.xlane.f32.xlu0 %v7112
    %v7114 = vpop.xlane.xlu0 %7113
    %v7115 = vmax.f32 %v7086, %v7105
    %7116 = vmax.xlane.f32.xlu0 %v7115
    %v7117 = vpop.xlane.xlu0 %7116
    %v7118 = vmax.f32 %v7089, %v7108
    %7119 = vmax.xlane.f32.xlu0 %v7118
    %v7120 = vpop.xlane.xlu0 %7119
    %v7121 = vmax.f32 %v7091, %v7110
    %7122 = vmax.xlane.f32.xlu0 %v7121
    %v7123 = vpop.xlane.xlu0 %7122
    %v7124 = vsub.f32 %v7084, %v7114
    %v7125 = vsub.f32 %v7103, %v7114
    %v7126 = vsub.f32 %v7086, %v7117
    %v7127 = vsub.f32 %v7105, %v7117
    %v7128 = vsub.f32 %v7089, %v7120
    %v7129 = vsub.f32 %v7108, %v7120
    %v7130 = vsub.f32 %v7091, %v7123
    %v7131 = vsub.f32 %v7110, %v7123
    %v7132 = vmul.f32 %v7124, 1.442695
    %v7133 = vpow.pop %v7132
    %v7134 = vmul.f32 %v7125, 1.442695
    %v7135 = vpow.pop %v7134
    %v7136 = vmul.f32 %v7126, 1.442695
    %v7137 = vpow.pop %v7136
    %v7138 = vmul.f32 %v7127, 1.442695
    %v7139 = vpow.pop %v7138
    %v7140 = vmul.f32 %v7128, 1.442695
    %v7141 = vpow.pop %v7140
    %v7142 = vmul.f32 %v7129, 1.442695
    %v7143 = vpow.pop %v7142
    %v7144 = vmul.f32 %v7130, 1.442695
    %v7145 = vpow.pop %v7144
    %v7146 = vmul.f32 %v7131, 1.442695
    %v7147 = vpow.pop %v7146
    %v7148 = vpack.c.bf16 %v7137, %v7133
    %v7149 = vpack.c.bf16 %v7139, %v7135
    %v7150 = vpack.c.bf16 %v7145, %v7141
    %v7151 = vpack.c.bf16 %v7147, %v7143
    %7152 = vmatpush.bf16.msra.mxu0 %v1033
    %7153 = vmatpush.bf16.msra.mxu0 %v1031
    %7154 = vmatpush.bf16.msra.mxu0 %v1029
    %7155 = vmatpush.bf16.msra.mxu0 %v1027
    %7156 = vmatpush.bf16.msra.mxu0 %v1025
    %7157 = vmatpush.bf16.msra.mxu0 %v1023
    %7158 = vmatpush.bf16.msra.mxu0 %v1021
    %7159 = vmatpush.bf16.msra.mxu0 %v1019
    %7160 = vmatmul.bf16.gmra.mxu0 %v7148
    %v7161 = vpop.f32.mrf.mxu0
    %v7162 = vadd.f32 0.0, %v7161
    %v7163 = vpop.f32.mrf.mxu0
    %v7164 = vadd.f32 0.0, %v7163
    %7165 = vmatmul.bf16.gmra.mxu0 %v7150
    %v7166 = vpop.f32.mrf.mxu0
    %v7167 = vadd.f32 0.0, %v7166
    %v7168 = vpop.f32.mrf.mxu0
    %v7169 = vadd.f32 0.0, %v7168
    %7170 = vdwg.mxu0
    %7171 = vmatpush.bf16.msra.mxu0 %v1049
    %7172 = vmatpush.bf16.msra.mxu0 %v1047
    %7173 = vmatpush.bf16.msra.mxu0 %v1045
    %7174 = vmatpush.bf16.msra.mxu0 %v1043
    %7175 = vmatpush.bf16.msra.mxu0 %v1041
    %7176 = vmatpush.bf16.msra.mxu0 %v1039
    %7177 = vmatpush.bf16.msra.mxu0 %v1037
    %7178 = vmatpush.bf16.msra.mxu0 %v1035
    %7179 = vmatmul.bf16.gmra.mxu0 %v7149
    %v7180 = vpop.f32.mrf.mxu0
    %v7181 = vadd.f32 %v7162, %v7180
    %v7182 = vpop.f32.mrf.mxu0
    %v7183 = vadd.f32 %v7164, %v7182
    %7184 = vmatmul.bf16.gmra.mxu0 %v7151
    %v7185 = vpop.f32.mrf.mxu0
    %v7186 = vadd.f32 %v7167, %v7185
    %v7187 = vpop.f32.mrf.mxu0
    %v7188 = vadd.f32 %v7169, %v7187
    %7189 = vdwg.mxu0
    %7190 = vmatpush.bf16.msra.mxu0 %v1034
    %7191 = vmatpush.bf16.msra.mxu0 %v1032
    %7192 = vmatpush.bf16.msra.mxu0 %v1030
    %7193 = vmatpush.bf16.msra.mxu0 %v1028
    %7194 = vmatpush.bf16.msra.mxu0 %v1026
    %7195 = vmatpush.bf16.msra.mxu0 %v1024
    %7196 = vmatpush.bf16.msra.mxu0 %v1022
    %7197 = vmatpush.bf16.msra.mxu0 %v1020
    %7198 = vmatmul.bf16.gmra.mxu0 %v7148
    %v7199 = vpop.f32.mrf.mxu0
    %v7200 = vadd.f32 0.0, %v7199
    %v7201 = vpop.f32.mrf.mxu0
    %v7202 = vadd.f32 0.0, %v7201
    %7203 = vmatmul.bf16.gmra.mxu0 %v7150
    %v7204 = vpop.f32.mrf.mxu0
    %v7205 = vadd.f32 0.0, %v7204
    %v7206 = vpop.f32.mrf.mxu0
    %v7207 = vadd.f32 0.0, %v7206
    %7208 = vdwg.mxu0
    %7209 = vmatpush.bf16.msra.mxu0 %v1050
    %7210 = vmatpush.bf16.msra.mxu0 %v1048
    %7211 = vmatpush.bf16.msra.mxu0 %v1046
    %7212 = vmatpush.bf16.msra.mxu0 %v1044
    %7213 = vmatpush.bf16.msra.mxu0 %v1042
    %7214 = vmatpush.bf16.msra.mxu0 %v1040
    %7215 = vmatpush.bf16.msra.mxu0 %v1038
    %7216 = vmatpush.bf16.msra.mxu0 %v1036
    %7217 = vmatmul.bf16.gmra.mxu0 %v7149
    %v7218 = vpop.f32.mrf.mxu0
    %v7219 = vadd.f32 %v7200, %v7218
    %v7220 = vpop.f32.mrf.mxu0
    %v7221 = vadd.f32 %v7202, %v7220
    %7222 = vmatmul.bf16.gmra.mxu0 %v7151
    %v7223 = vpop.f32.mrf.mxu0
    %v7224 = vadd.f32 %v7205, %v7223
    %v7225 = vpop.f32.mrf.mxu0
    %v7226 = vadd.f32 %v7207, %v7225
    %7227 = vdwg.mxu0
    %v7228 = vrcp.pop %v7181
    %v7229 = vrcp.pop %v7219
    %v7230 = vrcp.pop %v7183
    %v7231 = vrcp.pop %v7221
    %v7232 = vrcp.pop %v7186
    %v7233 = vrcp.pop %v7224
    %v7234 = vrcp.pop %v7188
    %v7235 = vrcp.pop %v7226
    %v7236 = vmul.f32 %v7133, %v7228
    %v7237 = vmul.f32 %v7135, %v7229
    %v7238 = vmul.f32 %v7137, %v7230
    %v7239 = vmul.f32 %v7139, %v7231
    %v7240 = vmul.f32 %v7141, %v7232
    %v7241 = vmul.f32 %v7143, %v7233
    %v7242 = vmul.f32 %v7145, %v7234
    %v7243 = vmul.f32 %v7147, %v7235
    %v7244 = vpack.c.bf16 %v7238, %v7236
    %v7245 = vpack.c.bf16 %v7239, %v7237
    %v7246 = vpack.c.bf16 %v7242, %v7240
    %v7247 = vpack.c.bf16 %v7243, %v7241
    %7248 = vmatpush.bf16.msra.mxu0 %v7065
    %7249 = vmatpush.bf16.msra.mxu0 %v7064
    %7250 = vmatpush.bf16.msra.mxu0 %v7063
    %7251 = vmatpush.bf16.msra.mxu0 %v7062
    %7252 = vmatpush.bf16.msra.mxu0 %v7061
    %7253 = vmatpush.bf16.msra.mxu0 %v7060
    %7254 = vmatpush.bf16.msra.mxu0 %v7059
    %7255 = vmatpush.bf16.msra.mxu0 %v7058
    %7256 = vmatmul.bf16.gmra.mxu0 %v7244
    %v7257 = vpop.f32.mrf.mxu0
    %v7258 = vadd.f32 0.0, %v7257
    %v7259 = vpop.f32.mrf.mxu0
    %v7260 = vadd.f32 0.0, %v7259
    %7261 = vmatmul.bf16.gmra.mxu0 %v7246
    %v7262 = vpop.f32.mrf.mxu0
    %v7263 = vadd.f32 0.0, %v7262
    %v7264 = vpop.f32.mrf.mxu0
    %v7265 = vadd.f32 0.0, %v7264
    %7266 = vdwg.mxu0
    %7267 = vmatpush.bf16.msra.mxu0 %v7073
    %7268 = vmatpush.bf16.msra.mxu0 %v7072
    %7269 = vmatpush.bf16.msra.mxu0 %v7071
    %7270 = vmatpush.bf16.msra.mxu0 %v7070
    %7271 = vmatpush.bf16.msra.mxu0 %v7069
    %7272 = vmatpush.bf16.msra.mxu0 %v7068
    %7273 = vmatpush.bf16.msra.mxu0 %v7067
    %7274 = vmatpush.bf16.msra.mxu0 %v7066
    %7275 = vmatmul.bf16.gmra.mxu0 %v7245
    %v7276 = vpop.f32.mrf.mxu0
    %v7277 = vadd.f32 %v7258, %v7276
    %v7278 = vpop.f32.mrf.mxu0
    %v7279 = vadd.f32 %v7260, %v7278
    %7280 = vmatmul.bf16.gmra.mxu0 %v7247
    %v7281 = vpop.f32.mrf.mxu0
    %v7282 = vadd.f32 %v7263, %v7281
    %v7283 = vpop.f32.mrf.mxu0
    %v7284 = vadd.f32 %v7265, %v7283
    %7285 = vdwg.mxu0
    %v7286 = vpack.c.bf16 %v7279, %v7277
    %v7287 = vpack.c.bf16 %v7284, %v7282
    %s7288 = scalar_lea.vmem [#allocation13], 256
    %v7289 = vld [vmem:[%s7288] sm:$0xf]
    %v7290 = vld [vmem:[%s7288 + $0x4] sm:$0xf]
    %v7291 = vld [vmem:[%s7288 + $0x8] sm:$0xf]
    %v7292 = vld [vmem:[%s7288 + $0xc] sm:$0xf]
    %v7293 = vld [vmem:[%s7288 + $0x10] sm:$0xf]
    %v7294 = vld [vmem:[%s7288 + $0x14] sm:$0xf]
    %v7295 = vld [vmem:[%s7288 + $0x18] sm:$0xf]
    %v7296 = vld [vmem:[%s7288 + $0x1c] sm:$0xf]
    %v7297 = vld [vmem:[%s7288 + $0x20] sm:$0xf]
    %v7298 = vld [vmem:[%s7288 + $0x24] sm:$0xf]
    %v7299 = vld [vmem:[%s7288 + $0x28] sm:$0xf]
    %v7300 = vld [vmem:[%s7288 + $0x2c] sm:$0xf]
    %v7301 = vld [vmem:[%s7288 + $0x30] sm:$0xf]
    %v7302 = vld [vmem:[%s7288 + $0x34] sm:$0xf]
    %v7303 = vld [vmem:[%s7288 + $0x38] sm:$0xf]
    %v7304 = vld [vmem:[%s7288 + $0x3c] sm:$0xf]
    %s7305 = scalar_lea.vmem [#allocation14], 4
    %v7306 = vld [vmem:[%s7305] sm:$0x1]
    %v7308 = vperm.slane %v7306, 0
    %v7326 = vunpack.c.l.b16 %v7289
    %v7327 = vunpack.c.l.b16 %v7290
    %v7328 = vunpack.c.l.b16 %v7291
    %v7329 = vunpack.c.l.b16 %v7292
    %v7330 = vunpack.c.l.b16 %v7293
    %v7331 = vunpack.c.l.b16 %v7294
    %v7332 = vunpack.c.l.b16 %v7295
    %v7333 = vunpack.c.l.b16 %v7296
    %v7334 = vunpack.c.l.b16 %v7297
    %v7335 = vunpack.c.l.b16 %v7298
    %v7336 = vunpack.c.l.b16 %v7299
    %v7337 = vunpack.c.l.b16 %v7300
    %v7338 = vunpack.c.l.b16 %v7301
    %v7339 = vunpack.c.l.b16 %v7302
    %v7340 = vunpack.c.l.b16 %v7303
    %v7341 = vunpack.c.l.b16 %v7304
    %v7342 = vpack.c.b16 %v7327, %v7326
    %v7343 = vpack.c.b16 %v7329, %v7328
    %v7344 = vpack.c.b16 %v7331, %v7330
    %v7345 = vpack.c.b16 %v7333, %v7332
    %v7346 = vpack.c.b16 %v7335, %v7334
    %v7347 = vpack.c.b16 %v7337, %v7336
    %v7348 = vpack.c.b16 %v7339, %v7338
    %v7349 = vpack.c.b16 %v7341, %v7340
    %7358 = vmatpush.bf16.msra.mxu0 %v7349
    %7359 = vmatpush.bf16.msra.mxu0 %v7348
    %7360 = vmatpush.bf16.msra.mxu0 %v7347
    %7361 = vmatpush.bf16.msra.mxu0 %v7346
    %7362 = vmatpush.bf16.msra.mxu0 %v7345
    %7363 = vmatpush.bf16.msra.mxu0 %v7344
    %7364 = vmatpush.bf16.msra.mxu0 %v7343
    %7365 = vmatpush.bf16.msra.mxu0 %v7342
    %7366 = vmatmul.bf16.gmra.mxu0 %v7286
    %v7367 = vpop.f32.mrf.mxu0
    %v7368 = vadd.f32 %v7308, %v7367
    %v7369 = vpop.f32.mrf.mxu0
    %v7370 = vadd.f32 %v7308, %v7369
    %7371 = vmatmul.bf16.gmra.mxu0 %v7287
    %v7372 = vpop.f32.mrf.mxu0
    %v7373 = vadd.f32 %v7308, %v7372
    %v7374 = vpop.f32.mrf.mxu0
    %v7375 = vadd.f32 %v7308, %v7374
    %7376 = vdwg.mxu0
    %v7377 = vadd.f32 %v6703, %v7368
    %v7378 = vadd.f32 %v6704, %v7370
    %v7379 = vadd.f32 %v6705, %v7373
    %v7380 = vadd.f32 %v6706, %v7375
    %s7381 = scalar_lea.vmem [#allocation16], 4
    %v7382 = vld [vmem:[%s7381] sm:$0x1]
    %s7383 = scalar_lea.vmem [#allocation17], 4
    %v7384 = vld [vmem:[%s7383] sm:$0x1]
    %7385 = vadd.xlane.f32.xlu0 %v7377
    %v7386 = vpop.xlane.xlu0 %7385
    %7387 = vadd.xlane.f32.xlu0 %v7378
    %v7388 = vpop.xlane.xlu0 %7387
    %7389 = vadd.xlane.f32.xlu0 %v7379
    %v7390 = vpop.xlane.xlu0 %7389
    %7391 = vadd.xlane.f32.xlu0 %v7380
    %v7392 = vpop.xlane.xlu0 %7391
    %v7393 = vmul.f32 %v7386, %v1326
    %v7394 = vmul.f32 %v7388, %v1326
    %v7395 = vmul.f32 %v7390, %v1326
    %v7396 = vmul.f32 %v7392, %v1326
    %v7397 = vsub.f32 %v7377, %v7393
    %v7398 = vsub.f32 %v7378, %v7394
    %v7399 = vsub.f32 %v7379, %v7395
    %v7400 = vsub.f32 %v7380, %v7396
    %v7401 = vmul.f32 %v7397, %v7397
    %v7402 = vmul.f32 %v7398, %v7398
    %v7403 = vmul.f32 %v7399, %v7399
    %v7404 = vmul.f32 %v7400, %v7400
    %7405 = vadd.xlane.f32.xlu0 %v7401
    %v7406 = vpop.xlane.xlu0 %7405
    %7407 = vadd.xlane.f32.xlu0 %v7402
    %v7408 = vpop.xlane.xlu0 %7407
    %7409 = vadd.xlane.f32.xlu0 %v7403
    %v7410 = vpop.xlane.xlu0 %7409
    %7411 = vadd.xlane.f32.xlu0 %v7404
    %v7412 = vpop.xlane.xlu0 %7411
    %v7413 = vmul.f32 %v7406, %v1326
    %v7414 = vmul.f32 %v7408, %v1326
    %v7415 = vmul.f32 %v7410, %v1326
    %v7416 = vmul.f32 %v7412, %v1326
    %v7417 = vadd.f32 %v7413, 1e-05
    %v7418 = vadd.f32 %v7414, 1e-05
    %v7419 = vadd.f32 %v7415, 1e-05
    %v7420 = vadd.f32 %v7416, 1e-05
    %v7421 = vrsqrt.pop %v7417
    %v7422 = vmul.f32 %v7421, %v7417
    %v7423 = vmul.f32 %v7422, %v7421
    %v7424 = vmul.f32 0.5, %v7423
    %v7425 = vsub.f32 1.5, %v7424
    %v7426 = vmul.f32 %v7421, %v7425
    %vm7427 = vweird.f32 %v7417
    %vm7428 = vweird.f32 %v7421
    %vm7429 = vmor %vm7427, %vm7428
    %v7430 = vsel %vm7429, %v7421, %v7426
    %v7431 = vrsqrt.pop %v7418
    %v7432 = vmul.f32 %v7431, %v7418
    %v7433 = vmul.f32 %v7432, %v7431
    %v7434 = vmul.f32 0.5, %v7433
    %v7435 = vsub.f32 1.5, %v7434
    %v7436 = vmul.f32 %v7431, %v7435
    %vm7437 = vweird.f32 %v7418
    %vm7438 = vweird.f32 %v7431
    %vm7439 = vmor %vm7437, %vm7438
    %v7440 = vsel %vm7439, %v7431, %v7436
    %v7441 = vrsqrt.pop %v7419
    %v7442 = vmul.f32 %v7441, %v7419
    %v7443 = vmul.f32 %v7442, %v7441
    %v7444 = vmul.f32 0.5, %v7443
    %v7445 = vsub.f32 1.5, %v7444
    %v7446 = vmul.f32 %v7441, %v7445
    %vm7447 = vweird.f32 %v7419
    %vm7448 = vweird.f32 %v7441
    %vm7449 = vmor %vm7447, %vm7448
    %v7450 = vsel %vm7449, %v7441, %v7446
    %v7451 = vrsqrt.pop %v7420
    %v7452 = vmul.f32 %v7451, %v7420
    %v7453 = vmul.f32 %v7452, %v7451
    %v7454 = vmul.f32 0.5, %v7453
    %v7455 = vsub.f32 1.5, %v7454
    %v7456 = vmul.f32 %v7451, %v7455
    %vm7457 = vweird.f32 %v7420
    %vm7458 = vweird.f32 %v7451
    %vm7459 = vmor %vm7457, %vm7458
    %v7460 = vsel %vm7459, %v7451, %v7456
    %v7461 = vmul.f32 %v7397, %v7430
    %v7462 = vmul.f32 %v7398, %v7440
    %v7463 = vmul.f32 %v7399, %v7450
    %v7464 = vmul.f32 %v7400, %v7460
    %v7466 = vperm.slane %v7382, 0
    %v7468 = vmul.f32 %v7461, %v7466
    %v7469 = vmul.f32 %v7462, %v7466
    %v7470 = vmul.f32 %v7463, %v7466
    %v7471 = vmul.f32 %v7464, %v7466
    %v7473 = vperm.slane %v7384, 0
    %v7475 = vadd.f32 %v7468, %v7473
    %v7476 = vadd.f32 %v7469, %v7473
    %v7477 = vadd.f32 %v7470, %v7473
    %v7478 = vadd.f32 %v7471, %v7473
    %v7479 = vpack.c.bf16 %v7476, %v7475
    %v7480 = vpack.c.bf16 %v7478, %v7477
    %s7481 = scalar_lea.vmem [#allocation22], 1024
    %v7482 = vld [vmem:[%s7481] sm:$0xff]
    %v7483 = vld [vmem:[%s7481 + $0x8] sm:$0xff]
    %v7484 = vld [vmem:[%s7481 + $0x10] sm:$0xff]
    %v7485 = vld [vmem:[%s7481 + $0x18] sm:$0xff]
    %v7486 = vld [vmem:[%s7481 + $0x20] sm:$0xff]
    %v7487 = vld [vmem:[%s7481 + $0x28] sm:$0xff]
    %v7488 = vld [vmem:[%s7481 + $0x30] sm:$0xff]
    %v7489 = vld [vmem:[%s7481 + $0x38] sm:$0xff]
    %v7490 = vld [vmem:[%s7481 + $0x40] sm:$0xff]
    %v7491 = vld [vmem:[%s7481 + $0x48] sm:$0xff]
    %v7492 = vld [vmem:[%s7481 + $0x50] sm:$0xff]
    %v7493 = vld [vmem:[%s7481 + $0x58] sm:$0xff]
    %v7494 = vld [vmem:[%s7481 + $0x60] sm:$0xff]
    %v7495 = vld [vmem:[%s7481 + $0x68] sm:$0xff]
    %v7496 = vld [vmem:[%s7481 + $0x70] sm:$0xff]
    %v7497 = vld [vmem:[%s7481 + $0x78] sm:$0xff]
    %v7498 = vld [vmem:[%s7481 + $0x80] sm:$0xff]
    %v7499 = vld [vmem:[%s7481 + $0x88] sm:$0xff]
    %v7500 = vld [vmem:[%s7481 + $0x90] sm:$0xff]
    %v7501 = vld [vmem:[%s7481 + $0x98] sm:$0xff]
    %v7502 = vld [vmem:[%s7481 + $0xa0] sm:$0xff]
    %v7503 = vld [vmem:[%s7481 + $0xa8] sm:$0xff]
    %v7504 = vld [vmem:[%s7481 + $0xb0] sm:$0xff]
    %v7505 = vld [vmem:[%s7481 + $0xb8] sm:$0xff]
    %v7506 = vld [vmem:[%s7481 + $0xc0] sm:$0xff]
    %v7507 = vld [vmem:[%s7481 + $0xc8] sm:$0xff]
    %v7508 = vld [vmem:[%s7481 + $0xd0] sm:$0xff]
    %v7509 = vld [vmem:[%s7481 + $0xd8] sm:$0xff]
    %v7510 = vld [vmem:[%s7481 + $0xe0] sm:$0xff]
    %v7511 = vld [vmem:[%s7481 + $0xe8] sm:$0xff]
    %v7512 = vld [vmem:[%s7481 + $0xf0] sm:$0xff]
    %v7513 = vld [vmem:[%s7481 + $0xf8] sm:$0xff]
    %s7514 = scalar_lea.vmem %s15, 16
    %v7515 = vld [vmem:[%s7514] sm:$0xf]
    %v7517 = vperm.slane %v7515, 0
    %v7518 = vperm.slane %v7515, 1
    %v7519 = vperm.slane %v7515, 2
    %v7520 = vperm.slane %v7515, 3
    %v7557 = vunpack.c.l.b16 %v7482
    %v7558 = vunpack.c.h.b16 %v7482
    %v7559 = vunpack.c.l.b16 %v7483
    %v7560 = vunpack.c.h.b16 %v7483
    %v7561 = vunpack.c.l.b16 %v7484
    %v7562 = vunpack.c.h.b16 %v7484
    %v7563 = vunpack.c.l.b16 %v7485
    %v7564 = vunpack.c.h.b16 %v7485
    %v7565 = vunpack.c.l.b16 %v7486
    %v7566 = vunpack.c.h.b16 %v7486
    %v7567 = vunpack.c.l.b16 %v7487
    %v7568 = vunpack.c.h.b16 %v7487
    %v7569 = vunpack.c.l.b16 %v7488
    %v7570 = vunpack.c.h.b16 %v7488
    %v7571 = vunpack.c.l.b16 %v7489
    %v7572 = vunpack.c.h.b16 %v7489
    %v7573 = vunpack.c.l.b16 %v7490
    %v7574 = vunpack.c.h.b16 %v7490
    %v7575 = vunpack.c.l.b16 %v7491
    %v7576 = vunpack.c.h.b16 %v7491
    %v7577 = vunpack.c.l.b16 %v7492
    %v7578 = vunpack.c.h.b16 %v7492
    %v7579 = vunpack.c.l.b16 %v7493
    %v7580 = vunpack.c.h.b16 %v7493
    %v7581 = vunpack.c.l.b16 %v7494
    %v7582 = vunpack.c.h.b16 %v7494
    %v7583 = vunpack.c.l.b16 %v7495
    %v7584 = vunpack.c.h.b16 %v7495
    %v7585 = vunpack.c.l.b16 %v7496
    %v7586 = vunpack.c.h.b16 %v7496
    %v7587 = vunpack.c.l.b16 %v7497
    %v7588 = vunpack.c.h.b16 %v7497
    %v7589 = vunpack.c.l.b16 %v7498
    %v7590 = vunpack.c.h.b16 %v7498
    %v7591 = vunpack.c.l.b16 %v7499
    %v7592 = vunpack.c.h.b16 %v7499
    %v7593 = vunpack.c.l.b16 %v7500
    %v7594 = vunpack.c.h.b16 %v7500
    %v7595 = vunpack.c.l.b16 %v7501
    %v7596 = vunpack.c.h.b16 %v7501
    %v7597 = vunpack.c.l.b16 %v7502
    %v7598 = vunpack.c.h.b16 %v7502
    %v7599 = vunpack.c.l.b16 %v7503
    %v7600 = vunpack.c.h.b16 %v7503
    %v7601 = vunpack.c.l.b16 %v7504
    %v7602 = vunpack.c.h.b16 %v7504
    %v7603 = vunpack.c.l.b16 %v7505
    %v7604 = vunpack.c.h.b16 %v7505
    %v7605 = vunpack.c.l.b16 %v7506
    %v7606 = vunpack.c.h.b16 %v7506
    %v7607 = vunpack.c.l.b16 %v7507
    %v7608 = vunpack.c.h.b16 %v7507
    %v7609 = vunpack.c.l.b16 %v7508
    %v7610 = vunpack.c.h.b16 %v7508
    %v7611 = vunpack.c.l.b16 %v7509
    %v7612 = vunpack.c.h.b16 %v7509
    %v7613 = vunpack.c.l.b16 %v7510
    %v7614 = vunpack.c.h.b16 %v7510
    %v7615 = vunpack.c.l.b16 %v7511
    %v7616 = vunpack.c.h.b16 %v7511
    %v7617 = vunpack.c.l.b16 %v7512
    %v7618 = vunpack.c.h.b16 %v7512
    %v7619 = vunpack.c.l.b16 %v7513
    %v7620 = vunpack.c.h.b16 %v7513
    %v7621 = vpack.c.b16 %v7561, %v7557
    %v7622 = vpack.c.b16 %v7562, %v7558
    %v7623 = vpack.c.b16 %v7563, %v7559
    %v7624 = vpack.c.b16 %v7564, %v7560
    %v7625 = vpack.c.b16 %v7569, %v7565
    %v7626 = vpack.c.b16 %v7570, %v7566
    %v7627 = vpack.c.b16 %v7571, %v7567
    %v7628 = vpack.c.b16 %v7572, %v7568
    %v7629 = vpack.c.b16 %v7577, %v7573
    %v7630 = vpack.c.b16 %v7578, %v7574
    %v7631 = vpack.c.b16 %v7579, %v7575
    %v7632 = vpack.c.b16 %v7580, %v7576
    %v7633 = vpack.c.b16 %v7585, %v7581
    %v7634 = vpack.c.b16 %v7586, %v7582
    %v7635 = vpack.c.b16 %v7587, %v7583
    %v7636 = vpack.c.b16 %v7588, %v7584
    %v7637 = vpack.c.b16 %v7593, %v7589
    %v7638 = vpack.c.b16 %v7594, %v7590
    %v7639 = vpack.c.b16 %v7595, %v7591
    %v7640 = vpack.c.b16 %v7596, %v7592
    %v7641 = vpack.c.b16 %v7601, %v7597
    %v7642 = vpack.c.b16 %v7602, %v7598
    %v7643 = vpack.c.b16 %v7603, %v7599
    %v7644 = vpack.c.b16 %v7604, %v7600
    %v7645 = vpack.c.b16 %v7609, %v7605
    %v7646 = vpack.c.b16 %v7610, %v7606
    %v7647 = vpack.c.b16 %v7611, %v7607
    %v7648 = vpack.c.b16 %v7612, %v7608
    %v7649 = vpack.c.b16 %v7617, %v7613
    %v7650 = vpack.c.b16 %v7618, %v7614
    %v7651 = vpack.c.b16 %v7619, %v7615
    %v7652 = vpack.c.b16 %v7620, %v7616
    %7685 = vmatpush.bf16.msra.mxu0 %v7649
    %7686 = vmatpush.bf16.msra.mxu0 %v7645
    %7687 = vmatpush.bf16.msra.mxu0 %v7641
    %7688 = vmatpush.bf16.msra.mxu0 %v7637
    %7689 = vmatpush.bf16.msra.mxu0 %v7633
    %7690 = vmatpush.bf16.msra.mxu0 %v7629
    %7691 = vmatpush.bf16.msra.mxu0 %v7625
    %7692 = vmatpush.bf16.msra.mxu0 %v7621
    %7693 = vmatmul.bf16.gmra.mxu0 %v7479
    %v7694 = vpop.f32.mrf.mxu0
    %v7695 = vadd.f32 %v7517, %v7694
    %v7696 = vpop.f32.mrf.mxu0
    %v7697 = vadd.f32 %v7517, %v7696
    %7698 = vmatmul.bf16.gmra.mxu0 %v7480
    %v7699 = vpop.f32.mrf.mxu0
    %v7700 = vadd.f32 %v7517, %v7699
    %v7701 = vpop.f32.mrf.mxu0
    %v7702 = vadd.f32 %v7517, %v7701
    %7703 = vdwg.mxu0
    %7704 = vmatpush.bf16.msra.mxu0 %v7650
    %7705 = vmatpush.bf16.msra.mxu0 %v7646
    %7706 = vmatpush.bf16.msra.mxu0 %v7642
    %7707 = vmatpush.bf16.msra.mxu0 %v7638
    %7708 = vmatpush.bf16.msra.mxu0 %v7634
    %7709 = vmatpush.bf16.msra.mxu0 %v7630
    %7710 = vmatpush.bf16.msra.mxu0 %v7626
    %7711 = vmatpush.bf16.msra.mxu0 %v7622
    %7712 = vmatmul.bf16.gmra.mxu0 %v7479
    %v7713 = vpop.f32.mrf.mxu0
    %v7714 = vadd.f32 %v7518, %v7713
    %v7715 = vpop.f32.mrf.mxu0
    %v7716 = vadd.f32 %v7518, %v7715
    %7717 = vmatmul.bf16.gmra.mxu0 %v7480
    %v7718 = vpop.f32.mrf.mxu0
    %v7719 = vadd.f32 %v7518, %v7718
    %v7720 = vpop.f32.mrf.mxu0
    %v7721 = vadd.f32 %v7518, %v7720
    %7722 = vdwg.mxu0
    %7723 = vmatpush.bf16.msra.mxu0 %v7651
    %7724 = vmatpush.bf16.msra.mxu0 %v7647
    %7725 = vmatpush.bf16.msra.mxu0 %v7643
    %7726 = vmatpush.bf16.msra.mxu0 %v7639
    %7727 = vmatpush.bf16.msra.mxu0 %v7635
    %7728 = vmatpush.bf16.msra.mxu0 %v7631
    %7729 = vmatpush.bf16.msra.mxu0 %v7627
    %7730 = vmatpush.bf16.msra.mxu0 %v7623
    %7731 = vmatmul.bf16.gmra.mxu0 %v7479
    %v7732 = vpop.f32.mrf.mxu0
    %v7733 = vadd.f32 %v7519, %v7732
    %v7734 = vpop.f32.mrf.mxu0
    %v7735 = vadd.f32 %v7519, %v7734
    %7736 = vmatmul.bf16.gmra.mxu0 %v7480
    %v7737 = vpop.f32.mrf.mxu0
    %v7738 = vadd.f32 %v7519, %v7737
    %v7739 = vpop.f32.mrf.mxu0
    %v7740 = vadd.f32 %v7519, %v7739
    %7741 = vdwg.mxu0
    %7742 = vmatpush.bf16.msra.mxu0 %v7652
    %7743 = vmatpush.bf16.msra.mxu0 %v7648
    %7744 = vmatpush.bf16.msra.mxu0 %v7644
    %7745 = vmatpush.bf16.msra.mxu0 %v7640
    %7746 = vmatpush.bf16.msra.mxu0 %v7636
    %7747 = vmatpush.bf16.msra.mxu0 %v7632
    %7748 = vmatpush.bf16.msra.mxu0 %v7628
    %7749 = vmatpush.bf16.msra.mxu0 %v7624
    %7750 = vmatmul.bf16.gmra.mxu0 %v7479
    %v7751 = vpop.f32.mrf.mxu0
    %v7752 = vadd.f32 %v7520, %v7751
    %v7753 = vpop.f32.mrf.mxu0
    %v7754 = vadd.f32 %v7520, %v7753
    %7755 = vmatmul.bf16.gmra.mxu0 %v7480
    %v7756 = vpop.f32.mrf.mxu0
    %v7757 = vadd.f32 %v7520, %v7756
    %v7758 = vpop.f32.mrf.mxu0
    %v7759 = vadd.f32 %v7520, %v7758
    %7760 = vdwg.mxu0
    %v7761 = vmax.f32 %v7695, 0.0
    %v7762 = vmax.f32 %v7714, 0.0
    %v7763 = vmax.f32 %v7733, 0.0
    %v7764 = vmax.f32 %v7752, 0.0
    %v7765 = vmax.f32 %v7697, 0.0
    %v7766 = vmax.f32 %v7716, 0.0
    %v7767 = vmax.f32 %v7735, 0.0
    %v7768 = vmax.f32 %v7754, 0.0
    %v7769 = vmax.f32 %v7700, 0.0
    %v7770 = vmax.f32 %v7719, 0.0
    %v7771 = vmax.f32 %v7738, 0.0
    %v7772 = vmax.f32 %v7757, 0.0
    %v7773 = vmax.f32 %v7702, 0.0
    %v7774 = vmax.f32 %v7721, 0.0
    %v7775 = vmax.f32 %v7740, 0.0
    %v7776 = vmax.f32 %v7759, 0.0
    %v7777 = vpack.c.bf16 %v7765, %v7761
    %v7778 = vpack.c.bf16 %v7766, %v7762
    %v7779 = vpack.c.bf16 %v7767, %v7763
    %v7780 = vpack.c.bf16 %v7768, %v7764
    %v7781 = vpack.c.bf16 %v7773, %v7769
    %v7782 = vpack.c.bf16 %v7774, %v7770
    %v7783 = vpack.c.bf16 %v7775, %v7771
    %v7784 = vpack.c.bf16 %v7776, %v7772
    %s7785 = scalar_lea.vmem [#allocation23], 1024
    %v7786 = vld [vmem:[%s7785] sm:$0xf]
    %v7787 = vld [vmem:[%s7785 + $0x4] sm:$0xf]
    %v7788 = vld [vmem:[%s7785 + $0x8] sm:$0xf]
    %v7789 = vld [vmem:[%s7785 + $0xc] sm:$0xf]
    %v7790 = vld [vmem:[%s7785 + $0x10] sm:$0xf]
    %v7791 = vld [vmem:[%s7785 + $0x14] sm:$0xf]
    %v7792 = vld [vmem:[%s7785 + $0x18] sm:$0xf]
    %v7793 = vld [vmem:[%s7785 + $0x1c] sm:$0xf]
    %v7794 = vld [vmem:[%s7785 + $0x20] sm:$0xf]
    %v7795 = vld [vmem:[%s7785 + $0x24] sm:$0xf]
    %v7796 = vld [vmem:[%s7785 + $0x28] sm:$0xf]
    %v7797 = vld [vmem:[%s7785 + $0x2c] sm:$0xf]
    %v7798 = vld [vmem:[%s7785 + $0x30] sm:$0xf]
    %v7799 = vld [vmem:[%s7785 + $0x34] sm:$0xf]
    %v7800 = vld [vmem:[%s7785 + $0x38] sm:$0xf]
    %v7801 = vld [vmem:[%s7785 + $0x3c] sm:$0xf]
    %v7802 = vld [vmem:[%s7785 + $0x40] sm:$0xf]
    %v7803 = vld [vmem:[%s7785 + $0x44] sm:$0xf]
    %v7804 = vld [vmem:[%s7785 + $0x48] sm:$0xf]
    %v7805 = vld [vmem:[%s7785 + $0x4c] sm:$0xf]
    %v7806 = vld [vmem:[%s7785 + $0x50] sm:$0xf]
    %v7807 = vld [vmem:[%s7785 + $0x54] sm:$0xf]
    %v7808 = vld [vmem:[%s7785 + $0x58] sm:$0xf]
    %v7809 = vld [vmem:[%s7785 + $0x5c] sm:$0xf]
    %v7810 = vld [vmem:[%s7785 + $0x60] sm:$0xf]
    %v7811 = vld [vmem:[%s7785 + $0x64] sm:$0xf]
    %v7812 = vld [vmem:[%s7785 + $0x68] sm:$0xf]
    %v7813 = vld [vmem:[%s7785 + $0x6c] sm:$0xf]
    %v7814 = vld [vmem:[%s7785 + $0x70] sm:$0xf]
    %v7815 = vld [vmem:[%s7785 + $0x74] sm:$0xf]
    %v7816 = vld [vmem:[%s7785 + $0x78] sm:$0xf]
    %v7817 = vld [vmem:[%s7785 + $0x7c] sm:$0xf]
    %v7818 = vld [vmem:[%s7785 + $0x80] sm:$0xf]
    %v7819 = vld [vmem:[%s7785 + $0x84] sm:$0xf]
    %v7820 = vld [vmem:[%s7785 + $0x88] sm:$0xf]
    %v7821 = vld [vmem:[%s7785 + $0x8c] sm:$0xf]
    %v7822 = vld [vmem:[%s7785 + $0x90] sm:$0xf]
    %v7823 = vld [vmem:[%s7785 + $0x94] sm:$0xf]
    %v7824 = vld [vmem:[%s7785 + $0x98] sm:$0xf]
    %v7825 = vld [vmem:[%s7785 + $0x9c] sm:$0xf]
    %v7826 = vld [vmem:[%s7785 + $0xa0] sm:$0xf]
    %v7827 = vld [vmem:[%s7785 + $0xa4] sm:$0xf]
    %v7828 = vld [vmem:[%s7785 + $0xa8] sm:$0xf]
    %v7829 = vld [vmem:[%s7785 + $0xac] sm:$0xf]
    %v7830 = vld [vmem:[%s7785 + $0xb0] sm:$0xf]
    %v7831 = vld [vmem:[%s7785 + $0xb4] sm:$0xf]
    %v7832 = vld [vmem:[%s7785 + $0xb8] sm:$0xf]
    %v7833 = vld [vmem:[%s7785 + $0xbc] sm:$0xf]
    %v7834 = vld [vmem:[%s7785 + $0xc0] sm:$0xf]
    %v7835 = vld [vmem:[%s7785 + $0xc4] sm:$0xf]
    %v7836 = vld [vmem:[%s7785 + $0xc8] sm:$0xf]
    %v7837 = vld [vmem:[%s7785 + $0xcc] sm:$0xf]
    %v7838 = vld [vmem:[%s7785 + $0xd0] sm:$0xf]
    %v7839 = vld [vmem:[%s7785 + $0xd4] sm:$0xf]
    %v7840 = vld [vmem:[%s7785 + $0xd8] sm:$0xf]
    %v7841 = vld [vmem:[%s7785 + $0xdc] sm:$0xf]
    %v7842 = vld [vmem:[%s7785 + $0xe0] sm:$0xf]
    %v7843 = vld [vmem:[%s7785 + $0xe4] sm:$0xf]
    %v7844 = vld [vmem:[%s7785 + $0xe8] sm:$0xf]
    %v7845 = vld [vmem:[%s7785 + $0xec] sm:$0xf]
    %v7846 = vld [vmem:[%s7785 + $0xf0] sm:$0xf]
    %v7847 = vld [vmem:[%s7785 + $0xf4] sm:$0xf]
    %v7848 = vld [vmem:[%s7785 + $0xf8] sm:$0xf]
    %v7849 = vld [vmem:[%s7785 + $0xfc] sm:$0xf]
    %s7850 = scalar_lea.vmem [#allocation25], 4
    %v7851 = vld [vmem:[%s7850] sm:$0x1]
    %v7853 = vperm.slane %v7851, 0
    %v7919 = vunpack.c.l.b16 %v7786
    %v7920 = vunpack.c.l.b16 %v7787
    %v7921 = vunpack.c.l.b16 %v7788
    %v7922 = vunpack.c.l.b16 %v7789
    %v7923 = vunpack.c.l.b16 %v7790
    %v7924 = vunpack.c.l.b16 %v7791
    %v7925 = vunpack.c.l.b16 %v7792
    %v7926 = vunpack.c.l.b16 %v7793
    %v7927 = vunpack.c.l.b16 %v7794
    %v7928 = vunpack.c.l.b16 %v7795
    %v7929 = vunpack.c.l.b16 %v7796
    %v7930 = vunpack.c.l.b16 %v7797
    %v7931 = vunpack.c.l.b16 %v7798
    %v7932 = vunpack.c.l.b16 %v7799
    %v7933 = vunpack.c.l.b16 %v7800
    %v7934 = vunpack.c.l.b16 %v7801
    %v7935 = vunpack.c.l.b16 %v7802
    %v7936 = vunpack.c.l.b16 %v7803
    %v7937 = vunpack.c.l.b16 %v7804
    %v7938 = vunpack.c.l.b16 %v7805
    %v7939 = vunpack.c.l.b16 %v7806
    %v7940 = vunpack.c.l.b16 %v7807
    %v7941 = vunpack.c.l.b16 %v7808
    %v7942 = vunpack.c.l.b16 %v7809
    %v7943 = vunpack.c.l.b16 %v7810
    %v7944 = vunpack.c.l.b16 %v7811
    %v7945 = vunpack.c.l.b16 %v7812
    %v7946 = vunpack.c.l.b16 %v7813
    %v7947 = vunpack.c.l.b16 %v7814
    %v7948 = vunpack.c.l.b16 %v7815
    %v7949 = vunpack.c.l.b16 %v7816
    %v7950 = vunpack.c.l.b16 %v7817
    %v7951 = vunpack.c.l.b16 %v7818
    %v7952 = vunpack.c.l.b16 %v7819
    %v7953 = vunpack.c.l.b16 %v7820
    %v7954 = vunpack.c.l.b16 %v7821
    %v7955 = vunpack.c.l.b16 %v7822
    %v7956 = vunpack.c.l.b16 %v7823
    %v7957 = vunpack.c.l.b16 %v7824
    %v7958 = vunpack.c.l.b16 %v7825
    %v7959 = vunpack.c.l.b16 %v7826
    %v7960 = vunpack.c.l.b16 %v7827
    %v7961 = vunpack.c.l.b16 %v7828
    %v7962 = vunpack.c.l.b16 %v7829
    %v7963 = vunpack.c.l.b16 %v7830
    %v7964 = vunpack.c.l.b16 %v7831
    %v7965 = vunpack.c.l.b16 %v7832
    %v7966 = vunpack.c.l.b16 %v7833
    %v7967 = vunpack.c.l.b16 %v7834
    %v7968 = vunpack.c.l.b16 %v7835
    %v7969 = vunpack.c.l.b16 %v7836
    %v7970 = vunpack.c.l.b16 %v7837
    %v7971 = vunpack.c.l.b16 %v7838
    %v7972 = vunpack.c.l.b16 %v7839
    %v7973 = vunpack.c.l.b16 %v7840
    %v7974 = vunpack.c.l.b16 %v7841
    %v7975 = vunpack.c.l.b16 %v7842
    %v7976 = vunpack.c.l.b16 %v7843
    %v7977 = vunpack.c.l.b16 %v7844
    %v7978 = vunpack.c.l.b16 %v7845
    %v7979 = vunpack.c.l.b16 %v7846
    %v7980 = vunpack.c.l.b16 %v7847
    %v7981 = vunpack.c.l.b16 %v7848
    %v7982 = vunpack.c.l.b16 %v7849
    %v7983 = vpack.c.b16 %v7920, %v7919
    %v7984 = vpack.c.b16 %v7922, %v7921
    %v7985 = vpack.c.b16 %v7924, %v7923
    %v7986 = vpack.c.b16 %v7926, %v7925
    %v7987 = vpack.c.b16 %v7928, %v7927
    %v7988 = vpack.c.b16 %v7930, %v7929
    %v7989 = vpack.c.b16 %v7932, %v7931
    %v7990 = vpack.c.b16 %v7934, %v7933
    %v7991 = vpack.c.b16 %v7936, %v7935
    %v7992 = vpack.c.b16 %v7938, %v7937
    %v7993 = vpack.c.b16 %v7940, %v7939
    %v7994 = vpack.c.b16 %v7942, %v7941
    %v7995 = vpack.c.b16 %v7944, %v7943
    %v7996 = vpack.c.b16 %v7946, %v7945
    %v7997 = vpack.c.b16 %v7948, %v7947
    %v7998 = vpack.c.b16 %v7950, %v7949
    %v7999 = vpack.c.b16 %v7952, %v7951
    %v8000 = vpack.c.b16 %v7954, %v7953
    %v8001 = vpack.c.b16 %v7956, %v7955
    %v8002 = vpack.c.b16 %v7958, %v7957
    %v8003 = vpack.c.b16 %v7960, %v7959
    %v8004 = vpack.c.b16 %v7962, %v7961
    %v8005 = vpack.c.b16 %v7964, %v7963
    %v8006 = vpack.c.b16 %v7966, %v7965
    %v8007 = vpack.c.b16 %v7968, %v7967
    %v8008 = vpack.c.b16 %v7970, %v7969
    %v8009 = vpack.c.b16 %v7972, %v7971
    %v8010 = vpack.c.b16 %v7974, %v7973
    %v8011 = vpack.c.b16 %v7976, %v7975
    %v8012 = vpack.c.b16 %v7978, %v7977
    %v8013 = vpack.c.b16 %v7980, %v7979
    %v8014 = vpack.c.b16 %v7982, %v7981
    %8047 = vmatpush.bf16.msra.mxu0 %v7990
    %8048 = vmatpush.bf16.msra.mxu0 %v7989
    %8049 = vmatpush.bf16.msra.mxu0 %v7988
    %8050 = vmatpush.bf16.msra.mxu0 %v7987
    %8051 = vmatpush.bf16.msra.mxu0 %v7986
    %8052 = vmatpush.bf16.msra.mxu0 %v7985
    %8053 = vmatpush.bf16.msra.mxu0 %v7984
    %8054 = vmatpush.bf16.msra.mxu0 %v7983
    %8055 = vmatmul.bf16.gmra.mxu0 %v7777
    %v8056 = vpop.f32.mrf.mxu0
    %v8057 = vadd.f32 %v7853, %v8056
    %v8058 = vpop.f32.mrf.mxu0
    %v8059 = vadd.f32 %v7853, %v8058
    %8060 = vmatmul.bf16.gmra.mxu0 %v7781
    %v8061 = vpop.f32.mrf.mxu0
    %v8062 = vadd.f32 %v7853, %v8061
    %v8063 = vpop.f32.mrf.mxu0
    %v8064 = vadd.f32 %v7853, %v8063
    %8065 = vdwg.mxu0
    %8066 = vmatpush.bf16.msra.mxu0 %v7998
    %8067 = vmatpush.bf16.msra.mxu0 %v7997
    %8068 = vmatpush.bf16.msra.mxu0 %v7996
    %8069 = vmatpush.bf16.msra.mxu0 %v7995
    %8070 = vmatpush.bf16.msra.mxu0 %v7994
    %8071 = vmatpush.bf16.msra.mxu0 %v7993
    %8072 = vmatpush.bf16.msra.mxu0 %v7992
    %8073 = vmatpush.bf16.msra.mxu0 %v7991
    %8074 = vmatmul.bf16.gmra.mxu0 %v7778
    %v8075 = vpop.f32.mrf.mxu0
    %v8076 = vadd.f32 %v8057, %v8075
    %v8077 = vpop.f32.mrf.mxu0
    %v8078 = vadd.f32 %v8059, %v8077
    %8079 = vmatmul.bf16.gmra.mxu0 %v7782
    %v8080 = vpop.f32.mrf.mxu0
    %v8081 = vadd.f32 %v8062, %v8080
    %v8082 = vpop.f32.mrf.mxu0
    %v8083 = vadd.f32 %v8064, %v8082
    %8084 = vdwg.mxu0
    %8085 = vmatpush.bf16.msra.mxu0 %v8006
    %8086 = vmatpush.bf16.msra.mxu0 %v8005
    %8087 = vmatpush.bf16.msra.mxu0 %v8004
    %8088 = vmatpush.bf16.msra.mxu0 %v8003
    %8089 = vmatpush.bf16.msra.mxu0 %v8002
    %8090 = vmatpush.bf16.msra.mxu0 %v8001
    %8091 = vmatpush.bf16.msra.mxu0 %v8000
    %8092 = vmatpush.bf16.msra.mxu0 %v7999
    %8093 = vmatmul.bf16.gmra.mxu0 %v7779
    %v8094 = vpop.f32.mrf.mxu0
    %v8095 = vadd.f32 %v8076, %v8094
    %v8096 = vpop.f32.mrf.mxu0
    %v8097 = vadd.f32 %v8078, %v8096
    %8098 = vmatmul.bf16.gmra.mxu0 %v7783
    %v8099 = vpop.f32.mrf.mxu0
    %v8100 = vadd.f32 %v8081, %v8099
    %v8101 = vpop.f32.mrf.mxu0
    %v8102 = vadd.f32 %v8083, %v8101
    %8103 = vdwg.mxu0
    %8104 = vmatpush.bf16.msra.mxu0 %v8014
    %8105 = vmatpush.bf16.msra.mxu0 %v8013
    %8106 = vmatpush.bf16.msra.mxu0 %v8012
    %8107 = vmatpush.bf16.msra.mxu0 %v8011
    %8108 = vmatpush.bf16.msra.mxu0 %v8010
    %8109 = vmatpush.bf16.msra.mxu0 %v8009
    %8110 = vmatpush.bf16.msra.mxu0 %v8008
    %8111 = vmatpush.bf16.msra.mxu0 %v8007
    %8112 = vmatmul.bf16.gmra.mxu0 %v7780
    %v8113 = vpop.f32.mrf.mxu0
    %v8114 = vadd.f32 %v8095, %v8113
    %v8115 = vpop.f32.mrf.mxu0
    %v8116 = vadd.f32 %v8097, %v8115
    %8117 = vmatmul.bf16.gmra.mxu0 %v7784
    %v8118 = vpop.f32.mrf.mxu0
    %v8119 = vadd.f32 %v8100, %v8118
    %v8120 = vpop.f32.mrf.mxu0
    %v8121 = vadd.f32 %v8102, %v8120
    %8122 = vdwg.mxu0
    %v8123 = vadd.f32 %v7475, %v8114
    %v8124 = vadd.f32 %v7476, %v8116
    %v8125 = vadd.f32 %v7477, %v8119
    %v8126 = vadd.f32 %v7478, %v8121
    %s8127 = scalar_lea.vmem [#allocation19], 4
    %v8128 = vld [vmem:[%s8127] sm:$0x1]
    %s8129 = scalar_lea.vmem [#allocation20], 4
    %v8130 = vld [vmem:[%s8129] sm:$0x1]
    %8131 = vadd.xlane.f32.xlu0 %v8123
    %v8132 = vpop.xlane.xlu0 %8131
    %8133 = vadd.xlane.f32.xlu0 %v8124
    %v8134 = vpop.xlane.xlu0 %8133
    %8135 = vadd.xlane.f32.xlu0 %v8125
    %v8136 = vpop.xlane.xlu0 %8135
    %8137 = vadd.xlane.f32.xlu0 %v8126
    %v8138 = vpop.xlane.xlu0 %8137
    %v8139 = vmul.f32 %v8132, %v1326
    %v8140 = vmul.f32 %v8134, %v1326
    %v8141 = vmul.f32 %v8136, %v1326
    %v8142 = vmul.f32 %v8138, %v1326
    %v8143 = vsub.f32 %v8123, %v8139
    %v8144 = vsub.f32 %v8124, %v8140
    %v8145 = vsub.f32 %v8125, %v8141
    %v8146 = vsub.f32 %v8126, %v8142
    %v8147 = vmul.f32 %v8143, %v8143
    %v8148 = vmul.f32 %v8144, %v8144
    %v8149 = vmul.f32 %v8145, %v8145
    %v8150 = vmul.f32 %v8146, %v8146
    %8151 = vadd.xlane.f32.xlu0 %v8147
    %v8152 = vpop.xlane.xlu0 %8151
    %8153 = vadd.xlane.f32.xlu0 %v8148
    %v8154 = vpop.xlane.xlu0 %8153
    %8155 = vadd.xlane.f32.xlu0 %v8149
    %v8156 = vpop.xlane.xlu0 %8155
    %8157 = vadd.xlane.f32.xlu0 %v8150
    %v8158 = vpop.xlane.xlu0 %8157
    %v8159 = vmul.f32 %v8152, %v1326
    %v8160 = vmul.f32 %v8154, %v1326
    %v8161 = vmul.f32 %v8156, %v1326
    %v8162 = vmul.f32 %v8158, %v1326
    %v8163 = vadd.f32 %v8159, 1e-05
    %v8164 = vadd.f32 %v8160, 1e-05
    %v8165 = vadd.f32 %v8161, 1e-05
    %v8166 = vadd.f32 %v8162, 1e-05
    %v8167 = vrsqrt.pop %v8163
    %v8168 = vmul.f32 %v8167, %v8163
    %v8169 = vmul.f32 %v8168, %v8167
    %v8170 = vmul.f32 0.5, %v8169
    %v8171 = vsub.f32 1.5, %v8170
    %v8172 = vmul.f32 %v8167, %v8171
    %vm8173 = vweird.f32 %v8163
    %vm8174 = vweird.f32 %v8167
    %vm8175 = vmor %vm8173, %vm8174
    %v8176 = vsel %vm8175, %v8167, %v8172
    %v8177 = vrsqrt.pop %v8164
    %v8178 = vmul.f32 %v8177, %v8164
    %v8179 = vmul.f32 %v8178, %v8177
    %v8180 = vmul.f32 0.5, %v8179
    %v8181 = vsub.f32 1.5, %v8180
    %v8182 = vmul.f32 %v8177, %v8181
    %vm8183 = vweird.f32 %v8164
    %vm8184 = vweird.f32 %v8177
    %vm8185 = vmor %vm8183, %vm8184
    %v8186 = vsel %vm8185, %v8177, %v8182
    %v8187 = vrsqrt.pop %v8165
    %v8188 = vmul.f32 %v8187, %v8165
    %v8189 = vmul.f32 %v8188, %v8187
    %v8190 = vmul.f32 0.5, %v8189
    %v8191 = vsub.f32 1.5, %v8190
    %v8192 = vmul.f32 %v8187, %v8191
    %vm8193 = vweird.f32 %v8165
    %vm8194 = vweird.f32 %v8187
    %vm8195 = vmor %vm8193, %vm8194
    %v8196 = vsel %vm8195, %v8187, %v8192
    %v8197 = vrsqrt.pop %v8166
    %v8198 = vmul.f32 %v8197, %v8166
    %v8199 = vmul.f32 %v8198, %v8197
    %v8200 = vmul.f32 0.5, %v8199
    %v8201 = vsub.f32 1.5, %v8200
    %v8202 = vmul.f32 %v8197, %v8201
    %vm8203 = vweird.f32 %v8166
    %vm8204 = vweird.f32 %v8197
    %vm8205 = vmor %vm8203, %vm8204
    %v8206 = vsel %vm8205, %v8197, %v8202
    %v8207 = vmul.f32 %v8143, %v8176
    %v8208 = vmul.f32 %v8144, %v8186
    %v8209 = vmul.f32 %v8145, %v8196
    %v8210 = vmul.f32 %v8146, %v8206
    %v8212 = vperm.slane %v8128, 0
    %v8214 = vmul.f32 %v8207, %v8212
    %v8215 = vmul.f32 %v8208, %v8212
    %v8216 = vmul.f32 %v8209, %v8212
    %v8217 = vmul.f32 %v8210, %v8212
    %v8219 = vperm.slane %v8130, 0
    %v8221 = vadd.f32 %v8214, %v8219
    %v8222 = vadd.f32 %v8215, %v8219
    %v8223 = vadd.f32 %v8216, %v8219
    %v8224 = vadd.f32 %v8217, %v8219
    %v8226 = vrot.slane %v8221, 2
    %v8228 = vrot.slane %v8221, 4
    %v8230 = vrot.slane %v8221, 6
    %v8233 = vrot.slane %v8222, 2
    %v8235 = vrot.slane %v8222, 4
    %v8237 = vrot.slane %v8222, 6
    %v8240 = vrot.slane %v8223, 2
    %v8242 = vrot.slane %v8223, 4
    %v8244 = vrot.slane %v8223, 6
    %v8247 = vrot.slane %v8224, 2
    %v8249 = vrot.slane %v8224, 4
    %v8251 = vrot.slane %v8224, 6
    %v8253 = vpack.c.bf16 %v8221, %v8221
    %v8254 = vpack.c.bf16 %v8226, %v8226
    %v8255 = vpack.c.bf16 %v8228, %v8228
    %v8256 = vpack.c.bf16 %v8230, %v8230
    %v8257 = vpack.c.bf16 %v8222, %v8222
    %v8258 = vpack.c.bf16 %v8233, %v8233
    %v8259 = vpack.c.bf16 %v8235, %v8235
    %v8260 = vpack.c.bf16 %v8237, %v8237
    %v8261 = vpack.c.bf16 %v8223, %v8223
    %v8262 = vpack.c.bf16 %v8240, %v8240
    %v8263 = vpack.c.bf16 %v8242, %v8242
    %v8264 = vpack.c.bf16 %v8244, %v8244
    %v8265 = vpack.c.bf16 %v8224, %v8224
    %v8266 = vpack.c.bf16 %v8247, %v8247
    %v8267 = vpack.c.bf16 %v8249, %v8249
    %v8268 = vpack.c.bf16 %v8251, %v8251
    %v8269 = vld [vmem:[#allocation26] sm:$0xf]
    %v8270 = vld [vmem:[#allocation26 + $0x4] sm:$0xf]
    %v8271 = vld [vmem:[#allocation26 + $0x8] sm:$0xf]
    %v8272 = vld [vmem:[#allocation26 + $0xc] sm:$0xf]
    %v8273 = vld [vmem:[#allocation26 + $0x10] sm:$0xf]
    %v8274 = vld [vmem:[#allocation26 + $0x14] sm:$0xf]
    %v8275 = vld [vmem:[#allocation26 + $0x18] sm:$0xf]
    %v8276 = vld [vmem:[#allocation26 + $0x1c] sm:$0xf]
    %v8277 = vld [vmem:[#allocation26 + $0x20] sm:$0xf]
    %v8278 = vld [vmem:[#allocation26 + $0x24] sm:$0xf]
    %v8279 = vld [vmem:[#allocation26 + $0x28] sm:$0xf]
    %v8280 = vld [vmem:[#allocation26 + $0x2c] sm:$0xf]
    %v8281 = vld [vmem:[#allocation26 + $0x30] sm:$0xf]
    %v8282 = vld [vmem:[#allocation26 + $0x34] sm:$0xf]
    %v8283 = vld [vmem:[#allocation26 + $0x38] sm:$0xf]
    %v8284 = vld [vmem:[#allocation26 + $0x3c] sm:$0xf]
    %v8285 = vld [vmem:[#allocation26 + $0x40] sm:$0xf]
    %v8286 = vld [vmem:[#allocation26 + $0x44] sm:$0xf]
    %v8287 = vld [vmem:[#allocation26 + $0x48] sm:$0xf]
    %v8288 = vld [vmem:[#allocation26 + $0x4c] sm:$0xf]
    %v8289 = vld [vmem:[#allocation26 + $0x50] sm:$0xf]
    %v8290 = vld [vmem:[#allocation26 + $0x54] sm:$0xf]
    %v8291 = vld [vmem:[#allocation26 + $0x58] sm:$0xf]
    %v8292 = vld [vmem:[#allocation26 + $0x5c] sm:$0xf]
    %v8293 = vld [vmem:[#allocation26 + $0x60] sm:$0xf]
    %v8294 = vld [vmem:[#allocation26 + $0x64] sm:$0xf]
    %v8295 = vld [vmem:[#allocation26 + $0x68] sm:$0xf]
    %v8296 = vld [vmem:[#allocation26 + $0x6c] sm:$0xf]
    %v8297 = vld [vmem:[#allocation26 + $0x70] sm:$0xf]
    %v8298 = vld [vmem:[#allocation26 + $0x74] sm:$0xf]
    %v8299 = vld [vmem:[#allocation26 + $0x78] sm:$0xf]
    %v8300 = vld [vmem:[#allocation26 + $0x7c] sm:$0xf]
    %v8301 = vld [vmem:[#allocation26 + $0x80] sm:$0xf]
    %v8302 = vld [vmem:[#allocation26 + $0x84] sm:$0xf]
    %v8303 = vld [vmem:[#allocation26 + $0x88] sm:$0xf]
    %v8304 = vld [vmem:[#allocation26 + $0x8c] sm:$0xf]
    %v8305 = vld [vmem:[#allocation26 + $0x90] sm:$0xf]
    %v8306 = vld [vmem:[#allocation26 + $0x94] sm:$0xf]
    %v8307 = vld [vmem:[#allocation26 + $0x98] sm:$0xf]
    %v8308 = vld [vmem:[#allocation26 + $0x9c] sm:$0xf]
    %v8309 = vld [vmem:[#allocation26 + $0xa0] sm:$0xf]
    %v8310 = vld [vmem:[#allocation26 + $0xa4] sm:$0xf]
    %v8311 = vld [vmem:[#allocation26 + $0xa8] sm:$0xf]
    %v8312 = vld [vmem:[#allocation26 + $0xac] sm:$0xf]
    %v8313 = vld [vmem:[#allocation26 + $0xb0] sm:$0xf]
    %v8314 = vld [vmem:[#allocation26 + $0xb4] sm:$0xf]
    %v8315 = vld [vmem:[#allocation26 + $0xb8] sm:$0xf]
    %v8316 = vld [vmem:[#allocation26 + $0xbc] sm:$0xf]
    %v8317 = vld [vmem:[#allocation26 + $0xc0] sm:$0xf]
    %v8318 = vld [vmem:[#allocation26 + $0xc4] sm:$0xf]
    %v8319 = vld [vmem:[#allocation26 + $0xc8] sm:$0xf]
    %v8320 = vld [vmem:[#allocation26 + $0xcc] sm:$0xf]
    %v8321 = vld [vmem:[#allocation26 + $0xd0] sm:$0xf]
    %v8322 = vld [vmem:[#allocation26 + $0xd4] sm:$0xf]
    %v8323 = vld [vmem:[#allocation26 + $0xd8] sm:$0xf]
    %v8324 = vld [vmem:[#allocation26 + $0xdc] sm:$0xf]
    %v8325 = vld [vmem:[#allocation26 + $0xe0] sm:$0xf]
    %v8326 = vld [vmem:[#allocation26 + $0xe4] sm:$0xf]
    %v8327 = vld [vmem:[#allocation26 + $0xe8] sm:$0xf]
    %v8328 = vld [vmem:[#allocation26 + $0xec] sm:$0xf]
    %v8329 = vld [vmem:[#allocation26 + $0xf0] sm:$0xf]
    %v8330 = vld [vmem:[#allocation26 + $0xf4] sm:$0xf]
    %v8331 = vld [vmem:[#allocation26 + $0xf8] sm:$0xf]
    %v8332 = vld [vmem:[#allocation26 + $0xfc] sm:$0xf]
    %v8333 = vld [vmem:[#allocation26 + $0x100] sm:$0xf]
    %v8334 = vld [vmem:[#allocation26 + $0x104] sm:$0xf]
    %v8335 = vld [vmem:[#allocation26 + $0x108] sm:$0xf]
    %v8336 = vld [vmem:[#allocation26 + $0x10c] sm:$0xf]
    %v8337 = vld [vmem:[#allocation26 + $0x110] sm:$0xf]
    %v8338 = vld [vmem:[#allocation26 + $0x114] sm:$0xf]
    %v8339 = vld [vmem:[#allocation26 + $0x118] sm:$0xf]
    %v8340 = vld [vmem:[#allocation26 + $0x11c] sm:$0xf]
    %v8341 = vld [vmem:[#allocation26 + $0x120] sm:$0xf]
    %v8342 = vld [vmem:[#allocation26 + $0x124] sm:$0xf]
    %v8343 = vld [vmem:[#allocation26 + $0x128] sm:$0xf]
    %v8344 = vld [vmem:[#allocation26 + $0x12c] sm:$0xf]
    %v8345 = vld [vmem:[#allocation26 + $0x130] sm:$0xf]
    %v8346 = vld [vmem:[#allocation26 + $0x134] sm:$0xf]
    %v8347 = vld [vmem:[#allocation26 + $0x138] sm:$0xf]
    %v8348 = vld [vmem:[#allocation26 + $0x13c] sm:$0xf]
    %v8349 = vld [vmem:[#allocation26 + $0x140] sm:$0xf]
    %v8350 = vld [vmem:[#allocation26 + $0x144] sm:$0xf]
    %v8351 = vld [vmem:[#allocation26 + $0x148] sm:$0xf]
    %v8352 = vld [vmem:[#allocation26 + $0x14c] sm:$0xf]
    %v8353 = vld [vmem:[#allocation26 + $0x150] sm:$0xf]
    %v8354 = vld [vmem:[#allocation26 + $0x154] sm:$0xf]
    %v8355 = vld [vmem:[#allocation26 + $0x158] sm:$0xf]
    %v8356 = vld [vmem:[#allocation26 + $0x15c] sm:$0xf]
    %v8357 = vld [vmem:[#allocation26 + $0x160] sm:$0xf]
    %v8358 = vld [vmem:[#allocation26 + $0x164] sm:$0xf]
    %v8359 = vld [vmem:[#allocation26 + $0x168] sm:$0xf]
    %v8360 = vld [vmem:[#allocation26 + $0x16c] sm:$0xf]
    %v8361 = vld [vmem:[#allocation26 + $0x170] sm:$0xf]
    %v8362 = vld [vmem:[#allocation26 + $0x174] sm:$0xf]
    %v8363 = vld [vmem:[#allocation26 + $0x178] sm:$0xf]
    %v8364 = vld [vmem:[#allocation26 + $0x17c] sm:$0xf]
    %v8365 = vld [vmem:[#allocation26 + $0x180] sm:$0xf]
    %v8366 = vld [vmem:[#allocation26 + $0x184] sm:$0xf]
    %v8367 = vld [vmem:[#allocation26 + $0x188] sm:$0xf]
    %v8368 = vld [vmem:[#allocation26 + $0x18c] sm:$0xf]
    %v8369 = vld [vmem:[#allocation26 + $0x190] sm:$0xf]
    %v8370 = vld [vmem:[#allocation26 + $0x194] sm:$0xf]
    %v8371 = vld [vmem:[#allocation26 + $0x198] sm:$0xf]
    %v8372 = vld [vmem:[#allocation26 + $0x19c] sm:$0xf]
    %v8373 = vld [vmem:[#allocation26 + $0x1a0] sm:$0xf]
    %v8374 = vld [vmem:[#allocation26 + $0x1a4] sm:$0xf]
    %v8375 = vld [vmem:[#allocation26 + $0x1a8] sm:$0xf]
    %v8376 = vld [vmem:[#allocation26 + $0x1ac] sm:$0xf]
    %v8377 = vld [vmem:[#allocation26 + $0x1b0] sm:$0xf]
    %v8378 = vld [vmem:[#allocation26 + $0x1b4] sm:$0xf]
    %v8379 = vld [vmem:[#allocation26 + $0x1b8] sm:$0xf]
    %v8380 = vld [vmem:[#allocation26 + $0x1bc] sm:$0xf]
    %v8381 = vld [vmem:[#allocation26 + $0x1c0] sm:$0xf]
    %v8382 = vld [vmem:[#allocation26 + $0x1c4] sm:$0xf]
    %v8383 = vld [vmem:[#allocation26 + $0x1c8] sm:$0xf]
    %v8384 = vld [vmem:[#allocation26 + $0x1cc] sm:$0xf]
    %v8385 = vld [vmem:[#allocation26 + $0x1d0] sm:$0xf]
    %v8386 = vld [vmem:[#allocation26 + $0x1d4] sm:$0xf]
    %v8387 = vld [vmem:[#allocation26 + $0x1d8] sm:$0xf]
    %v8388 = vld [vmem:[#allocation26 + $0x1dc] sm:$0xf]
    %v8389 = vld [vmem:[#allocation26 + $0x1e0] sm:$0xf]
    %v8390 = vld [vmem:[#allocation26 + $0x1e4] sm:$0xf]
    %v8391 = vld [vmem:[#allocation26 + $0x1e8] sm:$0xf]
    %v8392 = vld [vmem:[#allocation26 + $0x1ec] sm:$0xf]
    %v8393 = vld [vmem:[#allocation26 + $0x1f0] sm:$0xf]
    %v8394 = vld [vmem:[#allocation26 + $0x1f4] sm:$0xf]
    %v8395 = vld [vmem:[#allocation26 + $0x1f8] sm:$0xf]
    %v8396 = vld [vmem:[#allocation26 + $0x1fc] sm:$0xf]
    %v8397 = vld [vmem:[#allocation26 + $0x200] sm:$0xf]
    %v8398 = vld [vmem:[#allocation26 + $0x204] sm:$0xf]
    %v8399 = vld [vmem:[#allocation26 + $0x208] sm:$0xf]
    %v8400 = vld [vmem:[#allocation26 + $0x20c] sm:$0xf]
    %v8401 = vld [vmem:[#allocation26 + $0x210] sm:$0xf]
    %v8402 = vld [vmem:[#allocation26 + $0x214] sm:$0xf]
    %v8403 = vld [vmem:[#allocation26 + $0x218] sm:$0xf]
    %v8404 = vld [vmem:[#allocation26 + $0x21c] sm:$0xf]
    %v8405 = vld [vmem:[#allocation26 + $0x220] sm:$0xf]
    %v8406 = vld [vmem:[#allocation26 + $0x224] sm:$0xf]
    %v8407 = vld [vmem:[#allocation26 + $0x228] sm:$0xf]
    %v8408 = vld [vmem:[#allocation26 + $0x22c] sm:$0xf]
    %v8409 = vld [vmem:[#allocation26 + $0x230] sm:$0xf]
    %v8410 = vld [vmem:[#allocation26 + $0x234] sm:$0xf]
    %v8411 = vld [vmem:[#allocation26 + $0x238] sm:$0xf]
    %v8412 = vld [vmem:[#allocation26 + $0x23c] sm:$0xf]
    %v8413 = vld [vmem:[#allocation26 + $0x240] sm:$0xf]
    %v8414 = vld [vmem:[#allocation26 + $0x244] sm:$0xf]
    %v8415 = vld [vmem:[#allocation26 + $0x248] sm:$0xf]
    %v8416 = vld [vmem:[#allocation26 + $0x24c] sm:$0xf]
    %v8417 = vld [vmem:[#allocation26 + $0x250] sm:$0xf]
    %v8418 = vld [vmem:[#allocation26 + $0x254] sm:$0xf]
    %v8419 = vld [vmem:[#allocation26 + $0x258] sm:$0xf]
    %v8420 = vld [vmem:[#allocation26 + $0x25c] sm:$0xf]
    %v8421 = vld [vmem:[#allocation26 + $0x260] sm:$0xf]
    %v8422 = vld [vmem:[#allocation26 + $0x264] sm:$0xf]
    %v8423 = vld [vmem:[#allocation26 + $0x268] sm:$0xf]
    %v8424 = vld [vmem:[#allocation26 + $0x26c] sm:$0xf]
    %v8425 = vld [vmem:[#allocation26 + $0x270] sm:$0xf]
    %v8426 = vld [vmem:[#allocation26 + $0x274] sm:$0xf]
    %v8427 = vld [vmem:[#allocation26 + $0x278] sm:$0xf]
    %v8428 = vld [vmem:[#allocation26 + $0x27c] sm:$0xf]
    %v8429 = vld [vmem:[#allocation26 + $0x280] sm:$0xf]
    %v8430 = vld [vmem:[#allocation26 + $0x284] sm:$0xf]
    %v8431 = vld [vmem:[#allocation26 + $0x288] sm:$0xf]
    %v8432 = vld [vmem:[#allocation26 + $0x28c] sm:$0xf]
    %v8433 = vld [vmem:[#allocation26 + $0x290] sm:$0xf]
    %v8434 = vld [vmem:[#allocation26 + $0x294] sm:$0xf]
    %v8435 = vld [vmem:[#allocation26 + $0x298] sm:$0xf]
    %v8436 = vld [vmem:[#allocation26 + $0x29c] sm:$0xf]
    %v8437 = vld [vmem:[#allocation26 + $0x2a0] sm:$0xf]
    %v8438 = vld [vmem:[#allocation26 + $0x2a4] sm:$0xf]
    %v8439 = vld [vmem:[#allocation26 + $0x2a8] sm:$0xf]
    %v8440 = vld [vmem:[#allocation26 + $0x2ac] sm:$0xf]
    %v8441 = vld [vmem:[#allocation26 + $0x2b0] sm:$0xf]
    %v8442 = vld [vmem:[#allocation26 + $0x2b4] sm:$0xf]
    %v8443 = vld [vmem:[#allocation26 + $0x2b8] sm:$0xf]
    %v8444 = vld [vmem:[#allocation26 + $0x2bc] sm:$0xf]
    %v8445 = vld [vmem:[#allocation26 + $0x2c0] sm:$0xf]
    %v8446 = vld [vmem:[#allocation26 + $0x2c4] sm:$0xf]
    %v8447 = vld [vmem:[#allocation26 + $0x2c8] sm:$0xf]
    %v8448 = vld [vmem:[#allocation26 + $0x2cc] sm:$0xf]
    %v8449 = vld [vmem:[#allocation26 + $0x2d0] sm:$0xf]
    %v8450 = vld [vmem:[#allocation26 + $0x2d4] sm:$0xf]
    %v8451 = vld [vmem:[#allocation26 + $0x2d8] sm:$0xf]
    %v8452 = vld [vmem:[#allocation26 + $0x2dc] sm:$0xf]
    %v8453 = vld [vmem:[#allocation26 + $0x2e0] sm:$0xf]
    %v8454 = vld [vmem:[#allocation26 + $0x2e4] sm:$0xf]
    %v8455 = vld [vmem:[#allocation26 + $0x2e8] sm:$0xf]
    %v8456 = vld [vmem:[#allocation26 + $0x2ec] sm:$0xf]
    %v8457 = vld [vmem:[#allocation26 + $0x2f0] sm:$0xf]
    %v8458 = vld [vmem:[#allocation26 + $0x2f4] sm:$0xf]
    %v8459 = vld [vmem:[#allocation26 + $0x2f8] sm:$0xf]
    %v8460 = vld [vmem:[#allocation26 + $0x2fc] sm:$0xf]
    %v8461 = vld [vmem:[#allocation26 + $0x300] sm:$0xf]
    %v8462 = vld [vmem:[#allocation26 + $0x304] sm:$0xf]
    %v8463 = vld [vmem:[#allocation26 + $0x308] sm:$0xf]
    %v8464 = vld [vmem:[#allocation26 + $0x30c] sm:$0xf]
    %v8465 = vld [vmem:[#allocation26 + $0x310] sm:$0xf]
    %v8466 = vld [vmem:[#allocation26 + $0x314] sm:$0xf]
    %v8467 = vld [vmem:[#allocation26 + $0x318] sm:$0xf]
    %v8468 = vld [vmem:[#allocation26 + $0x31c] sm:$0xf]
    %v8469 = vld [vmem:[#allocation26 + $0x320] sm:$0xf]
    %v8470 = vld [vmem:[#allocation26 + $0x324] sm:$0xf]
    %v8471 = vld [vmem:[#allocation26 + $0x328] sm:$0xf]
    %v8472 = vld [vmem:[#allocation26 + $0x32c] sm:$0xf]
    %v8473 = vld [vmem:[#allocation26 + $0x330] sm:$0xf]
    %v8474 = vld [vmem:[#allocation26 + $0x334] sm:$0xf]
    %v8475 = vld [vmem:[#allocation26 + $0x338] sm:$0xf]
    %v8476 = vld [vmem:[#allocation26 + $0x33c] sm:$0xf]
    %v8477 = vld [vmem:[#allocation26 + $0x340] sm:$0xf]
    %v8478 = vld [vmem:[#allocation26 + $0x344] sm:$0xf]
    %v8479 = vld [vmem:[#allocation26 + $0x348] sm:$0xf]
    %v8480 = vld [vmem:[#allocation26 + $0x34c] sm:$0xf]
    %v8481 = vld [vmem:[#allocation26 + $0x350] sm:$0xf]
    %v8482 = vld [vmem:[#allocation26 + $0x354] sm:$0xf]
    %v8483 = vld [vmem:[#allocation26 + $0x358] sm:$0xf]
    %v8484 = vld [vmem:[#allocation26 + $0x35c] sm:$0xf]
    %v8485 = vld [vmem:[#allocation26 + $0x360] sm:$0xf]
    %v8486 = vld [vmem:[#allocation26 + $0x364] sm:$0xf]
    %v8487 = vld [vmem:[#allocation26 + $0x368] sm:$0xf]
    %v8488 = vld [vmem:[#allocation26 + $0x36c] sm:$0xf]
    %v8489 = vld [vmem:[#allocation26 + $0x370] sm:$0xf]
    %v8490 = vld [vmem:[#allocation26 + $0x374] sm:$0xf]
    %v8491 = vld [vmem:[#allocation26 + $0x378] sm:$0xf]
    %v8492 = vld [vmem:[#allocation26 + $0x37c] sm:$0xf]
    %v8493 = vld [vmem:[#allocation26 + $0x380] sm:$0xf]
    %v8494 = vld [vmem:[#allocation26 + $0x384] sm:$0xf]
    %v8495 = vld [vmem:[#allocation26 + $0x388] sm:$0xf]
    %v8496 = vld [vmem:[#allocation26 + $0x38c] sm:$0xf]
    %v8497 = vld [vmem:[#allocation26 + $0x390] sm:$0xf]
    %v8498 = vld [vmem:[#allocation26 + $0x394] sm:$0xf]
    %v8499 = vld [vmem:[#allocation26 + $0x398] sm:$0xf]
    %v8500 = vld [vmem:[#allocation26 + $0x39c] sm:$0xf]
    %v8501 = vld [vmem:[#allocation26 + $0x3a0] sm:$0xf]
    %v8502 = vld [vmem:[#allocation26 + $0x3a4] sm:$0xf]
    %v8503 = vld [vmem:[#allocation26 + $0x3a8] sm:$0xf]
    %v8504 = vld [vmem:[#allocation26 + $0x3ac] sm:$0xf]
    %v8505 = vld [vmem:[#allocation26 + $0x3b0] sm:$0xf]
    %v8506 = vld [vmem:[#allocation26 + $0x3b4] sm:$0xf]
    %v8507 = vld [vmem:[#allocation26 + $0x3b8] sm:$0xf]
    %v8508 = vld [vmem:[#allocation26 + $0x3bc] sm:$0xf]
    %v8509 = vld [vmem:[#allocation26 + $0x3c0] sm:$0xf]
    %v8510 = vld [vmem:[#allocation26 + $0x3c4] sm:$0xf]
    %v8511 = vld [vmem:[#allocation26 + $0x3c8] sm:$0xf]
    %v8512 = vld [vmem:[#allocation26 + $0x3cc] sm:$0xf]
    %v8513 = vld [vmem:[#allocation26 + $0x3d0] sm:$0xf]
    %v8514 = vld [vmem:[#allocation26 + $0x3d4] sm:$0xf]
    %v8515 = vld [vmem:[#allocation26 + $0x3d8] sm:$0xf]
    %v8516 = vld [vmem:[#allocation26 + $0x3dc] sm:$0xf]
    %v8517 = vld [vmem:[#allocation26 + $0x3e0] sm:$0xf]
    %v8518 = vld [vmem:[#allocation26 + $0x3e4] sm:$0xf]
    %v8519 = vld [vmem:[#allocation26 + $0x3e8] sm:$0xf]
    %v8520 = vld [vmem:[#allocation26 + $0x3ec] sm:$0xf]
    %v8521 = vld [vmem:[#allocation26 + $0x3f0] sm:$0xf]
    %v8522 = vld [vmem:[#allocation26 + $0x3f4] sm:$0xf]
    %v8523 = vld [vmem:[#allocation26 + $0x3f8] sm:$0xf]
    %v8524 = vld [vmem:[#allocation26 + $0x3fc] sm:$0xf]
    %v8525 = vld [vmem:[%s19] sm:$0x1]
    %v8527 = vperm.slane %v8525, 0
    %v8785 = vunpack.c.l.b16 %v8269
    %v8786 = vunpack.c.l.b16 %v8270
    %v8787 = vunpack.c.l.b16 %v8271
    %v8788 = vunpack.c.l.b16 %v8272
    %v8789 = vunpack.c.l.b16 %v8273
    %v8790 = vunpack.c.l.b16 %v8274
    %v8791 = vunpack.c.l.b16 %v8275
    %v8792 = vunpack.c.l.b16 %v8276
    %v8793 = vunpack.c.l.b16 %v8277
    %v8794 = vunpack.c.l.b16 %v8278
    %v8795 = vunpack.c.l.b16 %v8279
    %v8796 = vunpack.c.l.b16 %v8280
    %v8797 = vunpack.c.l.b16 %v8281
    %v8798 = vunpack.c.l.b16 %v8282
    %v8799 = vunpack.c.l.b16 %v8283
    %v8800 = vunpack.c.l.b16 %v8284
    %v8801 = vunpack.c.l.b16 %v8285
    %v8802 = vunpack.c.l.b16 %v8286
    %v8803 = vunpack.c.l.b16 %v8287
    %v8804 = vunpack.c.l.b16 %v8288
    %v8805 = vunpack.c.l.b16 %v8289
    %v8806 = vunpack.c.l.b16 %v8290
    %v8807 = vunpack.c.l.b16 %v8291
    %v8808 = vunpack.c.l.b16 %v8292
    %v8809 = vunpack.c.l.b16 %v8293
    %v8810 = vunpack.c.l.b16 %v8294
    %v8811 = vunpack.c.l.b16 %v8295
    %v8812 = vunpack.c.l.b16 %v8296
    %v8813 = vunpack.c.l.b16 %v8297
    %v8814 = vunpack.c.l.b16 %v8298
    %v8815 = vunpack.c.l.b16 %v8299
    %v8816 = vunpack.c.l.b16 %v8300
    %v8817 = vunpack.c.l.b16 %v8301
    %v8818 = vunpack.c.l.b16 %v8302
    %v8819 = vunpack.c.l.b16 %v8303
    %v8820 = vunpack.c.l.b16 %v8304
    %v8821 = vunpack.c.l.b16 %v8305
    %v8822 = vunpack.c.l.b16 %v8306
    %v8823 = vunpack.c.l.b16 %v8307
    %v8824 = vunpack.c.l.b16 %v8308
    %v8825 = vunpack.c.l.b16 %v8309
    %v8826 = vunpack.c.l.b16 %v8310
    %v8827 = vunpack.c.l.b16 %v8311
    %v8828 = vunpack.c.l.b16 %v8312
    %v8829 = vunpack.c.l.b16 %v8313
    %v8830 = vunpack.c.l.b16 %v8314
    %v8831 = vunpack.c.l.b16 %v8315
    %v8832 = vunpack.c.l.b16 %v8316
    %v8833 = vunpack.c.l.b16 %v8317
    %v8834 = vunpack.c.l.b16 %v8318
    %v8835 = vunpack.c.l.b16 %v8319
    %v8836 = vunpack.c.l.b16 %v8320
    %v8837 = vunpack.c.l.b16 %v8321
    %v8838 = vunpack.c.l.b16 %v8322
    %v8839 = vunpack.c.l.b16 %v8323
    %v8840 = vunpack.c.l.b16 %v8324
    %v8841 = vunpack.c.l.b16 %v8325
    %v8842 = vunpack.c.l.b16 %v8326
    %v8843 = vunpack.c.l.b16 %v8327
    %v8844 = vunpack.c.l.b16 %v8328
    %v8845 = vunpack.c.l.b16 %v8329
    %v8846 = vunpack.c.l.b16 %v8330
    %v8847 = vunpack.c.l.b16 %v8331
    %v8848 = vunpack.c.l.b16 %v8332
    %v8849 = vunpack.c.l.b16 %v8333
    %v8850 = vunpack.c.l.b16 %v8334
    %v8851 = vunpack.c.l.b16 %v8335
    %v8852 = vunpack.c.l.b16 %v8336
    %v8853 = vunpack.c.l.b16 %v8337
    %v8854 = vunpack.c.l.b16 %v8338
    %v8855 = vunpack.c.l.b16 %v8339
    %v8856 = vunpack.c.l.b16 %v8340
    %v8857 = vunpack.c.l.b16 %v8341
    %v8858 = vunpack.c.l.b16 %v8342
    %v8859 = vunpack.c.l.b16 %v8343
    %v8860 = vunpack.c.l.b16 %v8344
    %v8861 = vunpack.c.l.b16 %v8345
    %v8862 = vunpack.c.l.b16 %v8346
    %v8863 = vunpack.c.l.b16 %v8347
    %v8864 = vunpack.c.l.b16 %v8348
    %v8865 = vunpack.c.l.b16 %v8349
    %v8866 = vunpack.c.l.b16 %v8350
    %v8867 = vunpack.c.l.b16 %v8351
    %v8868 = vunpack.c.l.b16 %v8352
    %v8869 = vunpack.c.l.b16 %v8353
    %v8870 = vunpack.c.l.b16 %v8354
    %v8871 = vunpack.c.l.b16 %v8355
    %v8872 = vunpack.c.l.b16 %v8356
    %v8873 = vunpack.c.l.b16 %v8357
    %v8874 = vunpack.c.l.b16 %v8358
    %v8875 = vunpack.c.l.b16 %v8359
    %v8876 = vunpack.c.l.b16 %v8360
    %v8877 = vunpack.c.l.b16 %v8361
    %v8878 = vunpack.c.l.b16 %v8362
    %v8879 = vunpack.c.l.b16 %v8363
    %v8880 = vunpack.c.l.b16 %v8364
    %v8881 = vunpack.c.l.b16 %v8365
    %v8882 = vunpack.c.l.b16 %v8366
    %v8883 = vunpack.c.l.b16 %v8367
    %v8884 = vunpack.c.l.b16 %v8368
    %v8885 = vunpack.c.l.b16 %v8369
    %v8886 = vunpack.c.l.b16 %v8370
    %v8887 = vunpack.c.l.b16 %v8371
    %v8888 = vunpack.c.l.b16 %v8372
    %v8889 = vunpack.c.l.b16 %v8373
    %v8890 = vunpack.c.l.b16 %v8374
    %v8891 = vunpack.c.l.b16 %v8375
    %v8892 = vunpack.c.l.b16 %v8376
    %v8893 = vunpack.c.l.b16 %v8377
    %v8894 = vunpack.c.l.b16 %v8378
    %v8895 = vunpack.c.l.b16 %v8379
    %v8896 = vunpack.c.l.b16 %v8380
    %v8897 = vunpack.c.l.b16 %v8381
    %v8898 = vunpack.c.l.b16 %v8382
    %v8899 = vunpack.c.l.b16 %v8383
    %v8900 = vunpack.c.l.b16 %v8384
    %v8901 = vunpack.c.l.b16 %v8385
    %v8902 = vunpack.c.l.b16 %v8386
    %v8903 = vunpack.c.l.b16 %v8387
    %v8904 = vunpack.c.l.b16 %v8388
    %v8905 = vunpack.c.l.b16 %v8389
    %v8906 = vunpack.c.l.b16 %v8390
    %v8907 = vunpack.c.l.b16 %v8391
    %v8908 = vunpack.c.l.b16 %v8392
    %v8909 = vunpack.c.l.b16 %v8393
    %v8910 = vunpack.c.l.b16 %v8394
    %v8911 = vunpack.c.l.b16 %v8395
    %v8912 = vunpack.c.l.b16 %v8396
    %v8913 = vunpack.c.l.b16 %v8397
    %v8914 = vunpack.c.l.b16 %v8398
    %v8915 = vunpack.c.l.b16 %v8399
    %v8916 = vunpack.c.l.b16 %v8400
    %v8917 = vunpack.c.l.b16 %v8401
    %v8918 = vunpack.c.l.b16 %v8402
    %v8919 = vunpack.c.l.b16 %v8403
    %v8920 = vunpack.c.l.b16 %v8404
    %v8921 = vunpack.c.l.b16 %v8405
    %v8922 = vunpack.c.l.b16 %v8406
    %v8923 = vunpack.c.l.b16 %v8407
    %v8924 = vunpack.c.l.b16 %v8408
    %v8925 = vunpack.c.l.b16 %v8409
    %v8926 = vunpack.c.l.b16 %v8410
    %v8927 = vunpack.c.l.b16 %v8411
    %v8928 = vunpack.c.l.b16 %v8412
    %v8929 = vunpack.c.l.b16 %v8413
    %v8930 = vunpack.c.l.b16 %v8414
    %v8931 = vunpack.c.l.b16 %v8415
    %v8932 = vunpack.c.l.b16 %v8416
    %v8933 = vunpack.c.l.b16 %v8417
    %v8934 = vunpack.c.l.b16 %v8418
    %v8935 = vunpack.c.l.b16 %v8419
    %v8936 = vunpack.c.l.b16 %v8420
    %v8937 = vunpack.c.l.b16 %v8421
    %v8938 = vunpack.c.l.b16 %v8422
    %v8939 = vunpack.c.l.b16 %v8423
    %v8940 = vunpack.c.l.b16 %v8424
    %v8941 = vunpack.c.l.b16 %v8425
    %v8942 = vunpack.c.l.b16 %v8426
    %v8943 = vunpack.c.l.b16 %v8427
    %v8944 = vunpack.c.l.b16 %v8428
    %v8945 = vunpack.c.l.b16 %v8429
    %v8946 = vunpack.c.l.b16 %v8430
    %v8947 = vunpack.c.l.b16 %v8431
    %v8948 = vunpack.c.l.b16 %v8432
    %v8949 = vunpack.c.l.b16 %v8433
    %v8950 = vunpack.c.l.b16 %v8434
    %v8951 = vunpack.c.l.b16 %v8435
    %v8952 = vunpack.c.l.b16 %v8436
    %v8953 = vunpack.c.l.b16 %v8437
    %v8954 = vunpack.c.l.b16 %v8438
    %v8955 = vunpack.c.l.b16 %v8439
    %v8956 = vunpack.c.l.b16 %v8440
    %v8957 = vunpack.c.l.b16 %v8441
    %v8958 = vunpack.c.l.b16 %v8442
    %v8959 = vunpack.c.l.b16 %v8443
    %v8960 = vunpack.c.l.b16 %v8444
    %v8961 = vunpack.c.l.b16 %v8445
    %v8962 = vunpack.c.l.b16 %v8446
    %v8963 = vunpack.c.l.b16 %v8447
    %v8964 = vunpack.c.l.b16 %v8448
    %v8965 = vunpack.c.l.b16 %v8449
    %v8966 = vunpack.c.l.b16 %v8450
    %v8967 = vunpack.c.l.b16 %v8451
    %v8968 = vunpack.c.l.b16 %v8452
    %v8969 = vunpack.c.l.b16 %v8453
    %v8970 = vunpack.c.l.b16 %v8454
    %v8971 = vunpack.c.l.b16 %v8455
    %v8972 = vunpack.c.l.b16 %v8456
    %v8973 = vunpack.c.l.b16 %v8457
    %v8974 = vunpack.c.l.b16 %v8458
    %v8975 = vunpack.c.l.b16 %v8459
    %v8976 = vunpack.c.l.b16 %v8460
    %v8977 = vunpack.c.l.b16 %v8461
    %v8978 = vunpack.c.l.b16 %v8462
    %v8979 = vunpack.c.l.b16 %v8463
    %v8980 = vunpack.c.l.b16 %v8464
    %v8981 = vunpack.c.l.b16 %v8465
    %v8982 = vunpack.c.l.b16 %v8466
    %v8983 = vunpack.c.l.b16 %v8467
    %v8984 = vunpack.c.l.b16 %v8468
    %v8985 = vunpack.c.l.b16 %v8469
    %v8986 = vunpack.c.l.b16 %v8470
    %v8987 = vunpack.c.l.b16 %v8471
    %v8988 = vunpack.c.l.b16 %v8472
    %v8989 = vunpack.c.l.b16 %v8473
    %v8990 = vunpack.c.l.b16 %v8474
    %v8991 = vunpack.c.l.b16 %v8475
    %v8992 = vunpack.c.l.b16 %v8476
    %v8993 = vunpack.c.l.b16 %v8477
    %v8994 = vunpack.c.l.b16 %v8478
    %v8995 = vunpack.c.l.b16 %v8479
    %v8996 = vunpack.c.l.b16 %v8480
    %v8997 = vunpack.c.l.b16 %v8481
    %v8998 = vunpack.c.l.b16 %v8482
    %v8999 = vunpack.c.l.b16 %v8483
    %v9000 = vunpack.c.l.b16 %v8484
    %v9001 = vunpack.c.l.b16 %v8485
    %v9002 = vunpack.c.l.b16 %v8486
    %v9003 = vunpack.c.l.b16 %v8487
    %v9004 = vunpack.c.l.b16 %v8488
    %v9005 = vunpack.c.l.b16 %v8489
    %v9006 = vunpack.c.l.b16 %v8490
    %v9007 = vunpack.c.l.b16 %v8491
    %v9008 = vunpack.c.l.b16 %v8492
    %v9009 = vunpack.c.l.b16 %v8493
    %v9010 = vunpack.c.l.b16 %v8494
    %v9011 = vunpack.c.l.b16 %v8495
    %v9012 = vunpack.c.l.b16 %v8496
    %v9013 = vunpack.c.l.b16 %v8497
    %v9014 = vunpack.c.l.b16 %v8498
    %v9015 = vunpack.c.l.b16 %v8499
    %v9016 = vunpack.c.l.b16 %v8500
    %v9017 = vunpack.c.l.b16 %v8501
    %v9018 = vunpack.c.l.b16 %v8502
    %v9019 = vunpack.c.l.b16 %v8503
    %v9020 = vunpack.c.l.b16 %v8504
    %v9021 = vunpack.c.l.b16 %v8505
    %v9022 = vunpack.c.l.b16 %v8506
    %v9023 = vunpack.c.l.b16 %v8507
    %v9024 = vunpack.c.l.b16 %v8508
    %v9025 = vunpack.c.l.b16 %v8509
    %v9026 = vunpack.c.l.b16 %v8510
    %v9027 = vunpack.c.l.b16 %v8511
    %v9028 = vunpack.c.l.b16 %v8512
    %v9029 = vunpack.c.l.b16 %v8513
    %v9030 = vunpack.c.l.b16 %v8514
    %v9031 = vunpack.c.l.b16 %v8515
    %v9032 = vunpack.c.l.b16 %v8516
    %v9033 = vunpack.c.l.b16 %v8517
    %v9034 = vunpack.c.l.b16 %v8518
    %v9035 = vunpack.c.l.b16 %v8519
    %v9036 = vunpack.c.l.b16 %v8520
    %v9037 = vunpack.c.l.b16 %v8521
    %v9038 = vunpack.c.l.b16 %v8522
    %v9039 = vunpack.c.l.b16 %v8523
    %v9040 = vunpack.c.l.b16 %v8524
    %v9041 = vpack.c.b16 %v8786, %v8785
    %v9042 = vpack.c.b16 %v8788, %v8787
    %v9043 = vpack.c.b16 %v8790, %v8789
    %v9044 = vpack.c.b16 %v8792, %v8791
    %v9045 = vpack.c.b16 %v8794, %v8793
    %v9046 = vpack.c.b16 %v8796, %v8795
    %v9047 = vpack.c.b16 %v8798, %v8797
    %v9048 = vpack.c.b16 %v8800, %v8799
    %v9049 = vpack.c.b16 %v8802, %v8801
    %v9050 = vpack.c.b16 %v8804, %v8803
    %v9051 = vpack.c.b16 %v8806, %v8805
    %v9052 = vpack.c.b16 %v8808, %v8807
    %v9053 = vpack.c.b16 %v8810, %v8809
    %v9054 = vpack.c.b16 %v8812, %v8811
    %v9055 = vpack.c.b16 %v8814, %v8813
    %v9056 = vpack.c.b16 %v8816, %v8815
    %v9057 = vpack.c.b16 %v8818, %v8817
    %v9058 = vpack.c.b16 %v8820, %v8819
    %v9059 = vpack.c.b16 %v8822, %v8821
    %v9060 = vpack.c.b16 %v8824, %v8823
    %v9061 = vpack.c.b16 %v8826, %v8825
    %v9062 = vpack.c.b16 %v8828, %v8827
    %v9063 = vpack.c.b16 %v8830, %v8829
    %v9064 = vpack.c.b16 %v8832, %v8831
    %v9065 = vpack.c.b16 %v8834, %v8833
    %v9066 = vpack.c.b16 %v8836, %v8835
    %v9067 = vpack.c.b16 %v8838, %v8837
    %v9068 = vpack.c.b16 %v8840, %v8839
    %v9069 = vpack.c.b16 %v8842, %v8841
    %v9070 = vpack.c.b16 %v8844, %v8843
    %v9071 = vpack.c.b16 %v8846, %v8845
    %v9072 = vpack.c.b16 %v8848, %v8847
    %v9073 = vpack.c.b16 %v8850, %v8849
    %v9074 = vpack.c.b16 %v8852, %v8851
    %v9075 = vpack.c.b16 %v8854, %v8853
    %v9076 = vpack.c.b16 %v8856, %v8855
    %v9077 = vpack.c.b16 %v8858, %v8857
    %v9078 = vpack.c.b16 %v8860, %v8859
    %v9079 = vpack.c.b16 %v8862, %v8861
    %v9080 = vpack.c.b16 %v8864, %v8863
    %v9081 = vpack.c.b16 %v8866, %v8865
    %v9082 = vpack.c.b16 %v8868, %v8867
    %v9083 = vpack.c.b16 %v8870, %v8869
    %v9084 = vpack.c.b16 %v8872, %v8871
    %v9085 = vpack.c.b16 %v8874, %v8873
    %v9086 = vpack.c.b16 %v8876, %v8875
    %v9087 = vpack.c.b16 %v8878, %v8877
    %v9088 = vpack.c.b16 %v8880, %v8879
    %v9089 = vpack.c.b16 %v8882, %v8881
    %v9090 = vpack.c.b16 %v8884, %v8883
    %v9091 = vpack.c.b16 %v8886, %v8885
    %v9092 = vpack.c.b16 %v8888, %v8887
    %v9093 = vpack.c.b16 %v8890, %v8889
    %v9094 = vpack.c.b16 %v8892, %v8891
    %v9095 = vpack.c.b16 %v8894, %v8893
    %v9096 = vpack.c.b16 %v8896, %v8895
    %v9097 = vpack.c.b16 %v8898, %v8897
    %v9098 = vpack.c.b16 %v8900, %v8899
    %v9099 = vpack.c.b16 %v8902, %v8901
    %v9100 = vpack.c.b16 %v8904, %v8903
    %v9101 = vpack.c.b16 %v8906, %v8905
    %v9102 = vpack.c.b16 %v8908, %v8907
    %v9103 = vpack.c.b16 %v8910, %v8909
    %v9104 = vpack.c.b16 %v8912, %v8911
    %v9105 = vpack.c.b16 %v8914, %v8913
    %v9106 = vpack.c.b16 %v8916, %v8915
    %v9107 = vpack.c.b16 %v8918, %v8917
    %v9108 = vpack.c.b16 %v8920, %v8919
    %v9109 = vpack.c.b16 %v8922, %v8921
    %v9110 = vpack.c.b16 %v8924, %v8923
    %v9111 = vpack.c.b16 %v8926, %v8925
    %v9112 = vpack.c.b16 %v8928, %v8927
    %v9113 = vpack.c.b16 %v8930, %v8929
    %v9114 = vpack.c.b16 %v8932, %v8931
    %v9115 = vpack.c.b16 %v8934, %v8933
    %v9116 = vpack.c.b16 %v8936, %v8935
    %v9117 = vpack.c.b16 %v8938, %v8937
    %v9118 = vpack.c.b16 %v8940, %v8939
    %v9119 = vpack.c.b16 %v8942, %v8941
    %v9120 = vpack.c.b16 %v8944, %v8943
    %v9121 = vpack.c.b16 %v8946, %v8945
    %v9122 = vpack.c.b16 %v8948, %v8947
    %v9123 = vpack.c.b16 %v8950, %v8949
    %v9124 = vpack.c.b16 %v8952, %v8951
    %v9125 = vpack.c.b16 %v8954, %v8953
    %v9126 = vpack.c.b16 %v8956, %v8955
    %v9127 = vpack.c.b16 %v8958, %v8957
    %v9128 = vpack.c.b16 %v8960, %v8959
    %v9129 = vpack.c.b16 %v8962, %v8961
    %v9130 = vpack.c.b16 %v8964, %v8963
    %v9131 = vpack.c.b16 %v8966, %v8965
    %v9132 = vpack.c.b16 %v8968, %v8967
    %v9133 = vpack.c.b16 %v8970, %v8969
    %v9134 = vpack.c.b16 %v8972, %v8971
    %v9135 = vpack.c.b16 %v8974, %v8973
    %v9136 = vpack.c.b16 %v8976, %v8975
    %v9137 = vpack.c.b16 %v8978, %v8977
    %v9138 = vpack.c.b16 %v8980, %v8979
    %v9139 = vpack.c.b16 %v8982, %v8981
    %v9140 = vpack.c.b16 %v8984, %v8983
    %v9141 = vpack.c.b16 %v8986, %v8985
    %v9142 = vpack.c.b16 %v8988, %v8987
    %v9143 = vpack.c.b16 %v8990, %v8989
    %v9144 = vpack.c.b16 %v8992, %v8991
    %v9145 = vpack.c.b16 %v8994, %v8993
    %v9146 = vpack.c.b16 %v8996, %v8995
    %v9147 = vpack.c.b16 %v8998, %v8997
    %v9148 = vpack.c.b16 %v9000, %v8999
    %v9149 = vpack.c.b16 %v9002, %v9001
    %v9150 = vpack.c.b16 %v9004, %v9003
    %v9151 = vpack.c.b16 %v9006, %v9005
    %v9152 = vpack.c.b16 %v9008, %v9007
    %v9153 = vpack.c.b16 %v9010, %v9009
    %v9154 = vpack.c.b16 %v9012, %v9011
    %v9155 = vpack.c.b16 %v9014, %v9013
    %v9156 = vpack.c.b16 %v9016, %v9015
    %v9157 = vpack.c.b16 %v9018, %v9017
    %v9158 = vpack.c.b16 %v9020, %v9019
    %v9159 = vpack.c.b16 %v9022, %v9021
    %v9160 = vpack.c.b16 %v9024, %v9023
    %v9161 = vpack.c.b16 %v9026, %v9025
    %v9162 = vpack.c.b16 %v9028, %v9027
    %v9163 = vpack.c.b16 %v9030, %v9029
    %v9164 = vpack.c.b16 %v9032, %v9031
    %v9165 = vpack.c.b16 %v9034, %v9033
    %v9166 = vpack.c.b16 %v9036, %v9035
    %v9167 = vpack.c.b16 %v9038, %v9037
    %v9168 = vpack.c.b16 %v9040, %v9039
    %9297 = vmatpush.bf16.msra.mxu0 %v9048
    %9298 = vmatpush.bf16.msra.mxu0 %v9047
    %9299 = vmatpush.bf16.msra.mxu0 %v9046
    %9300 = vmatpush.bf16.msra.mxu0 %v9045
    %9301 = vmatpush.bf16.msra.mxu0 %v9044
    %9302 = vmatpush.bf16.msra.mxu0 %v9043
    %9303 = vmatpush.bf16.msra.mxu0 %v9042
    %9304 = vmatpush.bf16.msra.mxu0 %v9041
    %9305 = vmatmul.bf16.gmra.mxu0 %v8253
    %v9306 = vpop.f32.mrf.mxu0
    %v9307 = vadd.f32 %v8527, %v9306
    %v9308 = vpop.f32.mrf.mxu0
    %9309 = vdwg.mxu0
    %9310 = vmatpush.bf16.msra.mxu0 %v9056
    %9311 = vmatpush.bf16.msra.mxu0 %v9055
    %9312 = vmatpush.bf16.msra.mxu0 %v9054
    %9313 = vmatpush.bf16.msra.mxu0 %v9053
    %9314 = vmatpush.bf16.msra.mxu0 %v9052
    %9315 = vmatpush.bf16.msra.mxu0 %v9051
    %9316 = vmatpush.bf16.msra.mxu0 %v9050
    %9317 = vmatpush.bf16.msra.mxu0 %v9049
    %9318 = vmatmul.bf16.gmra.mxu0 %v8254
    %v9319 = vpop.f32.mrf.mxu0
    %v9320 = vadd.f32 %v9307, %v9319
    %v9321 = vpop.f32.mrf.mxu0
    %9322 = vdwg.mxu0
    %9323 = vmatpush.bf16.msra.mxu0 %v9064
    %9324 = vmatpush.bf16.msra.mxu0 %v9063
    %9325 = vmatpush.bf16.msra.mxu0 %v9062
    %9326 = vmatpush.bf16.msra.mxu0 %v9061
    %9327 = vmatpush.bf16.msra.mxu0 %v9060
    %9328 = vmatpush.bf16.msra.mxu0 %v9059
    %9329 = vmatpush.bf16.msra.mxu0 %v9058
    %9330 = vmatpush.bf16.msra.mxu0 %v9057
    %9331 = vmatmul.bf16.gmra.mxu0 %v8255
    %v9332 = vpop.f32.mrf.mxu0
    %v9333 = vadd.f32 %v9320, %v9332
    %v9334 = vpop.f32.mrf.mxu0
    %9335 = vdwg.mxu0
    %9336 = vmatpush.bf16.msra.mxu0 %v9072
    %9337 = vmatpush.bf16.msra.mxu0 %v9071
    %9338 = vmatpush.bf16.msra.mxu0 %v9070
    %9339 = vmatpush.bf16.msra.mxu0 %v9069
    %9340 = vmatpush.bf16.msra.mxu0 %v9068
    %9341 = vmatpush.bf16.msra.mxu0 %v9067
    %9342 = vmatpush.bf16.msra.mxu0 %v9066
    %9343 = vmatpush.bf16.msra.mxu0 %v9065
    %9344 = vmatmul.bf16.gmra.mxu0 %v8256
    %v9345 = vpop.f32.mrf.mxu0
    %v9346 = vadd.f32 %v9333, %v9345
    %v9347 = vpop.f32.mrf.mxu0
    %9348 = vdwg.mxu0
    %9349 = vmatpush.bf16.msra.mxu0 %v9080
    %9350 = vmatpush.bf16.msra.mxu0 %v9079
    %9351 = vmatpush.bf16.msra.mxu0 %v9078
    %9352 = vmatpush.bf16.msra.mxu0 %v9077
    %9353 = vmatpush.bf16.msra.mxu0 %v9076
    %9354 = vmatpush.bf16.msra.mxu0 %v9075
    %9355 = vmatpush.bf16.msra.mxu0 %v9074
    %9356 = vmatpush.bf16.msra.mxu0 %v9073
    %9357 = vmatmul.bf16.gmra.mxu0 %v8257
    %v9358 = vpop.f32.mrf.mxu0
    %v9359 = vadd.f32 %v9346, %v9358
    %v9360 = vpop.f32.mrf.mxu0
    %9361 = vdwg.mxu0
    %9362 = vmatpush.bf16.msra.mxu0 %v9088
    %9363 = vmatpush.bf16.msra.mxu0 %v9087
    %9364 = vmatpush.bf16.msra.mxu0 %v9086
    %9365 = vmatpush.bf16.msra.mxu0 %v9085
    %9366 = vmatpush.bf16.msra.mxu0 %v9084
    %9367 = vmatpush.bf16.msra.mxu0 %v9083
    %9368 = vmatpush.bf16.msra.mxu0 %v9082
    %9369 = vmatpush.bf16.msra.mxu0 %v9081
    %9370 = vmatmul.bf16.gmra.mxu0 %v8258
    %v9371 = vpop.f32.mrf.mxu0
    %v9372 = vadd.f32 %v9359, %v9371
    %v9373 = vpop.f32.mrf.mxu0
    %9374 = vdwg.mxu0
    %9375 = vmatpush.bf16.msra.mxu0 %v9096
    %9376 = vmatpush.bf16.msra.mxu0 %v9095
    %9377 = vmatpush.bf16.msra.mxu0 %v9094
    %9378 = vmatpush.bf16.msra.mxu0 %v9093
    %9379 = vmatpush.bf16.msra.mxu0 %v9092
    %9380 = vmatpush.bf16.msra.mxu0 %v9091
    %9381 = vmatpush.bf16.msra.mxu0 %v9090
    %9382 = vmatpush.bf16.msra.mxu0 %v9089
    %9383 = vmatmul.bf16.gmra.mxu0 %v8259
    %v9384 = vpop.f32.mrf.mxu0
    %v9385 = vadd.f32 %v9372, %v9384
    %v9386 = vpop.f32.mrf.mxu0
    %9387 = vdwg.mxu0
    %9388 = vmatpush.bf16.msra.mxu0 %v9104
    %9389 = vmatpush.bf16.msra.mxu0 %v9103
    %9390 = vmatpush.bf16.msra.mxu0 %v9102
    %9391 = vmatpush.bf16.msra.mxu0 %v9101
    %9392 = vmatpush.bf16.msra.mxu0 %v9100
    %9393 = vmatpush.bf16.msra.mxu0 %v9099
    %9394 = vmatpush.bf16.msra.mxu0 %v9098
    %9395 = vmatpush.bf16.msra.mxu0 %v9097
    %9396 = vmatmul.bf16.gmra.mxu0 %v8260
    %v9397 = vpop.f32.mrf.mxu0
    %v9398 = vadd.f32 %v9385, %v9397
    %v9399 = vpop.f32.mrf.mxu0
    %9400 = vdwg.mxu0
    %9401 = vmatpush.bf16.msra.mxu0 %v9112
    %9402 = vmatpush.bf16.msra.mxu0 %v9111
    %9403 = vmatpush.bf16.msra.mxu0 %v9110
    %9404 = vmatpush.bf16.msra.mxu0 %v9109
    %9405 = vmatpush.bf16.msra.mxu0 %v9108
    %9406 = vmatpush.bf16.msra.mxu0 %v9107
    %9407 = vmatpush.bf16.msra.mxu0 %v9106
    %9408 = vmatpush.bf16.msra.mxu0 %v9105
    %9409 = vmatmul.bf16.gmra.mxu0 %v8261
    %v9410 = vpop.f32.mrf.mxu0
    %v9411 = vadd.f32 %v9398, %v9410
    %v9412 = vpop.f32.mrf.mxu0
    %9413 = vdwg.mxu0
    %9414 = vmatpush.bf16.msra.mxu0 %v9120
    %9415 = vmatpush.bf16.msra.mxu0 %v9119
    %9416 = vmatpush.bf16.msra.mxu0 %v9118
    %9417 = vmatpush.bf16.msra.mxu0 %v9117
    %9418 = vmatpush.bf16.msra.mxu0 %v9116
    %9419 = vmatpush.bf16.msra.mxu0 %v9115
    %9420 = vmatpush.bf16.msra.mxu0 %v9114
    %9421 = vmatpush.bf16.msra.mxu0 %v9113
    %9422 = vmatmul.bf16.gmra.mxu0 %v8262
    %v9423 = vpop.f32.mrf.mxu0
    %v9424 = vadd.f32 %v9411, %v9423
    %v9425 = vpop.f32.mrf.mxu0
    %9426 = vdwg.mxu0
    %9427 = vmatpush.bf16.msra.mxu0 %v9128
    %9428 = vmatpush.bf16.msra.mxu0 %v9127
    %9429 = vmatpush.bf16.msra.mxu0 %v9126
    %9430 = vmatpush.bf16.msra.mxu0 %v9125
    %9431 = vmatpush.bf16.msra.mxu0 %v9124
    %9432 = vmatpush.bf16.msra.mxu0 %v9123
    %9433 = vmatpush.bf16.msra.mxu0 %v9122
    %9434 = vmatpush.bf16.msra.mxu0 %v9121
    %9435 = vmatmul.bf16.gmra.mxu0 %v8263
    %v9436 = vpop.f32.mrf.mxu0
    %v9437 = vadd.f32 %v9424, %v9436
    %v9438 = vpop.f32.mrf.mxu0
    %9439 = vdwg.mxu0
    %9440 = vmatpush.bf16.msra.mxu0 %v9136
    %9441 = vmatpush.bf16.msra.mxu0 %v9135
    %9442 = vmatpush.bf16.msra.mxu0 %v9134
    %9443 = vmatpush.bf16.msra.mxu0 %v9133
    %9444 = vmatpush.bf16.msra.mxu0 %v9132
    %9445 = vmatpush.bf16.msra.mxu0 %v9131
    %9446 = vmatpush.bf16.msra.mxu0 %v9130
    %9447 = vmatpush.bf16.msra.mxu0 %v9129
    %9448 = vmatmul.bf16.gmra.mxu0 %v8264
    %v9449 = vpop.f32.mrf.mxu0
    %v9450 = vadd.f32 %v9437, %v9449
    %v9451 = vpop.f32.mrf.mxu0
    %9452 = vdwg.mxu0
    %9453 = vmatpush.bf16.msra.mxu0 %v9144
    %9454 = vmatpush.bf16.msra.mxu0 %v9143
    %9455 = vmatpush.bf16.msra.mxu0 %v9142
    %9456 = vmatpush.bf16.msra.mxu0 %v9141
    %9457 = vmatpush.bf16.msra.mxu0 %v9140
    %9458 = vmatpush.bf16.msra.mxu0 %v9139
    %9459 = vmatpush.bf16.msra.mxu0 %v9138
    %9460 = vmatpush.bf16.msra.mxu0 %v9137
    %9461 = vmatmul.bf16.gmra.mxu0 %v8265
    %v9462 = vpop.f32.mrf.mxu0
    %v9463 = vadd.f32 %v9450, %v9462
    %v9464 = vpop.f32.mrf.mxu0
    %9465 = vdwg.mxu0
    %9466 = vmatpush.bf16.msra.mxu0 %v9152
    %9467 = vmatpush.bf16.msra.mxu0 %v9151
    %9468 = vmatpush.bf16.msra.mxu0 %v9150
    %9469 = vmatpush.bf16.msra.mxu0 %v9149
    %9470 = vmatpush.bf16.msra.mxu0 %v9148
    %9471 = vmatpush.bf16.msra.mxu0 %v9147
    %9472 = vmatpush.bf16.msra.mxu0 %v9146
    %9473 = vmatpush.bf16.msra.mxu0 %v9145
    %9474 = vmatmul.bf16.gmra.mxu0 %v8266
    %v9475 = vpop.f32.mrf.mxu0
    %v9476 = vadd.f32 %v9463, %v9475
    %v9477 = vpop.f32.mrf.mxu0
    %9478 = vdwg.mxu0
    %9479 = vmatpush.bf16.msra.mxu0 %v9160
    %9480 = vmatpush.bf16.msra.mxu0 %v9159
    %9481 = vmatpush.bf16.msra.mxu0 %v9158
    %9482 = vmatpush.bf16.msra.mxu0 %v9157
    %9483 = vmatpush.bf16.msra.mxu0 %v9156
    %9484 = vmatpush.bf16.msra.mxu0 %v9155
    %9485 = vmatpush.bf16.msra.mxu0 %v9154
    %9486 = vmatpush.bf16.msra.mxu0 %v9153
    %9487 = vmatmul.bf16.gmra.mxu0 %v8267
    %v9488 = vpop.f32.mrf.mxu0
    %v9489 = vadd.f32 %v9476, %v9488
    %v9490 = vpop.f32.mrf.mxu0
    %9491 = vdwg.mxu0
    %9492 = vmatpush.bf16.msra.mxu0 %v9168
    %9493 = vmatpush.bf16.msra.mxu0 %v9167
    %9494 = vmatpush.bf16.msra.mxu0 %v9166
    %9495 = vmatpush.bf16.msra.mxu0 %v9165
    %9496 = vmatpush.bf16.msra.mxu0 %v9164
    %9497 = vmatpush.bf16.msra.mxu0 %v9163
    %9498 = vmatpush.bf16.msra.mxu0 %v9162
    %9499 = vmatpush.bf16.msra.mxu0 %v9161
    %9500 = vmatmul.bf16.gmra.mxu0 %v8268
    %v9501 = vpop.f32.mrf.mxu0
    %v9502 = vadd.f32 %v9489, %v9501
    %v9503 = vpop.f32.mrf.mxu0
    %9504 = vdwg.mxu0
    %v9505 = vpack.c.bf16 %v9502, %v9502
    %v9506 = vld [vmem:[#allocation28] sm:$0xf]
    %v9507 = vld [vmem:[#allocation28 + $0x4] sm:$0xf]
    %v9508 = vld [vmem:[#allocation28 + $0x8] sm:$0xf]
    %v9509 = vld [vmem:[#allocation28 + $0xc] sm:$0xf]
    %v9510 = vld [vmem:[#allocation28 + $0x10] sm:$0xf]
    %v9511 = vld [vmem:[#allocation28 + $0x14] sm:$0xf]
    %v9512 = vld [vmem:[#allocation28 + $0x18] sm:$0xf]
    %v9513 = vld [vmem:[#allocation28 + $0x1c] sm:$0xf]
    %v9514 = vld [vmem:[#allocation28 + $0x20] sm:$0xf]
    %v9515 = vld [vmem:[#allocation28 + $0x24] sm:$0xf]
    %v9516 = vld [vmem:[#allocation28 + $0x28] sm:$0xf]
    %v9517 = vld [vmem:[#allocation28 + $0x2c] sm:$0xf]
    %v9518 = vld [vmem:[#allocation28 + $0x30] sm:$0xf]
    %v9519 = vld [vmem:[#allocation28 + $0x34] sm:$0xf]
    %v9520 = vld [vmem:[#allocation28 + $0x38] sm:$0xf]
    %v9521 = vld [vmem:[#allocation28 + $0x3c] sm:$0xf]
    %v9522 = vld [vmem:[%s21] sm:$0x1]
    %v9524 = vperm.slane %v9522, 0
    %v9542 = vunpack.c.l.b16 %v9506
    %v9543 = vunpack.c.l.b16 %v9507
    %v9544 = vunpack.c.l.b16 %v9508
    %v9545 = vunpack.c.l.b16 %v9509
    %v9546 = vunpack.c.l.b16 %v9510
    %v9547 = vunpack.c.l.b16 %v9511
    %v9548 = vunpack.c.l.b16 %v9512
    %v9549 = vunpack.c.l.b16 %v9513
    %v9550 = vunpack.c.l.b16 %v9514
    %v9551 = vunpack.c.l.b16 %v9515
    %v9552 = vunpack.c.l.b16 %v9516
    %v9553 = vunpack.c.l.b16 %v9517
    %v9554 = vunpack.c.l.b16 %v9518
    %v9555 = vunpack.c.l.b16 %v9519
    %v9556 = vunpack.c.l.b16 %v9520
    %v9557 = vunpack.c.l.b16 %v9521
    %v9558 = vpack.c.b16 %v9543, %v9542
    %v9559 = vpack.c.b16 %v9545, %v9544
    %v9560 = vpack.c.b16 %v9547, %v9546
    %v9561 = vpack.c.b16 %v9549, %v9548
    %v9562 = vpack.c.b16 %v9551, %v9550
    %v9563 = vpack.c.b16 %v9553, %v9552
    %v9564 = vpack.c.b16 %v9555, %v9554
    %v9565 = vpack.c.b16 %v9557, %v9556
    %9574 = vmatpush.bf16.msra.mxu0 %v9565
    %9575 = vmatpush.bf16.msra.mxu0 %v9564
    %9576 = vmatpush.bf16.msra.mxu0 %v9563
    %9577 = vmatpush.bf16.msra.mxu0 %v9562
    %9578 = vmatpush.bf16.msra.mxu0 %v9561
    %9579 = vmatpush.bf16.msra.mxu0 %v9560
    %9580 = vmatpush.bf16.msra.mxu0 %v9559
    %9581 = vmatpush.bf16.msra.mxu0 %v9558
    %9582 = vmatmul.bf16.gmra.mxu0 %v9505
    %v9583 = vpop.f32.mrf.mxu0
    %v9584 = vadd.f32 %v9524, %v9583
    %v9585 = vpop.f32.mrf.mxu0
    %9586 = vdwg.mxu0
    %9587 = vst [vmem:[#allocation29] sm:$0x3] %v9584
    // Predicated region
    $region158: #{tpu_custom_call.1} parent=1 // pred_check
      _
    $region159: #{tpu_custom_call.1} parent=1 // pred_check_branch
      %9589 = sbr.rel (0) target = $region161
    $region160: #{tpu_custom_call.1} parent=1 // pred_region
      %9591 = vsyncadd [#allocation4], 0
      %s9593 = sshll.u32 [#allocation29], 4
      %s9594 = int_to_ptr.vmem [resolvable:$true] %s9593
      %s9595 = sshll.u32 %s22, 4
      %s9596 = int_to_ptr.hbm [resolvable:$true] %s9595
      %9598 = dma.vmem_to_hbm [thread:$0]  %s9594, 32, %s9596, [#allocation4]
    $region161: #{tpu_custom_call.1} parent=1 // pred_fallthru
      _
    // Predicated region
    $region162: #{tpu_custom_call.1} parent=1 // pred_check
      _
    $region163: #{tpu_custom_call.1} parent=1 // pred_check_branch
      %9600 = sbr.rel (0) target = $region165
    $region164: #{tpu_custom_call.1} parent=1 // pred_region
      %9602 = dma.done [#allocation4], 32
    $region165: #{tpu_custom_call.1} parent=1 // pred_fallthru
      _
    %9603 = vsyncpa [#allocation3], 1
    %9604 = vsyncpa [#allocation6], 1
    %9605 = vsyncpa [#allocation9], 1
    %9606 = vsyncpa [#allocation12], 1
    %9607 = vsyncpa [#allocation15], 1
    %9608 = vsyncpa [#allocation18], 1
    %9609 = vsyncpa [#allocation21], 1
    %9610 = vsyncpa [#allocation24], 1
    %9611 = vsyncpa [#allocation27], 1
    %9612 = vsyncpa [#allocation4], 1

</llo_original>
